<compile_context>
chip_gen: v6e
topology: v6e:2x2x1
jax: 0.10.0
libtpu: 0.0.40
codegen_flags: <defaults>
</compile_context>

<pallas_src>
import functools

import numpy as np
import jax
import jax.numpy as jnp
from jax.experimental import pallas as pl
from jax.experimental.pallas import tpu as pltpu

DEFAULT_TM = 512  # pointwise-CBS M tile (review: 512+ reaches ~85% HBM roofline)


def _round_up(x, m):
    return ((x + m - 1) // m) * m


def _chunk_sizes(out_channels, n):
    sizes = []
    for i in range(n):
        size = out_channels // n
        if i < out_channels % n:
            size += 1
        sizes.append(size)
    return sizes


@functools.lru_cache(maxsize=None)
def _vmem_limit_bytes():
    """Generation-aware scoped-VMEM limit: 64 MiB on 128-MiB v5e/v6e parts,
    conservative 32 MiB elsewhere (v7x only has 64 MiB physical)."""
    try:
        kind = jax.devices()[0].device_kind.lower()
    except Exception:
        kind = ""
    if "v5" in kind or "v6" in kind:
        return 64 * 1024 * 1024
    return 32 * 1024 * 1024


def _compiler_params(n_grid_dims):
    return pltpu.CompilerParams(
        dimension_semantics=("parallel",) * n_grid_dims,
        vmem_limit_bytes=_vmem_limit_bytes(),
    )


# ----------------------------------------------------------------------------
# Kernel 1: in_conv = 1x1 CBS with the channel split fused in.
#   y = SiLU(x @ W * scale + shift); each channel chunk written to its own
#   lane-dense output array (multi-output pallas_call).
# ----------------------------------------------------------------------------
def _make_in_conv_kernel(offsets):
    n_out = len(offsets) - 1

    def kernel(*refs):
        x_ref, w_ref, s_ref, b_ref = refs[:4]
        o_refs = refs[4:4 + n_out]
        y = jnp.dot(x_ref[...], w_ref[...], preferred_element_type=jnp.float32)
        y = y * s_ref[...] + b_ref[...]
        y = y * jax.nn.sigmoid(y)                       # SiLU in f32
        for i in range(n_out):
            o_refs[i][...] = y[:, offsets[i]:offsets[i + 1]].astype(
                o_refs[i].dtype)

    return kernel


def in_conv_split(x2d, w, scale, shift, chunk_sizes, *, act_dtype,
                  tm=DEFAULT_TM):
    M, Cin = x2d.shape
    Cout = w.shape[1]
    offsets = [0]
    for c in chunk_sizes:
        offsets.append(offsets[-1] + int(c))

    tm = min(tm, _round_up(M, 8))
    Mp = _round_up(M, tm)
    if Mp != M:
        x2d = jnp.pad(x2d, ((0, Mp - M), (0, 0)))

    outs = pl.pallas_call(
        _make_in_conv_kernel(tuple(offsets)),
        out_shape=tuple(jax.ShapeDtypeStruct((Mp, c), act_dtype)
                        for c in chunk_sizes),
        grid=(Mp // tm,),
        in_specs=[
            pl.BlockSpec((tm, Cin), lambda i: (i, 0)),
            pl.BlockSpec((Cin, Cout), lambda i: (0, 0)),
            pl.BlockSpec((1, Cout), lambda i: (0, 0)),
            pl.BlockSpec((1, Cout), lambda i: (0, 0)),
        ],
        out_specs=tuple(pl.BlockSpec((tm, c), lambda i: (i, 0))
                        for c in chunk_sizes),
        compiler_params=_compiler_params(1),
    )(x2d, w, scale, shift)
    if Mp != M:
        outs = tuple(o[:M] for o in outs)
    return list(outs)


# ----------------------------------------------------------------------------
# Kernel 2: out_conv = 1x1 CBS over a (virtual) channel concat.
#   out = SiLU((sum_i chunk_i @ W_i) * scale + shift)
# Concat weight is pre-split per chunk in the wrapper (aligned operands).
# ----------------------------------------------------------------------------
def _make_cat_cbs_kernel(n_in):
    def kernel(*refs):
        x_refs = refs[:n_in]
        w_refs = refs[n_in:2 * n_in]
        s_ref, b_ref, o_ref = refs[2 * n_in:2 * n_in + 3]
        acc = jnp.dot(x_refs[0][...], w_refs[0][...],
                      preferred_element_type=jnp.float32)
        for i in range(1, n_in):
            acc = acc + jnp.dot(x_refs[i][...], w_refs[i][...],
                                preferred_element_type=jnp.float32)
        y = acc * s_ref[...] + b_ref[...]
        o_ref[...] = (y * jax.nn.sigmoid(y)).astype(o_ref.dtype)

    return kernel


def concat_conv_bn_silu(chunks, w_parts, scale, shift, *,
                        out_dtype=jnp.float32, tm=DEFAULT_TM):
    M = chunks[0].shape[0]
    Cout = w_parts[0].shape[1]
    tm = min(tm, _round_up(M, 8))
    Mp = _round_up(M, tm)
    if Mp != M:
        chunks = [jnp.pad(c, ((0, Mp - M), (0, 0))) for c in chunks]

    in_specs = [pl.BlockSpec((tm, c.shape[1]), lambda i: (i, 0))
                for c in chunks]
    in_specs += [pl.BlockSpec(w.shape, lambda i: (0, 0)) for w in w_parts]
    in_specs += [pl.BlockSpec((1, Cout), lambda i: (0, 0)),
                 pl.BlockSpec((1, Cout), lambda i: (0, 0))]

    out = pl.pallas_call(
        _make_cat_cbs_kernel(len(chunks)),
        out_shape=jax.ShapeDtypeStruct((Mp, Cout), out_dtype),
        grid=(Mp // tm,),
        in_specs=in_specs,
        out_specs=pl.BlockSpec((tm, Cout), lambda i: (i, 0)),
        compiler_params=_compiler_params(1),
    )(*chunks, *w_parts, scale, shift)
    return out[:M] if Mp != M else out


# ----------------------------------------------------------------------------
# Kernel 3: fused Bottleneck (same in/out channels):
#   out = x + SiLU(BN2(conv3x3(SiLU(BN1(x @ W1)))))
# Layout: (HW, c) rows on sublanes, channels on lanes; grid over batch N.
# 3x3 SAME conv = im2col along W (lane concat of column shifts) followed by
# 3 matmuls (one per row offset) with K = 3c.
# ----------------------------------------------------------------------------
def _make_bottleneck_kernel(H, W):
    HW = H * W

    def kernel(x_ref, w1_ref, s1_ref, b1_ref, w2_ref, s2_ref, b2_ref, o_ref):
        c = x_ref.shape[-1]
        cdt = x_ref.dtype
        x = x_ref[0]                                    # (HW, c)

        # cbs1: 1x1 conv + BN + SiLU (matmul in act dtype, f32 accumulation)
        y = jnp.dot(x, w1_ref[...], preferred_element_type=jnp.float32)
        y = y * s1_ref[...] + b1_ref[...]
        y = y * jax.nn.sigmoid(y)
        y = y.astype(cdt)

        # im2col along W: (left | center | right) column shifts with zero
        # horizontal borders, lane-concatenated -> (HW, 3c) operand.
        y3 = y.reshape(H, W, c)
        zcol = jnp.zeros((H, 1, c), cdt)
        l3 = jnp.concatenate([zcol, y3[:, :W - 1, :]], axis=1)   # column w-1
        r3 = jnp.concatenate([y3[:, 1:, :], zcol], axis=1)       # column w+1
        a = jnp.concatenate([l3, y3, r3], axis=2).reshape(HW, 3 * c)

        # cbs2: 3x3 conv as 3 matmuls (row offsets -1, 0, +1), K = 3c.
        # Vertical zero borders come from the W-row zero blocks (aligned when
        # W is a multiple of 8).
        zrows = jnp.zeros((W, 3 * c), cdt)
        acc = jnp.dot(a, w2_ref[1], preferred_element_type=jnp.float32)
        up = jnp.concatenate([zrows, a[:HW - W, :]], axis=0)     # row h-1
        acc = acc + jnp.dot(up, w2_ref[0], preferred_element_type=jnp.float32)
        dn = jnp.concatenate([a[W:, :], zrows], axis=0)          # row h+1
        acc = acc + jnp.dot(dn, w2_ref[2], preferred_element_type=jnp.float32)

        y2 = acc * s2_ref[...] + b2_ref[...]
        y2 = y2 * jax.nn.sigmoid(y2)

        # residual add in f32, store in activation dtype
        o_ref[0] = (x.astype(jnp.float32) + y2).astype(o_ref.dtype)

    return kernel


def bottleneck_forward(x_im, w1, s1, b1, w2cat, s2, b2, *, H, W):
    N, HW, c = x_im.shape
    return pl.pallas_call(
        _make_bottleneck_kernel(H, W),
        out_shape=jax.ShapeDtypeStruct((N, HW, c), x_im.dtype),
        grid=(N,),
        in_specs=[
            pl.BlockSpec((1, HW, c), lambda n: (n, 0, 0)),
            pl.BlockSpec((c, c), lambda n: (0, 0)),
            pl.BlockSpec((1, c), lambda n: (0, 0)),
            pl.BlockSpec((1, c), lambda n: (0, 0)),
            pl.BlockSpec((3, 3 * c, c), lambda n: (0, 0, 0)),
            pl.BlockSpec((1, c), lambda n: (0, 0)),
            pl.BlockSpec((1, c), lambda n: (0, 0)),
        ],
        out_specs=pl.BlockSpec((1, HW, c), lambda n: (n, 0, 0)),
        compiler_params=_compiler_params(1),
    )(x_im, w1, s1, b1, w2cat, s2, b2)


# ----------------------------------------------------------------------------
# Full C2f forward (NCHW in -> NCHW out); layout glue in plain JAX.
# ----------------------------------------------------------------------------
def c2f_forward(x_nchw, params, *, compute_dtype=jnp.bfloat16, tm=DEFAULT_TM):
    N, Cin, H, W = x_nchw.shape
    Cout = params["w_in"].shape[1]
    n = len(params["bottlenecks"])
    chunk_sizes = _chunk_sizes(Cout, n)
    M = N * H * W
    cdt = compute_dtype

    # NCHW -> (M, Cin) rows with channels on lanes.
    x2d = jnp.transpose(x_nchw, (0, 2, 3, 1)).reshape(M, Cin).astype(cdt)

    # in_conv with fused channel split (each chunk is its own lane-dense array)
    chunks = in_conv_split(x2d, params["w_in"].astype(cdt), params["s_in"],
                           params["b_in"], chunk_sizes, act_dtype=cdt, tm=tm)

    # per-chunk fused bottleneck
    processed = []
    for xc, bp, c in zip(chunks, params["bottlenecks"], chunk_sizes):
        # (3,3,c,c) HWIO -> (3 row-offsets, 3c, c); rows ordered (dw, cin) to
        # match the [left | center | right] lane order of the im2col operand.
        w2cat = bp["w2"].reshape(3, 3 * c, c).astype(cdt)
        p = bottleneck_forward(xc.reshape(N, H * W, c),
                               bp["w1"].astype(cdt), bp["s1"], bp["b1"],
                               w2cat, bp["s2"], bp["b2"], H=H, W=W)
        processed.append(p.reshape(M, c))

    # out_conv with the channel concat fused in; concat weight pre-split per
    # chunk so every kernel operand is sublane/lane aligned.
    cat_chunks = [chunks[0]] + processed
    cat_sizes = [chunk_sizes[0]] + chunk_sizes
    w_out = params["w_out"]
    w_parts, off = [], 0
    for c in cat_sizes:
        w_parts.append(w_out[off:off + c, :].astype(cdt))
        off += c
    out2d = concat_conv_bn_silu(cat_chunks, w_parts, params["s_out"],
                                params["b_out"], out_dtype=jnp.float32, tm=tm)
    return jnp.transpose(out2d.reshape(N, H, W, Cout), (0, 3, 1, 2))


# ----------------------------------------------------------------------------
# Pure-JAX reference (dtype-parametrized to mirror the kernel precision flow)
# ----------------------------------------------------------------------------
def c2f_reference(x_nchw, params, compute_dtype=jnp.float32):
    cdt = compute_dtype
    Cout = params["w_in"].shape[1]
    n = len(params["bottlenecks"])
    chunk_sizes = _chunk_sizes(Cout, n)
    x = jnp.transpose(x_nchw, (0, 2, 3, 1))  # NHWC

    def cbs1x1(x, w, s, b, out_dtype):
        y = jnp.einsum("nhwc,co->nhwo", x.astype(cdt), w.astype(cdt),
                       preferred_element_type=jnp.float32)
        y = y * s.reshape(1, 1, 1, -1) + b.reshape(1, 1, 1, -1)
        return (y * jax.nn.sigmoid(y)).astype(out_dtype)

    def cbs3x3(x, w, s, b, out_dtype):
        y = jax.lax.conv_general_dilated(
            x.astype(cdt), w.astype(cdt), (1, 1), "SAME",
            dimension_numbers=("NHWC", "HWIO", "NHWC"),
            preferred_element_type=jnp.float32)
        y = y * s.reshape(1, 1, 1, -1) + b.reshape(1, 1, 1, -1)
        return (y * jax.nn.sigmoid(y)).astype(out_dtype)

    y = cbs1x1(x, params["w_in"], params["s_in"], params["b_in"], cdt)
    xs, start = [], 0
    for c in chunk_sizes:
        xs.append(y[..., start:start + c])
        start += c
    processed = []
    for xc, bp in zip(xs, params["bottlenecks"]):
        t = cbs1x1(xc, bp["w1"], bp["s1"], bp["b1"], cdt)
        t = cbs3x3(t, bp["w2"], bp["s2"], bp["b2"], jnp.float32)
        processed.append((xc.astype(jnp.float32) + t).astype(cdt))
    cat = jnp.concatenate([xs[0]] + processed, axis=-1)
    out = cbs1x1(cat, params["w_out"], params["s_out"], params["b_out"],
                 jnp.float32)
    return jnp.transpose(out, (0, 3, 1, 2))


# ----------------------------------------------------------------------------
# Deterministic synthetic parameters (folded inference BatchNorm, eps=1e-5)
# ----------------------------------------------------------------------------
def make_params(key, in_channels, out_channels, n=3):
    eps = 1e-5
    chunk_sizes = _chunk_sizes(out_channels, n)
    concat_channels = chunk_sizes[0] + sum(chunk_sizes)
    keys = iter(jax.random.split(key, 64))

    def fold_bn(c):
        gamma = jax.random.uniform(next(keys), (c,), jnp.float32, 0.5, 1.5)
        beta = jax.random.normal(next(keys), (c,), jnp.float32) * 0.1
        mean = jax.random.normal(next(keys), (c,), jnp.float32) * 0.1
        var = jax.random.uniform(next(keys), (c,), jnp.float32, 0.5, 1.5)
        scale = gamma / jnp.sqrt(var + eps)
        shift = beta - mean * scale
        return scale.reshape(1, c), shift.reshape(1, c)

    def w1x1(cin, cout):
        return jax.random.normal(next(keys), (cin, cout),
                                 jnp.float32) / np.sqrt(cin)

    def w3x3(cin, cout):
        return jax.random.normal(next(keys), (3, 3, cin, cout),
                                 jnp.float32) / np.sqrt(9 * cin)

    params = {"w_in": w1x1(in_channels, out_channels)}
    params["s_in"], params["b_in"] = fold_bn(out_channels)
    bns = []
    for c in chunk_sizes:
        bp = {"w1": w1x1(c, c)}
        bp["s1"], bp["b1"] = fold_bn(c)
        bp["w2"] = w3x3(c, c)
        bp["s2"], bp["b2"] = fold_bn(c)
        bns.append(bp)
    params["bottlenecks"] = bns
    params["w_out"] = w1x1(concat_channels, out_channels)
    params["s_out"], params["b_out"] = fold_bn(out_channels)
    return params


if __name__ == "__main__":
    key = jax.random.PRNGKey(0)
    k_x, k_p = jax.random.split(key)

    N, Cin, H, W = 2, 4, 16, 16
    Cout, n = 8, 3
    x = jax.random.normal(k_x, (N, Cin, H, W), jnp.float32)
    params = make_params(k_p, Cin, Cout, n)

    # f32 path: tight structural check against the pure-JAX reference.
    out_f32 = jax.block_until_ready(
        jax.jit(functools.partial(c2f_forward,
                                  compute_dtype=jnp.float32))(x, params))
    ref_f32 = jax.block_until_ready(c2f_reference(x, params, jnp.float32))
    assert out_f32.shape == (N, Cout, H, W), out_f32.shape
    np.testing.assert_allclose(np.asarray(out_f32), np.asarray(ref_f32),
                               rtol=1e-4, atol=1e-4)

    # bf16 path (production config): check against the dtype-matched reference.
    out_bf = jax.block_until_ready(
        jax.jit(functools.partial(c2f_forward,
                                  compute_dtype=jnp.bfloat16))(x, params))
    ref_bf = jax.block_until_ready(c2f_reference(x, params, jnp.bfloat16))
    assert out_bf.shape == (N, Cout, H, W), out_bf.shape
    np.testing.assert_allclose(np.asarray(out_bf), np.asarray(ref_bf),
                               rtol=1e-2, atol=1e-2)

    print("KERNEL_OK")
</pallas_src>

<mosaic_0001>
module attributes {stable_mosaic.version = 11 : i64} {
  func.func @kernel(%arg0: i32, %arg1: memref<512x4xf32, #tpu.memory_space<vmem>>, %arg2: memref<4x8xf32, #tpu.memory_space<vmem>>, %arg3: memref<1x8xf32, #tpu.memory_space<vmem>>, %arg4: memref<1x8xf32, #tpu.memory_space<vmem>>, %arg5: memref<512x3xf32, #tpu.memory_space<vmem>>, %arg6: memref<512x3xf32, #tpu.memory_space<vmem>>, %arg7: memref<512x2xf32, #tpu.memory_space<vmem>>) attributes {dimension_semantics = [#tpu.dimension_semantics<parallel>], iteration_bounds = array<i64: 1>, scalar_prefetch = 0 : i64, scratch_operands = 0 : i64, tpu.core_type = #tpu.core_type<tc>, window_params = [{transform_indices = @transform_0, window_bounds = array<i64: 512, 4>}, {pipeline_mode = #tpu.pipeline_mode<synchronous>, transform_indices = @transform_1, window_bounds = array<i64: 4, 8>}, {pipeline_mode = #tpu.pipeline_mode<synchronous>, transform_indices = @transform_2, window_bounds = array<i64: 1, 8>}, {pipeline_mode = #tpu.pipeline_mode<synchronous>, transform_indices = @transform_3, window_bounds = array<i64: 1, 8>}, {transform_indices = @transform_4, window_bounds = array<i64: 512, 3>}, {transform_indices = @transform_5, window_bounds = array<i64: 512, 3>}, {transform_indices = @transform_6, window_bounds = array<i64: 512, 2>}]} {
    %c0 = arith.constant 0 : index
    %c0_0 = arith.constant 0 : index
    %0 = vector.load %arg1[%c0, %c0_0] : memref<512x4xf32, #tpu.memory_space<vmem>>, vector<512x4xf32>
    %c0_1 = arith.constant 0 : index
    %c0_2 = arith.constant 0 : index
    %1 = vector.load %arg2[%c0_1, %c0_2] : memref<4x8xf32, #tpu.memory_space<vmem>>, vector<4x8xf32>
    %cst = arith.constant dense<0.000000e+00> : vector<512x8xf32>
    %2 = tpu.matmul %0, %1, %cst {dimension_numbers = #tpu.dot_dimension_numbers<[1], [0], [0], [1], [0, 0, 1, 1], [], []>} : vector<512x4xf32>, vector<4x8xf32>, vector<512x8xf32> -> vector<512x8xf32>
    %c0_3 = arith.constant 0 : index
    %c0_4 = arith.constant 0 : index
    %3 = vector.load %arg3[%c0_3, %c0_4] : memref<1x8xf32, #tpu.memory_space<vmem>>, vector<1x8xf32>
    %4 = vector.broadcast %3 : vector<1x8xf32> to vector<512x8xf32>
    %5 = arith.mulf %2, %4 : vector<512x8xf32>
    %c0_5 = arith.constant 0 : index
    %c0_6 = arith.constant 0 : index
    %6 = vector.load %arg4[%c0_5, %c0_6] : memref<1x8xf32, #tpu.memory_space<vmem>>, vector<1x8xf32>
    %7 = vector.broadcast %6 : vector<1x8xf32> to vector<512x8xf32>
    %8 = arith.addf %5, %7 : vector<512x8xf32>
    %9 = arith.negf %8 : vector<512x8xf32>
    %10 = math.exp %9 : vector<512x8xf32>
    %cst_7 = arith.constant 1.000000e+00 : f32
    %11 = vector.broadcast %cst_7 : f32 to vector<512x8xf32>
    %12 = arith.addf %11, %10 : vector<512x8xf32>
    %13 = arith.divf %11, %12 : vector<512x8xf32>
    %14 = arith.mulf %8, %13 : vector<512x8xf32>
    %15 = vector.extract_strided_slice %14 {offsets = [0, 0], sizes = [512, 3], strides = [1, 1]} : vector<512x8xf32> to vector<512x3xf32>
    %c0_8 = arith.constant 0 : index
    %c0_9 = arith.constant 0 : index
    %16 = vector.load %arg5[%c0_8, %c0_9] : memref<512x3xf32, #tpu.memory_space<vmem>>, vector<512x3xf32>
    tpu.vector_store %arg5[%c0_8, %c0_9], %15 {strides = array<i32>} : memref<512x3xf32, #tpu.memory_space<vmem>>, vector<512x3xf32>,
    %17 = vector.extract_strided_slice %14 {offsets = [0, 3], sizes = [512, 3], strides = [1, 1]} : vector<512x8xf32> to vector<512x3xf32>
    %c0_10 = arith.constant 0 : index
    %c0_11 = arith.constant 0 : index
    %18 = vector.load %arg6[%c0_10, %c0_11] : memref<512x3xf32, #tpu.memory_space<vmem>>, vector<512x3xf32>
    tpu.vector_store %arg6[%c0_10, %c0_11], %17 {strides = array<i32>} : memref<512x3xf32, #tpu.memory_space<vmem>>, vector<512x3xf32>,
    %19 = vector.extract_strided_slice %14 {offsets = [0, 6], sizes = [512, 2], strides = [1, 1]} : vector<512x8xf32> to vector<512x2xf32>
    %c0_12 = arith.constant 0 : index
    %c0_13 = arith.constant 0 : index
    %20 = vector.load %arg7[%c0_12, %c0_13] : memref<512x2xf32, #tpu.memory_space<vmem>>, vector<512x2xf32>
    tpu.vector_store %arg7[%c0_12, %c0_13], %19 {strides = array<i32>} : memref<512x2xf32, #tpu.memory_space<vmem>>, vector<512x2xf32>,
    return
  }
  func.func @transform_0(%arg0: i32) -> (i32, i32) {
    %c0_i32 = arith.constant 0 : i32
    %c0_i32_0 = arith.constant 0 : i32
    return %arg0, %c0_i32 : i32, i32
  }
  func.func @transform_1(%arg0: i32) -> (i32, i32) {
    %c0_i32 = arith.constant 0 : i32
    %c0_i32_0 = arith.constant 0 : i32
    %c0_i32_1 = arith.constant 0 : i32
    return %c0_i32, %c0_i32_0 : i32, i32
  }
  func.func @transform_2(%arg0: i32) -> (i32, i32) {
    %c0_i32 = arith.constant 0 : i32
    %c0_i32_0 = arith.constant 0 : i32
    %c0_i32_1 = arith.constant 0 : i32
    return %c0_i32, %c0_i32_0 : i32, i32
  }
  func.func @transform_3(%arg0: i32) -> (i32, i32) {
    %c0_i32 = arith.constant 0 : i32
    %c0_i32_0 = arith.constant 0 : i32
    %c0_i32_1 = arith.constant 0 : i32
    return %c0_i32, %c0_i32_0 : i32, i32
  }
  func.func @transform_4(%arg0: i32) -> (i32, i32) {
    %c0_i32 = arith.constant 0 : i32
    %c0_i32_0 = arith.constant 0 : i32
    return %arg0, %c0_i32 : i32, i32
  }
  func.func @transform_5(%arg0: i32) -> (i32, i32) {
    %c0_i32 = arith.constant 0 : i32
    %c0_i32_0 = arith.constant 0 : i32
    return %arg0, %c0_i32 : i32, i32
  }
  func.func @transform_6(%arg0: i32) -> (i32, i32) {
    %c0_i32 = arith.constant 0 : i32
    %c0_i32_0 = arith.constant 0 : i32
    return %arg0, %c0_i32 : i32, i32
  }
}

module attributes {stable_mosaic.version = 11 : i64} {
  func.func @kernel(%arg0: i32, %arg1: memref<1x256x3xf32, #tpu.memory_space<vmem>>, %arg2: memref<3x3xf32, #tpu.memory_space<vmem>>, %arg3: memref<1x3xf32, #tpu.memory_space<vmem>>, %arg4: memref<1x3xf32, #tpu.memory_space<vmem>>, %arg5: memref<3x9x3xf32, #tpu.memory_space<vmem>>, %arg6: memref<1x3xf32, #tpu.memory_space<vmem>>, %arg7: memref<1x3xf32, #tpu.memory_space<vmem>>, %arg8: memref<1x256x3xf32, #tpu.memory_space<vmem>>) attributes {dimension_semantics = [#tpu.dimension_semantics<parallel>], iteration_bounds = array<i64: 2>, scalar_prefetch = 0 : i64, scratch_operands = 0 : i64, tpu.core_type = #tpu.core_type<tc>, window_params = [{transform_indices = @transform_0, window_bounds = array<i64: 1, 256, 3>}, {pipeline_mode = #tpu.pipeline_mode<synchronous>, transform_indices = @transform_1, window_bounds = array<i64: 3, 3>}, {pipeline_mode = #tpu.pipeline_mode<synchronous>, transform_indices = @transform_2, window_bounds = array<i64: 1, 3>}, {pipeline_mode = #tpu.pipeline_mode<synchronous>, transform_indices = @transform_3, window_bounds = array<i64: 1, 3>}, {pipeline_mode = #tpu.pipeline_mode<synchronous>, transform_indices = @transform_4, window_bounds = array<i64: 3, 9, 3>}, {pipeline_mode = #tpu.pipeline_mode<synchronous>, transform_indices = @transform_5, window_bounds = array<i64: 1, 3>}, {pipeline_mode = #tpu.pipeline_mode<synchronous>, transform_indices = @transform_6, window_bounds = array<i64: 1, 3>}, {transform_indices = @transform_7, window_bounds = array<i64: 1, 256, 3>}]} {
    %c0 = arith.constant 0 : index
    %c0_0 = arith.constant 0 : index
    %c0_1 = arith.constant 0 : index
    %0 = vector.load %arg1[%c0, %c0_0, %c0_1] : memref<1x256x3xf32, #tpu.memory_space<vmem>>, vector<1x256x3xf32>
    %1 = vector.shape_cast %0 : vector<1x256x3xf32> to vector<256x3xf32>
    %c0_2 = arith.constant 0 : index
    %c0_3 = arith.constant 0 : index
    %2 = vector.load %arg2[%c0_2, %c0_3] : memref<3x3xf32, #tpu.memory_space<vmem>>, vector<3x3xf32>
    %cst = arith.constant dense<0.000000e+00> : vector<256x3xf32>
    %3 = tpu.matmul %1, %2, %cst {dimension_numbers = #tpu.dot_dimension_numbers<[1], [0], [0], [1], [0, 0, 1, 1], [], []>} : vector<256x3xf32>, vector<3x3xf32>, vector<256x3xf32> -> vector<256x3xf32>
    %c0_4 = arith.constant 0 : index
    %c0_5 = arith.constant 0 : index
    %4 = vector.load %arg3[%c0_4, %c0_5] : memref<1x3xf32, #tpu.memory_space<vmem>>, vector<1x3xf32>
    %5 = vector.broadcast %4 : vector<1x3xf32> to vector<256x3xf32>
    %6 = arith.mulf %3, %5 : vector<256x3xf32>
    %c0_6 = arith.constant 0 : index
    %c0_7 = arith.constant 0 : index
    %7 = vector.load %arg4[%c0_6, %c0_7] : memref<1x3xf32, #tpu.memory_space<vmem>>, vector<1x3xf32>
    %8 = vector.broadcast %7 : vector<1x3xf32> to vector<256x3xf32>
    %9 = arith.addf %6, %8 : vector<256x3xf32>
    %10 = arith.negf %9 : vector<256x3xf32>
    %11 = math.exp %10 : vector<256x3xf32>
    %cst_8 = arith.constant 1.000000e+00 : f32
    %12 = vector.broadcast %cst_8 : f32 to vector<256x3xf32>
    %13 = arith.addf %12, %11 : vector<256x3xf32>
    %14 = arith.divf %12, %13 : vector<256x3xf32>
    %15 = arith.mulf %9, %14 : vector<256x3xf32>
    %16 = vector.shape_cast %15 : vector<256x3xf32> to vector<16x16x3xf32>
    %cst_9 = arith.constant 0.000000e+00 : f32
    %17 = vector.broadcast %cst_9 : f32 to vector<16x1x3xf32>
    %18 = vector.extract_strided_slice %16 {offsets = [0, 0, 0], sizes = [16, 15, 3], strides = [1, 1, 1]} : vector<16x16x3xf32> to vector<16x15x3xf32>
    %19 = tpu.concatenate %17, %18 in 1 : vector<16x1x3xf32>, vector<16x15x3xf32> -> vector<16x16x3xf32>
    %20 = vector.extract_strided_slice %16 {offsets = [0, 1, 0], sizes = [16, 15, 3], strides = [1, 1, 1]} : vector<16x16x3xf32> to vector<16x15x3xf32>
    %21 = tpu.concatenate %20, %17 in 1 : vector<16x15x3xf32>, vector<16x1x3xf32> -> vector<16x16x3xf32>
    %22 = tpu.concatenate %19, %16, %21 in 2 : vector<16x16x3xf32>, vector<16x16x3xf32>, vector<16x16x3xf32> -> vector<16x16x9xf32>
    %23 = vector.shape_cast %22 : vector<16x16x9xf32> to vector<256x9xf32>
    %cst_10 = arith.constant 0.000000e+00 : f32
    %24 = vector.broadcast %cst_10 : f32 to vector<16x9xf32>
    %c1 = arith.constant 1 : index
    %c0_11 = arith.constant 0 : index
    %c0_12 = arith.constant 0 : index
    %25 = vector.load %arg5[%c1, %c0_11, %c0_12] : memref<3x9x3xf32, #tpu.memory_space<vmem>>, vector<1x9x3xf32>
    %26 = vector.shape_cast %25 : vector<1x9x3xf32> to vector<9x3xf32>
    %cst_13 = arith.constant dense<0.000000e+00> : vector<256x3xf32>
    %27 = tpu.matmul %23, %26, %cst_13 {dimension_numbers = #tpu.dot_dimension_numbers<[1], [0], [0], [1], [0, 0, 1, 1], [], []>} : vector<256x9xf32>, vector<9x3xf32>, vector<256x3xf32> -> vector<256x3xf32>
    %28 = vector.extract_strided_slice %23 {offsets = [0, 0], sizes = [240, 9], strides = [1, 1]} : vector<256x9xf32> to vector<240x9xf32>
    %29 = tpu.concatenate %24, %28 in 0 : vector<16x9xf32>, vector<240x9xf32> -> vector<256x9xf32>
    %c0_14 = arith.constant 0 : index
    %c0_15 = arith.constant 0 : index
    %c0_16 = arith.constant 0 : index
    %30 = vector.load %arg5[%c0_14, %c0_15, %c0_16] : memref<3x9x3xf32, #tpu.memory_space<vmem>>, vector<1x9x3xf32>
    %31 = vector.shape_cast %30 : vector<1x9x3xf32> to vector<9x3xf32>
    %cst_17 = arith.constant dense<0.000000e+00> : vector<256x3xf32>
    %32 = tpu.matmul %29, %31, %cst_17 {dimension_numbers = #tpu.dot_dimension_numbers<[1], [0], [0], [1], [0, 0, 1, 1], [], []>} : vector<256x9xf32>, vector<9x3xf32>, vector<256x3xf32> -> vector<256x3xf32>
    %33 = arith.addf %27, %32 : vector<256x3xf32>
    %34 = vector.extract_strided_slice %23 {offsets = [16, 0], sizes = [240, 9], strides = [1, 1]} : vector<256x9xf32> to vector<240x9xf32>
    %35 = tpu.concatenate %34, %24 in 0 : vector<240x9xf32>, vector<16x9xf32> -> vector<256x9xf32>
    %c2 = arith.constant 2 : index
    %c0_18 = arith.constant 0 : index
    %c0_19 = arith.constant 0 : index
    %36 = vector.load %arg5[%c2, %c0_18, %c0_19] : memref<3x9x3xf32, #tpu.memory_space<vmem>>, vector<1x9x3xf32>
    %37 = vector.shape_cast %36 : vector<1x9x3xf32> to vector<9x3xf32>
    %cst_20 = arith.constant dense<0.000000e+00> : vector<256x3xf32>
    %38 = tpu.matmul %35, %37, %cst_20 {dimension_numbers = #tpu.dot_dimension_numbers<[1], [0], [0], [1], [0, 0, 1, 1], [], []>} : vector<256x9xf32>, vector<9x3xf32>, vector<256x3xf32> -> vector<256x3xf32>
    %39 = arith.addf %33, %38 : vector<256x3xf32>
    %c0_21 = arith.constant 0 : index
    %c0_22 = arith.constant 0 : index
    %40 = vector.load %arg6[%c0_21, %c0_22] : memref<1x3xf32, #tpu.memory_space<vmem>>, vector<1x3xf32>
    %41 = vector.broadcast %40 : vector<1x3xf32> to vector<256x3xf32>
    %42 = arith.mulf %39, %41 : vector<256x3xf32>
    %c0_23 = arith.constant 0 : index
    %c0_24 = arith.constant 0 : index
    %43 = vector.load %arg7[%c0_23, %c0_24] : memref<1x3xf32, #tpu.memory_space<vmem>>, vector<1x3xf32>
    %44 = vector.broadcast %43 : vector<1x3xf32> to vector<256x3xf32>
    %45 = arith.addf %42, %44 : vector<256x3xf32>
    %46 = arith.negf %45 : vector<256x3xf32>
    %47 = math.exp %46 : vector<256x3xf32>
    %cst_25 = arith.constant 1.000000e+00 : f32
    %48 = vector.broadcast %cst_25 : f32 to vector<256x3xf32>
    %49 = arith.addf %48, %47 : vector<256x3xf32>
    %50 = arith.divf %48, %49 : vector<256x3xf32>
    %51 = arith.mulf %45, %50 : vector<256x3xf32>
    %52 = arith.addf %1, %51 : vector<256x3xf32>
    %c0_26 = arith.constant 0 : index
    %c0_27 = arith.constant 0 : index
    %c0_28 = arith.constant 0 : index
    %53 = vector.load %arg8[%c0_26, %c0_27, %c0_28] : memref<1x256x3xf32, #tpu.memory_space<vmem>>, vector<1x256x3xf32>
    %54 = vector.shape_cast %53 : vector<1x256x3xf32> to vector<256x3xf32>
    %55 = vector.shape_cast %52 : vector<256x3xf32> to vector<1x256x3xf32>
    tpu.vector_store %arg8[%c0_26, %c0_27, %c0_28], %55 {strides = array<i32>} : memref<1x256x3xf32, #tpu.memory_space<vmem>>, vector<1x256x3xf32>,
    return
  }
  func.func @transform_0(%arg0: i32) -> (i32, i32, i32) {
    %c0_i32 = arith.constant 0 : i32
    %c0_i32_0 = arith.constant 0 : i32
    %c0_i32_1 = arith.constant 0 : i32
    return %arg0, %c0_i32, %c0_i32_0 : i32, i32, i32
  }
  func.func @transform_1(%arg0: i32) -> (i32, i32) {
    %c0_i32 = arith.constant 0 : i32
    %c0_i32_0 = arith.constant 0 : i32
    %c0_i32_1 = arith.constant 0 : i32
    return %c0_i32, %c0_i32_0 : i32, i32
  }
  func.func @transform_2(%arg0: i32) -> (i32, i32) {
    %c0_i32 = arith.constant 0 : i32
    %c0_i32_0 = arith.constant 0 : i32
    %c0_i32_1 = arith.constant 0 : i32
    return %c0_i32, %c0_i32_0 : i32, i32
  }
  func.func @transform_3(%arg0: i32) -> (i32, i32) {
    %c0_i32 = arith.constant 0 : i32
    %c0_i32_0 = arith.constant 0 : i32
    %c0_i32_1 = arith.constant 0 : i32
    return %c0_i32, %c0_i32_0 : i32, i32
  }
  func.func @transform_4(%arg0: i32) -> (i32, i32, i32) {
    %c0_i32 = arith.constant 0 : i32
    %c0_i32_0 = arith.constant 0 : i32
    %c0_i32_1 = arith.constant 0 : i32
    %c0_i32_2 = arith.constant 0 : i32
    return %c0_i32, %c0_i32_0, %c0_i32_1 : i32, i32, i32
  }
  func.func @transform_5(%arg0: i32) -> (i32, i32) {
    %c0_i32 = arith.constant 0 : i32
    %c0_i32_0 = arith.constant 0 : i32
    %c0_i32_1 = arith.constant 0 : i32
    return %c0_i32, %c0_i32_0 : i32, i32
  }
  func.func @transform_6(%arg0: i32) -> (i32, i32) {
    %c0_i32 = arith.constant 0 : i32
    %c0_i32_0 = arith.constant 0 : i32
    %c0_i32_1 = arith.constant 0 : i32
    return %c0_i32, %c0_i32_0 : i32, i32
  }
  func.func @transform_7(%arg0: i32) -> (i32, i32, i32) {
    %c0_i32 = arith.constant 0 : i32
    %c0_i32_0 = arith.constant 0 : i32
    %c0_i32_1 = arith.constant 0 : i32
    return %arg0, %c0_i32, %c0_i32_0 : i32, i32, i32
  }
}

module attributes {stable_mosaic.version = 11 : i64} {
  func.func @kernel(%arg0: i32, %arg1: memref<1x256x2xf32, #tpu.memory_space<vmem>>, %arg2: memref<2x2xf32, #tpu.memory_space<vmem>>, %arg3: memref<1x2xf32, #tpu.memory_space<vmem>>, %arg4: memref<1x2xf32, #tpu.memory_space<vmem>>, %arg5: memref<3x6x2xf32, #tpu.memory_space<vmem>>, %arg6: memref<1x2xf32, #tpu.memory_space<vmem>>, %arg7: memref<1x2xf32, #tpu.memory_space<vmem>>, %arg8: memref<1x256x2xf32, #tpu.memory_space<vmem>>) attributes {dimension_semantics = [#tpu.dimension_semantics<parallel>], iteration_bounds = array<i64: 2>, scalar_prefetch = 0 : i64, scratch_operands = 0 : i64, tpu.core_type = #tpu.core_type<tc>, window_params = [{transform_indices = @transform_0, window_bounds = array<i64: 1, 256, 2>}, {pipeline_mode = #tpu.pipeline_mode<synchronous>, transform_indices = @transform_1, window_bounds = array<i64: 2, 2>}, {pipeline_mode = #tpu.pipeline_mode<synchronous>, transform_indices = @transform_2, window_bounds = array<i64: 1, 2>}, {pipeline_mode = #tpu.pipeline_mode<synchronous>, transform_indices = @transform_3, window_bounds = array<i64: 1, 2>}, {pipeline_mode = #tpu.pipeline_mode<synchronous>, transform_indices = @transform_4, window_bounds = array<i64: 3, 6, 2>}, {pipeline_mode = #tpu.pipeline_mode<synchronous>, transform_indices = @transform_5, window_bounds = array<i64: 1, 2>}, {pipeline_mode = #tpu.pipeline_mode<synchronous>, transform_indices = @transform_6, window_bounds = array<i64: 1, 2>}, {transform_indices = @transform_7, window_bounds = array<i64: 1, 256, 2>}]} {
    %c0 = arith.constant 0 : index
    %c0_0 = arith.constant 0 : index
    %c0_1 = arith.constant 0 : index
    %0 = vector.load %arg1[%c0, %c0_0, %c0_1] : memref<1x256x2xf32, #tpu.memory_space<vmem>>, vector<1x256x2xf32>
    %1 = vector.shape_cast %0 : vector<1x256x2xf32> to vector<256x2xf32>
    %c0_2 = arith.constant 0 : index
    %c0_3 = arith.constant 0 : index
    %2 = vector.load %arg2[%c0_2, %c0_3] : memref<2x2xf32, #tpu.memory_space<vmem>>, vector<2x2xf32>
    %cst = arith.constant dense<0.000000e+00> : vector<256x2xf32>
    %3 = tpu.matmul %1, %2, %cst {dimension_numbers = #tpu.dot_dimension_numbers<[1], [0], [0], [1], [0, 0, 1, 1], [], []>} : vector<256x2xf32>, vector<2x2xf32>, vector<256x2xf32> -> vector<256x2xf32>
    %c0_4 = arith.constant 0 : index
    %c0_5 = arith.constant 0 : index
    %4 = vector.load %arg3[%c0_4, %c0_5] : memref<1x2xf32, #tpu.memory_space<vmem>>, vector<1x2xf32>
    %5 = vector.broadcast %4 : vector<1x2xf32> to vector<256x2xf32>
    %6 = arith.mulf %3, %5 : vector<256x2xf32>
    %c0_6 = arith.constant 0 : index
    %c0_7 = arith.constant 0 : index
    %7 = vector.load %arg4[%c0_6, %c0_7] : memref<1x2xf32, #tpu.memory_space<vmem>>, vector<1x2xf32>
    %8 = vector.broadcast %7 : vector<1x2xf32> to vector<256x2xf32>
    %9 = arith.addf %6, %8 : vector<256x2xf32>
    %10 = arith.negf %9 : vector<256x2xf32>
    %11 = math.exp %10 : vector<256x2xf32>
    %cst_8 = arith.constant 1.000000e+00 : f32
    %12 = vector.broadcast %cst_8 : f32 to vector<256x2xf32>
    %13 = arith.addf %12, %11 : vector<256x2xf32>
    %14 = arith.divf %12, %13 : vector<256x2xf32>
    %15 = arith.mulf %9, %14 : vector<256x2xf32>
    %16 = vector.shape_cast %15 : vector<256x2xf32> to vector<16x16x2xf32>
    %cst_9 = arith.constant 0.000000e+00 : f32
    %17 = vector.broadcast %cst_9 : f32 to vector<16x1x2xf32>
    %18 = vector.extract_strided_slice %16 {offsets = [0, 0, 0], sizes = [16, 15, 2], strides = [1, 1, 1]} : vector<16x16x2xf32> to vector<16x15x2xf32>
    %19 = tpu.concatenate %17, %18 in 1 : vector<16x1x2xf32>, vector<16x15x2xf32> -> vector<16x16x2xf32>
    %20 = vector.extract_strided_slice %16 {offsets = [0, 1, 0], sizes = [16, 15, 2], strides = [1, 1, 1]} : vector<16x16x2xf32> to vector<16x15x2xf32>
    %21 = tpu.concatenate %20, %17 in 1 : vector<16x15x2xf32>, vector<16x1x2xf32> -> vector<16x16x2xf32>
    %22 = tpu.concatenate %19, %16, %21 in 2 : vector<16x16x2xf32>, vector<16x16x2xf32>, vector<16x16x2xf32> -> vector<16x16x6xf32>
    %23 = vector.shape_cast %22 : vector<16x16x6xf32> to vector<256x6xf32>
    %cst_10 = arith.constant 0.000000e+00 : f32
    %24 = vector.broadcast %cst_10 : f32 to vector<16x6xf32>
    %c1 = arith.constant 1 : index
    %c0_11 = arith.constant 0 : index
    %c0_12 = arith.constant 0 : index
    %25 = vector.load %arg5[%c1, %c0_11, %c0_12] : memref<3x6x2xf32, #tpu.memory_space<vmem>>, vector<1x6x2xf32>
    %26 = vector.shape_cast %25 : vector<1x6x2xf32> to vector<6x2xf32>
    %cst_13 = arith.constant dense<0.000000e+00> : vector<256x2xf32>
    %27 = tpu.matmul %23, %26, %cst_13 {dimension_numbers = #tpu.dot_dimension_numbers<[1], [0], [0], [1], [0, 0, 1, 1], [], []>} : vector<256x6xf32>, vector<6x2xf32>, vector<256x2xf32> -> vector<256x2xf32>
    %28 = vector.extract_strided_slice %23 {offsets = [0, 0], sizes = [240, 6], strides = [1, 1]} : vector<256x6xf32> to vector<240x6xf32>
    %29 = tpu.concatenate %24, %28 in 0 : vector<16x6xf32>, vector<240x6xf32> -> vector<256x6xf32>
    %c0_14 = arith.constant 0 : index
    %c0_15 = arith.constant 0 : index
    %c0_16 = arith.constant 0 : index
    %30 = vector.load %arg5[%c0_14, %c0_15, %c0_16] : memref<3x6x2xf32, #tpu.memory_space<vmem>>, vector<1x6x2xf32>
    %31 = vector.shape_cast %30 : vector<1x6x2xf32> to vector<6x2xf32>
    %cst_17 = arith.constant dense<0.000000e+00> : vector<256x2xf32>
    %32 = tpu.matmul %29, %31, %cst_17 {dimension_numbers = #tpu.dot_dimension_numbers<[1], [0], [0], [1], [0, 0, 1, 1], [], []>} : vector<256x6xf32>, vector<6x2xf32>, vector<256x2xf32> -> vector<256x2xf32>
    %33 = arith.addf %27, %32 : vector<256x2xf32>
    %34 = vector.extract_strided_slice %23 {offsets = [16, 0], sizes = [240, 6], strides = [1, 1]} : vector<256x6xf32> to vector<240x6xf32>
    %35 = tpu.concatenate %34, %24 in 0 : vector<240x6xf32>, vector<16x6xf32> -> vector<256x6xf32>
    %c2 = arith.constant 2 : index
    %c0_18 = arith.constant 0 : index
    %c0_19 = arith.constant 0 : index
    %36 = vector.load %arg5[%c2, %c0_18, %c0_19] : memref<3x6x2xf32, #tpu.memory_space<vmem>>, vector<1x6x2xf32>
    %37 = vector.shape_cast %36 : vector<1x6x2xf32> to vector<6x2xf32>
    %cst_20 = arith.constant dense<0.000000e+00> : vector<256x2xf32>
    %38 = tpu.matmul %35, %37, %cst_20 {dimension_numbers = #tpu.dot_dimension_numbers<[1], [0], [0], [1], [0, 0, 1, 1], [], []>} : vector<256x6xf32>, vector<6x2xf32>, vector<256x2xf32> -> vector<256x2xf32>
    %39 = arith.addf %33, %38 : vector<256x2xf32>
    %c0_21 = arith.constant 0 : index
    %c0_22 = arith.constant 0 : index
    %40 = vector.load %arg6[%c0_21, %c0_22] : memref<1x2xf32, #tpu.memory_space<vmem>>, vector<1x2xf32>
    %41 = vector.broadcast %40 : vector<1x2xf32> to vector<256x2xf32>
    %42 = arith.mulf %39, %41 : vector<256x2xf32>
    %c0_23 = arith.constant 0 : index
    %c0_24 = arith.constant 0 : index
    %43 = vector.load %arg7[%c0_23, %c0_24] : memref<1x2xf32, #tpu.memory_space<vmem>>, vector<1x2xf32>
    %44 = vector.broadcast %43 : vector<1x2xf32> to vector<256x2xf32>
    %45 = arith.addf %42, %44 : vector<256x2xf32>
    %46 = arith.negf %45 : vector<256x2xf32>
    %47 = math.exp %46 : vector<256x2xf32>
    %cst_25 = arith.constant 1.000000e+00 : f32
    %48 = vector.broadcast %cst_25 : f32 to vector<256x2xf32>
    %49 = arith.addf %48, %47 : vector<256x2xf32>
    %50 = arith.divf %48, %49 : vector<256x2xf32>
    %51 = arith.mulf %45, %50 : vector<256x2xf32>
    %52 = arith.addf %1, %51 : vector<256x2xf32>
    %c0_26 = arith.constant 0 : index
    %c0_27 = arith.constant 0 : index
    %c0_28 = arith.constant 0 : index
    %53 = vector.load %arg8[%c0_26, %c0_27, %c0_28] : memref<1x256x2xf32, #tpu.memory_space<vmem>>, vector<1x256x2xf32>
    %54 = vector.shape_cast %53 : vector<1x256x2xf32> to vector<256x2xf32>
    %55 = vector.shape_cast %52 : vector<256x2xf32> to vector<1x256x2xf32>
    tpu.vector_store %arg8[%c0_26, %c0_27, %c0_28], %55 {strides = array<i32>} : memref<1x256x2xf32, #tpu.memory_space<vmem>>, vector<1x256x2xf32>,
    return
  }
  func.func @transform_0(%arg0: i32) -> (i32, i32, i32) {
    %c0_i32 = arith.constant 0 : i32
    %c0_i32_0 = arith.constant 0 : i32
    %c0_i32_1 = arith.constant 0 : i32
    return %arg0, %c0_i32, %c0_i32_0 : i32, i32, i32
  }
  func.func @transform_1(%arg0: i32) -> (i32, i32) {
    %c0_i32 = arith.constant 0 : i32
    %c0_i32_0 = arith.constant 0 : i32
    %c0_i32_1 = arith.constant 0 : i32
    return %c0_i32, %c0_i32_0 : i32, i32
  }
  func.func @transform_2(%arg0: i32) -> (i32, i32) {
    %c0_i32 = arith.constant 0 : i32
    %c0_i32_0 = arith.constant 0 : i32
    %c0_i32_1 = arith.constant 0 : i32
    return %c0_i32, %c0_i32_0 : i32, i32
  }
  func.func @transform_3(%arg0: i32) -> (i32, i32) {
    %c0_i32 = arith.constant 0 : i32
    %c0_i32_0 = arith.constant 0 : i32
    %c0_i32_1 = arith.constant 0 : i32
    return %c0_i32, %c0_i32_0 : i32, i32
  }
  func.func @transform_4(%arg0: i32) -> (i32, i32, i32) {
    %c0_i32 = arith.constant 0 : i32
    %c0_i32_0 = arith.constant 0 : i32
    %c0_i32_1 = arith.constant 0 : i32
    %c0_i32_2 = arith.constant 0 : i32
    return %c0_i32, %c0_i32_0, %c0_i32_1 : i32, i32, i32
  }
  func.func @transform_5(%arg0: i32) -> (i32, i32) {
    %c0_i32 = arith.constant 0 : i32
    %c0_i32_0 = arith.constant 0 : i32
    %c0_i32_1 = arith.constant 0 : i32
    return %c0_i32, %c0_i32_0 : i32, i32
  }
  func.func @transform_6(%arg0: i32) -> (i32, i32) {
    %c0_i32 = arith.constant 0 : i32
    %c0_i32_0 = arith.constant 0 : i32
    %c0_i32_1 = arith.constant 0 : i32
    return %c0_i32, %c0_i32_0 : i32, i32
  }
  func.func @transform_7(%arg0: i32) -> (i32, i32, i32) {
    %c0_i32 = arith.constant 0 : i32
    %c0_i32_0 = arith.constant 0 : i32
    %c0_i32_1 = arith.constant 0 : i32
    return %arg0, %c0_i32, %c0_i32_0 : i32, i32, i32
  }
}

module attributes {stable_mosaic.version = 11 : i64} {
  func.func @kernel(%arg0: i32, %arg1: memref<512x3xf32, #tpu.memory_space<vmem>>, %arg2: memref<512x3xf32, #tpu.memory_space<vmem>>, %arg3: memref<512x3xf32, #tpu.memory_space<vmem>>, %arg4: memref<512x2xf32, #tpu.memory_space<vmem>>, %arg5: memref<3x8xf32, #tpu.memory_space<vmem>>, %arg6: memref<3x8xf32, #tpu.memory_space<vmem>>, %arg7: memref<3x8xf32, #tpu.memory_space<vmem>>, %arg8: memref<2x8xf32, #tpu.memory_space<vmem>>, %arg9: memref<1x8xf32, #tpu.memory_space<vmem>>, %arg10: memref<1x8xf32, #tpu.memory_space<vmem>>, %arg11: memref<512x8xf32, #tpu.memory_space<vmem>>) attributes {dimension_semantics = [#tpu.dimension_semantics<parallel>], iteration_bounds = array<i64: 1>, scalar_prefetch = 0 : i64, scratch_operands = 0 : i64, tpu.core_type = #tpu.core_type<tc>, window_params = [{transform_indices = @transform_0, window_bounds = array<i64: 512, 3>}, {transform_indices = @transform_1, window_bounds = array<i64: 512, 3>}, {transform_indices = @transform_2, window_bounds = array<i64: 512, 3>}, {transform_indices = @transform_3, window_bounds = array<i64: 512, 2>}, {pipeline_mode = #tpu.pipeline_mode<synchronous>, transform_indices = @transform_4, window_bounds = array<i64: 3, 8>}, {pipeline_mode = #tpu.pipeline_mode<synchronous>, transform_indices = @transform_5, window_bounds = array<i64: 3, 8>}, {pipeline_mode = #tpu.pipeline_mode<synchronous>, transform_indices = @transform_6, window_bounds = array<i64: 3, 8>}, {pipeline_mode = #tpu.pipeline_mode<synchronous>, transform_indices = @transform_7, window_bounds = array<i64: 2, 8>}, {pipeline_mode = #tpu.pipeline_mode<synchronous>, transform_indices = @transform_8, window_bounds = array<i64: 1, 8>}, {pipeline_mode = #tpu.pipeline_mode<synchronous>, transform_indices = @transform_9, window_bounds = array<i64: 1, 8>}, {transform_indices = @transform_10, window_bounds = array<i64: 512, 8>}]} {
    %c0 = arith.constant 0 : index
    %c0_0 = arith.constant 0 : index
    %0 = vector.load %arg1[%c0, %c0_0] : memref<512x3xf32, #tpu.memory_space<vmem>>, vector<512x3xf32>
    %c0_1 = arith.constant 0 : index
    %c0_2 = arith.constant 0 : index
    %1 = vector.load %arg5[%c0_1, %c0_2] : memref<3x8xf32, #tpu.memory_space<vmem>>, vector<3x8xf32>
    %cst = arith.constant dense<0.000000e+00> : vector<512x8xf32>
    %2 = tpu.matmul %0, %1, %cst {dimension_numbers = #tpu.dot_dimension_numbers<[1], [0], [0], [1], [0, 0, 1, 1], [], []>} : vector<512x3xf32>, vector<3x8xf32>, vector<512x8xf32> -> vector<512x8xf32>
    %c0_3 = arith.constant 0 : index
    %c0_4 = arith.constant 0 : index
    %3 = vector.load %arg2[%c0_3, %c0_4] : memref<512x3xf32, #tpu.memory_space<vmem>>, vector<512x3xf32>
    %c0_5 = arith.constant 0 : index
    %c0_6 = arith.constant 0 : index
    %4 = vector.load %arg6[%c0_5, %c0_6] : memref<3x8xf32, #tpu.memory_space<vmem>>, vector<3x8xf32>
    %cst_7 = arith.constant dense<0.000000e+00> : vector<512x8xf32>
    %5 = tpu.matmul %3, %4, %cst_7 {dimension_numbers = #tpu.dot_dimension_numbers<[1], [0], [0], [1], [0, 0, 1, 1], [], []>} : vector<512x3xf32>, vector<3x8xf32>, vector<512x8xf32> -> vector<512x8xf32>
    %6 = arith.addf %2, %5 : vector<512x8xf32>
    %c0_8 = arith.constant 0 : index
    %c0_9 = arith.constant 0 : index
    %7 = vector.load %arg3[%c0_8, %c0_9] : memref<512x3xf32, #tpu.memory_space<vmem>>, vector<512x3xf32>
    %c0_10 = arith.constant 0 : index
    %c0_11 = arith.constant 0 : index
    %8 = vector.load %arg7[%c0_10, %c0_11] : memref<3x8xf32, #tpu.memory_space<vmem>>, vector<3x8xf32>
    %cst_12 = arith.constant dense<0.000000e+00> : vector<512x8xf32>
    %9 = tpu.matmul %7, %8, %cst_12 {dimension_numbers = #tpu.dot_dimension_numbers<[1], [0], [0], [1], [0, 0, 1, 1], [], []>} : vector<512x3xf32>, vector<3x8xf32>, vector<512x8xf32> -> vector<512x8xf32>
    %10 = arith.addf %6, %9 : vector<512x8xf32>
    %c0_13 = arith.constant 0 : index
    %c0_14 = arith.constant 0 : index
    %11 = vector.load %arg4[%c0_13, %c0_14] : memref<512x2xf32, #tpu.memory_space<vmem>>, vector<512x2xf32>
    %c0_15 = arith.constant 0 : index
    %c0_16 = arith.constant 0 : index
    %12 = vector.load %arg8[%c0_15, %c0_16] : memref<2x8xf32, #tpu.memory_space<vmem>>, vector<2x8xf32>
    %cst_17 = arith.constant dense<0.000000e+00> : vector<512x8xf32>
    %13 = tpu.matmul %11, %12, %cst_17 {dimension_numbers = #tpu.dot_dimension_numbers<[1], [0], [0], [1], [0, 0, 1, 1], [], []>} : vector<512x2xf32>, vector<2x8xf32>, vector<512x8xf32> -> vector<512x8xf32>
    %14 = arith.addf %10, %13 : vector<512x8xf32>
    %c0_18 = arith.constant 0 : index
    %c0_19 = arith.constant 0 : index
    %15 = vector.load %arg9[%c0_18, %c0_19] : memref<1x8xf32, #tpu.memory_space<vmem>>, vector<1x8xf32>
    %16 = vector.broadcast %15 : vector<1x8xf32> to vector<512x8xf32>
    %17 = arith.mulf %14, %16 : vector<512x8xf32>
    %c0_20 = arith.constant 0 : index
    %c0_21 = arith.constant 0 : index
    %18 = vector.load %arg10[%c0_20, %c0_21] : memref<1x8xf32, #tpu.memory_space<vmem>>, vector<1x8xf32>
    %19 = vector.broadcast %18 : vector<1x8xf32> to vector<512x8xf32>
    %20 = arith.addf %17, %19 : vector<512x8xf32>
    %21 = arith.negf %20 : vector<512x8xf32>
    %22 = math.exp %21 : vector<512x8xf32>
    %cst_22 = arith.constant 1.000000e+00 : f32
    %23 = vector.broadcast %cst_22 : f32 to vector<512x8xf32>
    %24 = arith.addf %23, %22 : vector<512x8xf32>
    %25 = arith.divf %23, %24 : vector<512x8xf32>
    %26 = arith.mulf %20, %25 : vector<512x8xf32>
    %c0_23 = arith.constant 0 : index
    %c0_24 = arith.constant 0 : index
    %27 = vector.load %arg11[%c0_23, %c0_24] : memref<512x8xf32, #tpu.memory_space<vmem>>, vector<512x8xf32>
    tpu.vector_store %arg11[%c0_23, %c0_24], %26 {strides = array<i32>} : memref<512x8xf32, #tpu.memory_space<vmem>>, vector<512x8xf32>,
    return
  }
  func.func @transform_0(%arg0: i32) -> (i32, i32) {
    %c0_i32 = arith.constant 0 : i32
    %c0_i32_0 = arith.constant 0 : i32
    return %arg0, %c0_i32 : i32, i32
  }
  func.func @transform_1(%arg0: i32) -> (i32, i32) {
    %c0_i32 = arith.constant 0 : i32
    %c0_i32_0 = arith.constant 0 : i32
    return %arg0, %c0_i32 : i32, i32
  }
  func.func @transform_2(%arg0: i32) -> (i32, i32) {
    %c0_i32 = arith.constant 0 : i32
    %c0_i32_0 = arith.constant 0 : i32
    return %arg0, %c0_i32 : i32, i32
  }
  func.func @transform_3(%arg0: i32) -> (i32, i32) {
    %c0_i32 = arith.constant 0 : i32
    %c0_i32_0 = arith.constant 0 : i32
    return %arg0, %c0_i32 : i32, i32
  }
  func.func @transform_4(%arg0: i32) -> (i32, i32) {
    %c0_i32 = arith.constant 0 : i32
    %c0_i32_0 = arith.constant 0 : i32
    %c0_i32_1 = arith.constant 0 : i32
    return %c0_i32, %c0_i32_0 : i32, i32
  }
  func.func @transform_5(%arg0: i32) -> (i32, i32) {
    %c0_i32 = arith.constant 0 : i32
    %c0_i32_0 = arith.constant 0 : i32
    %c0_i32_1 = arith.constant 0 : i32
    return %c0_i32, %c0_i32_0 : i32, i32
  }
  func.func @transform_6(%arg0: i32) -> (i32, i32) {
    %c0_i32 = arith.constant 0 : i32
    %c0_i32_0 = arith.constant 0 : i32
    %c0_i32_1 = arith.constant 0 : i32
    return %c0_i32, %c0_i32_0 : i32, i32
  }
  func.func @transform_7(%arg0: i32) -> (i32, i32) {
    %c0_i32 = arith.constant 0 : i32
    %c0_i32_0 = arith.constant 0 : i32
    %c0_i32_1 = arith.constant 0 : i32
    return %c0_i32, %c0_i32_0 : i32, i32
  }
  func.func @transform_8(%arg0: i32) -> (i32, i32) {
    %c0_i32 = arith.constant 0 : i32
    %c0_i32_0 = arith.constant 0 : i32
    %c0_i32_1 = arith.constant 0 : i32
    return %c0_i32, %c0_i32_0 : i32, i32
  }
  func.func @transform_9(%arg0: i32) -> (i32, i32) {
    %c0_i32 = arith.constant 0 : i32
    %c0_i32_0 = arith.constant 0 : i32
    %c0_i32_1 = arith.constant 0 : i32
    return %c0_i32, %c0_i32_0 : i32, i32
  }
  func.func @transform_10(%arg0: i32) -> (i32, i32) {
    %c0_i32 = arith.constant 0 : i32
    %c0_i32_0 = arith.constant 0 : i32
    return %arg0, %c0_i32 : i32, i32
  }
}

</mosaic_0001>

<llo_original>
// kernel: c2f_forward.5
$region0: #{c2f_forward.5}
  #allocation0 [shape = 'u32[]', space=smem, size = 0x4, offset = 0x4, fixed_abs, tag = 'smem constant byte address 0x4 - core index']
  #allocation1 [shape = 'u32[144,128]{1,0:T(1,128)}', space=vmem, size = 0x12000, scoped, tag = 'internal scratch']
  %s0 = inlined_call_operand.vmem [shape: f32[512,4], index: 0, kind: input, shape index: {}]
  %s1 = inlined_call_operand.vmem [shape: f32[4,8], index: 1, kind: input, shape index: {}]
  %s2 = inlined_call_operand.vmem [shape: f32[1,8], index: 2, kind: input, shape index: {}]
  %s3 = inlined_call_operand.vmem [shape: f32[1,8], index: 3, kind: input, shape index: {}]
  %s4 = inlined_call_operand.vmem [shape: f32[512,3], index: 4, kind: output, shape index: {0}]
  %s5 = inlined_call_operand.vmem [shape: f32[512,3], index: 5, kind: output, shape index: {1}]
  %s6 = inlined_call_operand.vmem [shape: f32[512,2], index: 6, kind: output, shape index: {2}]
  %7 = xla_tuple %s4, %s5, %s6
  %s8 = sld [smem:[#allocation0]]
  $region42: #{c2f_forward.5} parent=0
    _
  %s10 = ssub.s32 1, %s8
  %s11 = scalar_select 0, %s10, %s8
  // Predicated region
  $region2: #{c2f_forward.5} parent=0 // pred_check
    _
  $region3: #{c2f_forward.5} parent=0 // pred_check_branch
    %13 = sbr.rel (0) target = $region5
  $region4: #{c2f_forward.5} parent=0 // pred_region
    _
  $region5: #{c2f_forward.5} parent=0 // pred_fallthru
    _
  // Predicated region
  $region6: #{c2f_forward.5} parent=0 // pred_check
    _
  $region7: #{c2f_forward.5} parent=0 // pred_check_branch
    %15 = sbr.rel (0) target = $region9
  $region8: #{c2f_forward.5} parent=0 // pred_region
    _
  $region9: #{c2f_forward.5} parent=0 // pred_fallthru
    _
  // Predicated region
  $region10: #{c2f_forward.5} parent=0 // pred_check
    _
  $region11: #{c2f_forward.5} parent=0 // pred_check_branch
    %17 = sbr.rel (0) target = $region13
  $region12: #{c2f_forward.5} parent=0 // pred_region
    _
  $region13: #{c2f_forward.5} parent=0 // pred_fallthru
    _
  // Predicated region
  $region14: #{c2f_forward.5} parent=0 // pred_check
    _
  $region15: #{c2f_forward.5} parent=0 // pred_check_branch
    %19 = sbr.rel (0) target = $region17
  $region16: #{c2f_forward.5} parent=0 // pred_region
    _
  $region17: #{c2f_forward.5} parent=0 // pred_fallthru
    _
  %v20 = vld [vmem:[%s0] sm:$0xff]
  %v21 = vld [vmem:[%s0 + $0x8] sm:$0xff]
  %v22 = vld [vmem:[%s0 + $0x10] sm:$0xff]
  %v23 = vld [vmem:[%s0 + $0x18] sm:$0xff]
  %v24 = vld [vmem:[%s0 + $0x20] sm:$0xff]
  %v25 = vld [vmem:[%s0 + $0x28] sm:$0xff]
  %v26 = vld [vmem:[%s0 + $0x30] sm:$0xff]
  %v27 = vld [vmem:[%s0 + $0x38] sm:$0xff]
  %v28 = vld [vmem:[%s0 + $0x40] sm:$0xff]
  %v29 = vld [vmem:[%s0 + $0x48] sm:$0xff]
  %v30 = vld [vmem:[%s0 + $0x50] sm:$0xff]
  %v31 = vld [vmem:[%s0 + $0x58] sm:$0xff]
  %v32 = vld [vmem:[%s0 + $0x60] sm:$0xff]
  %v33 = vld [vmem:[%s0 + $0x68] sm:$0xff]
  %v34 = vld [vmem:[%s0 + $0x70] sm:$0xff]
  %v35 = vld [vmem:[%s0 + $0x78] sm:$0xff]
  %v36 = vld [vmem:[%s0 + $0x80] sm:$0xff]
  %v37 = vld [vmem:[%s0 + $0x88] sm:$0xff]
  %v38 = vld [vmem:[%s0 + $0x90] sm:$0xff]
  %v39 = vld [vmem:[%s0 + $0x98] sm:$0xff]
  %v40 = vld [vmem:[%s0 + $0xa0] sm:$0xff]
  %v41 = vld [vmem:[%s0 + $0xa8] sm:$0xff]
  %v42 = vld [vmem:[%s0 + $0xb0] sm:$0xff]
  %v43 = vld [vmem:[%s0 + $0xb8] sm:$0xff]
  %v44 = vld [vmem:[%s0 + $0xc0] sm:$0xff]
  %v45 = vld [vmem:[%s0 + $0xc8] sm:$0xff]
  %v46 = vld [vmem:[%s0 + $0xd0] sm:$0xff]
  %v47 = vld [vmem:[%s0 + $0xd8] sm:$0xff]
  %v48 = vld [vmem:[%s0 + $0xe0] sm:$0xff]
  %v49 = vld [vmem:[%s0 + $0xe8] sm:$0xff]
  %v50 = vld [vmem:[%s0 + $0xf0] sm:$0xff]
  %v51 = vld [vmem:[%s0 + $0xf8] sm:$0xff]
  %v52 = vld [vmem:[%s0 + $0x100] sm:$0xff]
  %v53 = vld [vmem:[%s0 + $0x108] sm:$0xff]
  %v54 = vld [vmem:[%s0 + $0x110] sm:$0xff]
  %v55 = vld [vmem:[%s0 + $0x118] sm:$0xff]
  %v56 = vld [vmem:[%s0 + $0x120] sm:$0xff]
  %v57 = vld [vmem:[%s0 + $0x128] sm:$0xff]
  %v58 = vld [vmem:[%s0 + $0x130] sm:$0xff]
  %v59 = vld [vmem:[%s0 + $0x138] sm:$0xff]
  %v60 = vld [vmem:[%s0 + $0x140] sm:$0xff]
  %v61 = vld [vmem:[%s0 + $0x148] sm:$0xff]
  %v62 = vld [vmem:[%s0 + $0x150] sm:$0xff]
  %v63 = vld [vmem:[%s0 + $0x158] sm:$0xff]
  %v64 = vld [vmem:[%s0 + $0x160] sm:$0xff]
  %v65 = vld [vmem:[%s0 + $0x168] sm:$0xff]
  %v66 = vld [vmem:[%s0 + $0x170] sm:$0xff]
  %v67 = vld [vmem:[%s0 + $0x178] sm:$0xff]
  %v68 = vld [vmem:[%s0 + $0x180] sm:$0xff]
  %v69 = vld [vmem:[%s0 + $0x188] sm:$0xff]
  %v70 = vld [vmem:[%s0 + $0x190] sm:$0xff]
  %v71 = vld [vmem:[%s0 + $0x198] sm:$0xff]
  %v72 = vld [vmem:[%s0 + $0x1a0] sm:$0xff]
  %v73 = vld [vmem:[%s0 + $0x1a8] sm:$0xff]
  %v74 = vld [vmem:[%s0 + $0x1b0] sm:$0xff]
  %v75 = vld [vmem:[%s0 + $0x1b8] sm:$0xff]
  %v76 = vld [vmem:[%s0 + $0x1c0] sm:$0xff]
  %v77 = vld [vmem:[%s0 + $0x1c8] sm:$0xff]
  %v78 = vld [vmem:[%s0 + $0x1d0] sm:$0xff]
  %v79 = vld [vmem:[%s0 + $0x1d8] sm:$0xff]
  %v80 = vld [vmem:[%s0 + $0x1e0] sm:$0xff]
  %v81 = vld [vmem:[%s0 + $0x1e8] sm:$0xff]
  %v82 = vld [vmem:[%s0 + $0x1f0] sm:$0xff]
  %v83 = vld [vmem:[%s0 + $0x1f8] sm:$0xff]
  %v84 = vld [vmem:[%s1] sm:$0xf]
  %vm85 = vcmask 31744
  %v87 = vsel %vm85, %v20, 0
  %v90 = vsel %vm85, %v21, 0
  %v93 = vsel %vm85, %v22, 0
  %v96 = vsel %vm85, %v23, 0
  %v99 = vsel %vm85, %v24, 0
  %v102 = vsel %vm85, %v25, 0
  %v105 = vsel %vm85, %v26, 0
  %v108 = vsel %vm85, %v27, 0
  %v111 = vsel %vm85, %v28, 0
  %v114 = vsel %vm85, %v29, 0
  %v117 = vsel %vm85, %v30, 0
  %v120 = vsel %vm85, %v31, 0
  %v123 = vsel %vm85, %v32, 0
  %v126 = vsel %vm85, %v33, 0
  %v129 = vsel %vm85, %v34, 0
  %v132 = vsel %vm85, %v35, 0
  %v135 = vsel %vm85, %v36, 0
  %v138 = vsel %vm85, %v37, 0
  %v141 = vsel %vm85, %v38, 0
  %v144 = vsel %vm85, %v39, 0
  %v147 = vsel %vm85, %v40, 0
  %v150 = vsel %vm85, %v41, 0
  %v153 = vsel %vm85, %v42, 0
  %v156 = vsel %vm85, %v43, 0
  %v159 = vsel %vm85, %v44, 0
  %v162 = vsel %vm85, %v45, 0
  %v165 = vsel %vm85, %v46, 0
  %v168 = vsel %vm85, %v47, 0
  %v171 = vsel %vm85, %v48, 0
  %v174 = vsel %vm85, %v49, 0
  %v177 = vsel %vm85, %v50, 0
  %v180 = vsel %vm85, %v51, 0
  %v183 = vsel %vm85, %v52, 0
  %v186 = vsel %vm85, %v53, 0
  %v189 = vsel %vm85, %v54, 0
  %v192 = vsel %vm85, %v55, 0
  %v195 = vsel %vm85, %v56, 0
  %v198 = vsel %vm85, %v57, 0
  %v201 = vsel %vm85, %v58, 0
  %v204 = vsel %vm85, %v59, 0
  %v207 = vsel %vm85, %v60, 0
  %v210 = vsel %vm85, %v61, 0
  %v213 = vsel %vm85, %v62, 0
  %v216 = vsel %vm85, %v63, 0
  %v219 = vsel %vm85, %v64, 0
  %v222 = vsel %vm85, %v65, 0
  %v225 = vsel %vm85, %v66, 0
  %v228 = vsel %vm85, %v67, 0
  %v231 = vsel %vm85, %v68, 0
  %v234 = vsel %vm85, %v69, 0
  %v237 = vsel %vm85, %v70, 0
  %v240 = vsel %vm85, %v71, 0
  %v243 = vsel %vm85, %v72, 0
  %v246 = vsel %vm85, %v73, 0
  %v249 = vsel %vm85, %v74, 0
  %v252 = vsel %vm85, %v75, 0
  %v255 = vsel %vm85, %v76, 0
  %v258 = vsel %vm85, %v77, 0
  %v261 = vsel %vm85, %v78, 0
  %v264 = vsel %vm85, %v79, 0
  %v267 = vsel %vm85, %v80, 0
  %v270 = vsel %vm85, %v81, 0
  %v273 = vsel %vm85, %v82, 0
  %v276 = vsel %vm85, %v83, 0
  %vm278 = vcmask 1043456
  %v280 = vsel %vm278, %v84, 0
  %282 = vmatprep.subr.mxu0 0.0
  %283 = vmatpush1.msra.mxu0 0.0
  %284 = vmatprep.subr.mxu0 0.0
  %285 = vmatpush1.msra.mxu0 0.0
  %286 = vmatprep.subr.mxu0 0.0
  %287 = vmatpush1.msra.mxu0 0.0
  %288 = vmatprep.subr.mxu0 0.0
  %289 = vmatpush1.msra.mxu0 0.0
  %290 = vmatprep.subr.mxu0 0.0
  %291 = vmatpush1.msra.mxu0 0.0
  %292 = vmatprep.subr.mxu0 0.0
  %293 = vmatpush1.msra.mxu0 0.0
  %294 = vmatprep.subr.mxu0 0.0
  %295 = vmatpush1.msra.mxu0 0.0
  %296 = vmatprep.subr.mxu0 0.0
  %297 = vmatpush1.msra.mxu0 0.0
  %298 = vmatprep.subr.mxu0 0.0
  %299 = vmatpush1.msra.mxu0 0.0
  %300 = vmatprep.subr.mxu0 0.0
  %301 = vmatpush1.msra.mxu0 0.0
  %302 = vmatprep.subr.mxu0 0.0
  %303 = vmatpush1.msra.mxu0 0.0
  %304 = vmatprep.subr.mxu0 0.0
  %305 = vmatpush1.msra.mxu0 0.0
  %306 = vmatprep.subr.mxu0 0.0
  %307 = vmatpush1.msra.mxu0 0.0
  %308 = vmatprep.subr.mxu0 0.0
  %309 = vmatpush1.msra.mxu0 0.0
  %310 = vmatprep.subr.mxu0 0.0
  %311 = vmatpush1.msra.mxu0 0.0
  %312 = vmatprep.subr.mxu0 0.0
  %313 = vmatpush1.msra.mxu0 %v280
  %314 = vmatprep.subr.mxu0 0.0
  %315 = vmatpush2.msra.mxu0 0.0
  %316 = vmatprep.subr.mxu0 0.0
  %317 = vmatpush2.msra.mxu0 0.0
  %318 = vmatprep.subr.mxu0 0.0
  %319 = vmatpush2.msra.mxu0 0.0
  %320 = vmatprep.subr.mxu0 0.0
  %321 = vmatpush2.msra.mxu0 0.0
  %322 = vmatprep.subr.mxu0 0.0
  %323 = vmatpush2.msra.mxu0 0.0
  %324 = vmatprep.subr.mxu0 0.0
  %325 = vmatpush2.msra.mxu0 0.0
  %326 = vmatprep.subr.mxu0 0.0
  %327 = vmatpush2.msra.mxu0 0.0
  %328 = vmatprep.subr.mxu0 0.0
  %329 = vmatpush2.msra.mxu0 0.0
  %330 = vmatprep.subr.mxu0 0.0
  %331 = vmatpush2.msra.mxu0 0.0
  %332 = vmatprep.subr.mxu0 0.0
  %333 = vmatpush2.msra.mxu0 0.0
  %334 = vmatprep.subr.mxu0 0.0
  %335 = vmatpush2.msra.mxu0 0.0
  %336 = vmatprep.subr.mxu0 0.0
  %337 = vmatpush2.msra.mxu0 0.0
  %338 = vmatprep.subr.mxu0 0.0
  %339 = vmatpush2.msra.mxu0 0.0
  %340 = vmatprep.subr.mxu0 0.0
  %341 = vmatpush2.msra.mxu0 0.0
  %342 = vmatprep.subr.mxu0 0.0
  %343 = vmatpush2.msra.mxu0 0.0
  %344 = vmatprep.subr.mxu0 0.0
  %345 = vmatpush2.msra.mxu0 0.0
  %346 = vmatprep.mubr.f32.mxu0 0.0
  %347 = vmatmul.mubr.f32.gmra.mxu0 %v87
  %v348 = vpop.f32.mrf.mxu0
  %v349 = vadd.f32 0.0, %v348
  %v350 = vpop.f32.mrf.mxu0
  %351 = vmatprep.mubr.f32.mxu0 0.0
  %352 = vmatmul.mubr.f32.gmra.mxu0 %v90
  %v353 = vpop.f32.mrf.mxu0
  %v354 = vadd.f32 0.0, %v353
  %v355 = vpop.f32.mrf.mxu0
  %356 = vmatprep.mubr.f32.mxu0 0.0
  %357 = vmatmul.mubr.f32.gmra.mxu0 %v93
  %v358 = vpop.f32.mrf.mxu0
  %v359 = vadd.f32 0.0, %v358
  %v360 = vpop.f32.mrf.mxu0
  %361 = vmatprep.mubr.f32.mxu0 0.0
  %362 = vmatmul.mubr.f32.gmra.mxu0 %v96
  %v363 = vpop.f32.mrf.mxu0
  %v364 = vadd.f32 0.0, %v363
  %v365 = vpop.f32.mrf.mxu0
  %366 = vmatprep.mubr.f32.mxu0 0.0
  %367 = vmatmul.mubr.f32.gmra.mxu0 %v99
  %v368 = vpop.f32.mrf.mxu0
  %v369 = vadd.f32 0.0, %v368
  %v370 = vpop.f32.mrf.mxu0
  %371 = vmatprep.mubr.f32.mxu0 0.0
  %372 = vmatmul.mubr.f32.gmra.mxu0 %v102
  %v373 = vpop.f32.mrf.mxu0
  %v374 = vadd.f32 0.0, %v373
  %v375 = vpop.f32.mrf.mxu0
  %376 = vmatprep.mubr.f32.mxu0 0.0
  %377 = vmatmul.mubr.f32.gmra.mxu0 %v105
  %v378 = vpop.f32.mrf.mxu0
  %v379 = vadd.f32 0.0, %v378
  %v380 = vpop.f32.mrf.mxu0
  %381 = vmatprep.mubr.f32.mxu0 0.0
  %382 = vmatmul.mubr.f32.gmra.mxu0 %v108
  %v383 = vpop.f32.mrf.mxu0
  %v384 = vadd.f32 0.0, %v383
  %v385 = vpop.f32.mrf.mxu0
  %386 = vmatprep.mubr.f32.mxu0 0.0
  %387 = vmatmul.mubr.f32.gmra.mxu0 %v111
  %v388 = vpop.f32.mrf.mxu0
  %v389 = vadd.f32 0.0, %v388
  %v390 = vpop.f32.mrf.mxu0
  %391 = vmatprep.mubr.f32.mxu0 0.0
  %392 = vmatmul.mubr.f32.gmra.mxu0 %v114
  %v393 = vpop.f32.mrf.mxu0
  %v394 = vadd.f32 0.0, %v393
  %v395 = vpop.f32.mrf.mxu0
  %396 = vmatprep.mubr.f32.mxu0 0.0
  %397 = vmatmul.mubr.f32.gmra.mxu0 %v117
  %v398 = vpop.f32.mrf.mxu0
  %v399 = vadd.f32 0.0, %v398
  %v400 = vpop.f32.mrf.mxu0
  %401 = vmatprep.mubr.f32.mxu0 0.0
  %402 = vmatmul.mubr.f32.gmra.mxu0 %v120
  %v403 = vpop.f32.mrf.mxu0
  %v404 = vadd.f32 0.0, %v403
  %v405 = vpop.f32.mrf.mxu0
  %406 = vmatprep.mubr.f32.mxu0 0.0
  %407 = vmatmul.mubr.f32.gmra.mxu0 %v123
  %v408 = vpop.f32.mrf.mxu0
  %v409 = vadd.f32 0.0, %v408
  %v410 = vpop.f32.mrf.mxu0
  %411 = vmatprep.mubr.f32.mxu0 0.0
  %412 = vmatmul.mubr.f32.gmra.mxu0 %v126
  %v413 = vpop.f32.mrf.mxu0
  %v414 = vadd.f32 0.0, %v413
  %v415 = vpop.f32.mrf.mxu0
  %416 = vmatprep.mubr.f32.mxu0 0.0
  %417 = vmatmul.mubr.f32.gmra.mxu0 %v129
  %v418 = vpop.f32.mrf.mxu0
  %v419 = vadd.f32 0.0, %v418
  %v420 = vpop.f32.mrf.mxu0
  %421 = vmatprep.mubr.f32.mxu0 0.0
  %422 = vmatmul.mubr.f32.gmra.mxu0 %v132
  %v423 = vpop.f32.mrf.mxu0
  %v424 = vadd.f32 0.0, %v423
  %v425 = vpop.f32.mrf.mxu0
  %426 = vmatprep.mubr.f32.mxu0 0.0
  %427 = vmatmul.mubr.f32.gmra.mxu0 %v135
  %v428 = vpop.f32.mrf.mxu0
  %v429 = vadd.f32 0.0, %v428
  %v430 = vpop.f32.mrf.mxu0
  %431 = vmatprep.mubr.f32.mxu0 0.0
  %432 = vmatmul.mubr.f32.gmra.mxu0 %v138
  %v433 = vpop.f32.mrf.mxu0
  %v434 = vadd.f32 0.0, %v433
  %v435 = vpop.f32.mrf.mxu0
  %436 = vmatprep.mubr.f32.mxu0 0.0
  %437 = vmatmul.mubr.f32.gmra.mxu0 %v141
  %v438 = vpop.f32.mrf.mxu0
  %v439 = vadd.f32 0.0, %v438
  %v440 = vpop.f32.mrf.mxu0
  %441 = vmatprep.mubr.f32.mxu0 0.0
  %442 = vmatmul.mubr.f32.gmra.mxu0 %v144
  %v443 = vpop.f32.mrf.mxu0
  %v444 = vadd.f32 0.0, %v443
  %v445 = vpop.f32.mrf.mxu0
  %446 = vmatprep.mubr.f32.mxu0 0.0
  %447 = vmatmul.mubr.f32.gmra.mxu0 %v147
  %v448 = vpop.f32.mrf.mxu0
  %v449 = vadd.f32 0.0, %v448
  %v450 = vpop.f32.mrf.mxu0
  %451 = vmatprep.mubr.f32.mxu0 0.0
  %452 = vmatmul.mubr.f32.gmra.mxu0 %v150
  %v453 = vpop.f32.mrf.mxu0
  %v454 = vadd.f32 0.0, %v453
  %v455 = vpop.f32.mrf.mxu0
  %456 = vmatprep.mubr.f32.mxu0 0.0
  %457 = vmatmul.mubr.f32.gmra.mxu0 %v153
  %v458 = vpop.f32.mrf.mxu0
  %v459 = vadd.f32 0.0, %v458
  %v460 = vpop.f32.mrf.mxu0
  %461 = vmatprep.mubr.f32.mxu0 0.0
  %462 = vmatmul.mubr.f32.gmra.mxu0 %v156
  %v463 = vpop.f32.mrf.mxu0
  %v464 = vadd.f32 0.0, %v463
  %v465 = vpop.f32.mrf.mxu0
  %466 = vmatprep.mubr.f32.mxu0 0.0
  %467 = vmatmul.mubr.f32.gmra.mxu0 %v159
  %v468 = vpop.f32.mrf.mxu0
  %v469 = vadd.f32 0.0, %v468
  %v470 = vpop.f32.mrf.mxu0
  %471 = vmatprep.mubr.f32.mxu0 0.0
  %472 = vmatmul.mubr.f32.gmra.mxu0 %v162
  %v473 = vpop.f32.mrf.mxu0
  %v474 = vadd.f32 0.0, %v473
  %v475 = vpop.f32.mrf.mxu0
  %476 = vmatprep.mubr.f32.mxu0 0.0
  %477 = vmatmul.mubr.f32.gmra.mxu0 %v165
  %v478 = vpop.f32.mrf.mxu0
  %v479 = vadd.f32 0.0, %v478
  %v480 = vpop.f32.mrf.mxu0
  %481 = vmatprep.mubr.f32.mxu0 0.0
  %482 = vmatmul.mubr.f32.gmra.mxu0 %v168
  %v483 = vpop.f32.mrf.mxu0
  %v484 = vadd.f32 0.0, %v483
  %v485 = vpop.f32.mrf.mxu0
  %486 = vmatprep.mubr.f32.mxu0 0.0
  %487 = vmatmul.mubr.f32.gmra.mxu0 %v171
  %v488 = vpop.f32.mrf.mxu0
  %v489 = vadd.f32 0.0, %v488
  %v490 = vpop.f32.mrf.mxu0
  %491 = vmatprep.mubr.f32.mxu0 0.0
  %492 = vmatmul.mubr.f32.gmra.mxu0 %v174
  %v493 = vpop.f32.mrf.mxu0
  %v494 = vadd.f32 0.0, %v493
  %v495 = vpop.f32.mrf.mxu0
  %496 = vmatprep.mubr.f32.mxu0 0.0
  %497 = vmatmul.mubr.f32.gmra.mxu0 %v177
  %v498 = vpop.f32.mrf.mxu0
  %v499 = vadd.f32 0.0, %v498
  %v500 = vpop.f32.mrf.mxu0
  %501 = vmatprep.mubr.f32.mxu0 0.0
  %502 = vmatmul.mubr.f32.gmra.mxu0 %v180
  %v503 = vpop.f32.mrf.mxu0
  %v504 = vadd.f32 0.0, %v503
  %v505 = vpop.f32.mrf.mxu0
  %506 = vmatprep.mubr.f32.mxu0 0.0
  %507 = vmatmul.mubr.f32.gmra.mxu0 %v183
  %v508 = vpop.f32.mrf.mxu0
  %v509 = vadd.f32 0.0, %v508
  %v510 = vpop.f32.mrf.mxu0
  %511 = vmatprep.mubr.f32.mxu0 0.0
  %512 = vmatmul.mubr.f32.gmra.mxu0 %v186
  %v513 = vpop.f32.mrf.mxu0
  %v514 = vadd.f32 0.0, %v513
  %v515 = vpop.f32.mrf.mxu0
  %516 = vmatprep.mubr.f32.mxu0 0.0
  %517 = vmatmul.mubr.f32.gmra.mxu0 %v189
  %v518 = vpop.f32.mrf.mxu0
  %v519 = vadd.f32 0.0, %v518
  %v520 = vpop.f32.mrf.mxu0
  %521 = vmatprep.mubr.f32.mxu0 0.0
  %522 = vmatmul.mubr.f32.gmra.mxu0 %v192
  %v523 = vpop.f32.mrf.mxu0
  %v524 = vadd.f32 0.0, %v523
  %v525 = vpop.f32.mrf.mxu0
  %526 = vmatprep.mubr.f32.mxu0 0.0
  %527 = vmatmul.mubr.f32.gmra.mxu0 %v195
  %v528 = vpop.f32.mrf.mxu0
  %v529 = vadd.f32 0.0, %v528
  %v530 = vpop.f32.mrf.mxu0
  %531 = vmatprep.mubr.f32.mxu0 0.0
  %532 = vmatmul.mubr.f32.gmra.mxu0 %v198
  %v533 = vpop.f32.mrf.mxu0
  %v534 = vadd.f32 0.0, %v533
  %v535 = vpop.f32.mrf.mxu0
  %536 = vmatprep.mubr.f32.mxu0 0.0
  %537 = vmatmul.mubr.f32.gmra.mxu0 %v201
  %v538 = vpop.f32.mrf.mxu0
  %v539 = vadd.f32 0.0, %v538
  %v540 = vpop.f32.mrf.mxu0
  %541 = vmatprep.mubr.f32.mxu0 0.0
  %542 = vmatmul.mubr.f32.gmra.mxu0 %v204
  %v543 = vpop.f32.mrf.mxu0
  %v544 = vadd.f32 0.0, %v543
  %v545 = vpop.f32.mrf.mxu0
  %546 = vmatprep.mubr.f32.mxu0 0.0
  %547 = vmatmul.mubr.f32.gmra.mxu0 %v207
  %v548 = vpop.f32.mrf.mxu0
  %v549 = vadd.f32 0.0, %v548
  %v550 = vpop.f32.mrf.mxu0
  %551 = vmatprep.mubr.f32.mxu0 0.0
  %552 = vmatmul.mubr.f32.gmra.mxu0 %v210
  %v553 = vpop.f32.mrf.mxu0
  %v554 = vadd.f32 0.0, %v553
  %v555 = vpop.f32.mrf.mxu0
  %556 = vmatprep.mubr.f32.mxu0 0.0
  %557 = vmatmul.mubr.f32.gmra.mxu0 %v213
  %v558 = vpop.f32.mrf.mxu0
  %v559 = vadd.f32 0.0, %v558
  %v560 = vpop.f32.mrf.mxu0
  %561 = vmatprep.mubr.f32.mxu0 0.0
  %562 = vmatmul.mubr.f32.gmra.mxu0 %v216
  %v563 = vpop.f32.mrf.mxu0
  %v564 = vadd.f32 0.0, %v563
  %v565 = vpop.f32.mrf.mxu0
  %566 = vmatprep.mubr.f32.mxu0 0.0
  %567 = vmatmul.mubr.f32.gmra.mxu0 %v219
  %v568 = vpop.f32.mrf.mxu0
  %v569 = vadd.f32 0.0, %v568
  %v570 = vpop.f32.mrf.mxu0
  %571 = vmatprep.mubr.f32.mxu0 0.0
  %572 = vmatmul.mubr.f32.gmra.mxu0 %v222
  %v573 = vpop.f32.mrf.mxu0
  %v574 = vadd.f32 0.0, %v573
  %v575 = vpop.f32.mrf.mxu0
  %576 = vmatprep.mubr.f32.mxu0 0.0
  %577 = vmatmul.mubr.f32.gmra.mxu0 %v225
  %v578 = vpop.f32.mrf.mxu0
  %v579 = vadd.f32 0.0, %v578
  %v580 = vpop.f32.mrf.mxu0
  %581 = vmatprep.mubr.f32.mxu0 0.0
  %582 = vmatmul.mubr.f32.gmra.mxu0 %v228
  %v583 = vpop.f32.mrf.mxu0
  %v584 = vadd.f32 0.0, %v583
  %v585 = vpop.f32.mrf.mxu0
  %586 = vmatprep.mubr.f32.mxu0 0.0
  %587 = vmatmul.mubr.f32.gmra.mxu0 %v231
  %v588 = vpop.f32.mrf.mxu0
  %v589 = vadd.f32 0.0, %v588
  %v590 = vpop.f32.mrf.mxu0
  %591 = vmatprep.mubr.f32.mxu0 0.0
  %592 = vmatmul.mubr.f32.gmra.mxu0 %v234
  %v593 = vpop.f32.mrf.mxu0
  %v594 = vadd.f32 0.0, %v593
  %v595 = vpop.f32.mrf.mxu0
  %596 = vmatprep.mubr.f32.mxu0 0.0
  %597 = vmatmul.mubr.f32.gmra.mxu0 %v237
  %v598 = vpop.f32.mrf.mxu0
  %v599 = vadd.f32 0.0, %v598
  %v600 = vpop.f32.mrf.mxu0
  %601 = vmatprep.mubr.f32.mxu0 0.0
  %602 = vmatmul.mubr.f32.gmra.mxu0 %v240
  %v603 = vpop.f32.mrf.mxu0
  %v604 = vadd.f32 0.0, %v603
  %v605 = vpop.f32.mrf.mxu0
  %606 = vmatprep.mubr.f32.mxu0 0.0
  %607 = vmatmul.mubr.f32.gmra.mxu0 %v243
  %v608 = vpop.f32.mrf.mxu0
  %v609 = vadd.f32 0.0, %v608
  %v610 = vpop.f32.mrf.mxu0
  %611 = vmatprep.mubr.f32.mxu0 0.0
  %612 = vmatmul.mubr.f32.gmra.mxu0 %v246
  %v613 = vpop.f32.mrf.mxu0
  %v614 = vadd.f32 0.0, %v613
  %v615 = vpop.f32.mrf.mxu0
  %616 = vmatprep.mubr.f32.mxu0 0.0
  %617 = vmatmul.mubr.f32.gmra.mxu0 %v249
  %v618 = vpop.f32.mrf.mxu0
  %v619 = vadd.f32 0.0, %v618
  %v620 = vpop.f32.mrf.mxu0
  %621 = vmatprep.mubr.f32.mxu0 0.0
  %622 = vmatmul.mubr.f32.gmra.mxu0 %v252
  %v623 = vpop.f32.mrf.mxu0
  %v624 = vadd.f32 0.0, %v623
  %v625 = vpop.f32.mrf.mxu0
  %626 = vmatprep.mubr.f32.mxu0 0.0
  %627 = vmatmul.mubr.f32.gmra.mxu0 %v255
  %v628 = vpop.f32.mrf.mxu0
  %v629 = vadd.f32 0.0, %v628
  %v630 = vpop.f32.mrf.mxu0
  %631 = vmatprep.mubr.f32.mxu0 0.0
  %632 = vmatmul.mubr.f32.gmra.mxu0 %v258
  %v633 = vpop.f32.mrf.mxu0
  %v634 = vadd.f32 0.0, %v633
  %v635 = vpop.f32.mrf.mxu0
  %636 = vmatprep.mubr.f32.mxu0 0.0
  %637 = vmatmul.mubr.f32.gmra.mxu0 %v261
  %v638 = vpop.f32.mrf.mxu0
  %v639 = vadd.f32 0.0, %v638
  %v640 = vpop.f32.mrf.mxu0
  %641 = vmatprep.mubr.f32.mxu0 0.0
  %642 = vmatmul.mubr.f32.gmra.mxu0 %v264
  %v643 = vpop.f32.mrf.mxu0
  %v644 = vadd.f32 0.0, %v643
  %v645 = vpop.f32.mrf.mxu0
  %646 = vmatprep.mubr.f32.mxu0 0.0
  %647 = vmatmul.mubr.f32.gmra.mxu0 %v267
  %v648 = vpop.f32.mrf.mxu0
  %v649 = vadd.f32 0.0, %v648
  %v650 = vpop.f32.mrf.mxu0
  %651 = vmatprep.mubr.f32.mxu0 0.0
  %652 = vmatmul.mubr.f32.gmra.mxu0 %v270
  %v653 = vpop.f32.mrf.mxu0
  %v654 = vadd.f32 0.0, %v653
  %v655 = vpop.f32.mrf.mxu0
  %656 = vmatprep.mubr.f32.mxu0 0.0
  %657 = vmatmul.mubr.f32.gmra.mxu0 %v273
  %v658 = vpop.f32.mrf.mxu0
  %v659 = vadd.f32 0.0, %v658
  %v660 = vpop.f32.mrf.mxu0
  %661 = vmatprep.mubr.f32.mxu0 0.0
  %662 = vmatmul.mubr.f32.gmra.mxu0 %v276
  %v663 = vpop.f32.mrf.mxu0
  %v664 = vadd.f32 0.0, %v663
  %v665 = vpop.f32.mrf.mxu0
  %666 = vdwg.mxu0
  %v667 = vld [vmem:[%s2] sm:$0x1]
  %v669 = vlaneseq
  %v670 = vshrl.u32 %v669, 7
  %v671 = vsub.s32 0, %v670
  %v672 = vrot.slane %v667, %v671
  %v674 = vmul.f32 %v349, %v672
  %v675 = vmul.f32 %v354, %v672
  %v676 = vmul.f32 %v359, %v672
  %v677 = vmul.f32 %v364, %v672
  %v678 = vmul.f32 %v369, %v672
  %v679 = vmul.f32 %v374, %v672
  %v680 = vmul.f32 %v379, %v672
  %v681 = vmul.f32 %v384, %v672
  %v682 = vmul.f32 %v389, %v672
  %v683 = vmul.f32 %v394, %v672
  %v684 = vmul.f32 %v399, %v672
  %v685 = vmul.f32 %v404, %v672
  %v686 = vmul.f32 %v409, %v672
  %v687 = vmul.f32 %v414, %v672
  %v688 = vmul.f32 %v419, %v672
  %v689 = vmul.f32 %v424, %v672
  %v690 = vmul.f32 %v429, %v672
  %v691 = vmul.f32 %v434, %v672
  %v692 = vmul.f32 %v439, %v672
  %v693 = vmul.f32 %v444, %v672
  %v694 = vmul.f32 %v449, %v672
  %v695 = vmul.f32 %v454, %v672
  %v696 = vmul.f32 %v459, %v672
  %v697 = vmul.f32 %v464, %v672
  %v698 = vmul.f32 %v469, %v672
  %v699 = vmul.f32 %v474, %v672
  %v700 = vmul.f32 %v479, %v672
  %v701 = vmul.f32 %v484, %v672
  %v702 = vmul.f32 %v489, %v672
  %v703 = vmul.f32 %v494, %v672
  %v704 = vmul.f32 %v499, %v672
  %v705 = vmul.f32 %v504, %v672
  %v706 = vmul.f32 %v509, %v672
  %v707 = vmul.f32 %v514, %v672
  %v708 = vmul.f32 %v519, %v672
  %v709 = vmul.f32 %v524, %v672
  %v710 = vmul.f32 %v529, %v672
  %v711 = vmul.f32 %v534, %v672
  %v712 = vmul.f32 %v539, %v672
  %v713 = vmul.f32 %v544, %v672
  %v714 = vmul.f32 %v549, %v672
  %v715 = vmul.f32 %v554, %v672
  %v716 = vmul.f32 %v559, %v672
  %v717 = vmul.f32 %v564, %v672
  %v718 = vmul.f32 %v569, %v672
  %v719 = vmul.f32 %v574, %v672
  %v720 = vmul.f32 %v579, %v672
  %v721 = vmul.f32 %v584, %v672
  %v722 = vmul.f32 %v589, %v672
  %v723 = vmul.f32 %v594, %v672
  %v724 = vmul.f32 %v599, %v672
  %v725 = vmul.f32 %v604, %v672
  %v726 = vmul.f32 %v609, %v672
  %v727 = vmul.f32 %v614, %v672
  %v728 = vmul.f32 %v619, %v672
  %v729 = vmul.f32 %v624, %v672
  %v730 = vmul.f32 %v629, %v672
  %v731 = vmul.f32 %v634, %v672
  %v732 = vmul.f32 %v639, %v672
  %v733 = vmul.f32 %v644, %v672
  %v734 = vmul.f32 %v649, %v672
  %v735 = vmul.f32 %v654, %v672
  %v736 = vmul.f32 %v659, %v672
  %v737 = vmul.f32 %v664, %v672
  %v738 = vld [vmem:[%s3] sm:$0x1]
  %v740 = vlaneseq
  %v741 = vshrl.u32 %v740, 7
  %v742 = vsub.s32 0, %v741
  %v743 = vrot.slane %v738, %v742
  %v745 = vadd.f32 %v674, %v743
  %v746 = vadd.f32 %v675, %v743
  %v747 = vadd.f32 %v676, %v743
  %v748 = vadd.f32 %v677, %v743
  %v749 = vadd.f32 %v678, %v743
  %v750 = vadd.f32 %v679, %v743
  %v751 = vadd.f32 %v680, %v743
  %v752 = vadd.f32 %v681, %v743
  %v753 = vadd.f32 %v682, %v743
  %v754 = vadd.f32 %v683, %v743
  %v755 = vadd.f32 %v684, %v743
  %v756 = vadd.f32 %v685, %v743
  %v757 = vadd.f32 %v686, %v743
  %v758 = vadd.f32 %v687, %v743
  %v759 = vadd.f32 %v688, %v743
  %v760 = vadd.f32 %v689, %v743
  %v761 = vadd.f32 %v690, %v743
  %v762 = vadd.f32 %v691, %v743
  %v763 = vadd.f32 %v692, %v743
  %v764 = vadd.f32 %v693, %v743
  %v765 = vadd.f32 %v694, %v743
  %v766 = vadd.f32 %v695, %v743
  %v767 = vadd.f32 %v696, %v743
  %v768 = vadd.f32 %v697, %v743
  %v769 = vadd.f32 %v698, %v743
  %v770 = vadd.f32 %v699, %v743
  %v771 = vadd.f32 %v700, %v743
  %v772 = vadd.f32 %v701, %v743
  %v773 = vadd.f32 %v702, %v743
  %v774 = vadd.f32 %v703, %v743
  %v775 = vadd.f32 %v704, %v743
  %v776 = vadd.f32 %v705, %v743
  %v777 = vadd.f32 %v706, %v743
  %v778 = vadd.f32 %v707, %v743
  %v779 = vadd.f32 %v708, %v743
  %v780 = vadd.f32 %v709, %v743
  %v781 = vadd.f32 %v710, %v743
  %v782 = vadd.f32 %v711, %v743
  %v783 = vadd.f32 %v712, %v743
  %v784 = vadd.f32 %v713, %v743
  %v785 = vadd.f32 %v714, %v743
  %v786 = vadd.f32 %v715, %v743
  %v787 = vadd.f32 %v716, %v743
  %v788 = vadd.f32 %v717, %v743
  %v789 = vadd.f32 %v718, %v743
  %v790 = vadd.f32 %v719, %v743
  %v791 = vadd.f32 %v720, %v743
  %v792 = vadd.f32 %v721, %v743
  %v793 = vadd.f32 %v722, %v743
  %v794 = vadd.f32 %v723, %v743
  %v795 = vadd.f32 %v724, %v743
  %v796 = vadd.f32 %v725, %v743
  %v797 = vadd.f32 %v726, %v743
  %v798 = vadd.f32 %v727, %v743
  %v799 = vadd.f32 %v728, %v743
  %v800 = vadd.f32 %v729, %v743
  %v801 = vadd.f32 %v730, %v743
  %v802 = vadd.f32 %v731, %v743
  %v803 = vadd.f32 %v732, %v743
  %v804 = vadd.f32 %v733, %v743
  %v805 = vadd.f32 %v734, %v743
  %v806 = vadd.f32 %v735, %v743
  %v807 = vadd.f32 %v736, %v743
  %v808 = vadd.f32 %v737, %v743
  %v809 = vxor.u32 %v745, 2147483648
  %v810 = vxor.u32 %v746, 2147483648
  %v811 = vxor.u32 %v747, 2147483648
  %v812 = vxor.u32 %v748, 2147483648
  %v813 = vxor.u32 %v749, 2147483648
  %v814 = vxor.u32 %v750, 2147483648
  %v815 = vxor.u32 %v751, 2147483648
  %v816 = vxor.u32 %v752, 2147483648
  %v817 = vxor.u32 %v753, 2147483648
  %v818 = vxor.u32 %v754, 2147483648
  %v819 = vxor.u32 %v755, 2147483648
  %v820 = vxor.u32 %v756, 2147483648
  %v821 = vxor.u32 %v757, 2147483648
  %v822 = vxor.u32 %v758, 2147483648
  %v823 = vxor.u32 %v759, 2147483648
  %v824 = vxor.u32 %v760, 2147483648
  %v825 = vxor.u32 %v761, 2147483648
  %v826 = vxor.u32 %v762, 2147483648
  %v827 = vxor.u32 %v763, 2147483648
  %v828 = vxor.u32 %v764, 2147483648
  %v829 = vxor.u32 %v765, 2147483648
  %v830 = vxor.u32 %v766, 2147483648
  %v831 = vxor.u32 %v767, 2147483648
  %v832 = vxor.u32 %v768, 2147483648
  %v833 = vxor.u32 %v769, 2147483648
  %v834 = vxor.u32 %v770, 2147483648
  %v835 = vxor.u32 %v771, 2147483648
  %v836 = vxor.u32 %v772, 2147483648
  %v837 = vxor.u32 %v773, 2147483648
  %v838 = vxor.u32 %v774, 2147483648
  %v839 = vxor.u32 %v775, 2147483648
  %v840 = vxor.u32 %v776, 2147483648
  %v841 = vxor.u32 %v777, 2147483648
  %v842 = vxor.u32 %v778, 2147483648
  %v843 = vxor.u32 %v779, 2147483648
  %v844 = vxor.u32 %v780, 2147483648
  %v845 = vxor.u32 %v781, 2147483648
  %v846 = vxor.u32 %v782, 2147483648
  %v847 = vxor.u32 %v783, 2147483648
  %v848 = vxor.u32 %v784, 2147483648
  %v849 = vxor.u32 %v785, 2147483648
  %v850 = vxor.u32 %v786, 2147483648
  %v851 = vxor.u32 %v787, 2147483648
  %v852 = vxor.u32 %v788, 2147483648
  %v853 = vxor.u32 %v789, 2147483648
  %v854 = vxor.u32 %v790, 2147483648
  %v855 = vxor.u32 %v791, 2147483648
  %v856 = vxor.u32 %v792, 2147483648
  %v857 = vxor.u32 %v793, 2147483648
  %v858 = vxor.u32 %v794, 2147483648
  %v859 = vxor.u32 %v795, 2147483648
  %v860 = vxor.u32 %v796, 2147483648
  %v861 = vxor.u32 %v797, 2147483648
  %v862 = vxor.u32 %v798, 2147483648
  %v863 = vxor.u32 %v799, 2147483648
  %v864 = vxor.u32 %v800, 2147483648
  %v865 = vxor.u32 %v801, 2147483648
  %v866 = vxor.u32 %v802, 2147483648
  %v867 = vxor.u32 %v803, 2147483648
  %v868 = vxor.u32 %v804, 2147483648
  %v869 = vxor.u32 %v805, 2147483648
  %v870 = vxor.u32 %v806, 2147483648
  %v871 = vxor.u32 %v807, 2147483648
  %v872 = vxor.u32 %v808, 2147483648
  %v873 = vmul.f32 %v809, 1.442695
  %v874 = vpow.pop %v873
  %v875 = vmul.f32 %v810, 1.442695
  %v876 = vpow.pop %v875
  %v877 = vmul.f32 %v811, 1.442695
  %v878 = vpow.pop %v877
  %v879 = vmul.f32 %v812, 1.442695
  %v880 = vpow.pop %v879
  %v881 = vmul.f32 %v813, 1.442695
  %v882 = vpow.pop %v881
  %v883 = vmul.f32 %v814, 1.442695
  %v884 = vpow.pop %v883
  %v885 = vmul.f32 %v815, 1.442695
  %v886 = vpow.pop %v885
  %v887 = vmul.f32 %v816, 1.442695
  %v888 = vpow.pop %v887
  %v889 = vmul.f32 %v817, 1.442695
  %v890 = vpow.pop %v889
  %v891 = vmul.f32 %v818, 1.442695
  %v892 = vpow.pop %v891
  %v893 = vmul.f32 %v819, 1.442695
  %v894 = vpow.pop %v893
  %v895 = vmul.f32 %v820, 1.442695
  %v896 = vpow.pop %v895
  %v897 = vmul.f32 %v821, 1.442695
  %v898 = vpow.pop %v897
  %v899 = vmul.f32 %v822, 1.442695
  %v900 = vpow.pop %v899
  %v901 = vmul.f32 %v823, 1.442695
  %v902 = vpow.pop %v901
  %v903 = vmul.f32 %v824, 1.442695
  %v904 = vpow.pop %v903
  %v905 = vmul.f32 %v825, 1.442695
  %v906 = vpow.pop %v905
  %v907 = vmul.f32 %v826, 1.442695
  %v908 = vpow.pop %v907
  %v909 = vmul.f32 %v827, 1.442695
  %v910 = vpow.pop %v909
  %v911 = vmul.f32 %v828, 1.442695
  %v912 = vpow.pop %v911
  %v913 = vmul.f32 %v829, 1.442695
  %v914 = vpow.pop %v913
  %v915 = vmul.f32 %v830, 1.442695
  %v916 = vpow.pop %v915
  %v917 = vmul.f32 %v831, 1.442695
  %v918 = vpow.pop %v917
  %v919 = vmul.f32 %v832, 1.442695
  %v920 = vpow.pop %v919
  %v921 = vmul.f32 %v833, 1.442695
  %v922 = vpow.pop %v921
  %v923 = vmul.f32 %v834, 1.442695
  %v924 = vpow.pop %v923
  %v925 = vmul.f32 %v835, 1.442695
  %v926 = vpow.pop %v925
  %v927 = vmul.f32 %v836, 1.442695
  %v928 = vpow.pop %v927
  %v929 = vmul.f32 %v837, 1.442695
  %v930 = vpow.pop %v929
  %v931 = vmul.f32 %v838, 1.442695
  %v932 = vpow.pop %v931
  %v933 = vmul.f32 %v839, 1.442695
  %v934 = vpow.pop %v933
  %v935 = vmul.f32 %v840, 1.442695
  %v936 = vpow.pop %v935
  %v937 = vmul.f32 %v841, 1.442695
  %v938 = vpow.pop %v937
  %v939 = vmul.f32 %v842, 1.442695
  %v940 = vpow.pop %v939
  %v941 = vmul.f32 %v843, 1.442695
  %v942 = vpow.pop %v941
  %v943 = vmul.f32 %v844, 1.442695
  %v944 = vpow.pop %v943
  %v945 = vmul.f32 %v845, 1.442695
  %v946 = vpow.pop %v945
  %v947 = vmul.f32 %v846, 1.442695
  %v948 = vpow.pop %v947
  %v949 = vmul.f32 %v847, 1.442695
  %v950 = vpow.pop %v949
  %v951 = vmul.f32 %v848, 1.442695
  %v952 = vpow.pop %v951
  %v953 = vmul.f32 %v849, 1.442695
  %v954 = vpow.pop %v953
  %v955 = vmul.f32 %v850, 1.442695
  %v956 = vpow.pop %v955
  %v957 = vmul.f32 %v851, 1.442695
  %v958 = vpow.pop %v957
  %v959 = vmul.f32 %v852, 1.442695
  %v960 = vpow.pop %v959
  %v961 = vmul.f32 %v853, 1.442695
  %v962 = vpow.pop %v961
  %v963 = vmul.f32 %v854, 1.442695
  %v964 = vpow.pop %v963
  %v965 = vmul.f32 %v855, 1.442695
  %v966 = vpow.pop %v965
  %v967 = vmul.f32 %v856, 1.442695
  %v968 = vpow.pop %v967
  %v969 = vmul.f32 %v857, 1.442695
  %v970 = vpow.pop %v969
  %v971 = vmul.f32 %v858, 1.442695
  %v972 = vpow.pop %v971
  %v973 = vmul.f32 %v859, 1.442695
  %v974 = vpow.pop %v973
  %v975 = vmul.f32 %v860, 1.442695
  %v976 = vpow.pop %v975
  %v977 = vmul.f32 %v861, 1.442695
  %v978 = vpow.pop %v977
  %v979 = vmul.f32 %v862, 1.442695
  %v980 = vpow.pop %v979
  %v981 = vmul.f32 %v863, 1.442695
  %v982 = vpow.pop %v981
  %v983 = vmul.f32 %v864, 1.442695
  %v984 = vpow.pop %v983
  %v985 = vmul.f32 %v865, 1.442695
  %v986 = vpow.pop %v985
  %v987 = vmul.f32 %v866, 1.442695
  %v988 = vpow.pop %v987
  %v989 = vmul.f32 %v867, 1.442695
  %v990 = vpow.pop %v989
  %v991 = vmul.f32 %v868, 1.442695
  %v992 = vpow.pop %v991
  %v993 = vmul.f32 %v869, 1.442695
  %v994 = vpow.pop %v993
  %v995 = vmul.f32 %v870, 1.442695
  %v996 = vpow.pop %v995
  %v997 = vmul.f32 %v871, 1.442695
  %v998 = vpow.pop %v997
  %v999 = vmul.f32 %v872, 1.442695
  %v1000 = vpow.pop %v999
  %v1001 = vadd.f32 %v874, 1.0
  %v1002 = vadd.f32 %v876, 1.0
  %v1003 = vadd.f32 %v878, 1.0
  %v1004 = vadd.f32 %v880, 1.0
  %v1005 = vadd.f32 %v882, 1.0
  %v1006 = vadd.f32 %v884, 1.0
  %v1007 = vadd.f32 %v886, 1.0
  %v1008 = vadd.f32 %v888, 1.0
  %v1009 = vadd.f32 %v890, 1.0
  %v1010 = vadd.f32 %v892, 1.0
  %v1011 = vadd.f32 %v894, 1.0
  %v1012 = vadd.f32 %v896, 1.0
  %v1013 = vadd.f32 %v898, 1.0
  %v1014 = vadd.f32 %v900, 1.0
  %v1015 = vadd.f32 %v902, 1.0
  %v1016 = vadd.f32 %v904, 1.0
  %v1017 = vadd.f32 %v906, 1.0
  %v1018 = vadd.f32 %v908, 1.0
  %v1019 = vadd.f32 %v910, 1.0
  %v1020 = vadd.f32 %v912, 1.0
  %v1021 = vadd.f32 %v914, 1.0
  %v1022 = vadd.f32 %v916, 1.0
  %v1023 = vadd.f32 %v918, 1.0
  %v1024 = vadd.f32 %v920, 1.0
  %v1025 = vadd.f32 %v922, 1.0
  %v1026 = vadd.f32 %v924, 1.0
  %v1027 = vadd.f32 %v926, 1.0
  %v1028 = vadd.f32 %v928, 1.0
  %v1029 = vadd.f32 %v930, 1.0
  %v1030 = vadd.f32 %v932, 1.0
  %v1031 = vadd.f32 %v934, 1.0
  %v1032 = vadd.f32 %v936, 1.0
  %v1033 = vadd.f32 %v938, 1.0
  %v1034 = vadd.f32 %v940, 1.0
  %v1035 = vadd.f32 %v942, 1.0
  %v1036 = vadd.f32 %v944, 1.0
  %v1037 = vadd.f32 %v946, 1.0
  %v1038 = vadd.f32 %v948, 1.0
  %v1039 = vadd.f32 %v950, 1.0
  %v1040 = vadd.f32 %v952, 1.0
  %v1041 = vadd.f32 %v954, 1.0
  %v1042 = vadd.f32 %v956, 1.0
  %v1043 = vadd.f32 %v958, 1.0
  %v1044 = vadd.f32 %v960, 1.0
  %v1045 = vadd.f32 %v962, 1.0
  %v1046 = vadd.f32 %v964, 1.0
  %v1047 = vadd.f32 %v966, 1.0
  %v1048 = vadd.f32 %v968, 1.0
  %v1049 = vadd.f32 %v970, 1.0
  %v1050 = vadd.f32 %v972, 1.0
  %v1051 = vadd.f32 %v974, 1.0
  %v1052 = vadd.f32 %v976, 1.0
  %v1053 = vadd.f32 %v978, 1.0
  %v1054 = vadd.f32 %v980, 1.0
  %v1055 = vadd.f32 %v982, 1.0
  %v1056 = vadd.f32 %v984, 1.0
  %v1057 = vadd.f32 %v986, 1.0
  %v1058 = vadd.f32 %v988, 1.0
  %v1059 = vadd.f32 %v990, 1.0
  %v1060 = vadd.f32 %v992, 1.0
  %v1061 = vadd.f32 %v994, 1.0
  %v1062 = vadd.f32 %v996, 1.0
  %v1063 = vadd.f32 %v998, 1.0
  %v1064 = vadd.f32 %v1000, 1.0
  %v1065 = vrcp.pop %v1001
  %v1066 = vmul.f32 1.0, %v1065
  %v1067 = vrcp.pop %v1002
  %v1068 = vmul.f32 1.0, %v1067
  %v1069 = vrcp.pop %v1003
  %v1070 = vmul.f32 1.0, %v1069
  %v1071 = vrcp.pop %v1004
  %v1072 = vmul.f32 1.0, %v1071
  %v1073 = vrcp.pop %v1005
  %v1074 = vmul.f32 1.0, %v1073
  %v1075 = vrcp.pop %v1006
  %v1076 = vmul.f32 1.0, %v1075
  %v1077 = vrcp.pop %v1007
  %v1078 = vmul.f32 1.0, %v1077
  %v1079 = vrcp.pop %v1008
  %v1080 = vmul.f32 1.0, %v1079
  %v1081 = vrcp.pop %v1009
  %v1082 = vmul.f32 1.0, %v1081
  %v1083 = vrcp.pop %v1010
  %v1084 = vmul.f32 1.0, %v1083
  %v1085 = vrcp.pop %v1011
  %v1086 = vmul.f32 1.0, %v1085
  %v1087 = vrcp.pop %v1012
  %v1088 = vmul.f32 1.0, %v1087
  %v1089 = vrcp.pop %v1013
  %v1090 = vmul.f32 1.0, %v1089
  %v1091 = vrcp.pop %v1014
  %v1092 = vmul.f32 1.0, %v1091
  %v1093 = vrcp.pop %v1015
  %v1094 = vmul.f32 1.0, %v1093
  %v1095 = vrcp.pop %v1016
  %v1096 = vmul.f32 1.0, %v1095
  %v1097 = vrcp.pop %v1017
  %v1098 = vmul.f32 1.0, %v1097
  %v1099 = vrcp.pop %v1018
  %v1100 = vmul.f32 1.0, %v1099
  %v1101 = vrcp.pop %v1019
  %v1102 = vmul.f32 1.0, %v1101
  %v1103 = vrcp.pop %v1020
  %v1104 = vmul.f32 1.0, %v1103
  %v1105 = vrcp.pop %v1021
  %v1106 = vmul.f32 1.0, %v1105
  %v1107 = vrcp.pop %v1022
  %v1108 = vmul.f32 1.0, %v1107
  %v1109 = vrcp.pop %v1023
  %v1110 = vmul.f32 1.0, %v1109
  %v1111 = vrcp.pop %v1024
  %v1112 = vmul.f32 1.0, %v1111
  %v1113 = vrcp.pop %v1025
  %v1114 = vmul.f32 1.0, %v1113
  %v1115 = vrcp.pop %v1026
  %v1116 = vmul.f32 1.0, %v1115
  %v1117 = vrcp.pop %v1027
  %v1118 = vmul.f32 1.0, %v1117
  %v1119 = vrcp.pop %v1028
  %v1120 = vmul.f32 1.0, %v1119
  %v1121 = vrcp.pop %v1029
  %v1122 = vmul.f32 1.0, %v1121
  %v1123 = vrcp.pop %v1030
  %v1124 = vmul.f32 1.0, %v1123
  %v1125 = vrcp.pop %v1031
  %v1126 = vmul.f32 1.0, %v1125
  %v1127 = vrcp.pop %v1032
  %v1128 = vmul.f32 1.0, %v1127
  %v1129 = vrcp.pop %v1033
  %v1130 = vmul.f32 1.0, %v1129
  %v1131 = vrcp.pop %v1034
  %v1132 = vmul.f32 1.0, %v1131
  %v1133 = vrcp.pop %v1035
  %v1134 = vmul.f32 1.0, %v1133
  %v1135 = vrcp.pop %v1036
  %v1136 = vmul.f32 1.0, %v1135
  %v1137 = vrcp.pop %v1037
  %v1138 = vmul.f32 1.0, %v1137
  %v1139 = vrcp.pop %v1038
  %v1140 = vmul.f32 1.0, %v1139
  %v1141 = vrcp.pop %v1039
  %v1142 = vmul.f32 1.0, %v1141
  %v1143 = vrcp.pop %v1040
  %v1144 = vmul.f32 1.0, %v1143
  %v1145 = vrcp.pop %v1041
  %v1146 = vmul.f32 1.0, %v1145
  %v1147 = vrcp.pop %v1042
  %v1148 = vmul.f32 1.0, %v1147
  %v1149 = vrcp.pop %v1043
  %v1150 = vmul.f32 1.0, %v1149
  %v1151 = vrcp.pop %v1044
  %v1152 = vmul.f32 1.0, %v1151
  %v1153 = vrcp.pop %v1045
  %v1154 = vmul.f32 1.0, %v1153
  %v1155 = vrcp.pop %v1046
  %v1156 = vmul.f32 1.0, %v1155
  %v1157 = vrcp.pop %v1047
  %v1158 = vmul.f32 1.0, %v1157
  %v1159 = vrcp.pop %v1048
  %v1160 = vmul.f32 1.0, %v1159
  %v1161 = vrcp.pop %v1049
  %v1162 = vmul.f32 1.0, %v1161
  %v1163 = vrcp.pop %v1050
  %v1164 = vmul.f32 1.0, %v1163
  %v1165 = vrcp.pop %v1051
  %v1166 = vmul.f32 1.0, %v1165
  %v1167 = vrcp.pop %v1052
  %v1168 = vmul.f32 1.0, %v1167
  %v1169 = vrcp.pop %v1053
  %v1170 = vmul.f32 1.0, %v1169
  %v1171 = vrcp.pop %v1054
  %v1172 = vmul.f32 1.0, %v1171
  %v1173 = vrcp.pop %v1055
  %v1174 = vmul.f32 1.0, %v1173
  %v1175 = vrcp.pop %v1056
  %v1176 = vmul.f32 1.0, %v1175
  %v1177 = vrcp.pop %v1057
  %v1178 = vmul.f32 1.0, %v1177
  %v1179 = vrcp.pop %v1058
  %v1180 = vmul.f32 1.0, %v1179
  %v1181 = vrcp.pop %v1059
  %v1182 = vmul.f32 1.0, %v1181
  %v1183 = vrcp.pop %v1060
  %v1184 = vmul.f32 1.0, %v1183
  %v1185 = vrcp.pop %v1061
  %v1186 = vmul.f32 1.0, %v1185
  %v1187 = vrcp.pop %v1062
  %v1188 = vmul.f32 1.0, %v1187
  %v1189 = vrcp.pop %v1063
  %v1190 = vmul.f32 1.0, %v1189
  %v1191 = vrcp.pop %v1064
  %v1192 = vmul.f32 1.0, %v1191
  %v1193 = vmul.f32 %v745, %v1066
  %v1194 = vmul.f32 %v746, %v1068
  %v1195 = vmul.f32 %v747, %v1070
  %v1196 = vmul.f32 %v748, %v1072
  %v1197 = vmul.f32 %v749, %v1074
  %v1198 = vmul.f32 %v750, %v1076
  %v1199 = vmul.f32 %v751, %v1078
  %v1200 = vmul.f32 %v752, %v1080
  %v1201 = vmul.f32 %v753, %v1082
  %v1202 = vmul.f32 %v754, %v1084
  %v1203 = vmul.f32 %v755, %v1086
  %v1204 = vmul.f32 %v756, %v1088
  %v1205 = vmul.f32 %v757, %v1090
  %v1206 = vmul.f32 %v758, %v1092
  %v1207 = vmul.f32 %v759, %v1094
  %v1208 = vmul.f32 %v760, %v1096
  %v1209 = vmul.f32 %v761, %v1098
  %v1210 = vmul.f32 %v762, %v1100
  %v1211 = vmul.f32 %v763, %v1102
  %v1212 = vmul.f32 %v764, %v1104
  %v1213 = vmul.f32 %v765, %v1106
  %v1214 = vmul.f32 %v766, %v1108
  %v1215 = vmul.f32 %v767, %v1110
  %v1216 = vmul.f32 %v768, %v1112
  %v1217 = vmul.f32 %v769, %v1114
  %v1218 = vmul.f32 %v770, %v1116
  %v1219 = vmul.f32 %v771, %v1118
  %v1220 = vmul.f32 %v772, %v1120
  %v1221 = vmul.f32 %v773, %v1122
  %v1222 = vmul.f32 %v774, %v1124
  %v1223 = vmul.f32 %v775, %v1126
  %v1224 = vmul.f32 %v776, %v1128
  %v1225 = vmul.f32 %v777, %v1130
  %v1226 = vmul.f32 %v778, %v1132
  %v1227 = vmul.f32 %v779, %v1134
  %v1228 = vmul.f32 %v780, %v1136
  %v1229 = vmul.f32 %v781, %v1138
  %v1230 = vmul.f32 %v782, %v1140
  %v1231 = vmul.f32 %v783, %v1142
  %v1232 = vmul.f32 %v784, %v1144
  %v1233 = vmul.f32 %v785, %v1146
  %v1234 = vmul.f32 %v786, %v1148
  %v1235 = vmul.f32 %v787, %v1150
  %v1236 = vmul.f32 %v788, %v1152
  %v1237 = vmul.f32 %v789, %v1154
  %v1238 = vmul.f32 %v790, %v1156
  %v1239 = vmul.f32 %v791, %v1158
  %v1240 = vmul.f32 %v792, %v1160
  %v1241 = vmul.f32 %v793, %v1162
  %v1242 = vmul.f32 %v794, %v1164
  %v1243 = vmul.f32 %v795, %v1166
  %v1244 = vmul.f32 %v796, %v1168
  %v1245 = vmul.f32 %v797, %v1170
  %v1246 = vmul.f32 %v798, %v1172
  %v1247 = vmul.f32 %v799, %v1174
  %v1248 = vmul.f32 %v800, %v1176
  %v1249 = vmul.f32 %v801, %v1178
  %v1250 = vmul.f32 %v802, %v1180
  %v1251 = vmul.f32 %v803, %v1182
  %v1252 = vmul.f32 %v804, %v1184
  %v1253 = vmul.f32 %v805, %v1186
  %v1254 = vmul.f32 %v806, %v1188
  %v1255 = vmul.f32 %v807, %v1190
  %v1256 = vmul.f32 %v808, %v1192
  %vm1257 = vcmask 23552
  %1258 = vst.msk [vmem:[%s4] sm:$0xff] %vm1257, %v1193
  %1259 = vst.msk [vmem:[%s4 + $0x8] sm:$0xff] %vm1257, %v1194
  %1260 = vst.msk [vmem:[%s4 + $0x10] sm:$0xff] %vm1257, %v1195
  %1261 = vst.msk [vmem:[%s4 + $0x18] sm:$0xff] %vm1257, %v1196
  %1262 = vst.msk [vmem:[%s4 + $0x20] sm:$0xff] %vm1257, %v1197
  %1263 = vst.msk [vmem:[%s4 + $0x28] sm:$0xff] %vm1257, %v1198
  %1264 = vst.msk [vmem:[%s4 + $0x30] sm:$0xff] %vm1257, %v1199
  %1265 = vst.msk [vmem:[%s4 + $0x38] sm:$0xff] %vm1257, %v1200
  %1266 = vst.msk [vmem:[%s4 + $0x40] sm:$0xff] %vm1257, %v1201
  %1267 = vst.msk [vmem:[%s4 + $0x48] sm:$0xff] %vm1257, %v1202
  %1268 = vst.msk [vmem:[%s4 + $0x50] sm:$0xff] %vm1257, %v1203
  %1269 = vst.msk [vmem:[%s4 + $0x58] sm:$0xff] %vm1257, %v1204
  %1270 = vst.msk [vmem:[%s4 + $0x60] sm:$0xff] %vm1257, %v1205
  %1271 = vst.msk [vmem:[%s4 + $0x68] sm:$0xff] %vm1257, %v1206
  %1272 = vst.msk [vmem:[%s4 + $0x70] sm:$0xff] %vm1257, %v1207
  %1273 = vst.msk [vmem:[%s4 + $0x78] sm:$0xff] %vm1257, %v1208
  %1274 = vst.msk [vmem:[%s4 + $0x80] sm:$0xff] %vm1257, %v1209
  %1275 = vst.msk [vmem:[%s4 + $0x88] sm:$0xff] %vm1257, %v1210
  %1276 = vst.msk [vmem:[%s4 + $0x90] sm:$0xff] %vm1257, %v1211
  %1277 = vst.msk [vmem:[%s4 + $0x98] sm:$0xff] %vm1257, %v1212
  %1278 = vst.msk [vmem:[%s4 + $0xa0] sm:$0xff] %vm1257, %v1213
  %1279 = vst.msk [vmem:[%s4 + $0xa8] sm:$0xff] %vm1257, %v1214
  %1280 = vst.msk [vmem:[%s4 + $0xb0] sm:$0xff] %vm1257, %v1215
  %1281 = vst.msk [vmem:[%s4 + $0xb8] sm:$0xff] %vm1257, %v1216
  %1282 = vst.msk [vmem:[%s4 + $0xc0] sm:$0xff] %vm1257, %v1217
  %1283 = vst.msk [vmem:[%s4 + $0xc8] sm:$0xff] %vm1257, %v1218
  %1284 = vst.msk [vmem:[%s4 + $0xd0] sm:$0xff] %vm1257, %v1219
  %1285 = vst.msk [vmem:[%s4 + $0xd8] sm:$0xff] %vm1257, %v1220
  %1286 = vst.msk [vmem:[%s4 + $0xe0] sm:$0xff] %vm1257, %v1221
  %1287 = vst.msk [vmem:[%s4 + $0xe8] sm:$0xff] %vm1257, %v1222
  %1288 = vst.msk [vmem:[%s4 + $0xf0] sm:$0xff] %vm1257, %v1223
  %1289 = vst.msk [vmem:[%s4 + $0xf8] sm:$0xff] %vm1257, %v1224
  %1290 = vst.msk [vmem:[%s4 + $0x100] sm:$0xff] %vm1257, %v1225
  %1291 = vst.msk [vmem:[%s4 + $0x108] sm:$0xff] %vm1257, %v1226
  %1292 = vst.msk [vmem:[%s4 + $0x110] sm:$0xff] %vm1257, %v1227
  %1293 = vst.msk [vmem:[%s4 + $0x118] sm:$0xff] %vm1257, %v1228
  %1294 = vst.msk [vmem:[%s4 + $0x120] sm:$0xff] %vm1257, %v1229
  %1295 = vst.msk [vmem:[%s4 + $0x128] sm:$0xff] %vm1257, %v1230
  %1296 = vst.msk [vmem:[%s4 + $0x130] sm:$0xff] %vm1257, %v1231
  %1297 = vst.msk [vmem:[%s4 + $0x138] sm:$0xff] %vm1257, %v1232
  %1298 = vst.msk [vmem:[%s4 + $0x140] sm:$0xff] %vm1257, %v1233
  %1299 = vst.msk [vmem:[%s4 + $0x148] sm:$0xff] %vm1257, %v1234
  %1300 = vst.msk [vmem:[%s4 + $0x150] sm:$0xff] %vm1257, %v1235
  %1301 = vst.msk [vmem:[%s4 + $0x158] sm:$0xff] %vm1257, %v1236
  %1302 = vst.msk [vmem:[%s4 + $0x160] sm:$0xff] %vm1257, %v1237
  %1303 = vst.msk [vmem:[%s4 + $0x168] sm:$0xff] %vm1257, %v1238
  %1304 = vst.msk [vmem:[%s4 + $0x170] sm:$0xff] %vm1257, %v1239
  %1305 = vst.msk [vmem:[%s4 + $0x178] sm:$0xff] %vm1257, %v1240
  %1306 = vst.msk [vmem:[%s4 + $0x180] sm:$0xff] %vm1257, %v1241
  %1307 = vst.msk [vmem:[%s4 + $0x188] sm:$0xff] %vm1257, %v1242
  %1308 = vst.msk [vmem:[%s4 + $0x190] sm:$0xff] %vm1257, %v1243
  %1309 = vst.msk [vmem:[%s4 + $0x198] sm:$0xff] %vm1257, %v1244
  %1310 = vst.msk [vmem:[%s4 + $0x1a0] sm:$0xff] %vm1257, %v1245
  %1311 = vst.msk [vmem:[%s4 + $0x1a8] sm:$0xff] %vm1257, %v1246
  %1312 = vst.msk [vmem:[%s4 + $0x1b0] sm:$0xff] %vm1257, %v1247
  %1313 = vst.msk [vmem:[%s4 + $0x1b8] sm:$0xff] %vm1257, %v1248
  %1314 = vst.msk [vmem:[%s4 + $0x1c0] sm:$0xff] %vm1257, %v1249
  %1315 = vst.msk [vmem:[%s4 + $0x1c8] sm:$0xff] %vm1257, %v1250
  %1316 = vst.msk [vmem:[%s4 + $0x1d0] sm:$0xff] %vm1257, %v1251
  %1317 = vst.msk [vmem:[%s4 + $0x1d8] sm:$0xff] %vm1257, %v1252
  %1318 = vst.msk [vmem:[%s4 + $0x1e0] sm:$0xff] %vm1257, %v1253
  %1319 = vst.msk [vmem:[%s4 + $0x1e8] sm:$0xff] %vm1257, %v1254
  %1320 = vst.msk [vmem:[%s4 + $0x1f0] sm:$0xff] %vm1257, %v1255
  %1321 = vst.msk [vmem:[%s4 + $0x1f8] sm:$0xff] %vm1257, %v1256
  %1386 = vrot.lane.b32.xlu0 %v1193, 125
  %v1387 = vpop.permute.xlu0 %1386
  %1388 = vrot.lane.b32.xlu0 %v1194, 125
  %v1389 = vpop.permute.xlu0 %1388
  %1390 = vrot.lane.b32.xlu0 %v1195, 125
  %v1391 = vpop.permute.xlu0 %1390
  %1392 = vrot.lane.b32.xlu0 %v1196, 125
  %v1393 = vpop.permute.xlu0 %1392
  %1394 = vrot.lane.b32.xlu0 %v1197, 125
  %v1395 = vpop.permute.xlu0 %1394
  %1396 = vrot.lane.b32.xlu0 %v1198, 125
  %v1397 = vpop.permute.xlu0 %1396
  %1398 = vrot.lane.b32.xlu0 %v1199, 125
  %v1399 = vpop.permute.xlu0 %1398
  %1400 = vrot.lane.b32.xlu0 %v1200, 125
  %v1401 = vpop.permute.xlu0 %1400
  %1402 = vrot.lane.b32.xlu0 %v1201, 125
  %v1403 = vpop.permute.xlu0 %1402
  %1404 = vrot.lane.b32.xlu0 %v1202, 125
  %v1405 = vpop.permute.xlu0 %1404
  %1406 = vrot.lane.b32.xlu0 %v1203, 125
  %v1407 = vpop.permute.xlu0 %1406
  %1408 = vrot.lane.b32.xlu0 %v1204, 125
  %v1409 = vpop.permute.xlu0 %1408
  %1410 = vrot.lane.b32.xlu0 %v1205, 125
  %v1411 = vpop.permute.xlu0 %1410
  %1412 = vrot.lane.b32.xlu0 %v1206, 125
  %v1413 = vpop.permute.xlu0 %1412
  %1414 = vrot.lane.b32.xlu0 %v1207, 125
  %v1415 = vpop.permute.xlu0 %1414
  %1416 = vrot.lane.b32.xlu0 %v1208, 125
  %v1417 = vpop.permute.xlu0 %1416
  %1418 = vrot.lane.b32.xlu0 %v1209, 125
  %v1419 = vpop.permute.xlu0 %1418
  %1420 = vrot.lane.b32.xlu0 %v1210, 125
  %v1421 = vpop.permute.xlu0 %1420
  %1422 = vrot.lane.b32.xlu0 %v1211, 125
  %v1423 = vpop.permute.xlu0 %1422
  %1424 = vrot.lane.b32.xlu0 %v1212, 125
  %v1425 = vpop.permute.xlu0 %1424
  %1426 = vrot.lane.b32.xlu0 %v1213, 125
  %v1427 = vpop.permute.xlu0 %1426
  %1428 = vrot.lane.b32.xlu0 %v1214, 125
  %v1429 = vpop.permute.xlu0 %1428
  %1430 = vrot.lane.b32.xlu0 %v1215, 125
  %v1431 = vpop.permute.xlu0 %1430
  %1432 = vrot.lane.b32.xlu0 %v1216, 125
  %v1433 = vpop.permute.xlu0 %1432
  %1434 = vrot.lane.b32.xlu0 %v1217, 125
  %v1435 = vpop.permute.xlu0 %1434
  %1436 = vrot.lane.b32.xlu0 %v1218, 125
  %v1437 = vpop.permute.xlu0 %1436
  %1438 = vrot.lane.b32.xlu0 %v1219, 125
  %v1439 = vpop.permute.xlu0 %1438
  %1440 = vrot.lane.b32.xlu0 %v1220, 125
  %v1441 = vpop.permute.xlu0 %1440
  %1442 = vrot.lane.b32.xlu0 %v1221, 125
  %v1443 = vpop.permute.xlu0 %1442
  %1444 = vrot.lane.b32.xlu0 %v1222, 125
  %v1445 = vpop.permute.xlu0 %1444
  %1446 = vrot.lane.b32.xlu0 %v1223, 125
  %v1447 = vpop.permute.xlu0 %1446
  %1448 = vrot.lane.b32.xlu0 %v1224, 125
  %v1449 = vpop.permute.xlu0 %1448
  %1450 = vrot.lane.b32.xlu0 %v1225, 125
  %v1451 = vpop.permute.xlu0 %1450
  %1452 = vrot.lane.b32.xlu0 %v1226, 125
  %v1453 = vpop.permute.xlu0 %1452
  %1454 = vrot.lane.b32.xlu0 %v1227, 125
  %v1455 = vpop.permute.xlu0 %1454
  %1456 = vrot.lane.b32.xlu0 %v1228, 125
  %v1457 = vpop.permute.xlu0 %1456
  %1458 = vrot.lane.b32.xlu0 %v1229, 125
  %v1459 = vpop.permute.xlu0 %1458
  %1460 = vrot.lane.b32.xlu0 %v1230, 125
  %v1461 = vpop.permute.xlu0 %1460
  %1462 = vrot.lane.b32.xlu0 %v1231, 125
  %v1463 = vpop.permute.xlu0 %1462
  %1464 = vrot.lane.b32.xlu0 %v1232, 125
  %v1465 = vpop.permute.xlu0 %1464
  %1466 = vrot.lane.b32.xlu0 %v1233, 125
  %v1467 = vpop.permute.xlu0 %1466
  %1468 = vrot.lane.b32.xlu0 %v1234, 125
  %v1469 = vpop.permute.xlu0 %1468
  %1470 = vrot.lane.b32.xlu0 %v1235, 125
  %v1471 = vpop.permute.xlu0 %1470
  %1472 = vrot.lane.b32.xlu0 %v1236, 125
  %v1473 = vpop.permute.xlu0 %1472
  %1474 = vrot.lane.b32.xlu0 %v1237, 125
  %v1475 = vpop.permute.xlu0 %1474
  %1476 = vrot.lane.b32.xlu0 %v1238, 125
  %v1477 = vpop.permute.xlu0 %1476
  %1478 = vrot.lane.b32.xlu0 %v1239, 125
  %v1479 = vpop.permute.xlu0 %1478
  %1480 = vrot.lane.b32.xlu0 %v1240, 125
  %v1481 = vpop.permute.xlu0 %1480
  %1482 = vrot.lane.b32.xlu0 %v1241, 125
  %v1483 = vpop.permute.xlu0 %1482
  %1484 = vrot.lane.b32.xlu0 %v1242, 125
  %v1485 = vpop.permute.xlu0 %1484
  %1486 = vrot.lane.b32.xlu0 %v1243, 125
  %v1487 = vpop.permute.xlu0 %1486
  %1488 = vrot.lane.b32.xlu0 %v1244, 125
  %v1489 = vpop.permute.xlu0 %1488
  %1490 = vrot.lane.b32.xlu0 %v1245, 125
  %v1491 = vpop.permute.xlu0 %1490
  %1492 = vrot.lane.b32.xlu0 %v1246, 125
  %v1493 = vpop.permute.xlu0 %1492
  %1494 = vrot.lane.b32.xlu0 %v1247, 125
  %v1495 = vpop.permute.xlu0 %1494
  %1496 = vrot.lane.b32.xlu0 %v1248, 125
  %v1497 = vpop.permute.xlu0 %1496
  %1498 = vrot.lane.b32.xlu0 %v1249, 125
  %v1499 = vpop.permute.xlu0 %1498
  %1500 = vrot.lane.b32.xlu0 %v1250, 125
  %v1501 = vpop.permute.xlu0 %1500
  %1502 = vrot.lane.b32.xlu0 %v1251, 125
  %v1503 = vpop.permute.xlu0 %1502
  %1504 = vrot.lane.b32.xlu0 %v1252, 125
  %v1505 = vpop.permute.xlu0 %1504
  %1506 = vrot.lane.b32.xlu0 %v1253, 125
  %v1507 = vpop.permute.xlu0 %1506
  %1508 = vrot.lane.b32.xlu0 %v1254, 125
  %v1509 = vpop.permute.xlu0 %1508
  %1510 = vrot.lane.b32.xlu0 %v1255, 125
  %v1511 = vpop.permute.xlu0 %1510
  %1512 = vrot.lane.b32.xlu0 %v1256, 125
  %v1513 = vpop.permute.xlu0 %1512
  %1578 = vst.msk [vmem:[%s5] sm:$0xff] %vm1257, %v1387
  %1579 = vst.msk [vmem:[%s5 + $0x8] sm:$0xff] %vm1257, %v1389
  %1580 = vst.msk [vmem:[%s5 + $0x10] sm:$0xff] %vm1257, %v1391
  %1581 = vst.msk [vmem:[%s5 + $0x18] sm:$0xff] %vm1257, %v1393
  %1582 = vst.msk [vmem:[%s5 + $0x20] sm:$0xff] %vm1257, %v1395
  %1583 = vst.msk [vmem:[%s5 + $0x28] sm:$0xff] %vm1257, %v1397
  %1584 = vst.msk [vmem:[%s5 + $0x30] sm:$0xff] %vm1257, %v1399
  %1585 = vst.msk [vmem:[%s5 + $0x38] sm:$0xff] %vm1257, %v1401
  %1586 = vst.msk [vmem:[%s5 + $0x40] sm:$0xff] %vm1257, %v1403
  %1587 = vst.msk [vmem:[%s5 + $0x48] sm:$0xff] %vm1257, %v1405
  %1588 = vst.msk [vmem:[%s5 + $0x50] sm:$0xff] %vm1257, %v1407
  %1589 = vst.msk [vmem:[%s5 + $0x58] sm:$0xff] %vm1257, %v1409
  %1590 = vst.msk [vmem:[%s5 + $0x60] sm:$0xff] %vm1257, %v1411
  %1591 = vst.msk [vmem:[%s5 + $0x68] sm:$0xff] %vm1257, %v1413
  %1592 = vst.msk [vmem:[%s5 + $0x70] sm:$0xff] %vm1257, %v1415
  %1593 = vst.msk [vmem:[%s5 + $0x78] sm:$0xff] %vm1257, %v1417
  %1594 = vst.msk [vmem:[%s5 + $0x80] sm:$0xff] %vm1257, %v1419
  %1595 = vst.msk [vmem:[%s5 + $0x88] sm:$0xff] %vm1257, %v1421
  %1596 = vst.msk [vmem:[%s5 + $0x90] sm:$0xff] %vm1257, %v1423
  %1597 = vst.msk [vmem:[%s5 + $0x98] sm:$0xff] %vm1257, %v1425
  %1598 = vst.msk [vmem:[%s5 + $0xa0] sm:$0xff] %vm1257, %v1427
  %1599 = vst.msk [vmem:[%s5 + $0xa8] sm:$0xff] %vm1257, %v1429
  %1600 = vst.msk [vmem:[%s5 + $0xb0] sm:$0xff] %vm1257, %v1431
  %1601 = vst.msk [vmem:[%s5 + $0xb8] sm:$0xff] %vm1257, %v1433
  %1602 = vst.msk [vmem:[%s5 + $0xc0] sm:$0xff] %vm1257, %v1435
  %1603 = vst.msk [vmem:[%s5 + $0xc8] sm:$0xff] %vm1257, %v1437
  %1604 = vst.msk [vmem:[%s5 + $0xd0] sm:$0xff] %vm1257, %v1439
  %1605 = vst.msk [vmem:[%s5 + $0xd8] sm:$0xff] %vm1257, %v1441
  %1606 = vst.msk [vmem:[%s5 + $0xe0] sm:$0xff] %vm1257, %v1443
  %1607 = vst.msk [vmem:[%s5 + $0xe8] sm:$0xff] %vm1257, %v1445
  %1608 = vst.msk [vmem:[%s5 + $0xf0] sm:$0xff] %vm1257, %v1447
  %1609 = vst.msk [vmem:[%s5 + $0xf8] sm:$0xff] %vm1257, %v1449
  %1610 = vst.msk [vmem:[%s5 + $0x100] sm:$0xff] %vm1257, %v1451
  %1611 = vst.msk [vmem:[%s5 + $0x108] sm:$0xff] %vm1257, %v1453
  %1612 = vst.msk [vmem:[%s5 + $0x110] sm:$0xff] %vm1257, %v1455
  %1613 = vst.msk [vmem:[%s5 + $0x118] sm:$0xff] %vm1257, %v1457
  %1614 = vst.msk [vmem:[%s5 + $0x120] sm:$0xff] %vm1257, %v1459
  %1615 = vst.msk [vmem:[%s5 + $0x128] sm:$0xff] %vm1257, %v1461
  %1616 = vst.msk [vmem:[%s5 + $0x130] sm:$0xff] %vm1257, %v1463
  %1617 = vst.msk [vmem:[%s5 + $0x138] sm:$0xff] %vm1257, %v1465
  %1618 = vst.msk [vmem:[%s5 + $0x140] sm:$0xff] %vm1257, %v1467
  %1619 = vst.msk [vmem:[%s5 + $0x148] sm:$0xff] %vm1257, %v1469
  %1620 = vst.msk [vmem:[%s5 + $0x150] sm:$0xff] %vm1257, %v1471
  %1621 = vst.msk [vmem:[%s5 + $0x158] sm:$0xff] %vm1257, %v1473
  %1622 = vst.msk [vmem:[%s5 + $0x160] sm:$0xff] %vm1257, %v1475
  %1623 = vst.msk [vmem:[%s5 + $0x168] sm:$0xff] %vm1257, %v1477
  %1624 = vst.msk [vmem:[%s5 + $0x170] sm:$0xff] %vm1257, %v1479
  %1625 = vst.msk [vmem:[%s5 + $0x178] sm:$0xff] %vm1257, %v1481
  %1626 = vst.msk [vmem:[%s5 + $0x180] sm:$0xff] %vm1257, %v1483
  %1627 = vst.msk [vmem:[%s5 + $0x188] sm:$0xff] %vm1257, %v1485
  %1628 = vst.msk [vmem:[%s5 + $0x190] sm:$0xff] %vm1257, %v1487
  %1629 = vst.msk [vmem:[%s5 + $0x198] sm:$0xff] %vm1257, %v1489
  %1630 = vst.msk [vmem:[%s5 + $0x1a0] sm:$0xff] %vm1257, %v1491
  %1631 = vst.msk [vmem:[%s5 + $0x1a8] sm:$0xff] %vm1257, %v1493
  %1632 = vst.msk [vmem:[%s5 + $0x1b0] sm:$0xff] %vm1257, %v1495
  %1633 = vst.msk [vmem:[%s5 + $0x1b8] sm:$0xff] %vm1257, %v1497
  %1634 = vst.msk [vmem:[%s5 + $0x1c0] sm:$0xff] %vm1257, %v1499
  %1635 = vst.msk [vmem:[%s5 + $0x1c8] sm:$0xff] %vm1257, %v1501
  %1636 = vst.msk [vmem:[%s5 + $0x1d0] sm:$0xff] %vm1257, %v1503
  %1637 = vst.msk [vmem:[%s5 + $0x1d8] sm:$0xff] %vm1257, %v1505
  %1638 = vst.msk [vmem:[%s5 + $0x1e0] sm:$0xff] %vm1257, %v1507
  %1639 = vst.msk [vmem:[%s5 + $0x1e8] sm:$0xff] %vm1257, %v1509
  %1640 = vst.msk [vmem:[%s5 + $0x1f0] sm:$0xff] %vm1257, %v1511
  %1641 = vst.msk [vmem:[%s5 + $0x1f8] sm:$0xff] %vm1257, %v1513
  %1642 = vrot.lane.b32.xlu0 %v1193, 122
  %v1643 = vpop.permute.xlu0 %1642
  %1644 = vrot.lane.b32.xlu0 %v1194, 122
  %v1645 = vpop.permute.xlu0 %1644
  %1646 = vrot.lane.b32.xlu0 %v1195, 122
  %v1647 = vpop.permute.xlu0 %1646
  %1648 = vrot.lane.b32.xlu0 %v1196, 122
  %v1649 = vpop.permute.xlu0 %1648
  %1650 = vrot.lane.b32.xlu0 %v1197, 122
  %v1651 = vpop.permute.xlu0 %1650
  %1652 = vrot.lane.b32.xlu0 %v1198, 122
  %v1653 = vpop.permute.xlu0 %1652
  %1654 = vrot.lane.b32.xlu0 %v1199, 122
  %v1655 = vpop.permute.xlu0 %1654
  %1656 = vrot.lane.b32.xlu0 %v1200, 122
  %v1657 = vpop.permute.xlu0 %1656
  %1658 = vrot.lane.b32.xlu0 %v1201, 122
  %v1659 = vpop.permute.xlu0 %1658
  %1660 = vrot.lane.b32.xlu0 %v1202, 122
  %v1661 = vpop.permute.xlu0 %1660
  %1662 = vrot.lane.b32.xlu0 %v1203, 122
  %v1663 = vpop.permute.xlu0 %1662
  %1664 = vrot.lane.b32.xlu0 %v1204, 122
  %v1665 = vpop.permute.xlu0 %1664
  %1666 = vrot.lane.b32.xlu0 %v1205, 122
  %v1667 = vpop.permute.xlu0 %1666
  %1668 = vrot.lane.b32.xlu0 %v1206, 122
  %v1669 = vpop.permute.xlu0 %1668
  %1670 = vrot.lane.b32.xlu0 %v1207, 122
  %v1671 = vpop.permute.xlu0 %1670
  %1672 = vrot.lane.b32.xlu0 %v1208, 122
  %v1673 = vpop.permute.xlu0 %1672
  %1674 = vrot.lane.b32.xlu0 %v1209, 122
  %v1675 = vpop.permute.xlu0 %1674
  %1676 = vrot.lane.b32.xlu0 %v1210, 122
  %v1677 = vpop.permute.xlu0 %1676
  %1678 = vrot.lane.b32.xlu0 %v1211, 122
  %v1679 = vpop.permute.xlu0 %1678
  %1680 = vrot.lane.b32.xlu0 %v1212, 122
  %v1681 = vpop.permute.xlu0 %1680
  %1682 = vrot.lane.b32.xlu0 %v1213, 122
  %v1683 = vpop.permute.xlu0 %1682
  %1684 = vrot.lane.b32.xlu0 %v1214, 122
  %v1685 = vpop.permute.xlu0 %1684
  %1686 = vrot.lane.b32.xlu0 %v1215, 122
  %v1687 = vpop.permute.xlu0 %1686
  %1688 = vrot.lane.b32.xlu0 %v1216, 122
  %v1689 = vpop.permute.xlu0 %1688
  %1690 = vrot.lane.b32.xlu0 %v1217, 122
  %v1691 = vpop.permute.xlu0 %1690
  %1692 = vrot.lane.b32.xlu0 %v1218, 122
  %v1693 = vpop.permute.xlu0 %1692
  %1694 = vrot.lane.b32.xlu0 %v1219, 122
  %v1695 = vpop.permute.xlu0 %1694
  %1696 = vrot.lane.b32.xlu0 %v1220, 122
  %v1697 = vpop.permute.xlu0 %1696
  %1698 = vrot.lane.b32.xlu0 %v1221, 122
  %v1699 = vpop.permute.xlu0 %1698
  %1700 = vrot.lane.b32.xlu0 %v1222, 122
  %v1701 = vpop.permute.xlu0 %1700
  %1702 = vrot.lane.b32.xlu0 %v1223, 122
  %v1703 = vpop.permute.xlu0 %1702
  %1704 = vrot.lane.b32.xlu0 %v1224, 122
  %v1705 = vpop.permute.xlu0 %1704
  %1706 = vrot.lane.b32.xlu0 %v1225, 122
  %v1707 = vpop.permute.xlu0 %1706
  %1708 = vrot.lane.b32.xlu0 %v1226, 122
  %v1709 = vpop.permute.xlu0 %1708
  %1710 = vrot.lane.b32.xlu0 %v1227, 122
  %v1711 = vpop.permute.xlu0 %1710
  %1712 = vrot.lane.b32.xlu0 %v1228, 122
  %v1713 = vpop.permute.xlu0 %1712
  %1714 = vrot.lane.b32.xlu0 %v1229, 122
  %v1715 = vpop.permute.xlu0 %1714
  %1716 = vrot.lane.b32.xlu0 %v1230, 122
  %v1717 = vpop.permute.xlu0 %1716
  %1718 = vrot.lane.b32.xlu0 %v1231, 122
  %v1719 = vpop.permute.xlu0 %1718
  %1720 = vrot.lane.b32.xlu0 %v1232, 122
  %v1721 = vpop.permute.xlu0 %1720
  %1722 = vrot.lane.b32.xlu0 %v1233, 122
  %v1723 = vpop.permute.xlu0 %1722
  %1724 = vrot.lane.b32.xlu0 %v1234, 122
  %v1725 = vpop.permute.xlu0 %1724
  %1726 = vrot.lane.b32.xlu0 %v1235, 122
  %v1727 = vpop.permute.xlu0 %1726
  %1728 = vrot.lane.b32.xlu0 %v1236, 122
  %v1729 = vpop.permute.xlu0 %1728
  %1730 = vrot.lane.b32.xlu0 %v1237, 122
  %v1731 = vpop.permute.xlu0 %1730
  %1732 = vrot.lane.b32.xlu0 %v1238, 122
  %v1733 = vpop.permute.xlu0 %1732
  %1734 = vrot.lane.b32.xlu0 %v1239, 122
  %v1735 = vpop.permute.xlu0 %1734
  %1736 = vrot.lane.b32.xlu0 %v1240, 122
  %v1737 = vpop.permute.xlu0 %1736
  %1738 = vrot.lane.b32.xlu0 %v1241, 122
  %v1739 = vpop.permute.xlu0 %1738
  %1740 = vrot.lane.b32.xlu0 %v1242, 122
  %v1741 = vpop.permute.xlu0 %1740
  %1742 = vrot.lane.b32.xlu0 %v1243, 122
  %v1743 = vpop.permute.xlu0 %1742
  %1744 = vrot.lane.b32.xlu0 %v1244, 122
  %v1745 = vpop.permute.xlu0 %1744
  %1746 = vrot.lane.b32.xlu0 %v1245, 122
  %v1747 = vpop.permute.xlu0 %1746
  %1748 = vrot.lane.b32.xlu0 %v1246, 122
  %v1749 = vpop.permute.xlu0 %1748
  %1750 = vrot.lane.b32.xlu0 %v1247, 122
  %v1751 = vpop.permute.xlu0 %1750
  %1752 = vrot.lane.b32.xlu0 %v1248, 122
  %v1753 = vpop.permute.xlu0 %1752
  %1754 = vrot.lane.b32.xlu0 %v1249, 122
  %v1755 = vpop.permute.xlu0 %1754
  %1756 = vrot.lane.b32.xlu0 %v1250, 122
  %v1757 = vpop.permute.xlu0 %1756
  %1758 = vrot.lane.b32.xlu0 %v1251, 122
  %v1759 = vpop.permute.xlu0 %1758
  %1760 = vrot.lane.b32.xlu0 %v1252, 122
  %v1761 = vpop.permute.xlu0 %1760
  %1762 = vrot.lane.b32.xlu0 %v1253, 122
  %v1763 = vpop.permute.xlu0 %1762
  %1764 = vrot.lane.b32.xlu0 %v1254, 122
  %v1765 = vpop.permute.xlu0 %1764
  %1766 = vrot.lane.b32.xlu0 %v1255, 122
  %v1767 = vpop.permute.xlu0 %1766
  %1768 = vrot.lane.b32.xlu0 %v1256, 122
  %v1769 = vpop.permute.xlu0 %1768
  %vm1834 = vcmask 15360
  %1835 = vst.msk [vmem:[%s6] sm:$0xff] %vm1834, %v1643
  %1836 = vst.msk [vmem:[%s6 + $0x8] sm:$0xff] %vm1834, %v1645
  %1837 = vst.msk [vmem:[%s6 + $0x10] sm:$0xff] %vm1834, %v1647
  %1838 = vst.msk [vmem:[%s6 + $0x18] sm:$0xff] %vm1834, %v1649
  %1839 = vst.msk [vmem:[%s6 + $0x20] sm:$0xff] %vm1834, %v1651
  %1840 = vst.msk [vmem:[%s6 + $0x28] sm:$0xff] %vm1834, %v1653
  %1841 = vst.msk [vmem:[%s6 + $0x30] sm:$0xff] %vm1834, %v1655
  %1842 = vst.msk [vmem:[%s6 + $0x38] sm:$0xff] %vm1834, %v1657
  %1843 = vst.msk [vmem:[%s6 + $0x40] sm:$0xff] %vm1834, %v1659
  %1844 = vst.msk [vmem:[%s6 + $0x48] sm:$0xff] %vm1834, %v1661
  %1845 = vst.msk [vmem:[%s6 + $0x50] sm:$0xff] %vm1834, %v1663
  %1846 = vst.msk [vmem:[%s6 + $0x58] sm:$0xff] %vm1834, %v1665
  %1847 = vst.msk [vmem:[%s6 + $0x60] sm:$0xff] %vm1834, %v1667
  %1848 = vst.msk [vmem:[%s6 + $0x68] sm:$0xff] %vm1834, %v1669
  %1849 = vst.msk [vmem:[%s6 + $0x70] sm:$0xff] %vm1834, %v1671
  %1850 = vst.msk [vmem:[%s6 + $0x78] sm:$0xff] %vm1834, %v1673
  %1851 = vst.msk [vmem:[%s6 + $0x80] sm:$0xff] %vm1834, %v1675
  %1852 = vst.msk [vmem:[%s6 + $0x88] sm:$0xff] %vm1834, %v1677
  %1853 = vst.msk [vmem:[%s6 + $0x90] sm:$0xff] %vm1834, %v1679
  %1854 = vst.msk [vmem:[%s6 + $0x98] sm:$0xff] %vm1834, %v1681
  %1855 = vst.msk [vmem:[%s6 + $0xa0] sm:$0xff] %vm1834, %v1683
  %1856 = vst.msk [vmem:[%s6 + $0xa8] sm:$0xff] %vm1834, %v1685
  %1857 = vst.msk [vmem:[%s6 + $0xb0] sm:$0xff] %vm1834, %v1687
  %1858 = vst.msk [vmem:[%s6 + $0xb8] sm:$0xff] %vm1834, %v1689
  %1859 = vst.msk [vmem:[%s6 + $0xc0] sm:$0xff] %vm1834, %v1691
  %1860 = vst.msk [vmem:[%s6 + $0xc8] sm:$0xff] %vm1834, %v1693
  %1861 = vst.msk [vmem:[%s6 + $0xd0] sm:$0xff] %vm1834, %v1695
  %1862 = vst.msk [vmem:[%s6 + $0xd8] sm:$0xff] %vm1834, %v1697
  %1863 = vst.msk [vmem:[%s6 + $0xe0] sm:$0xff] %vm1834, %v1699
  %1864 = vst.msk [vmem:[%s6 + $0xe8] sm:$0xff] %vm1834, %v1701
  %1865 = vst.msk [vmem:[%s6 + $0xf0] sm:$0xff] %vm1834, %v1703
  %1866 = vst.msk [vmem:[%s6 + $0xf8] sm:$0xff] %vm1834, %v1705
  %1867 = vst.msk [vmem:[%s6 + $0x100] sm:$0xff] %vm1834, %v1707
  %1868 = vst.msk [vmem:[%s6 + $0x108] sm:$0xff] %vm1834, %v1709
  %1869 = vst.msk [vmem:[%s6 + $0x110] sm:$0xff] %vm1834, %v1711
  %1870 = vst.msk [vmem:[%s6 + $0x118] sm:$0xff] %vm1834, %v1713
  %1871 = vst.msk [vmem:[%s6 + $0x120] sm:$0xff] %vm1834, %v1715
  %1872 = vst.msk [vmem:[%s6 + $0x128] sm:$0xff] %vm1834, %v1717
  %1873 = vst.msk [vmem:[%s6 + $0x130] sm:$0xff] %vm1834, %v1719
  %1874 = vst.msk [vmem:[%s6 + $0x138] sm:$0xff] %vm1834, %v1721
  %1875 = vst.msk [vmem:[%s6 + $0x140] sm:$0xff] %vm1834, %v1723
  %1876 = vst.msk [vmem:[%s6 + $0x148] sm:$0xff] %vm1834, %v1725
  %1877 = vst.msk [vmem:[%s6 + $0x150] sm:$0xff] %vm1834, %v1727
  %1878 = vst.msk [vmem:[%s6 + $0x158] sm:$0xff] %vm1834, %v1729
  %1879 = vst.msk [vmem:[%s6 + $0x160] sm:$0xff] %vm1834, %v1731
  %1880 = vst.msk [vmem:[%s6 + $0x168] sm:$0xff] %vm1834, %v1733
  %1881 = vst.msk [vmem:[%s6 + $0x170] sm:$0xff] %vm1834, %v1735
  %1882 = vst.msk [vmem:[%s6 + $0x178] sm:$0xff] %vm1834, %v1737
  %1883 = vst.msk [vmem:[%s6 + $0x180] sm:$0xff] %vm1834, %v1739
  %1884 = vst.msk [vmem:[%s6 + $0x188] sm:$0xff] %vm1834, %v1741
  %1885 = vst.msk [vmem:[%s6 + $0x190] sm:$0xff] %vm1834, %v1743
  %1886 = vst.msk [vmem:[%s6 + $0x198] sm:$0xff] %vm1834, %v1745
  %1887 = vst.msk [vmem:[%s6 + $0x1a0] sm:$0xff] %vm1834, %v1747
  %1888 = vst.msk [vmem:[%s6 + $0x1a8] sm:$0xff] %vm1834, %v1749
  %1889 = vst.msk [vmem:[%s6 + $0x1b0] sm:$0xff] %vm1834, %v1751
  %1890 = vst.msk [vmem:[%s6 + $0x1b8] sm:$0xff] %vm1834, %v1753
  %1891 = vst.msk [vmem:[%s6 + $0x1c0] sm:$0xff] %vm1834, %v1755
  %1892 = vst.msk [vmem:[%s6 + $0x1c8] sm:$0xff] %vm1834, %v1757
  %1893 = vst.msk [vmem:[%s6 + $0x1d0] sm:$0xff] %vm1834, %v1759
  %1894 = vst.msk [vmem:[%s6 + $0x1d8] sm:$0xff] %vm1834, %v1761
  %1895 = vst.msk [vmem:[%s6 + $0x1e0] sm:$0xff] %vm1834, %v1763
  %1896 = vst.msk [vmem:[%s6 + $0x1e8] sm:$0xff] %vm1834, %v1765
  %1897 = vst.msk [vmem:[%s6 + $0x1f0] sm:$0xff] %vm1834, %v1767
  %1898 = vst.msk [vmem:[%s6 + $0x1f8] sm:$0xff] %vm1834, %v1769
  // Predicated region
  $region18: #{c2f_forward.5} parent=0 // pred_check
    _
  $region19: #{c2f_forward.5} parent=0 // pred_check_branch
    %1900 = sbr.rel (0) target = $region21
  $region20: #{c2f_forward.5} parent=0 // pred_region
    _
  $region21: #{c2f_forward.5} parent=0 // pred_fallthru
    _
  // Predicated region
  $region22: #{c2f_forward.5} parent=0 // pred_check
    _
  $region23: #{c2f_forward.5} parent=0 // pred_check_branch
    %1902 = sbr.rel (0) target = $region25
  $region24: #{c2f_forward.5} parent=0 // pred_region
    _
  $region25: #{c2f_forward.5} parent=0 // pred_fallthru
    _
  // Predicated region
  $region26: #{c2f_forward.5} parent=0 // pred_check
    _
  $region27: #{c2f_forward.5} parent=0 // pred_check_branch
    %1904 = sbr.rel (0) target = $region29
  $region28: #{c2f_forward.5} parent=0 // pred_region
    _
  $region29: #{c2f_forward.5} parent=0 // pred_fallthru
    _
  // Predicated region
  $region30: #{c2f_forward.5} parent=0 // pred_check
    _
  $region31: #{c2f_forward.5} parent=0 // pred_check_branch
    %1906 = sbr.rel (0) target = $region33
  $region32: #{c2f_forward.5} parent=0 // pred_region
    _
  $region33: #{c2f_forward.5} parent=0 // pred_fallthru
    _
  // Predicated region
  $region34: #{c2f_forward.5} parent=0 // pred_check
    _
  $region35: #{c2f_forward.5} parent=0 // pred_check_branch
    %1908 = sbr.rel (0) target = $region37
  $region36: #{c2f_forward.5} parent=0 // pred_region
    _
  $region37: #{c2f_forward.5} parent=0 // pred_fallthru
    _
  // Predicated region
  $region38: #{c2f_forward.5} parent=0 // pred_check
    _
  $region39: #{c2f_forward.5} parent=0 // pred_check_branch
    %1910 = sbr.rel (0) target = $region41
  $region40: #{c2f_forward.5} parent=0 // pred_region
    _
  $region41: #{c2f_forward.5} parent=0 // pred_fallthru
    _

// kernel: c2f_forward.8
$region0: #{c2f_forward.8}
  #allocation0 [shape = 'u32[]', space=smem, size = 0x4, offset = 0x4, fixed_abs, tag = 'smem constant byte address 0x4 - core index']
  #allocation1 [shape = 'u32[144,128]{1,0:T(1,128)}', space=vmem, size = 0x12000, scoped, tag = 'internal scratch']
  %s0 = inlined_call_operand.vmem [shape: f32[2,256,2], index: 0, kind: input, shape index: {}]
  %s1 = inlined_call_operand.vmem [shape: f32[2,2], index: 1, kind: input, shape index: {}]
  %s2 = inlined_call_operand.vmem [shape: f32[1,2], index: 2, kind: input, shape index: {}]
  %s3 = inlined_call_operand.vmem [shape: f32[1,2], index: 3, kind: input, shape index: {}]
  %s4 = inlined_call_operand.vmem [shape: f32[3,6,2], index: 4, kind: input, shape index: {}]
  %s5 = inlined_call_operand.vmem [shape: f32[1,2], index: 5, kind: input, shape index: {}]
  %s6 = inlined_call_operand.vmem [shape: f32[1,2], index: 6, kind: input, shape index: {}]
  %s7 = inlined_call_operand.vmem [shape: f32[2,256,2], index: 7, kind: output, shape index: {}]
  %s8 = sld [smem:[#allocation0]]
  $region61: #{c2f_forward.8} parent=0
    _
  %s10 = ssub.s32 1, %s8
  %s11 = scalar_select 0, %s10, %s8
  loop: start=0, step=1, limit=4
  $region2: #{c2f_forward.8} parent=0 // loop_pre_header
    _
  $region3: #{c2f_forward.8} parent=0 // loop_header
    %s13 = sphi 0, %s17
    %p14 = scmp.ge.s32.totalorder %s13, 4
    %s23 = sphi 0, %s25
    %s26 = sphi 0, %s23
    %s27 = sphi 0, %s26
    %s43 = sphi 0, %s27
    %s47 = sphi 0, %s47
    %s49 = sphi 0, %s47
    %s50 = sphi 0, %s49
    %s64 = sphi 0, %s50
    %s68 = sphi 0, %s68
    %s70 = sphi 0, %s68
    %s71 = sphi 0, %s70
    %s85 = sphi 0, %s71
    %s89 = sphi 0, %s89
    %s91 = sphi 0, %s89
    %s92 = sphi 0, %s91
    %s106 = sphi 0, %s92
    %s110 = sphi 0, %s110
    %s112 = sphi 0, %s110
    %s113 = sphi 0, %s112
    %s127 = sphi 0, %s113
    %s131 = sphi 0, %s131
    %s133 = sphi 0, %s131
    %s134 = sphi 0, %s133
    %s148 = sphi 0, %s134
    %s152 = sphi 0, %s152
    %s154 = sphi 0, %s152
    %s155 = sphi 0, %s154
    %s169 = sphi 0, %s155
    %s175 = sphi 0, %s177
    %s178 = sphi 0, %s175
    %s179 = sphi 0, %s178
    %s195 = sphi 0, %s179
  $region4: #{c2f_forward.8} parent=0 // loop_header_branch
    %16 = sbr.rel (%p14) target = $region8
  $region5: #{c2f_forward.8} parent=0 // loop_body
    %s18 = ssub.s32 %s13, 1
    %s19 = ssub.s32 %s13, 2
    %s20 = sadd.s32 %s13, 1
    %s21 = ssub.s32 %s13, %s20
    %p22 = scmp.eq.s32.totalorder %s21, 0
    %s24 = sadd.s32 %s23, 1
    %s25 = scalar_select %p22, %s23, %s24
    %p28 = pneg %p22
    %p29 = scmp.eq.s32.totalorder %s13, 1
    %p30 = por %p28, %p29
    %p31 = scmp.ne.s32.totalorder %s23, %s26
    %p32 = scmp.eq.s32.totalorder %s13, 0
    %p33 = por %p31, %p32
    %p34 = scmp.ne.s32.totalorder %s23, %s26
    %p35 = scmp.eq.s32.totalorder %s18, 1
    %p36 = por %p34, %p35
    %p37 = scmp.ne.s32.totalorder %s26, %s27
    %p38 = scmp.eq.s32.totalorder %s18, 0
    %p39 = por %p37, %p38
    %p40 = scmp.ne.s32.totalorder %s26, %s27
    %p41 = scmp.eq.s32.totalorder %s19, 1
    %p42 = por %p40, %p41
    %p44 = scmp.ne.s32.totalorder %s27, %s43
    %p45 = scmp.eq.s32.totalorder %s19, 0
    %p46 = por %p44, %p45
    %s48 = sadd.s32 %s47, 1
    %p51 = scmp.eq.s32.totalorder %s13, 1
    %p52 = scmp.ne.s32.totalorder %s47, %s49
    %p53 = scmp.eq.s32.totalorder %s13, 0
    %p54 = por %p52, %p53
    %p55 = scmp.ne.s32.totalorder %s47, %s49
    %p56 = scmp.eq.s32.totalorder %s18, 1
    %p57 = por %p55, %p56
    %p58 = scmp.ne.s32.totalorder %s49, %s50
    %p59 = scmp.eq.s32.totalorder %s18, 0
    %p60 = por %p58, %p59
    %p61 = scmp.ne.s32.totalorder %s49, %s50
    %p62 = scmp.eq.s32.totalorder %s19, 1
    %p63 = por %p61, %p62
    %p65 = scmp.ne.s32.totalorder %s50, %s64
    %p66 = scmp.eq.s32.totalorder %s19, 0
    %p67 = por %p65, %p66
    %s69 = sadd.s32 %s68, 1
    %p72 = scmp.eq.s32.totalorder %s13, 1
    %p73 = scmp.ne.s32.totalorder %s68, %s70
    %p74 = scmp.eq.s32.totalorder %s13, 0
    %p75 = por %p73, %p74
    %p76 = scmp.ne.s32.totalorder %s68, %s70
    %p77 = scmp.eq.s32.totalorder %s18, 1
    %p78 = por %p76, %p77
    %p79 = scmp.ne.s32.totalorder %s70, %s71
    %p80 = scmp.eq.s32.totalorder %s18, 0
    %p81 = por %p79, %p80
    %p82 = scmp.ne.s32.totalorder %s70, %s71
    %p83 = scmp.eq.s32.totalorder %s19, 1
    %p84 = por %p82, %p83
    %p86 = scmp.ne.s32.totalorder %s71, %s85
    %p87 = scmp.eq.s32.totalorder %s19, 0
    %p88 = por %p86, %p87
    %s90 = sadd.s32 %s89, 1
    %p93 = scmp.eq.s32.totalorder %s13, 1
    %p94 = scmp.ne.s32.totalorder %s89, %s91
    %p95 = scmp.eq.s32.totalorder %s13, 0
    %p96 = por %p94, %p95
    %p97 = scmp.ne.s32.totalorder %s89, %s91
    %p98 = scmp.eq.s32.totalorder %s18, 1
    %p99 = por %p97, %p98
    %p100 = scmp.ne.s32.totalorder %s91, %s92
    %p101 = scmp.eq.s32.totalorder %s18, 0
    %p102 = por %p100, %p101
    %p103 = scmp.ne.s32.totalorder %s91, %s92
    %p104 = scmp.eq.s32.totalorder %s19, 1
    %p105 = por %p103, %p104
    %p107 = scmp.ne.s32.totalorder %s92, %s106
    %p108 = scmp.eq.s32.totalorder %s19, 0
    %p109 = por %p107, %p108
    %s111 = sadd.s32 %s110, 1
    %p114 = scmp.eq.s32.totalorder %s13, 1
    %p115 = scmp.ne.s32.totalorder %s110, %s112
    %p116 = scmp.eq.s32.totalorder %s13, 0
    %p117 = por %p115, %p116
    %p118 = scmp.ne.s32.totalorder %s110, %s112
    %p119 = scmp.eq.s32.totalorder %s18, 1
    %p120 = por %p118, %p119
    %p121 = scmp.ne.s32.totalorder %s112, %s113
    %p122 = scmp.eq.s32.totalorder %s18, 0
    %p123 = por %p121, %p122
    %p124 = scmp.ne.s32.totalorder %s112, %s113
    %p125 = scmp.eq.s32.totalorder %s19, 1
    %p126 = por %p124, %p125
    %p128 = scmp.ne.s32.totalorder %s113, %s127
    %p129 = scmp.eq.s32.totalorder %s19, 0
    %p130 = por %p128, %p129
    %s132 = sadd.s32 %s131, 1
    %p135 = scmp.eq.s32.totalorder %s13, 1
    %p136 = scmp.ne.s32.totalorder %s131, %s133
    %p137 = scmp.eq.s32.totalorder %s13, 0
    %p138 = por %p136, %p137
    %p139 = scmp.ne.s32.totalorder %s131, %s133
    %p140 = scmp.eq.s32.totalorder %s18, 1
    %p141 = por %p139, %p140
    %p142 = scmp.ne.s32.totalorder %s133, %s134
    %p143 = scmp.eq.s32.totalorder %s18, 0
    %p144 = por %p142, %p143
    %p145 = scmp.ne.s32.totalorder %s133, %s134
    %p146 = scmp.eq.s32.totalorder %s19, 1
    %p147 = por %p145, %p146
    %p149 = scmp.ne.s32.totalorder %s134, %s148
    %p150 = scmp.eq.s32.totalorder %s19, 0
    %p151 = por %p149, %p150
    %s153 = sadd.s32 %s152, 1
    %p156 = scmp.eq.s32.totalorder %s13, 1
    %p157 = scmp.ne.s32.totalorder %s152, %s154
    %p158 = scmp.eq.s32.totalorder %s13, 0
    %p159 = por %p157, %p158
    %p160 = scmp.ne.s32.totalorder %s152, %s154
    %p161 = scmp.eq.s32.totalorder %s18, 1
    %p162 = por %p160, %p161
    %p163 = scmp.ne.s32.totalorder %s154, %s155
    %p164 = scmp.eq.s32.totalorder %s18, 0
    %p165 = por %p163, %p164
    %p166 = scmp.ne.s32.totalorder %s154, %s155
    %p167 = scmp.eq.s32.totalorder %s19, 1
    %p168 = por %p166, %p167
    %p170 = scmp.ne.s32.totalorder %s155, %s169
    %p171 = scmp.eq.s32.totalorder %s19, 0
    %p172 = por %p170, %p171
    %s173 = ssub.s32 %s13, %s20
    %p174 = scmp.eq.s32.totalorder %s173, 0
    %s176 = sadd.s32 %s175, 1
    %s177 = scalar_select %p174, %s175, %s176
    %p180 = pneg %p174
    %p181 = scmp.eq.s32.totalorder %s13, 1
    %p182 = por %p180, %p181
    %p183 = scmp.ne.s32.totalorder %s175, %s178
    %p184 = scmp.eq.s32.totalorder %s13, 0
    %p185 = por %p183, %p184
    %p186 = scmp.ne.s32.totalorder %s175, %s178
    %p187 = scmp.eq.s32.totalorder %s18, 1
    %p188 = por %p186, %p187
    %p189 = scmp.ne.s32.totalorder %s178, %s179
    %p190 = scmp.eq.s32.totalorder %s18, 0
    %p191 = por %p189, %p190
    %p192 = scmp.ne.s32.totalorder %s178, %s179
    %p193 = scmp.eq.s32.totalorder %s19, 1
    %p194 = por %p192, %p193
    %p196 = scmp.ne.s32.totalorder %s179, %s195
    %p197 = scmp.eq.s32.totalorder %s19, 0
    %p198 = por %p196, %p197
    %p199 = scmp.le.s32.totalorder 1, %s13
    %p200 = scmp.lt.s32.totalorder %s13, 3
    %p201 = pnand %p199, %p200
    %p202 = pneg %p201
    // Predicated region
    $region9: #{c2f_forward.8} parent=5 // pred_check
      _
    $region10: #{c2f_forward.8} parent=5 // pred_check_branch
      %204 = sbr.rel (%p201) target = $region12
    $region11: #{c2f_forward.8} parent=5 // pred_region
      %s205 = ssub.s32 %s13, 1
      // Predicated region
      $region13: #{c2f_forward.8} parent=11 // pred_check
        %p206 = pneg %p60
      $region14: #{c2f_forward.8} parent=11 // pred_check_branch
        %208 = sbr.rel (%p206) target = $region16
      $region15: #{c2f_forward.8} parent=11 // pred_region
        _
      $region16: #{c2f_forward.8} parent=11 // pred_fallthru
        _
      // Predicated region
      $region17: #{c2f_forward.8} parent=11 // pred_check
        %p209 = pneg %p81
      $region18: #{c2f_forward.8} parent=11 // pred_check_branch
        %211 = sbr.rel (%p209) target = $region20
      $region19: #{c2f_forward.8} parent=11 // pred_region
        _
      $region20: #{c2f_forward.8} parent=11 // pred_fallthru
        _
      // Predicated region
      $region21: #{c2f_forward.8} parent=11 // pred_check
        %p212 = pneg %p102
      $region22: #{c2f_forward.8} parent=11 // pred_check_branch
        %214 = sbr.rel (%p212) target = $region24
      $region23: #{c2f_forward.8} parent=11 // pred_region
        _
      $region24: #{c2f_forward.8} parent=11 // pred_fallthru
        _
      // Predicated region
      $region25: #{c2f_forward.8} parent=11 // pred_check
        %p215 = pneg %p123
      $region26: #{c2f_forward.8} parent=11 // pred_check_branch
        %217 = sbr.rel (%p215) target = $region28
      $region27: #{c2f_forward.8} parent=11 // pred_region
        _
      $region28: #{c2f_forward.8} parent=11 // pred_fallthru
        _
      // Predicated region
      $region29: #{c2f_forward.8} parent=11 // pred_check
        %p218 = pneg %p144
      $region30: #{c2f_forward.8} parent=11 // pred_check_branch
        %220 = sbr.rel (%p218) target = $region32
      $region31: #{c2f_forward.8} parent=11 // pred_region
        _
      $region32: #{c2f_forward.8} parent=11 // pred_fallthru
        _
      // Predicated region
      $region33: #{c2f_forward.8} parent=11 // pred_check
        %p221 = pneg %p165
      $region34: #{c2f_forward.8} parent=11 // pred_check_branch
        %223 = sbr.rel (%p221) target = $region36
      $region35: #{c2f_forward.8} parent=11 // pred_region
        _
      $region36: #{c2f_forward.8} parent=11 // pred_fallthru
        _
    $region12: #{c2f_forward.8} parent=5 // pred_fallthru
      _
    %p224 = scmp.lt.s32.totalorder %s13, 2
    // Predicated region
    $region37: #{c2f_forward.8} parent=5 // pred_check
      %p225 = pneg %p224
    $region38: #{c2f_forward.8} parent=5 // pred_check_branch
      %227 = sbr.rel (%p225) target = $region40
    $region39: #{c2f_forward.8} parent=5 // pred_region
      // Predicated region
      $region41: #{c2f_forward.8} parent=39 // pred_check
        %p228 = pneg %p33
      $region42: #{c2f_forward.8} parent=39 // pred_check_branch
        %230 = sbr.rel (%p228) target = $region44
      $region43: #{c2f_forward.8} parent=39 // pred_region
        %p231 = scmp.lt.s32.totalorder %s13, 1
        %s232 = scalar_select %p231, %s13, 1
        %s233 = smul.addr %s232, 32
        %s234 = smul.addr %s233, 8
        %s235 = scalar_lea.vmem %s0, %s234
      $region44: #{c2f_forward.8} parent=39 // pred_fallthru
        _
    $region40: #{c2f_forward.8} parent=5 // pred_fallthru
      _
    %p236 = scmp.le.s32.totalorder 1, %s13
    %p237 = scmp.lt.s32.totalorder %s13, 3
    %p238 = pnand %p236, %p237
    %p239 = pneg %p238
    // Predicated region
    $region45: #{c2f_forward.8} parent=5 // pred_check
      _
    $region46: #{c2f_forward.8} parent=5 // pred_check_branch
      %241 = sbr.rel (%p238) target = $region48
    $region47: #{c2f_forward.8} parent=5 // pred_region
      %s242 = ssub.s32 %s13, 1
      %p243 = scmp.lt.s32.totalorder %s18, 1
      %s244 = scalar_select %p243, %s18, 1
      %s245 = smul.addr %s244, 32
      %s246 = smul.addr %s245, 8
      %s247 = scalar_lea.vmem %s0, %s246
      %p248 = pneg %p39
      %p249 = pneg %p36
      %p250 = pneg %p60
      %p251 = pneg %p57
      %p252 = pneg %p81
      %p253 = pneg %p78
      %p254 = pneg %p102
      %p255 = pneg %p99
      %p256 = pneg %p123
      %p257 = pneg %p120
      %p258 = pneg %p144
      %p259 = pneg %p141
      %p260 = pneg %p165
      %p261 = pneg %p162
      %p262 = pneg %p191
      %p263 = pneg %p188
      %p264 = scmp.lt.s32.totalorder %s18, 1
      %s265 = scalar_select %p264, %s18, 1
      %s266 = smul.addr %s265, 32
      %s267 = smul.addr %s266, 8
      %s268 = scalar_lea.vmem %s7, %s267
      %p269 = scmp.lt.s32.totalorder %s18, 1
      %s270 = scalar_select %p269, %s18, 1
      %s271 = smul.addr %s270, 32
      %s272 = smul.addr %s271, 8
      %s273 = scalar_lea.vmem %s0, %s272
      %p274 = scmp.lt.s32.totalorder %s18, 1
      %s275 = scalar_select %p274, %s18, 1
      %s276 = smul.addr %s275, 32
      %s277 = smul.addr %s276, 8
      %s278 = scalar_lea.vmem %s7, %s277
      %v279 = vld [vmem:[%s273] sm:$0xff]
      %v280 = vld [vmem:[%s273 + $0x8] sm:$0xff]
      %v281 = vld [vmem:[%s273 + $0x10] sm:$0xff]
      %v282 = vld [vmem:[%s273 + $0x18] sm:$0xff]
      %v283 = vld [vmem:[%s273 + $0x20] sm:$0xff]
      %v284 = vld [vmem:[%s273 + $0x28] sm:$0xff]
      %v285 = vld [vmem:[%s273 + $0x30] sm:$0xff]
      %v286 = vld [vmem:[%s273 + $0x38] sm:$0xff]
      %v287 = vld [vmem:[%s273 + $0x40] sm:$0xff]
      %v288 = vld [vmem:[%s273 + $0x48] sm:$0xff]
      %v289 = vld [vmem:[%s273 + $0x50] sm:$0xff]
      %v290 = vld [vmem:[%s273 + $0x58] sm:$0xff]
      %v291 = vld [vmem:[%s273 + $0x60] sm:$0xff]
      %v292 = vld [vmem:[%s273 + $0x68] sm:$0xff]
      %v293 = vld [vmem:[%s273 + $0x70] sm:$0xff]
      %v294 = vld [vmem:[%s273 + $0x78] sm:$0xff]
      %v295 = vld [vmem:[%s273 + $0x80] sm:$0xff]
      %v296 = vld [vmem:[%s273 + $0x88] sm:$0xff]
      %v297 = vld [vmem:[%s273 + $0x90] sm:$0xff]
      %v298 = vld [vmem:[%s273 + $0x98] sm:$0xff]
      %v299 = vld [vmem:[%s273 + $0xa0] sm:$0xff]
      %v300 = vld [vmem:[%s273 + $0xa8] sm:$0xff]
      %v301 = vld [vmem:[%s273 + $0xb0] sm:$0xff]
      %v302 = vld [vmem:[%s273 + $0xb8] sm:$0xff]
      %v303 = vld [vmem:[%s273 + $0xc0] sm:$0xff]
      %v304 = vld [vmem:[%s273 + $0xc8] sm:$0xff]
      %v305 = vld [vmem:[%s273 + $0xd0] sm:$0xff]
      %v306 = vld [vmem:[%s273 + $0xd8] sm:$0xff]
      %v307 = vld [vmem:[%s273 + $0xe0] sm:$0xff]
      %v308 = vld [vmem:[%s273 + $0xe8] sm:$0xff]
      %v309 = vld [vmem:[%s273 + $0xf0] sm:$0xff]
      %v310 = vld [vmem:[%s273 + $0xf8] sm:$0xff]
      %v311 = vld [vmem:[%s1] sm:$0x3]
      %vm312 = vcmask 15360
      %v314 = vsel %vm312, %v279, 0
      %v317 = vsel %vm312, %v280, 0
      %v320 = vsel %vm312, %v281, 0
      %v323 = vsel %vm312, %v282, 0
      %v326 = vsel %vm312, %v283, 0
      %v329 = vsel %vm312, %v284, 0
      %v332 = vsel %vm312, %v285, 0
      %v335 = vsel %vm312, %v286, 0
      %v338 = vsel %vm312, %v287, 0
      %v341 = vsel %vm312, %v288, 0
      %v344 = vsel %vm312, %v289, 0
      %v347 = vsel %vm312, %v290, 0
      %v350 = vsel %vm312, %v291, 0
      %v353 = vsel %vm312, %v292, 0
      %v356 = vsel %vm312, %v293, 0
      %v359 = vsel %vm312, %v294, 0
      %v362 = vsel %vm312, %v295, 0
      %v365 = vsel %vm312, %v296, 0
      %v368 = vsel %vm312, %v297, 0
      %v371 = vsel %vm312, %v298, 0
      %v374 = vsel %vm312, %v299, 0
      %v377 = vsel %vm312, %v300, 0
      %v380 = vsel %vm312, %v301, 0
      %v383 = vsel %vm312, %v302, 0
      %v386 = vsel %vm312, %v303, 0
      %v389 = vsel %vm312, %v304, 0
      %v392 = vsel %vm312, %v305, 0
      %v395 = vsel %vm312, %v306, 0
      %v398 = vsel %vm312, %v307, 0
      %v401 = vsel %vm312, %v308, 0
      %v404 = vsel %vm312, %v309, 0
      %v407 = vsel %vm312, %v310, 0
      %vm409 = vcmask 1041408
      %v411 = vsel %vm409, %v311, 0
      %413 = vmatprep.subr.mxu0 0.0
      %414 = vmatpush1.msra.mxu0 0.0
      %415 = vmatprep.subr.mxu0 0.0
      %416 = vmatpush1.msra.mxu0 0.0
      %417 = vmatprep.subr.mxu0 0.0
      %418 = vmatpush1.msra.mxu0 0.0
      %419 = vmatprep.subr.mxu0 0.0
      %420 = vmatpush1.msra.mxu0 0.0
      %421 = vmatprep.subr.mxu0 0.0
      %422 = vmatpush1.msra.mxu0 0.0
      %423 = vmatprep.subr.mxu0 0.0
      %424 = vmatpush1.msra.mxu0 0.0
      %425 = vmatprep.subr.mxu0 0.0
      %426 = vmatpush1.msra.mxu0 0.0
      %427 = vmatprep.subr.mxu0 0.0
      %428 = vmatpush1.msra.mxu0 0.0
      %429 = vmatprep.subr.mxu0 0.0
      %430 = vmatpush1.msra.mxu0 0.0
      %431 = vmatprep.subr.mxu0 0.0
      %432 = vmatpush1.msra.mxu0 0.0
      %433 = vmatprep.subr.mxu0 0.0
      %434 = vmatpush1.msra.mxu0 0.0
      %435 = vmatprep.subr.mxu0 0.0
      %436 = vmatpush1.msra.mxu0 0.0
      %437 = vmatprep.subr.mxu0 0.0
      %438 = vmatpush1.msra.mxu0 0.0
      %439 = vmatprep.subr.mxu0 0.0
      %440 = vmatpush1.msra.mxu0 0.0
      %441 = vmatprep.subr.mxu0 0.0
      %442 = vmatpush1.msra.mxu0 0.0
      %443 = vmatprep.subr.mxu0 0.0
      %444 = vmatpush1.msra.mxu0 %v411
      %445 = vmatprep.subr.mxu0 0.0
      %446 = vmatpush2.msra.mxu0 0.0
      %447 = vmatprep.subr.mxu0 0.0
      %448 = vmatpush2.msra.mxu0 0.0
      %449 = vmatprep.subr.mxu0 0.0
      %450 = vmatpush2.msra.mxu0 0.0
      %451 = vmatprep.subr.mxu0 0.0
      %452 = vmatpush2.msra.mxu0 0.0
      %453 = vmatprep.subr.mxu0 0.0
      %454 = vmatpush2.msra.mxu0 0.0
      %455 = vmatprep.subr.mxu0 0.0
      %456 = vmatpush2.msra.mxu0 0.0
      %457 = vmatprep.subr.mxu0 0.0
      %458 = vmatpush2.msra.mxu0 0.0
      %459 = vmatprep.subr.mxu0 0.0
      %460 = vmatpush2.msra.mxu0 0.0
      %461 = vmatprep.subr.mxu0 0.0
      %462 = vmatpush2.msra.mxu0 0.0
      %463 = vmatprep.subr.mxu0 0.0
      %464 = vmatpush2.msra.mxu0 0.0
      %465 = vmatprep.subr.mxu0 0.0
      %466 = vmatpush2.msra.mxu0 0.0
      %467 = vmatprep.subr.mxu0 0.0
      %468 = vmatpush2.msra.mxu0 0.0
      %469 = vmatprep.subr.mxu0 0.0
      %470 = vmatpush2.msra.mxu0 0.0
      %471 = vmatprep.subr.mxu0 0.0
      %472 = vmatpush2.msra.mxu0 0.0
      %473 = vmatprep.subr.mxu0 0.0
      %474 = vmatpush2.msra.mxu0 0.0
      %475 = vmatprep.subr.mxu0 0.0
      %476 = vmatpush2.msra.mxu0 0.0
      %477 = vmatprep.mubr.f32.mxu0 0.0
      %478 = vmatmul.mubr.f32.gmra.mxu0 %v314
      %v479 = vpop.f32.mrf.mxu0
      %v480 = vadd.f32 0.0, %v479
      %v481 = vpop.f32.mrf.mxu0
      %482 = vmatprep.mubr.f32.mxu0 0.0
      %483 = vmatmul.mubr.f32.gmra.mxu0 %v317
      %v484 = vpop.f32.mrf.mxu0
      %v485 = vadd.f32 0.0, %v484
      %v486 = vpop.f32.mrf.mxu0
      %487 = vmatprep.mubr.f32.mxu0 0.0
      %488 = vmatmul.mubr.f32.gmra.mxu0 %v320
      %v489 = vpop.f32.mrf.mxu0
      %v490 = vadd.f32 0.0, %v489
      %v491 = vpop.f32.mrf.mxu0
      %492 = vmatprep.mubr.f32.mxu0 0.0
      %493 = vmatmul.mubr.f32.gmra.mxu0 %v323
      %v494 = vpop.f32.mrf.mxu0
      %v495 = vadd.f32 0.0, %v494
      %v496 = vpop.f32.mrf.mxu0
      %497 = vmatprep.mubr.f32.mxu0 0.0
      %498 = vmatmul.mubr.f32.gmra.mxu0 %v326
      %v499 = vpop.f32.mrf.mxu0
      %v500 = vadd.f32 0.0, %v499
      %v501 = vpop.f32.mrf.mxu0
      %502 = vmatprep.mubr.f32.mxu0 0.0
      %503 = vmatmul.mubr.f32.gmra.mxu0 %v329
      %v504 = vpop.f32.mrf.mxu0
      %v505 = vadd.f32 0.0, %v504
      %v506 = vpop.f32.mrf.mxu0
      %507 = vmatprep.mubr.f32.mxu0 0.0
      %508 = vmatmul.mubr.f32.gmra.mxu0 %v332
      %v509 = vpop.f32.mrf.mxu0
      %v510 = vadd.f32 0.0, %v509
      %v511 = vpop.f32.mrf.mxu0
      %512 = vmatprep.mubr.f32.mxu0 0.0
      %513 = vmatmul.mubr.f32.gmra.mxu0 %v335
      %v514 = vpop.f32.mrf.mxu0
      %v515 = vadd.f32 0.0, %v514
      %v516 = vpop.f32.mrf.mxu0
      %517 = vmatprep.mubr.f32.mxu0 0.0
      %518 = vmatmul.mubr.f32.gmra.mxu0 %v338
      %v519 = vpop.f32.mrf.mxu0
      %v520 = vadd.f32 0.0, %v519
      %v521 = vpop.f32.mrf.mxu0
      %522 = vmatprep.mubr.f32.mxu0 0.0
      %523 = vmatmul.mubr.f32.gmra.mxu0 %v341
      %v524 = vpop.f32.mrf.mxu0
      %v525 = vadd.f32 0.0, %v524
      %v526 = vpop.f32.mrf.mxu0
      %527 = vmatprep.mubr.f32.mxu0 0.0
      %528 = vmatmul.mubr.f32.gmra.mxu0 %v344
      %v529 = vpop.f32.mrf.mxu0
      %v530 = vadd.f32 0.0, %v529
      %v531 = vpop.f32.mrf.mxu0
      %532 = vmatprep.mubr.f32.mxu0 0.0
      %533 = vmatmul.mubr.f32.gmra.mxu0 %v347
      %v534 = vpop.f32.mrf.mxu0
      %v535 = vadd.f32 0.0, %v534
      %v536 = vpop.f32.mrf.mxu0
      %537 = vmatprep.mubr.f32.mxu0 0.0
      %538 = vmatmul.mubr.f32.gmra.mxu0 %v350
      %v539 = vpop.f32.mrf.mxu0
      %v540 = vadd.f32 0.0, %v539
      %v541 = vpop.f32.mrf.mxu0
      %542 = vmatprep.mubr.f32.mxu0 0.0
      %543 = vmatmul.mubr.f32.gmra.mxu0 %v353
      %v544 = vpop.f32.mrf.mxu0
      %v545 = vadd.f32 0.0, %v544
      %v546 = vpop.f32.mrf.mxu0
      %547 = vmatprep.mubr.f32.mxu0 0.0
      %548 = vmatmul.mubr.f32.gmra.mxu0 %v356
      %v549 = vpop.f32.mrf.mxu0
      %v550 = vadd.f32 0.0, %v549
      %v551 = vpop.f32.mrf.mxu0
      %552 = vmatprep.mubr.f32.mxu0 0.0
      %553 = vmatmul.mubr.f32.gmra.mxu0 %v359
      %v554 = vpop.f32.mrf.mxu0
      %v555 = vadd.f32 0.0, %v554
      %v556 = vpop.f32.mrf.mxu0
      %557 = vmatprep.mubr.f32.mxu0 0.0
      %558 = vmatmul.mubr.f32.gmra.mxu0 %v362
      %v559 = vpop.f32.mrf.mxu0
      %v560 = vadd.f32 0.0, %v559
      %v561 = vpop.f32.mrf.mxu0
      %562 = vmatprep.mubr.f32.mxu0 0.0
      %563 = vmatmul.mubr.f32.gmra.mxu0 %v365
      %v564 = vpop.f32.mrf.mxu0
      %v565 = vadd.f32 0.0, %v564
      %v566 = vpop.f32.mrf.mxu0
      %567 = vmatprep.mubr.f32.mxu0 0.0
      %568 = vmatmul.mubr.f32.gmra.mxu0 %v368
      %v569 = vpop.f32.mrf.mxu0
      %v570 = vadd.f32 0.0, %v569
      %v571 = vpop.f32.mrf.mxu0
      %572 = vmatprep.mubr.f32.mxu0 0.0
      %573 = vmatmul.mubr.f32.gmra.mxu0 %v371
      %v574 = vpop.f32.mrf.mxu0
      %v575 = vadd.f32 0.0, %v574
      %v576 = vpop.f32.mrf.mxu0
      %577 = vmatprep.mubr.f32.mxu0 0.0
      %578 = vmatmul.mubr.f32.gmra.mxu0 %v374
      %v579 = vpop.f32.mrf.mxu0
      %v580 = vadd.f32 0.0, %v579
      %v581 = vpop.f32.mrf.mxu0
      %582 = vmatprep.mubr.f32.mxu0 0.0
      %583 = vmatmul.mubr.f32.gmra.mxu0 %v377
      %v584 = vpop.f32.mrf.mxu0
      %v585 = vadd.f32 0.0, %v584
      %v586 = vpop.f32.mrf.mxu0
      %587 = vmatprep.mubr.f32.mxu0 0.0
      %588 = vmatmul.mubr.f32.gmra.mxu0 %v380
      %v589 = vpop.f32.mrf.mxu0
      %v590 = vadd.f32 0.0, %v589
      %v591 = vpop.f32.mrf.mxu0
      %592 = vmatprep.mubr.f32.mxu0 0.0
      %593 = vmatmul.mubr.f32.gmra.mxu0 %v383
      %v594 = vpop.f32.mrf.mxu0
      %v595 = vadd.f32 0.0, %v594
      %v596 = vpop.f32.mrf.mxu0
      %597 = vmatprep.mubr.f32.mxu0 0.0
      %598 = vmatmul.mubr.f32.gmra.mxu0 %v386
      %v599 = vpop.f32.mrf.mxu0
      %v600 = vadd.f32 0.0, %v599
      %v601 = vpop.f32.mrf.mxu0
      %602 = vmatprep.mubr.f32.mxu0 0.0
      %603 = vmatmul.mubr.f32.gmra.mxu0 %v389
      %v604 = vpop.f32.mrf.mxu0
      %v605 = vadd.f32 0.0, %v604
      %v606 = vpop.f32.mrf.mxu0
      %607 = vmatprep.mubr.f32.mxu0 0.0
      %608 = vmatmul.mubr.f32.gmra.mxu0 %v392
      %v609 = vpop.f32.mrf.mxu0
      %v610 = vadd.f32 0.0, %v609
      %v611 = vpop.f32.mrf.mxu0
      %612 = vmatprep.mubr.f32.mxu0 0.0
      %613 = vmatmul.mubr.f32.gmra.mxu0 %v395
      %v614 = vpop.f32.mrf.mxu0
      %v615 = vadd.f32 0.0, %v614
      %v616 = vpop.f32.mrf.mxu0
      %617 = vmatprep.mubr.f32.mxu0 0.0
      %618 = vmatmul.mubr.f32.gmra.mxu0 %v398
      %v619 = vpop.f32.mrf.mxu0
      %v620 = vadd.f32 0.0, %v619
      %v621 = vpop.f32.mrf.mxu0
      %622 = vmatprep.mubr.f32.mxu0 0.0
      %623 = vmatmul.mubr.f32.gmra.mxu0 %v401
      %v624 = vpop.f32.mrf.mxu0
      %v625 = vadd.f32 0.0, %v624
      %v626 = vpop.f32.mrf.mxu0
      %627 = vmatprep.mubr.f32.mxu0 0.0
      %628 = vmatmul.mubr.f32.gmra.mxu0 %v404
      %v629 = vpop.f32.mrf.mxu0
      %v630 = vadd.f32 0.0, %v629
      %v631 = vpop.f32.mrf.mxu0
      %632 = vmatprep.mubr.f32.mxu0 0.0
      %633 = vmatmul.mubr.f32.gmra.mxu0 %v407
      %v634 = vpop.f32.mrf.mxu0
      %v635 = vadd.f32 0.0, %v634
      %v636 = vpop.f32.mrf.mxu0
      %637 = vdwg.mxu0
      %v638 = vld [vmem:[%s2] sm:$0x1]
      %v640 = vlaneseq
      %v641 = vshrl.u32 %v640, 7
      %v642 = vsub.s32 0, %v641
      %v643 = vrot.slane %v638, %v642
      %v645 = vmul.f32 %v480, %v643
      %v646 = vmul.f32 %v485, %v643
      %v647 = vmul.f32 %v490, %v643
      %v648 = vmul.f32 %v495, %v643
      %v649 = vmul.f32 %v500, %v643
      %v650 = vmul.f32 %v505, %v643
      %v651 = vmul.f32 %v510, %v643
      %v652 = vmul.f32 %v515, %v643
      %v653 = vmul.f32 %v520, %v643
      %v654 = vmul.f32 %v525, %v643
      %v655 = vmul.f32 %v530, %v643
      %v656 = vmul.f32 %v535, %v643
      %v657 = vmul.f32 %v540, %v643
      %v658 = vmul.f32 %v545, %v643
      %v659 = vmul.f32 %v550, %v643
      %v660 = vmul.f32 %v555, %v643
      %v661 = vmul.f32 %v560, %v643
      %v662 = vmul.f32 %v565, %v643
      %v663 = vmul.f32 %v570, %v643
      %v664 = vmul.f32 %v575, %v643
      %v665 = vmul.f32 %v580, %v643
      %v666 = vmul.f32 %v585, %v643
      %v667 = vmul.f32 %v590, %v643
      %v668 = vmul.f32 %v595, %v643
      %v669 = vmul.f32 %v600, %v643
      %v670 = vmul.f32 %v605, %v643
      %v671 = vmul.f32 %v610, %v643
      %v672 = vmul.f32 %v615, %v643
      %v673 = vmul.f32 %v620, %v643
      %v674 = vmul.f32 %v625, %v643
      %v675 = vmul.f32 %v630, %v643
      %v676 = vmul.f32 %v635, %v643
      %v677 = vld [vmem:[%s3] sm:$0x1]
      %v679 = vlaneseq
      %v680 = vshrl.u32 %v679, 7
      %v681 = vsub.s32 0, %v680
      %v682 = vrot.slane %v677, %v681
      %v684 = vadd.f32 %v645, %v682
      %v685 = vadd.f32 %v646, %v682
      %v686 = vadd.f32 %v647, %v682
      %v687 = vadd.f32 %v648, %v682
      %v688 = vadd.f32 %v649, %v682
      %v689 = vadd.f32 %v650, %v682
      %v690 = vadd.f32 %v651, %v682
      %v691 = vadd.f32 %v652, %v682
      %v692 = vadd.f32 %v653, %v682
      %v693 = vadd.f32 %v654, %v682
      %v694 = vadd.f32 %v655, %v682
      %v695 = vadd.f32 %v656, %v682
      %v696 = vadd.f32 %v657, %v682
      %v697 = vadd.f32 %v658, %v682
      %v698 = vadd.f32 %v659, %v682
      %v699 = vadd.f32 %v660, %v682
      %v700 = vadd.f32 %v661, %v682
      %v701 = vadd.f32 %v662, %v682
      %v702 = vadd.f32 %v663, %v682
      %v703 = vadd.f32 %v664, %v682
      %v704 = vadd.f32 %v665, %v682
      %v705 = vadd.f32 %v666, %v682
      %v706 = vadd.f32 %v667, %v682
      %v707 = vadd.f32 %v668, %v682
      %v708 = vadd.f32 %v669, %v682
      %v709 = vadd.f32 %v670, %v682
      %v710 = vadd.f32 %v671, %v682
      %v711 = vadd.f32 %v672, %v682
      %v712 = vadd.f32 %v673, %v682
      %v713 = vadd.f32 %v674, %v682
      %v714 = vadd.f32 %v675, %v682
      %v715 = vadd.f32 %v676, %v682
      %v716 = vxor.u32 %v684, 2147483648
      %v717 = vxor.u32 %v685, 2147483648
      %v718 = vxor.u32 %v686, 2147483648
      %v719 = vxor.u32 %v687, 2147483648
      %v720 = vxor.u32 %v688, 2147483648
      %v721 = vxor.u32 %v689, 2147483648
      %v722 = vxor.u32 %v690, 2147483648
      %v723 = vxor.u32 %v691, 2147483648
      %v724 = vxor.u32 %v692, 2147483648
      %v725 = vxor.u32 %v693, 2147483648
      %v726 = vxor.u32 %v694, 2147483648
      %v727 = vxor.u32 %v695, 2147483648
      %v728 = vxor.u32 %v696, 2147483648
      %v729 = vxor.u32 %v697, 2147483648
      %v730 = vxor.u32 %v698, 2147483648
      %v731 = vxor.u32 %v699, 2147483648
      %v732 = vxor.u32 %v700, 2147483648
      %v733 = vxor.u32 %v701, 2147483648
      %v734 = vxor.u32 %v702, 2147483648
      %v735 = vxor.u32 %v703, 2147483648
      %v736 = vxor.u32 %v704, 2147483648
      %v737 = vxor.u32 %v705, 2147483648
      %v738 = vxor.u32 %v706, 2147483648
      %v739 = vxor.u32 %v707, 2147483648
      %v740 = vxor.u32 %v708, 2147483648
      %v741 = vxor.u32 %v709, 2147483648
      %v742 = vxor.u32 %v710, 2147483648
      %v743 = vxor.u32 %v711, 2147483648
      %v744 = vxor.u32 %v712, 2147483648
      %v745 = vxor.u32 %v713, 2147483648
      %v746 = vxor.u32 %v714, 2147483648
      %v747 = vxor.u32 %v715, 2147483648
      %v748 = vmul.f32 %v716, 1.442695
      %v749 = vpow.pop %v748
      %v750 = vmul.f32 %v717, 1.442695
      %v751 = vpow.pop %v750
      %v752 = vmul.f32 %v718, 1.442695
      %v753 = vpow.pop %v752
      %v754 = vmul.f32 %v719, 1.442695
      %v755 = vpow.pop %v754
      %v756 = vmul.f32 %v720, 1.442695
      %v757 = vpow.pop %v756
      %v758 = vmul.f32 %v721, 1.442695
      %v759 = vpow.pop %v758
      %v760 = vmul.f32 %v722, 1.442695
      %v761 = vpow.pop %v760
      %v762 = vmul.f32 %v723, 1.442695
      %v763 = vpow.pop %v762
      %v764 = vmul.f32 %v724, 1.442695
      %v765 = vpow.pop %v764
      %v766 = vmul.f32 %v725, 1.442695
      %v767 = vpow.pop %v766
      %v768 = vmul.f32 %v726, 1.442695
      %v769 = vpow.pop %v768
      %v770 = vmul.f32 %v727, 1.442695
      %v771 = vpow.pop %v770
      %v772 = vmul.f32 %v728, 1.442695
      %v773 = vpow.pop %v772
      %v774 = vmul.f32 %v729, 1.442695
      %v775 = vpow.pop %v774
      %v776 = vmul.f32 %v730, 1.442695
      %v777 = vpow.pop %v776
      %v778 = vmul.f32 %v731, 1.442695
      %v779 = vpow.pop %v778
      %v780 = vmul.f32 %v732, 1.442695
      %v781 = vpow.pop %v780
      %v782 = vmul.f32 %v733, 1.442695
      %v783 = vpow.pop %v782
      %v784 = vmul.f32 %v734, 1.442695
      %v785 = vpow.pop %v784
      %v786 = vmul.f32 %v735, 1.442695
      %v787 = vpow.pop %v786
      %v788 = vmul.f32 %v736, 1.442695
      %v789 = vpow.pop %v788
      %v790 = vmul.f32 %v737, 1.442695
      %v791 = vpow.pop %v790
      %v792 = vmul.f32 %v738, 1.442695
      %v793 = vpow.pop %v792
      %v794 = vmul.f32 %v739, 1.442695
      %v795 = vpow.pop %v794
      %v796 = vmul.f32 %v740, 1.442695
      %v797 = vpow.pop %v796
      %v798 = vmul.f32 %v741, 1.442695
      %v799 = vpow.pop %v798
      %v800 = vmul.f32 %v742, 1.442695
      %v801 = vpow.pop %v800
      %v802 = vmul.f32 %v743, 1.442695
      %v803 = vpow.pop %v802
      %v804 = vmul.f32 %v744, 1.442695
      %v805 = vpow.pop %v804
      %v806 = vmul.f32 %v745, 1.442695
      %v807 = vpow.pop %v806
      %v808 = vmul.f32 %v746, 1.442695
      %v809 = vpow.pop %v808
      %v810 = vmul.f32 %v747, 1.442695
      %v811 = vpow.pop %v810
      %v812 = vadd.f32 %v749, 1.0
      %v813 = vadd.f32 %v751, 1.0
      %v814 = vadd.f32 %v753, 1.0
      %v815 = vadd.f32 %v755, 1.0
      %v816 = vadd.f32 %v757, 1.0
      %v817 = vadd.f32 %v759, 1.0
      %v818 = vadd.f32 %v761, 1.0
      %v819 = vadd.f32 %v763, 1.0
      %v820 = vadd.f32 %v765, 1.0
      %v821 = vadd.f32 %v767, 1.0
      %v822 = vadd.f32 %v769, 1.0
      %v823 = vadd.f32 %v771, 1.0
      %v824 = vadd.f32 %v773, 1.0
      %v825 = vadd.f32 %v775, 1.0
      %v826 = vadd.f32 %v777, 1.0
      %v827 = vadd.f32 %v779, 1.0
      %v828 = vadd.f32 %v781, 1.0
      %v829 = vadd.f32 %v783, 1.0
      %v830 = vadd.f32 %v785, 1.0
      %v831 = vadd.f32 %v787, 1.0
      %v832 = vadd.f32 %v789, 1.0
      %v833 = vadd.f32 %v791, 1.0
      %v834 = vadd.f32 %v793, 1.0
      %v835 = vadd.f32 %v795, 1.0
      %v836 = vadd.f32 %v797, 1.0
      %v837 = vadd.f32 %v799, 1.0
      %v838 = vadd.f32 %v801, 1.0
      %v839 = vadd.f32 %v803, 1.0
      %v840 = vadd.f32 %v805, 1.0
      %v841 = vadd.f32 %v807, 1.0
      %v842 = vadd.f32 %v809, 1.0
      %v843 = vadd.f32 %v811, 1.0
      %v844 = vrcp.pop %v812
      %v845 = vmul.f32 1.0, %v844
      %v846 = vrcp.pop %v813
      %v847 = vmul.f32 1.0, %v846
      %v848 = vrcp.pop %v814
      %v849 = vmul.f32 1.0, %v848
      %v850 = vrcp.pop %v815
      %v851 = vmul.f32 1.0, %v850
      %v852 = vrcp.pop %v816
      %v853 = vmul.f32 1.0, %v852
      %v854 = vrcp.pop %v817
      %v855 = vmul.f32 1.0, %v854
      %v856 = vrcp.pop %v818
      %v857 = vmul.f32 1.0, %v856
      %v858 = vrcp.pop %v819
      %v859 = vmul.f32 1.0, %v858
      %v860 = vrcp.pop %v820
      %v861 = vmul.f32 1.0, %v860
      %v862 = vrcp.pop %v821
      %v863 = vmul.f32 1.0, %v862
      %v864 = vrcp.pop %v822
      %v865 = vmul.f32 1.0, %v864
      %v866 = vrcp.pop %v823
      %v867 = vmul.f32 1.0, %v866
      %v868 = vrcp.pop %v824
      %v869 = vmul.f32 1.0, %v868
      %v870 = vrcp.pop %v825
      %v871 = vmul.f32 1.0, %v870
      %v872 = vrcp.pop %v826
      %v873 = vmul.f32 1.0, %v872
      %v874 = vrcp.pop %v827
      %v875 = vmul.f32 1.0, %v874
      %v876 = vrcp.pop %v828
      %v877 = vmul.f32 1.0, %v876
      %v878 = vrcp.pop %v829
      %v879 = vmul.f32 1.0, %v878
      %v880 = vrcp.pop %v830
      %v881 = vmul.f32 1.0, %v880
      %v882 = vrcp.pop %v831
      %v883 = vmul.f32 1.0, %v882
      %v884 = vrcp.pop %v832
      %v885 = vmul.f32 1.0, %v884
      %v886 = vrcp.pop %v833
      %v887 = vmul.f32 1.0, %v886
      %v888 = vrcp.pop %v834
      %v889 = vmul.f32 1.0, %v888
      %v890 = vrcp.pop %v835
      %v891 = vmul.f32 1.0, %v890
      %v892 = vrcp.pop %v836
      %v893 = vmul.f32 1.0, %v892
      %v894 = vrcp.pop %v837
      %v895 = vmul.f32 1.0, %v894
      %v896 = vrcp.pop %v838
      %v897 = vmul.f32 1.0, %v896
      %v898 = vrcp.pop %v839
      %v899 = vmul.f32 1.0, %v898
      %v900 = vrcp.pop %v840
      %v901 = vmul.f32 1.0, %v900
      %v902 = vrcp.pop %v841
      %v903 = vmul.f32 1.0, %v902
      %v904 = vrcp.pop %v842
      %v905 = vmul.f32 1.0, %v904
      %v906 = vrcp.pop %v843
      %v907 = vmul.f32 1.0, %v906
      %v908 = vmul.f32 %v684, %v845
      %v909 = vmul.f32 %v685, %v847
      %v910 = vmul.f32 %v686, %v849
      %v911 = vmul.f32 %v687, %v851
      %v912 = vmul.f32 %v688, %v853
      %v913 = vmul.f32 %v689, %v855
      %v914 = vmul.f32 %v690, %v857
      %v915 = vmul.f32 %v691, %v859
      %v916 = vmul.f32 %v692, %v861
      %v917 = vmul.f32 %v693, %v863
      %v918 = vmul.f32 %v694, %v865
      %v919 = vmul.f32 %v695, %v867
      %v920 = vmul.f32 %v696, %v869
      %v921 = vmul.f32 %v697, %v871
      %v922 = vmul.f32 %v698, %v873
      %v923 = vmul.f32 %v699, %v875
      %v924 = vmul.f32 %v700, %v877
      %v925 = vmul.f32 %v701, %v879
      %v926 = vmul.f32 %v702, %v881
      %v927 = vmul.f32 %v703, %v883
      %v928 = vmul.f32 %v704, %v885
      %v929 = vmul.f32 %v705, %v887
      %v930 = vmul.f32 %v706, %v889
      %v931 = vmul.f32 %v707, %v891
      %v932 = vmul.f32 %v708, %v893
      %v933 = vmul.f32 %v709, %v895
      %v934 = vmul.f32 %v710, %v897
      %v935 = vmul.f32 %v711, %v899
      %v936 = vmul.f32 %v712, %v901
      %v937 = vmul.f32 %v713, %v903
      %v938 = vmul.f32 %v714, %v905
      %v939 = vmul.f32 %v715, %v907
      %vm972 = vcmask 1040384
      %v973 = vrot.slane %v908, 7
      %v974 = vrot.slane %v909, 7
      %v975 = vsel %vm972, %v973, %v974
      %v976 = vrot.slane %v910, 7
      %v977 = vrot.slane %v911, 7
      %v978 = vsel %vm972, %v976, %v977
      %v979 = vrot.slane %v912, 7
      %v980 = vrot.slane %v913, 7
      %v981 = vsel %vm972, %v979, %v980
      %v982 = vrot.slane %v914, 7
      %v983 = vrot.slane %v915, 7
      %v984 = vsel %vm972, %v982, %v983
      %v985 = vrot.slane %v916, 7
      %v986 = vrot.slane %v917, 7
      %v987 = vsel %vm972, %v985, %v986
      %v988 = vrot.slane %v918, 7
      %v989 = vrot.slane %v919, 7
      %v990 = vsel %vm972, %v988, %v989
      %v991 = vrot.slane %v920, 7
      %v992 = vrot.slane %v921, 7
      %v993 = vsel %vm972, %v991, %v992
      %v994 = vrot.slane %v922, 7
      %v995 = vrot.slane %v923, 7
      %v996 = vsel %vm972, %v994, %v995
      %v997 = vrot.slane %v924, 7
      %v998 = vrot.slane %v925, 7
      %v999 = vsel %vm972, %v997, %v998
      %v1000 = vrot.slane %v926, 7
      %v1001 = vrot.slane %v927, 7
      %v1002 = vsel %vm972, %v1000, %v1001
      %v1003 = vrot.slane %v928, 7
      %v1004 = vrot.slane %v929, 7
      %v1005 = vsel %vm972, %v1003, %v1004
      %v1006 = vrot.slane %v930, 7
      %v1007 = vrot.slane %v931, 7
      %v1008 = vsel %vm972, %v1006, %v1007
      %v1009 = vrot.slane %v932, 7
      %v1010 = vrot.slane %v933, 7
      %v1011 = vsel %vm972, %v1009, %v1010
      %v1012 = vrot.slane %v934, 7
      %v1013 = vrot.slane %v935, 7
      %v1014 = vsel %vm972, %v1012, %v1013
      %v1015 = vrot.slane %v936, 7
      %v1016 = vrot.slane %v937, 7
      %v1017 = vsel %vm972, %v1015, %v1016
      %v1018 = vrot.slane %v938, 7
      %v1019 = vrot.slane %v939, 7
      %v1020 = vsel %vm972, %v1018, %v1019
      %v1053 = vsel %vm972, 0.0, %v973
      %v1054 = vsel %vm972, 0.0, %v976
      %v1055 = vsel %vm972, 0.0, %v979
      %v1056 = vsel %vm972, 0.0, %v982
      %v1057 = vsel %vm972, 0.0, %v985
      %v1058 = vsel %vm972, 0.0, %v988
      %v1059 = vsel %vm972, 0.0, %v991
      %v1060 = vsel %vm972, 0.0, %v994
      %v1061 = vsel %vm972, 0.0, %v997
      %v1062 = vsel %vm972, 0.0, %v1000
      %v1063 = vsel %vm972, 0.0, %v1003
      %v1064 = vsel %vm972, 0.0, %v1006
      %v1065 = vsel %vm972, 0.0, %v1009
      %v1066 = vsel %vm972, 0.0, %v1012
      %v1067 = vsel %vm972, 0.0, %v1015
      %v1068 = vsel %vm972, 0.0, %v1018
      %vm1069 = vcmask 1046528
      %v1070 = vrot.slane %v908, 1
      %v1071 = vrot.slane %v909, 1
      %v1072 = vsel %vm1069, %v1070, %v1071
      %v1073 = vrot.slane %v910, 1
      %v1074 = vrot.slane %v911, 1
      %v1075 = vsel %vm1069, %v1073, %v1074
      %v1076 = vrot.slane %v912, 1
      %v1077 = vrot.slane %v913, 1
      %v1078 = vsel %vm1069, %v1076, %v1077
      %v1079 = vrot.slane %v914, 1
      %v1080 = vrot.slane %v915, 1
      %v1081 = vsel %vm1069, %v1079, %v1080
      %v1082 = vrot.slane %v916, 1
      %v1083 = vrot.slane %v917, 1
      %v1084 = vsel %vm1069, %v1082, %v1083
      %v1085 = vrot.slane %v918, 1
      %v1086 = vrot.slane %v919, 1
      %v1087 = vsel %vm1069, %v1085, %v1086
      %v1088 = vrot.slane %v920, 1
      %v1089 = vrot.slane %v921, 1
      %v1090 = vsel %vm1069, %v1088, %v1089
      %v1091 = vrot.slane %v922, 1
      %v1092 = vrot.slane %v923, 1
      %v1093 = vsel %vm1069, %v1091, %v1092
      %v1094 = vrot.slane %v924, 1
      %v1095 = vrot.slane %v925, 1
      %v1096 = vsel %vm1069, %v1094, %v1095
      %v1097 = vrot.slane %v926, 1
      %v1098 = vrot.slane %v927, 1
      %v1099 = vsel %vm1069, %v1097, %v1098
      %v1100 = vrot.slane %v928, 1
      %v1101 = vrot.slane %v929, 1
      %v1102 = vsel %vm1069, %v1100, %v1101
      %v1103 = vrot.slane %v930, 1
      %v1104 = vrot.slane %v931, 1
      %v1105 = vsel %vm1069, %v1103, %v1104
      %v1106 = vrot.slane %v932, 1
      %v1107 = vrot.slane %v933, 1
      %v1108 = vsel %vm1069, %v1106, %v1107
      %v1109 = vrot.slane %v934, 1
      %v1110 = vrot.slane %v935, 1
      %v1111 = vsel %vm1069, %v1109, %v1110
      %v1112 = vrot.slane %v936, 1
      %v1113 = vrot.slane %v937, 1
      %v1114 = vsel %vm1069, %v1112, %v1113
      %v1115 = vrot.slane %v938, 1
      %v1116 = vrot.slane %v939, 1
      %v1117 = vsel %vm1069, %v1115, %v1116
      %v1134 = vsel %vm1069, %v1071, 0.0
      %v1135 = vsel %vm1069, %v1074, 0.0
      %v1136 = vsel %vm1069, %v1077, 0.0
      %v1137 = vsel %vm1069, %v1080, 0.0
      %v1138 = vsel %vm1069, %v1083, 0.0
      %v1139 = vsel %vm1069, %v1086, 0.0
      %v1140 = vsel %vm1069, %v1089, 0.0
      %v1141 = vsel %vm1069, %v1092, 0.0
      %v1142 = vsel %vm1069, %v1095, 0.0
      %v1143 = vsel %vm1069, %v1098, 0.0
      %v1144 = vsel %vm1069, %v1101, 0.0
      %v1145 = vsel %vm1069, %v1104, 0.0
      %v1146 = vsel %vm1069, %v1107, 0.0
      %v1147 = vsel %vm1069, %v1110, 0.0
      %v1148 = vsel %vm1069, %v1113, 0.0
      %v1149 = vsel %vm1069, %v1116, 0.0
      %1150 = vrot.lane.b32.xlu0 %v908, 2
      %v1151 = vpop.permute.xlu0 %1150
      %1152 = vrot.lane.b32.xlu0 %v909, 2
      %v1153 = vpop.permute.xlu0 %1152
      %1154 = vrot.lane.b32.xlu0 %v910, 2
      %v1155 = vpop.permute.xlu0 %1154
      %1156 = vrot.lane.b32.xlu0 %v911, 2
      %v1157 = vpop.permute.xlu0 %1156
      %1158 = vrot.lane.b32.xlu0 %v912, 2
      %v1159 = vpop.permute.xlu0 %1158
      %1160 = vrot.lane.b32.xlu0 %v913, 2
      %v1161 = vpop.permute.xlu0 %1160
      %1162 = vrot.lane.b32.xlu0 %v914, 2
      %v1163 = vpop.permute.xlu0 %1162
      %1164 = vrot.lane.b32.xlu0 %v915, 2
      %v1165 = vpop.permute.xlu0 %1164
      %1166 = vrot.lane.b32.xlu0 %v916, 2
      %v1167 = vpop.permute.xlu0 %1166
      %1168 = vrot.lane.b32.xlu0 %v917, 2
      %v1169 = vpop.permute.xlu0 %1168
      %1170 = vrot.lane.b32.xlu0 %v918, 2
      %v1171 = vpop.permute.xlu0 %1170
      %1172 = vrot.lane.b32.xlu0 %v919, 2
      %v1173 = vpop.permute.xlu0 %1172
      %1174 = vrot.lane.b32.xlu0 %v920, 2
      %v1175 = vpop.permute.xlu0 %1174
      %1176 = vrot.lane.b32.xlu0 %v921, 2
      %v1177 = vpop.permute.xlu0 %1176
      %1178 = vrot.lane.b32.xlu0 %v922, 2
      %v1179 = vpop.permute.xlu0 %1178
      %1180 = vrot.lane.b32.xlu0 %v923, 2
      %v1181 = vpop.permute.xlu0 %1180
      %1182 = vrot.lane.b32.xlu0 %v924, 2
      %v1183 = vpop.permute.xlu0 %1182
      %1184 = vrot.lane.b32.xlu0 %v925, 2
      %v1185 = vpop.permute.xlu0 %1184
      %1186 = vrot.lane.b32.xlu0 %v926, 2
      %v1187 = vpop.permute.xlu0 %1186
      %1188 = vrot.lane.b32.xlu0 %v927, 2
      %v1189 = vpop.permute.xlu0 %1188
      %1190 = vrot.lane.b32.xlu0 %v928, 2
      %v1191 = vpop.permute.xlu0 %1190
      %1192 = vrot.lane.b32.xlu0 %v929, 2
      %v1193 = vpop.permute.xlu0 %1192
      %1194 = vrot.lane.b32.xlu0 %v930, 2
      %v1195 = vpop.permute.xlu0 %1194
      %1196 = vrot.lane.b32.xlu0 %v931, 2
      %v1197 = vpop.permute.xlu0 %1196
      %1198 = vrot.lane.b32.xlu0 %v932, 2
      %v1199 = vpop.permute.xlu0 %1198
      %1200 = vrot.lane.b32.xlu0 %v933, 2
      %v1201 = vpop.permute.xlu0 %1200
      %1202 = vrot.lane.b32.xlu0 %v934, 2
      %v1203 = vpop.permute.xlu0 %1202
      %1204 = vrot.lane.b32.xlu0 %v935, 2
      %v1205 = vpop.permute.xlu0 %1204
      %1206 = vrot.lane.b32.xlu0 %v936, 2
      %v1207 = vpop.permute.xlu0 %1206
      %1208 = vrot.lane.b32.xlu0 %v937, 2
      %v1209 = vpop.permute.xlu0 %1208
      %1210 = vrot.lane.b32.xlu0 %v938, 2
      %v1211 = vpop.permute.xlu0 %1210
      %1212 = vrot.lane.b32.xlu0 %v939, 2
      %v1213 = vpop.permute.xlu0 %1212
      %1262 = vrot.lane.b32.xlu0 %v1072, 4
      %v1263 = vpop.permute.xlu0 %1262
      %1264 = vrot.lane.b32.xlu0 %v1134, 4
      %v1265 = vpop.permute.xlu0 %1264
      %1266 = vrot.lane.b32.xlu0 %v1075, 4
      %v1267 = vpop.permute.xlu0 %1266
      %1268 = vrot.lane.b32.xlu0 %v1135, 4
      %v1269 = vpop.permute.xlu0 %1268
      %1270 = vrot.lane.b32.xlu0 %v1078, 4
      %v1271 = vpop.permute.xlu0 %1270
      %1272 = vrot.lane.b32.xlu0 %v1136, 4
      %v1273 = vpop.permute.xlu0 %1272
      %1274 = vrot.lane.b32.xlu0 %v1081, 4
      %v1275 = vpop.permute.xlu0 %1274
      %1276 = vrot.lane.b32.xlu0 %v1137, 4
      %v1277 = vpop.permute.xlu0 %1276
      %1278 = vrot.lane.b32.xlu0 %v1084, 4
      %v1279 = vpop.permute.xlu0 %1278
      %1280 = vrot.lane.b32.xlu0 %v1138, 4
      %v1281 = vpop.permute.xlu0 %1280
      %1282 = vrot.lane.b32.xlu0 %v1087, 4
      %v1283 = vpop.permute.xlu0 %1282
      %1284 = vrot.lane.b32.xlu0 %v1139, 4
      %v1285 = vpop.permute.xlu0 %1284
      %1286 = vrot.lane.b32.xlu0 %v1090, 4
      %v1287 = vpop.permute.xlu0 %1286
      %1288 = vrot.lane.b32.xlu0 %v1140, 4
      %v1289 = vpop.permute.xlu0 %1288
      %1290 = vrot.lane.b32.xlu0 %v1093, 4
      %v1291 = vpop.permute.xlu0 %1290
      %1292 = vrot.lane.b32.xlu0 %v1141, 4
      %v1293 = vpop.permute.xlu0 %1292
      %1294 = vrot.lane.b32.xlu0 %v1096, 4
      %v1295 = vpop.permute.xlu0 %1294
      %1296 = vrot.lane.b32.xlu0 %v1142, 4
      %v1297 = vpop.permute.xlu0 %1296
      %1298 = vrot.lane.b32.xlu0 %v1099, 4
      %v1299 = vpop.permute.xlu0 %1298
      %1300 = vrot.lane.b32.xlu0 %v1143, 4
      %v1301 = vpop.permute.xlu0 %1300
      %1302 = vrot.lane.b32.xlu0 %v1102, 4
      %v1303 = vpop.permute.xlu0 %1302
      %1304 = vrot.lane.b32.xlu0 %v1144, 4
      %v1305 = vpop.permute.xlu0 %1304
      %1306 = vrot.lane.b32.xlu0 %v1105, 4
      %v1307 = vpop.permute.xlu0 %1306
      %1308 = vrot.lane.b32.xlu0 %v1145, 4
      %v1309 = vpop.permute.xlu0 %1308
      %1310 = vrot.lane.b32.xlu0 %v1108, 4
      %v1311 = vpop.permute.xlu0 %1310
      %1312 = vrot.lane.b32.xlu0 %v1146, 4
      %v1313 = vpop.permute.xlu0 %1312
      %1314 = vrot.lane.b32.xlu0 %v1111, 4
      %v1315 = vpop.permute.xlu0 %1314
      %1316 = vrot.lane.b32.xlu0 %v1147, 4
      %v1317 = vpop.permute.xlu0 %1316
      %1318 = vrot.lane.b32.xlu0 %v1114, 4
      %v1319 = vpop.permute.xlu0 %1318
      %1320 = vrot.lane.b32.xlu0 %v1148, 4
      %v1321 = vpop.permute.xlu0 %1320
      %1322 = vrot.lane.b32.xlu0 %v1117, 4
      %v1323 = vpop.permute.xlu0 %1322
      %1324 = vrot.lane.b32.xlu0 %v1149, 4
      %v1325 = vpop.permute.xlu0 %1324
      %v1358 = vsel %vm312, %v1053, %v1151
      %v1359 = vsel %vm312, %v975, %v1153
      %v1360 = vsel %vm312, %v1054, %v1155
      %v1361 = vsel %vm312, %v978, %v1157
      %v1362 = vsel %vm312, %v1055, %v1159
      %v1363 = vsel %vm312, %v981, %v1161
      %v1364 = vsel %vm312, %v1056, %v1163
      %v1365 = vsel %vm312, %v984, %v1165
      %v1366 = vsel %vm312, %v1057, %v1167
      %v1367 = vsel %vm312, %v987, %v1169
      %v1368 = vsel %vm312, %v1058, %v1171
      %v1369 = vsel %vm312, %v990, %v1173
      %v1370 = vsel %vm312, %v1059, %v1175
      %v1371 = vsel %vm312, %v993, %v1177
      %v1372 = vsel %vm312, %v1060, %v1179
      %v1373 = vsel %vm312, %v996, %v1181
      %v1374 = vsel %vm312, %v1061, %v1183
      %v1375 = vsel %vm312, %v999, %v1185
      %v1376 = vsel %vm312, %v1062, %v1187
      %v1377 = vsel %vm312, %v1002, %v1189
      %v1378 = vsel %vm312, %v1063, %v1191
      %v1379 = vsel %vm312, %v1005, %v1193
      %v1380 = vsel %vm312, %v1064, %v1195
      %v1381 = vsel %vm312, %v1008, %v1197
      %v1382 = vsel %vm312, %v1065, %v1199
      %v1383 = vsel %vm312, %v1011, %v1201
      %v1384 = vsel %vm312, %v1066, %v1203
      %v1385 = vsel %vm312, %v1014, %v1205
      %v1386 = vsel %vm312, %v1067, %v1207
      %v1387 = vsel %vm312, %v1017, %v1209
      %v1388 = vsel %vm312, %v1068, %v1211
      %v1389 = vsel %vm312, %v1020, %v1213
      %vm1390 = vcmask 31744
      %v1391 = vsel %vm1390, %v1358, %v1263
      %v1392 = vsel %vm1390, %v1359, %v1265
      %v1393 = vsel %vm1390, %v1360, %v1267
      %v1394 = vsel %vm1390, %v1361, %v1269
      %v1395 = vsel %vm1390, %v1362, %v1271
      %v1396 = vsel %vm1390, %v1363, %v1273
      %v1397 = vsel %vm1390, %v1364, %v1275
      %v1398 = vsel %vm1390, %v1365, %v1277
      %v1399 = vsel %vm1390, %v1366, %v1279
      %v1400 = vsel %vm1390, %v1367, %v1281
      %v1401 = vsel %vm1390, %v1368, %v1283
      %v1402 = vsel %vm1390, %v1369, %v1285
      %v1403 = vsel %vm1390, %v1370, %v1287
      %v1404 = vsel %vm1390, %v1371, %v1289
      %v1405 = vsel %vm1390, %v1372, %v1291
      %v1406 = vsel %vm1390, %v1373, %v1293
      %v1407 = vsel %vm1390, %v1374, %v1295
      %v1408 = vsel %vm1390, %v1375, %v1297
      %v1409 = vsel %vm1390, %v1376, %v1299
      %v1410 = vsel %vm1390, %v1377, %v1301
      %v1411 = vsel %vm1390, %v1378, %v1303
      %v1412 = vsel %vm1390, %v1379, %v1305
      %v1413 = vsel %vm1390, %v1380, %v1307
      %v1414 = vsel %vm1390, %v1381, %v1309
      %v1415 = vsel %vm1390, %v1382, %v1311
      %v1416 = vsel %vm1390, %v1383, %v1313
      %v1417 = vsel %vm1390, %v1384, %v1315
      %v1418 = vsel %vm1390, %v1385, %v1317
      %v1419 = vsel %vm1390, %v1386, %v1319
      %v1420 = vsel %vm1390, %v1387, %v1321
      %v1421 = vsel %vm1390, %v1388, %v1323
      %v1422 = vsel %vm1390, %v1389, %v1325
      %s1423 = scalar_lea.vmem %s4, 8
      %v1424 = vld [vmem:[%s1423] sm:$0x3f]
      %v1425 = vld [vmem:[%s4] sm:$0x3f]
      %vm1426 = vcmask 48128
      %v1428 = vsel %vm1426, 0.0, 0
      %v1431 = vsel %vm1426, %v1391, 0
      %v1434 = vsel %vm1426, %v1392, 0
      %v1437 = vsel %vm1426, %v1393, 0
      %v1440 = vsel %vm1426, %v1394, 0
      %v1443 = vsel %vm1426, %v1395, 0
      %v1446 = vsel %vm1426, %v1396, 0
      %v1449 = vsel %vm1426, %v1397, 0
      %v1452 = vsel %vm1426, %v1398, 0
      %v1455 = vsel %vm1426, %v1399, 0
      %v1458 = vsel %vm1426, %v1400, 0
      %v1461 = vsel %vm1426, %v1401, 0
      %v1464 = vsel %vm1426, %v1402, 0
      %v1467 = vsel %vm1426, %v1403, 0
      %v1470 = vsel %vm1426, %v1404, 0
      %v1473 = vsel %vm1426, %v1405, 0
      %v1476 = vsel %vm1426, %v1406, 0
      %v1479 = vsel %vm1426, %v1407, 0
      %v1482 = vsel %vm1426, %v1408, 0
      %v1485 = vsel %vm1426, %v1409, 0
      %v1488 = vsel %vm1426, %v1410, 0
      %v1491 = vsel %vm1426, %v1411, 0
      %v1494 = vsel %vm1426, %v1412, 0
      %v1497 = vsel %vm1426, %v1413, 0
      %v1500 = vsel %vm1426, %v1414, 0
      %v1503 = vsel %vm1426, %v1415, 0
      %v1506 = vsel %vm1426, %v1416, 0
      %v1509 = vsel %vm1426, %v1417, 0
      %v1512 = vsel %vm1426, %v1418, 0
      %v1515 = vsel %vm1426, %v1419, 0
      %v1518 = vsel %vm1426, %v1420, 0
      %vm1520 = vcmask 1045504
      %v1522 = vsel %vm1520, %v1425, 0
      %1524 = vmatprep.subr.mxu0 0.0
      %1525 = vmatpush1.msra.mxu0 0.0
      %1526 = vmatprep.subr.mxu0 0.0
      %1527 = vmatpush1.msra.mxu0 0.0
      %1528 = vmatprep.subr.mxu0 0.0
      %1529 = vmatpush1.msra.mxu0 0.0
      %1530 = vmatprep.subr.mxu0 0.0
      %1531 = vmatpush1.msra.mxu0 0.0
      %1532 = vmatprep.subr.mxu0 0.0
      %1533 = vmatpush1.msra.mxu0 0.0
      %1534 = vmatprep.subr.mxu0 0.0
      %1535 = vmatpush1.msra.mxu0 0.0
      %1536 = vmatprep.subr.mxu0 0.0
      %1537 = vmatpush1.msra.mxu0 0.0
      %1538 = vmatprep.subr.mxu0 0.0
      %1539 = vmatpush1.msra.mxu0 0.0
      %1540 = vmatprep.subr.mxu0 0.0
      %1541 = vmatpush1.msra.mxu0 0.0
      %1542 = vmatprep.subr.mxu0 0.0
      %1543 = vmatpush1.msra.mxu0 0.0
      %1544 = vmatprep.subr.mxu0 0.0
      %1545 = vmatpush1.msra.mxu0 0.0
      %1546 = vmatprep.subr.mxu0 0.0
      %1547 = vmatpush1.msra.mxu0 0.0
      %1548 = vmatprep.subr.mxu0 0.0
      %1549 = vmatpush1.msra.mxu0 0.0
      %1550 = vmatprep.subr.mxu0 0.0
      %1551 = vmatpush1.msra.mxu0 0.0
      %1552 = vmatprep.subr.mxu0 0.0
      %1553 = vmatpush1.msra.mxu0 0.0
      %1554 = vmatprep.subr.mxu0 0.0
      %1555 = vmatpush1.msra.mxu0 %v1522
      %1556 = vmatprep.subr.mxu0 0.0
      %1557 = vmatpush2.msra.mxu0 0.0
      %1558 = vmatprep.subr.mxu0 0.0
      %1559 = vmatpush2.msra.mxu0 0.0
      %1560 = vmatprep.subr.mxu0 0.0
      %1561 = vmatpush2.msra.mxu0 0.0
      %1562 = vmatprep.subr.mxu0 0.0
      %1563 = vmatpush2.msra.mxu0 0.0
      %1564 = vmatprep.subr.mxu0 0.0
      %1565 = vmatpush2.msra.mxu0 0.0
      %1566 = vmatprep.subr.mxu0 0.0
      %1567 = vmatpush2.msra.mxu0 0.0
      %1568 = vmatprep.subr.mxu0 0.0
      %1569 = vmatpush2.msra.mxu0 0.0
      %1570 = vmatprep.subr.mxu0 0.0
      %1571 = vmatpush2.msra.mxu0 0.0
      %1572 = vmatprep.subr.mxu0 0.0
      %1573 = vmatpush2.msra.mxu0 0.0
      %1574 = vmatprep.subr.mxu0 0.0
      %1575 = vmatpush2.msra.mxu0 0.0
      %1576 = vmatprep.subr.mxu0 0.0
      %1577 = vmatpush2.msra.mxu0 0.0
      %1578 = vmatprep.subr.mxu0 0.0
      %1579 = vmatpush2.msra.mxu0 0.0
      %1580 = vmatprep.subr.mxu0 0.0
      %1581 = vmatpush2.msra.mxu0 0.0
      %1582 = vmatprep.subr.mxu0 0.0
      %1583 = vmatpush2.msra.mxu0 0.0
      %1584 = vmatprep.subr.mxu0 0.0
      %1585 = vmatpush2.msra.mxu0 0.0
      %1586 = vmatprep.subr.mxu0 0.0
      %1587 = vmatpush2.msra.mxu0 0.0
      %1588 = vmatprep.mubr.f32.mxu0 0.0
      %1589 = vmatmul.mubr.f32.gmra.mxu0 %v1428
      %v1590 = vpop.f32.mrf.mxu0
      %v1591 = vadd.f32 0.0, %v1590
      %v1592 = vpop.f32.mrf.mxu0
      %1593 = vmatprep.mubr.f32.mxu0 0.0
      %1594 = vmatmul.mubr.f32.gmra.mxu0 %v1428
      %v1595 = vpop.f32.mrf.mxu0
      %v1596 = vadd.f32 0.0, %v1595
      %v1597 = vpop.f32.mrf.mxu0
      %1598 = vmatprep.mubr.f32.mxu0 0.0
      %1599 = vmatmul.mubr.f32.gmra.mxu0 %v1431
      %v1600 = vpop.f32.mrf.mxu0
      %v1601 = vadd.f32 0.0, %v1600
      %v1602 = vpop.f32.mrf.mxu0
      %1603 = vmatprep.mubr.f32.mxu0 0.0
      %1604 = vmatmul.mubr.f32.gmra.mxu0 %v1434
      %v1605 = vpop.f32.mrf.mxu0
      %v1606 = vadd.f32 0.0, %v1605
      %v1607 = vpop.f32.mrf.mxu0
      %1608 = vmatprep.mubr.f32.mxu0 0.0
      %1609 = vmatmul.mubr.f32.gmra.mxu0 %v1437
      %v1610 = vpop.f32.mrf.mxu0
      %v1611 = vadd.f32 0.0, %v1610
      %v1612 = vpop.f32.mrf.mxu0
      %1613 = vmatprep.mubr.f32.mxu0 0.0
      %1614 = vmatmul.mubr.f32.gmra.mxu0 %v1440
      %v1615 = vpop.f32.mrf.mxu0
      %v1616 = vadd.f32 0.0, %v1615
      %v1617 = vpop.f32.mrf.mxu0
      %1618 = vmatprep.mubr.f32.mxu0 0.0
      %1619 = vmatmul.mubr.f32.gmra.mxu0 %v1443
      %v1620 = vpop.f32.mrf.mxu0
      %v1621 = vadd.f32 0.0, %v1620
      %v1622 = vpop.f32.mrf.mxu0
      %1623 = vmatprep.mubr.f32.mxu0 0.0
      %1624 = vmatmul.mubr.f32.gmra.mxu0 %v1446
      %v1625 = vpop.f32.mrf.mxu0
      %v1626 = vadd.f32 0.0, %v1625
      %v1627 = vpop.f32.mrf.mxu0
      %1628 = vmatprep.mubr.f32.mxu0 0.0
      %1629 = vmatmul.mubr.f32.gmra.mxu0 %v1449
      %v1630 = vpop.f32.mrf.mxu0
      %v1631 = vadd.f32 0.0, %v1630
      %v1632 = vpop.f32.mrf.mxu0
      %1633 = vmatprep.mubr.f32.mxu0 0.0
      %1634 = vmatmul.mubr.f32.gmra.mxu0 %v1452
      %v1635 = vpop.f32.mrf.mxu0
      %v1636 = vadd.f32 0.0, %v1635
      %v1637 = vpop.f32.mrf.mxu0
      %1638 = vmatprep.mubr.f32.mxu0 0.0
      %1639 = vmatmul.mubr.f32.gmra.mxu0 %v1455
      %v1640 = vpop.f32.mrf.mxu0
      %v1641 = vadd.f32 0.0, %v1640
      %v1642 = vpop.f32.mrf.mxu0
      %1643 = vmatprep.mubr.f32.mxu0 0.0
      %1644 = vmatmul.mubr.f32.gmra.mxu0 %v1458
      %v1645 = vpop.f32.mrf.mxu0
      %v1646 = vadd.f32 0.0, %v1645
      %v1647 = vpop.f32.mrf.mxu0
      %1648 = vmatprep.mubr.f32.mxu0 0.0
      %1649 = vmatmul.mubr.f32.gmra.mxu0 %v1461
      %v1650 = vpop.f32.mrf.mxu0
      %v1651 = vadd.f32 0.0, %v1650
      %v1652 = vpop.f32.mrf.mxu0
      %1653 = vmatprep.mubr.f32.mxu0 0.0
      %1654 = vmatmul.mubr.f32.gmra.mxu0 %v1464
      %v1655 = vpop.f32.mrf.mxu0
      %v1656 = vadd.f32 0.0, %v1655
      %v1657 = vpop.f32.mrf.mxu0
      %1658 = vmatprep.mubr.f32.mxu0 0.0
      %1659 = vmatmul.mubr.f32.gmra.mxu0 %v1467
      %v1660 = vpop.f32.mrf.mxu0
      %v1661 = vadd.f32 0.0, %v1660
      %v1662 = vpop.f32.mrf.mxu0
      %1663 = vmatprep.mubr.f32.mxu0 0.0
      %1664 = vmatmul.mubr.f32.gmra.mxu0 %v1470
      %v1665 = vpop.f32.mrf.mxu0
      %v1666 = vadd.f32 0.0, %v1665
      %v1667 = vpop.f32.mrf.mxu0
      %1668 = vmatprep.mubr.f32.mxu0 0.0
      %1669 = vmatmul.mubr.f32.gmra.mxu0 %v1473
      %v1670 = vpop.f32.mrf.mxu0
      %v1671 = vadd.f32 0.0, %v1670
      %v1672 = vpop.f32.mrf.mxu0
      %1673 = vmatprep.mubr.f32.mxu0 0.0
      %1674 = vmatmul.mubr.f32.gmra.mxu0 %v1476
      %v1675 = vpop.f32.mrf.mxu0
      %v1676 = vadd.f32 0.0, %v1675
      %v1677 = vpop.f32.mrf.mxu0
      %1678 = vmatprep.mubr.f32.mxu0 0.0
      %1679 = vmatmul.mubr.f32.gmra.mxu0 %v1479
      %v1680 = vpop.f32.mrf.mxu0
      %v1681 = vadd.f32 0.0, %v1680
      %v1682 = vpop.f32.mrf.mxu0
      %1683 = vmatprep.mubr.f32.mxu0 0.0
      %1684 = vmatmul.mubr.f32.gmra.mxu0 %v1482
      %v1685 = vpop.f32.mrf.mxu0
      %v1686 = vadd.f32 0.0, %v1685
      %v1687 = vpop.f32.mrf.mxu0
      %1688 = vmatprep.mubr.f32.mxu0 0.0
      %1689 = vmatmul.mubr.f32.gmra.mxu0 %v1485
      %v1690 = vpop.f32.mrf.mxu0
      %v1691 = vadd.f32 0.0, %v1690
      %v1692 = vpop.f32.mrf.mxu0
      %1693 = vmatprep.mubr.f32.mxu0 0.0
      %1694 = vmatmul.mubr.f32.gmra.mxu0 %v1488
      %v1695 = vpop.f32.mrf.mxu0
      %v1696 = vadd.f32 0.0, %v1695
      %v1697 = vpop.f32.mrf.mxu0
      %1698 = vmatprep.mubr.f32.mxu0 0.0
      %1699 = vmatmul.mubr.f32.gmra.mxu0 %v1491
      %v1700 = vpop.f32.mrf.mxu0
      %v1701 = vadd.f32 0.0, %v1700
      %v1702 = vpop.f32.mrf.mxu0
      %1703 = vmatprep.mubr.f32.mxu0 0.0
      %1704 = vmatmul.mubr.f32.gmra.mxu0 %v1494
      %v1705 = vpop.f32.mrf.mxu0
      %v1706 = vadd.f32 0.0, %v1705
      %v1707 = vpop.f32.mrf.mxu0
      %1708 = vmatprep.mubr.f32.mxu0 0.0
      %1709 = vmatmul.mubr.f32.gmra.mxu0 %v1497
      %v1710 = vpop.f32.mrf.mxu0
      %v1711 = vadd.f32 0.0, %v1710
      %v1712 = vpop.f32.mrf.mxu0
      %1713 = vmatprep.mubr.f32.mxu0 0.0
      %1714 = vmatmul.mubr.f32.gmra.mxu0 %v1500
      %v1715 = vpop.f32.mrf.mxu0
      %v1716 = vadd.f32 0.0, %v1715
      %v1717 = vpop.f32.mrf.mxu0
      %1718 = vmatprep.mubr.f32.mxu0 0.0
      %1719 = vmatmul.mubr.f32.gmra.mxu0 %v1503
      %v1720 = vpop.f32.mrf.mxu0
      %v1721 = vadd.f32 0.0, %v1720
      %v1722 = vpop.f32.mrf.mxu0
      %1723 = vmatprep.mubr.f32.mxu0 0.0
      %1724 = vmatmul.mubr.f32.gmra.mxu0 %v1506
      %v1725 = vpop.f32.mrf.mxu0
      %v1726 = vadd.f32 0.0, %v1725
      %v1727 = vpop.f32.mrf.mxu0
      %1728 = vmatprep.mubr.f32.mxu0 0.0
      %1729 = vmatmul.mubr.f32.gmra.mxu0 %v1509
      %v1730 = vpop.f32.mrf.mxu0
      %v1731 = vadd.f32 0.0, %v1730
      %v1732 = vpop.f32.mrf.mxu0
      %1733 = vmatprep.mubr.f32.mxu0 0.0
      %1734 = vmatmul.mubr.f32.gmra.mxu0 %v1512
      %v1735 = vpop.f32.mrf.mxu0
      %v1736 = vadd.f32 0.0, %v1735
      %v1737 = vpop.f32.mrf.mxu0
      %1738 = vmatprep.mubr.f32.mxu0 0.0
      %1739 = vmatmul.mubr.f32.gmra.mxu0 %v1515
      %v1740 = vpop.f32.mrf.mxu0
      %v1741 = vadd.f32 0.0, %v1740
      %v1742 = vpop.f32.mrf.mxu0
      %1743 = vmatprep.mubr.f32.mxu0 0.0
      %1744 = vmatmul.mubr.f32.gmra.mxu0 %v1518
      %v1745 = vpop.f32.mrf.mxu0
      %v1746 = vadd.f32 0.0, %v1745
      %v1747 = vpop.f32.mrf.mxu0
      %1748 = vdwg.mxu0
      %v1750 = vsel %vm1426, %v1421, 0
      %v1753 = vsel %vm1426, %v1422, 0
      %v1756 = vsel %vm1520, %v1424, 0
      %1758 = vmatprep.subr.mxu0 0.0
      %1759 = vmatpush1.msra.mxu0 0.0
      %1760 = vmatprep.subr.mxu0 0.0
      %1761 = vmatpush1.msra.mxu0 0.0
      %1762 = vmatprep.subr.mxu0 0.0
      %1763 = vmatpush1.msra.mxu0 0.0
      %1764 = vmatprep.subr.mxu0 0.0
      %1765 = vmatpush1.msra.mxu0 0.0
      %1766 = vmatprep.subr.mxu0 0.0
      %1767 = vmatpush1.msra.mxu0 0.0
      %1768 = vmatprep.subr.mxu0 0.0
      %1769 = vmatpush1.msra.mxu0 0.0
      %1770 = vmatprep.subr.mxu0 0.0
      %1771 = vmatpush1.msra.mxu0 0.0
      %1772 = vmatprep.subr.mxu0 0.0
      %1773 = vmatpush1.msra.mxu0 0.0
      %1774 = vmatprep.subr.mxu0 0.0
      %1775 = vmatpush1.msra.mxu0 0.0
      %1776 = vmatprep.subr.mxu0 0.0
      %1777 = vmatpush1.msra.mxu0 0.0
      %1778 = vmatprep.subr.mxu0 0.0
      %1779 = vmatpush1.msra.mxu0 0.0
      %1780 = vmatprep.subr.mxu0 0.0
      %1781 = vmatpush1.msra.mxu0 0.0
      %1782 = vmatprep.subr.mxu0 0.0
      %1783 = vmatpush1.msra.mxu0 0.0
      %1784 = vmatprep.subr.mxu0 0.0
      %1785 = vmatpush1.msra.mxu0 0.0
      %1786 = vmatprep.subr.mxu0 0.0
      %1787 = vmatpush1.msra.mxu0 0.0
      %1788 = vmatprep.subr.mxu0 0.0
      %1789 = vmatpush1.msra.mxu0 %v1756
      %1790 = vmatprep.subr.mxu0 0.0
      %1791 = vmatpush2.msra.mxu0 0.0
      %1792 = vmatprep.subr.mxu0 0.0
      %1793 = vmatpush2.msra.mxu0 0.0
      %1794 = vmatprep.subr.mxu0 0.0
      %1795 = vmatpush2.msra.mxu0 0.0
      %1796 = vmatprep.subr.mxu0 0.0
      %1797 = vmatpush2.msra.mxu0 0.0
      %1798 = vmatprep.subr.mxu0 0.0
      %1799 = vmatpush2.msra.mxu0 0.0
      %1800 = vmatprep.subr.mxu0 0.0
      %1801 = vmatpush2.msra.mxu0 0.0
      %1802 = vmatprep.subr.mxu0 0.0
      %1803 = vmatpush2.msra.mxu0 0.0
      %1804 = vmatprep.subr.mxu0 0.0
      %1805 = vmatpush2.msra.mxu0 0.0
      %1806 = vmatprep.subr.mxu0 0.0
      %1807 = vmatpush2.msra.mxu0 0.0
      %1808 = vmatprep.subr.mxu0 0.0
      %1809 = vmatpush2.msra.mxu0 0.0
      %1810 = vmatprep.subr.mxu0 0.0
      %1811 = vmatpush2.msra.mxu0 0.0
      %1812 = vmatprep.subr.mxu0 0.0
      %1813 = vmatpush2.msra.mxu0 0.0
      %1814 = vmatprep.subr.mxu0 0.0
      %1815 = vmatpush2.msra.mxu0 0.0
      %1816 = vmatprep.subr.mxu0 0.0
      %1817 = vmatpush2.msra.mxu0 0.0
      %1818 = vmatprep.subr.mxu0 0.0
      %1819 = vmatpush2.msra.mxu0 0.0
      %1820 = vmatprep.subr.mxu0 0.0
      %1821 = vmatpush2.msra.mxu0 0.0
      %1822 = vmatprep.mubr.f32.mxu0 0.0
      %1823 = vmatmul.mubr.f32.gmra.mxu0 %v1431
      %v1824 = vpop.f32.mrf.mxu0
      %v1825 = vadd.f32 %v1591, %v1824
      %v1826 = vpop.f32.mrf.mxu0
      %1827 = vmatprep.mubr.f32.mxu0 0.0
      %1828 = vmatmul.mubr.f32.gmra.mxu0 %v1434
      %v1829 = vpop.f32.mrf.mxu0
      %v1830 = vadd.f32 %v1596, %v1829
      %v1831 = vpop.f32.mrf.mxu0
      %1832 = vmatprep.mubr.f32.mxu0 0.0
      %1833 = vmatmul.mubr.f32.gmra.mxu0 %v1437
      %v1834 = vpop.f32.mrf.mxu0
      %v1835 = vadd.f32 %v1601, %v1834
      %v1836 = vpop.f32.mrf.mxu0
      %1837 = vmatprep.mubr.f32.mxu0 0.0
      %1838 = vmatmul.mubr.f32.gmra.mxu0 %v1440
      %v1839 = vpop.f32.mrf.mxu0
      %v1840 = vadd.f32 %v1606, %v1839
      %v1841 = vpop.f32.mrf.mxu0
      %1842 = vmatprep.mubr.f32.mxu0 0.0
      %1843 = vmatmul.mubr.f32.gmra.mxu0 %v1443
      %v1844 = vpop.f32.mrf.mxu0
      %v1845 = vadd.f32 %v1611, %v1844
      %v1846 = vpop.f32.mrf.mxu0
      %1847 = vmatprep.mubr.f32.mxu0 0.0
      %1848 = vmatmul.mubr.f32.gmra.mxu0 %v1446
      %v1849 = vpop.f32.mrf.mxu0
      %v1850 = vadd.f32 %v1616, %v1849
      %v1851 = vpop.f32.mrf.mxu0
      %1852 = vmatprep.mubr.f32.mxu0 0.0
      %1853 = vmatmul.mubr.f32.gmra.mxu0 %v1449
      %v1854 = vpop.f32.mrf.mxu0
      %v1855 = vadd.f32 %v1621, %v1854
      %v1856 = vpop.f32.mrf.mxu0
      %1857 = vmatprep.mubr.f32.mxu0 0.0
      %1858 = vmatmul.mubr.f32.gmra.mxu0 %v1452
      %v1859 = vpop.f32.mrf.mxu0
      %v1860 = vadd.f32 %v1626, %v1859
      %v1861 = vpop.f32.mrf.mxu0
      %1862 = vmatprep.mubr.f32.mxu0 0.0
      %1863 = vmatmul.mubr.f32.gmra.mxu0 %v1455
      %v1864 = vpop.f32.mrf.mxu0
      %v1865 = vadd.f32 %v1631, %v1864
      %v1866 = vpop.f32.mrf.mxu0
      %1867 = vmatprep.mubr.f32.mxu0 0.0
      %1868 = vmatmul.mubr.f32.gmra.mxu0 %v1458
      %v1869 = vpop.f32.mrf.mxu0
      %v1870 = vadd.f32 %v1636, %v1869
      %v1871 = vpop.f32.mrf.mxu0
      %1872 = vmatprep.mubr.f32.mxu0 0.0
      %1873 = vmatmul.mubr.f32.gmra.mxu0 %v1461
      %v1874 = vpop.f32.mrf.mxu0
      %v1875 = vadd.f32 %v1641, %v1874
      %v1876 = vpop.f32.mrf.mxu0
      %1877 = vmatprep.mubr.f32.mxu0 0.0
      %1878 = vmatmul.mubr.f32.gmra.mxu0 %v1464
      %v1879 = vpop.f32.mrf.mxu0
      %v1880 = vadd.f32 %v1646, %v1879
      %v1881 = vpop.f32.mrf.mxu0
      %1882 = vmatprep.mubr.f32.mxu0 0.0
      %1883 = vmatmul.mubr.f32.gmra.mxu0 %v1467
      %v1884 = vpop.f32.mrf.mxu0
      %v1885 = vadd.f32 %v1651, %v1884
      %v1886 = vpop.f32.mrf.mxu0
      %1887 = vmatprep.mubr.f32.mxu0 0.0
      %1888 = vmatmul.mubr.f32.gmra.mxu0 %v1470
      %v1889 = vpop.f32.mrf.mxu0
      %v1890 = vadd.f32 %v1656, %v1889
      %v1891 = vpop.f32.mrf.mxu0
      %1892 = vmatprep.mubr.f32.mxu0 0.0
      %1893 = vmatmul.mubr.f32.gmra.mxu0 %v1473
      %v1894 = vpop.f32.mrf.mxu0
      %v1895 = vadd.f32 %v1661, %v1894
      %v1896 = vpop.f32.mrf.mxu0
      %1897 = vmatprep.mubr.f32.mxu0 0.0
      %1898 = vmatmul.mubr.f32.gmra.mxu0 %v1476
      %v1899 = vpop.f32.mrf.mxu0
      %v1900 = vadd.f32 %v1666, %v1899
      %v1901 = vpop.f32.mrf.mxu0
      %1902 = vmatprep.mubr.f32.mxu0 0.0
      %1903 = vmatmul.mubr.f32.gmra.mxu0 %v1479
      %v1904 = vpop.f32.mrf.mxu0
      %v1905 = vadd.f32 %v1671, %v1904
      %v1906 = vpop.f32.mrf.mxu0
      %1907 = vmatprep.mubr.f32.mxu0 0.0
      %1908 = vmatmul.mubr.f32.gmra.mxu0 %v1482
      %v1909 = vpop.f32.mrf.mxu0
      %v1910 = vadd.f32 %v1676, %v1909
      %v1911 = vpop.f32.mrf.mxu0
      %1912 = vmatprep.mubr.f32.mxu0 0.0
      %1913 = vmatmul.mubr.f32.gmra.mxu0 %v1485
      %v1914 = vpop.f32.mrf.mxu0
      %v1915 = vadd.f32 %v1681, %v1914
      %v1916 = vpop.f32.mrf.mxu0
      %1917 = vmatprep.mubr.f32.mxu0 0.0
      %1918 = vmatmul.mubr.f32.gmra.mxu0 %v1488
      %v1919 = vpop.f32.mrf.mxu0
      %v1920 = vadd.f32 %v1686, %v1919
      %v1921 = vpop.f32.mrf.mxu0
      %1922 = vmatprep.mubr.f32.mxu0 0.0
      %1923 = vmatmul.mubr.f32.gmra.mxu0 %v1491
      %v1924 = vpop.f32.mrf.mxu0
      %v1925 = vadd.f32 %v1691, %v1924
      %v1926 = vpop.f32.mrf.mxu0
      %1927 = vmatprep.mubr.f32.mxu0 0.0
      %1928 = vmatmul.mubr.f32.gmra.mxu0 %v1494
      %v1929 = vpop.f32.mrf.mxu0
      %v1930 = vadd.f32 %v1696, %v1929
      %v1931 = vpop.f32.mrf.mxu0
      %1932 = vmatprep.mubr.f32.mxu0 0.0
      %1933 = vmatmul.mubr.f32.gmra.mxu0 %v1497
      %v1934 = vpop.f32.mrf.mxu0
      %v1935 = vadd.f32 %v1701, %v1934
      %v1936 = vpop.f32.mrf.mxu0
      %1937 = vmatprep.mubr.f32.mxu0 0.0
      %1938 = vmatmul.mubr.f32.gmra.mxu0 %v1500
      %v1939 = vpop.f32.mrf.mxu0
      %v1940 = vadd.f32 %v1706, %v1939
      %v1941 = vpop.f32.mrf.mxu0
      %1942 = vmatprep.mubr.f32.mxu0 0.0
      %1943 = vmatmul.mubr.f32.gmra.mxu0 %v1503
      %v1944 = vpop.f32.mrf.mxu0
      %v1945 = vadd.f32 %v1711, %v1944
      %v1946 = vpop.f32.mrf.mxu0
      %1947 = vmatprep.mubr.f32.mxu0 0.0
      %1948 = vmatmul.mubr.f32.gmra.mxu0 %v1506
      %v1949 = vpop.f32.mrf.mxu0
      %v1950 = vadd.f32 %v1716, %v1949
      %v1951 = vpop.f32.mrf.mxu0
      %1952 = vmatprep.mubr.f32.mxu0 0.0
      %1953 = vmatmul.mubr.f32.gmra.mxu0 %v1509
      %v1954 = vpop.f32.mrf.mxu0
      %v1955 = vadd.f32 %v1721, %v1954
      %v1956 = vpop.f32.mrf.mxu0
      %1957 = vmatprep.mubr.f32.mxu0 0.0
      %1958 = vmatmul.mubr.f32.gmra.mxu0 %v1512
      %v1959 = vpop.f32.mrf.mxu0
      %v1960 = vadd.f32 %v1726, %v1959
      %v1961 = vpop.f32.mrf.mxu0
      %1962 = vmatprep.mubr.f32.mxu0 0.0
      %1963 = vmatmul.mubr.f32.gmra.mxu0 %v1515
      %v1964 = vpop.f32.mrf.mxu0
      %v1965 = vadd.f32 %v1731, %v1964
      %v1966 = vpop.f32.mrf.mxu0
      %1967 = vmatprep.mubr.f32.mxu0 0.0
      %1968 = vmatmul.mubr.f32.gmra.mxu0 %v1518
      %v1969 = vpop.f32.mrf.mxu0
      %v1970 = vadd.f32 %v1736, %v1969
      %v1971 = vpop.f32.mrf.mxu0
      %1972 = vmatprep.mubr.f32.mxu0 0.0
      %1973 = vmatmul.mubr.f32.gmra.mxu0 %v1750
      %v1974 = vpop.f32.mrf.mxu0
      %v1975 = vadd.f32 %v1741, %v1974
      %v1976 = vpop.f32.mrf.mxu0
      %1977 = vmatprep.mubr.f32.mxu0 0.0
      %1978 = vmatmul.mubr.f32.gmra.mxu0 %v1753
      %v1979 = vpop.f32.mrf.mxu0
      %v1980 = vadd.f32 %v1746, %v1979
      %v1981 = vpop.f32.mrf.mxu0
      %1982 = vdwg.mxu0
      %s1983 = scalar_lea.vmem %s4, 16
      %v1984 = vld [vmem:[%s1983] sm:$0x3f]
      %v1986 = vsel %vm1520, %v1984, 0
      %1988 = vmatprep.subr.mxu0 0.0
      %1989 = vmatpush1.msra.mxu0 0.0
      %1990 = vmatprep.subr.mxu0 0.0
      %1991 = vmatpush1.msra.mxu0 0.0
      %1992 = vmatprep.subr.mxu0 0.0
      %1993 = vmatpush1.msra.mxu0 0.0
      %1994 = vmatprep.subr.mxu0 0.0
      %1995 = vmatpush1.msra.mxu0 0.0
      %1996 = vmatprep.subr.mxu0 0.0
      %1997 = vmatpush1.msra.mxu0 0.0
      %1998 = vmatprep.subr.mxu0 0.0
      %1999 = vmatpush1.msra.mxu0 0.0
      %2000 = vmatprep.subr.mxu0 0.0
      %2001 = vmatpush1.msra.mxu0 0.0
      %2002 = vmatprep.subr.mxu0 0.0
      %2003 = vmatpush1.msra.mxu0 0.0
      %2004 = vmatprep.subr.mxu0 0.0
      %2005 = vmatpush1.msra.mxu0 0.0
      %2006 = vmatprep.subr.mxu0 0.0
      %2007 = vmatpush1.msra.mxu0 0.0
      %2008 = vmatprep.subr.mxu0 0.0
      %2009 = vmatpush1.msra.mxu0 0.0
      %2010 = vmatprep.subr.mxu0 0.0
      %2011 = vmatpush1.msra.mxu0 0.0
      %2012 = vmatprep.subr.mxu0 0.0
      %2013 = vmatpush1.msra.mxu0 0.0
      %2014 = vmatprep.subr.mxu0 0.0
      %2015 = vmatpush1.msra.mxu0 0.0
      %2016 = vmatprep.subr.mxu0 0.0
      %2017 = vmatpush1.msra.mxu0 0.0
      %2018 = vmatprep.subr.mxu0 0.0
      %2019 = vmatpush1.msra.mxu0 %v1986
      %2020 = vmatprep.subr.mxu0 0.0
      %2021 = vmatpush2.msra.mxu0 0.0
      %2022 = vmatprep.subr.mxu0 0.0
      %2023 = vmatpush2.msra.mxu0 0.0
      %2024 = vmatprep.subr.mxu0 0.0
      %2025 = vmatpush2.msra.mxu0 0.0
      %2026 = vmatprep.subr.mxu0 0.0
      %2027 = vmatpush2.msra.mxu0 0.0
      %2028 = vmatprep.subr.mxu0 0.0
      %2029 = vmatpush2.msra.mxu0 0.0
      %2030 = vmatprep.subr.mxu0 0.0
      %2031 = vmatpush2.msra.mxu0 0.0
      %2032 = vmatprep.subr.mxu0 0.0
      %2033 = vmatpush2.msra.mxu0 0.0
      %2034 = vmatprep.subr.mxu0 0.0
      %2035 = vmatpush2.msra.mxu0 0.0
      %2036 = vmatprep.subr.mxu0 0.0
      %2037 = vmatpush2.msra.mxu0 0.0
      %2038 = vmatprep.subr.mxu0 0.0
      %2039 = vmatpush2.msra.mxu0 0.0
      %2040 = vmatprep.subr.mxu0 0.0
      %2041 = vmatpush2.msra.mxu0 0.0
      %2042 = vmatprep.subr.mxu0 0.0
      %2043 = vmatpush2.msra.mxu0 0.0
      %2044 = vmatprep.subr.mxu0 0.0
      %2045 = vmatpush2.msra.mxu0 0.0
      %2046 = vmatprep.subr.mxu0 0.0
      %2047 = vmatpush2.msra.mxu0 0.0
      %2048 = vmatprep.subr.mxu0 0.0
      %2049 = vmatpush2.msra.mxu0 0.0
      %2050 = vmatprep.subr.mxu0 0.0
      %2051 = vmatpush2.msra.mxu0 0.0
      %2052 = vmatprep.mubr.f32.mxu0 0.0
      %2053 = vmatmul.mubr.f32.gmra.mxu0 %v1437
      %v2054 = vpop.f32.mrf.mxu0
      %v2055 = vadd.f32 0.0, %v2054
      %v2056 = vpop.f32.mrf.mxu0
      %2057 = vmatprep.mubr.f32.mxu0 0.0
      %2058 = vmatmul.mubr.f32.gmra.mxu0 %v1440
      %v2059 = vpop.f32.mrf.mxu0
      %v2060 = vadd.f32 0.0, %v2059
      %v2061 = vpop.f32.mrf.mxu0
      %2062 = vmatprep.mubr.f32.mxu0 0.0
      %2063 = vmatmul.mubr.f32.gmra.mxu0 %v1443
      %v2064 = vpop.f32.mrf.mxu0
      %v2065 = vadd.f32 0.0, %v2064
      %v2066 = vpop.f32.mrf.mxu0
      %2067 = vmatprep.mubr.f32.mxu0 0.0
      %2068 = vmatmul.mubr.f32.gmra.mxu0 %v1446
      %v2069 = vpop.f32.mrf.mxu0
      %v2070 = vadd.f32 0.0, %v2069
      %v2071 = vpop.f32.mrf.mxu0
      %2072 = vmatprep.mubr.f32.mxu0 0.0
      %2073 = vmatmul.mubr.f32.gmra.mxu0 %v1449
      %v2074 = vpop.f32.mrf.mxu0
      %v2075 = vadd.f32 0.0, %v2074
      %v2076 = vpop.f32.mrf.mxu0
      %2077 = vmatprep.mubr.f32.mxu0 0.0
      %2078 = vmatmul.mubr.f32.gmra.mxu0 %v1452
      %v2079 = vpop.f32.mrf.mxu0
      %v2080 = vadd.f32 0.0, %v2079
      %v2081 = vpop.f32.mrf.mxu0
      %2082 = vmatprep.mubr.f32.mxu0 0.0
      %2083 = vmatmul.mubr.f32.gmra.mxu0 %v1455
      %v2084 = vpop.f32.mrf.mxu0
      %v2085 = vadd.f32 0.0, %v2084
      %v2086 = vpop.f32.mrf.mxu0
      %2087 = vmatprep.mubr.f32.mxu0 0.0
      %2088 = vmatmul.mubr.f32.gmra.mxu0 %v1458
      %v2089 = vpop.f32.mrf.mxu0
      %v2090 = vadd.f32 0.0, %v2089
      %v2091 = vpop.f32.mrf.mxu0
      %2092 = vmatprep.mubr.f32.mxu0 0.0
      %2093 = vmatmul.mubr.f32.gmra.mxu0 %v1461
      %v2094 = vpop.f32.mrf.mxu0
      %v2095 = vadd.f32 0.0, %v2094
      %v2096 = vpop.f32.mrf.mxu0
      %2097 = vmatprep.mubr.f32.mxu0 0.0
      %2098 = vmatmul.mubr.f32.gmra.mxu0 %v1464
      %v2099 = vpop.f32.mrf.mxu0
      %v2100 = vadd.f32 0.0, %v2099
      %v2101 = vpop.f32.mrf.mxu0
      %2102 = vmatprep.mubr.f32.mxu0 0.0
      %2103 = vmatmul.mubr.f32.gmra.mxu0 %v1467
      %v2104 = vpop.f32.mrf.mxu0
      %v2105 = vadd.f32 0.0, %v2104
      %v2106 = vpop.f32.mrf.mxu0
      %2107 = vmatprep.mubr.f32.mxu0 0.0
      %2108 = vmatmul.mubr.f32.gmra.mxu0 %v1470
      %v2109 = vpop.f32.mrf.mxu0
      %v2110 = vadd.f32 0.0, %v2109
      %v2111 = vpop.f32.mrf.mxu0
      %2112 = vmatprep.mubr.f32.mxu0 0.0
      %2113 = vmatmul.mubr.f32.gmra.mxu0 %v1473
      %v2114 = vpop.f32.mrf.mxu0
      %v2115 = vadd.f32 0.0, %v2114
      %v2116 = vpop.f32.mrf.mxu0
      %2117 = vmatprep.mubr.f32.mxu0 0.0
      %2118 = vmatmul.mubr.f32.gmra.mxu0 %v1476
      %v2119 = vpop.f32.mrf.mxu0
      %v2120 = vadd.f32 0.0, %v2119
      %v2121 = vpop.f32.mrf.mxu0
      %2122 = vmatprep.mubr.f32.mxu0 0.0
      %2123 = vmatmul.mubr.f32.gmra.mxu0 %v1479
      %v2124 = vpop.f32.mrf.mxu0
      %v2125 = vadd.f32 0.0, %v2124
      %v2126 = vpop.f32.mrf.mxu0
      %2127 = vmatprep.mubr.f32.mxu0 0.0
      %2128 = vmatmul.mubr.f32.gmra.mxu0 %v1482
      %v2129 = vpop.f32.mrf.mxu0
      %v2130 = vadd.f32 0.0, %v2129
      %v2131 = vpop.f32.mrf.mxu0
      %2132 = vmatprep.mubr.f32.mxu0 0.0
      %2133 = vmatmul.mubr.f32.gmra.mxu0 %v1485
      %v2134 = vpop.f32.mrf.mxu0
      %v2135 = vadd.f32 0.0, %v2134
      %v2136 = vpop.f32.mrf.mxu0
      %2137 = vmatprep.mubr.f32.mxu0 0.0
      %2138 = vmatmul.mubr.f32.gmra.mxu0 %v1488
      %v2139 = vpop.f32.mrf.mxu0
      %v2140 = vadd.f32 0.0, %v2139
      %v2141 = vpop.f32.mrf.mxu0
      %2142 = vmatprep.mubr.f32.mxu0 0.0
      %2143 = vmatmul.mubr.f32.gmra.mxu0 %v1491
      %v2144 = vpop.f32.mrf.mxu0
      %v2145 = vadd.f32 0.0, %v2144
      %v2146 = vpop.f32.mrf.mxu0
      %2147 = vmatprep.mubr.f32.mxu0 0.0
      %2148 = vmatmul.mubr.f32.gmra.mxu0 %v1494
      %v2149 = vpop.f32.mrf.mxu0
      %v2150 = vadd.f32 0.0, %v2149
      %v2151 = vpop.f32.mrf.mxu0
      %2152 = vmatprep.mubr.f32.mxu0 0.0
      %2153 = vmatmul.mubr.f32.gmra.mxu0 %v1497
      %v2154 = vpop.f32.mrf.mxu0
      %v2155 = vadd.f32 0.0, %v2154
      %v2156 = vpop.f32.mrf.mxu0
      %2157 = vmatprep.mubr.f32.mxu0 0.0
      %2158 = vmatmul.mubr.f32.gmra.mxu0 %v1500
      %v2159 = vpop.f32.mrf.mxu0
      %v2160 = vadd.f32 0.0, %v2159
      %v2161 = vpop.f32.mrf.mxu0
      %2162 = vmatprep.mubr.f32.mxu0 0.0
      %2163 = vmatmul.mubr.f32.gmra.mxu0 %v1503
      %v2164 = vpop.f32.mrf.mxu0
      %v2165 = vadd.f32 0.0, %v2164
      %v2166 = vpop.f32.mrf.mxu0
      %2167 = vmatprep.mubr.f32.mxu0 0.0
      %2168 = vmatmul.mubr.f32.gmra.mxu0 %v1506
      %v2169 = vpop.f32.mrf.mxu0
      %v2170 = vadd.f32 0.0, %v2169
      %v2171 = vpop.f32.mrf.mxu0
      %2172 = vmatprep.mubr.f32.mxu0 0.0
      %2173 = vmatmul.mubr.f32.gmra.mxu0 %v1509
      %v2174 = vpop.f32.mrf.mxu0
      %v2175 = vadd.f32 0.0, %v2174
      %v2176 = vpop.f32.mrf.mxu0
      %2177 = vmatprep.mubr.f32.mxu0 0.0
      %2178 = vmatmul.mubr.f32.gmra.mxu0 %v1512
      %v2179 = vpop.f32.mrf.mxu0
      %v2180 = vadd.f32 0.0, %v2179
      %v2181 = vpop.f32.mrf.mxu0
      %2182 = vmatprep.mubr.f32.mxu0 0.0
      %2183 = vmatmul.mubr.f32.gmra.mxu0 %v1515
      %v2184 = vpop.f32.mrf.mxu0
      %v2185 = vadd.f32 0.0, %v2184
      %v2186 = vpop.f32.mrf.mxu0
      %2187 = vmatprep.mubr.f32.mxu0 0.0
      %2188 = vmatmul.mubr.f32.gmra.mxu0 %v1518
      %v2189 = vpop.f32.mrf.mxu0
      %v2190 = vadd.f32 0.0, %v2189
      %v2191 = vpop.f32.mrf.mxu0
      %2192 = vmatprep.mubr.f32.mxu0 0.0
      %2193 = vmatmul.mubr.f32.gmra.mxu0 %v1750
      %v2194 = vpop.f32.mrf.mxu0
      %v2195 = vadd.f32 0.0, %v2194
      %v2196 = vpop.f32.mrf.mxu0
      %2197 = vmatprep.mubr.f32.mxu0 0.0
      %2198 = vmatmul.mubr.f32.gmra.mxu0 %v1753
      %v2199 = vpop.f32.mrf.mxu0
      %v2200 = vadd.f32 0.0, %v2199
      %v2201 = vpop.f32.mrf.mxu0
      %2202 = vmatprep.mubr.f32.mxu0 0.0
      %2203 = vmatmul.mubr.f32.gmra.mxu0 %v1428
      %v2204 = vpop.f32.mrf.mxu0
      %v2205 = vadd.f32 0.0, %v2204
      %v2206 = vpop.f32.mrf.mxu0
      %2207 = vmatprep.mubr.f32.mxu0 0.0
      %2208 = vmatmul.mubr.f32.gmra.mxu0 %v1428
      %v2209 = vpop.f32.mrf.mxu0
      %v2210 = vadd.f32 0.0, %v2209
      %v2211 = vpop.f32.mrf.mxu0
      %2212 = vdwg.mxu0
      %v2213 = vadd.f32 %v1825, %v2055
      %v2214 = vadd.f32 %v1830, %v2060
      %v2215 = vadd.f32 %v1835, %v2065
      %v2216 = vadd.f32 %v1840, %v2070
      %v2217 = vadd.f32 %v1845, %v2075
      %v2218 = vadd.f32 %v1850, %v2080
      %v2219 = vadd.f32 %v1855, %v2085
      %v2220 = vadd.f32 %v1860, %v2090
      %v2221 = vadd.f32 %v1865, %v2095
      %v2222 = vadd.f32 %v1870, %v2100
      %v2223 = vadd.f32 %v1875, %v2105
      %v2224 = vadd.f32 %v1880, %v2110
      %v2225 = vadd.f32 %v1885, %v2115
      %v2226 = vadd.f32 %v1890, %v2120
      %v2227 = vadd.f32 %v1895, %v2125
      %v2228 = vadd.f32 %v1900, %v2130
      %v2229 = vadd.f32 %v1905, %v2135
      %v2230 = vadd.f32 %v1910, %v2140
      %v2231 = vadd.f32 %v1915, %v2145
      %v2232 = vadd.f32 %v1920, %v2150
      %v2233 = vadd.f32 %v1925, %v2155
      %v2234 = vadd.f32 %v1930, %v2160
      %v2235 = vadd.f32 %v1935, %v2165
      %v2236 = vadd.f32 %v1940, %v2170
      %v2237 = vadd.f32 %v1945, %v2175
      %v2238 = vadd.f32 %v1950, %v2180
      %v2239 = vadd.f32 %v1955, %v2185
      %v2240 = vadd.f32 %v1960, %v2190
      %v2241 = vadd.f32 %v1965, %v2195
      %v2242 = vadd.f32 %v1970, %v2200
      %v2243 = vadd.f32 %v1975, %v2205
      %v2244 = vadd.f32 %v1980, %v2210
      %v2245 = vld [vmem:[%s5] sm:$0x1]
      %v2247 = vlaneseq
      %v2248 = vshrl.u32 %v2247, 7
      %v2249 = vsub.s32 0, %v2248
      %v2250 = vrot.slane %v2245, %v2249
      %v2252 = vmul.f32 %v2213, %v2250
      %v2253 = vmul.f32 %v2214, %v2250
      %v2254 = vmul.f32 %v2215, %v2250
      %v2255 = vmul.f32 %v2216, %v2250
      %v2256 = vmul.f32 %v2217, %v2250
      %v2257 = vmul.f32 %v2218, %v2250
      %v2258 = vmul.f32 %v2219, %v2250
      %v2259 = vmul.f32 %v2220, %v2250
      %v2260 = vmul.f32 %v2221, %v2250
      %v2261 = vmul.f32 %v2222, %v2250
      %v2262 = vmul.f32 %v2223, %v2250
      %v2263 = vmul.f32 %v2224, %v2250
      %v2264 = vmul.f32 %v2225, %v2250
      %v2265 = vmul.f32 %v2226, %v2250
      %v2266 = vmul.f32 %v2227, %v2250
      %v2267 = vmul.f32 %v2228, %v2250
      %v2268 = vmul.f32 %v2229, %v2250
      %v2269 = vmul.f32 %v2230, %v2250
      %v2270 = vmul.f32 %v2231, %v2250
      %v2271 = vmul.f32 %v2232, %v2250
      %v2272 = vmul.f32 %v2233, %v2250
      %v2273 = vmul.f32 %v2234, %v2250
      %v2274 = vmul.f32 %v2235, %v2250
      %v2275 = vmul.f32 %v2236, %v2250
      %v2276 = vmul.f32 %v2237, %v2250
      %v2277 = vmul.f32 %v2238, %v2250
      %v2278 = vmul.f32 %v2239, %v2250
      %v2279 = vmul.f32 %v2240, %v2250
      %v2280 = vmul.f32 %v2241, %v2250
      %v2281 = vmul.f32 %v2242, %v2250
      %v2282 = vmul.f32 %v2243, %v2250
      %v2283 = vmul.f32 %v2244, %v2250
      %v2284 = vld [vmem:[%s6] sm:$0x1]
      %v2286 = vlaneseq
      %v2287 = vshrl.u32 %v2286, 7
      %v2288 = vsub.s32 0, %v2287
      %v2289 = vrot.slane %v2284, %v2288
      %v2291 = vadd.f32 %v2252, %v2289
      %v2292 = vadd.f32 %v2253, %v2289
      %v2293 = vadd.f32 %v2254, %v2289
      %v2294 = vadd.f32 %v2255, %v2289
      %v2295 = vadd.f32 %v2256, %v2289
      %v2296 = vadd.f32 %v2257, %v2289
      %v2297 = vadd.f32 %v2258, %v2289
      %v2298 = vadd.f32 %v2259, %v2289
      %v2299 = vadd.f32 %v2260, %v2289
      %v2300 = vadd.f32 %v2261, %v2289
      %v2301 = vadd.f32 %v2262, %v2289
      %v2302 = vadd.f32 %v2263, %v2289
      %v2303 = vadd.f32 %v2264, %v2289
      %v2304 = vadd.f32 %v2265, %v2289
      %v2305 = vadd.f32 %v2266, %v2289
      %v2306 = vadd.f32 %v2267, %v2289
      %v2307 = vadd.f32 %v2268, %v2289
      %v2308 = vadd.f32 %v2269, %v2289
      %v2309 = vadd.f32 %v2270, %v2289
      %v2310 = vadd.f32 %v2271, %v2289
      %v2311 = vadd.f32 %v2272, %v2289
      %v2312 = vadd.f32 %v2273, %v2289
      %v2313 = vadd.f32 %v2274, %v2289
      %v2314 = vadd.f32 %v2275, %v2289
      %v2315 = vadd.f32 %v2276, %v2289
      %v2316 = vadd.f32 %v2277, %v2289
      %v2317 = vadd.f32 %v2278, %v2289
      %v2318 = vadd.f32 %v2279, %v2289
      %v2319 = vadd.f32 %v2280, %v2289
      %v2320 = vadd.f32 %v2281, %v2289
      %v2321 = vadd.f32 %v2282, %v2289
      %v2322 = vadd.f32 %v2283, %v2289
      %v2323 = vxor.u32 %v2291, 2147483648
      %v2324 = vxor.u32 %v2292, 2147483648
      %v2325 = vxor.u32 %v2293, 2147483648
      %v2326 = vxor.u32 %v2294, 2147483648
      %v2327 = vxor.u32 %v2295, 2147483648
      %v2328 = vxor.u32 %v2296, 2147483648
      %v2329 = vxor.u32 %v2297, 2147483648
      %v2330 = vxor.u32 %v2298, 2147483648
      %v2331 = vxor.u32 %v2299, 2147483648
      %v2332 = vxor.u32 %v2300, 2147483648
      %v2333 = vxor.u32 %v2301, 2147483648
      %v2334 = vxor.u32 %v2302, 2147483648
      %v2335 = vxor.u32 %v2303, 2147483648
      %v2336 = vxor.u32 %v2304, 2147483648
      %v2337 = vxor.u32 %v2305, 2147483648
      %v2338 = vxor.u32 %v2306, 2147483648
      %v2339 = vxor.u32 %v2307, 2147483648
      %v2340 = vxor.u32 %v2308, 2147483648
      %v2341 = vxor.u32 %v2309, 2147483648
      %v2342 = vxor.u32 %v2310, 2147483648
      %v2343 = vxor.u32 %v2311, 2147483648
      %v2344 = vxor.u32 %v2312, 2147483648
      %v2345 = vxor.u32 %v2313, 2147483648
      %v2346 = vxor.u32 %v2314, 2147483648
      %v2347 = vxor.u32 %v2315, 2147483648
      %v2348 = vxor.u32 %v2316, 2147483648
      %v2349 = vxor.u32 %v2317, 2147483648
      %v2350 = vxor.u32 %v2318, 2147483648
      %v2351 = vxor.u32 %v2319, 2147483648
      %v2352 = vxor.u32 %v2320, 2147483648
      %v2353 = vxor.u32 %v2321, 2147483648
      %v2354 = vxor.u32 %v2322, 2147483648
      %v2355 = vmul.f32 %v2323, 1.442695
      %v2356 = vpow.pop %v2355
      %v2357 = vmul.f32 %v2324, 1.442695
      %v2358 = vpow.pop %v2357
      %v2359 = vmul.f32 %v2325, 1.442695
      %v2360 = vpow.pop %v2359
      %v2361 = vmul.f32 %v2326, 1.442695
      %v2362 = vpow.pop %v2361
      %v2363 = vmul.f32 %v2327, 1.442695
      %v2364 = vpow.pop %v2363
      %v2365 = vmul.f32 %v2328, 1.442695
      %v2366 = vpow.pop %v2365
      %v2367 = vmul.f32 %v2329, 1.442695
      %v2368 = vpow.pop %v2367
      %v2369 = vmul.f32 %v2330, 1.442695
      %v2370 = vpow.pop %v2369
      %v2371 = vmul.f32 %v2331, 1.442695
      %v2372 = vpow.pop %v2371
      %v2373 = vmul.f32 %v2332, 1.442695
      %v2374 = vpow.pop %v2373
      %v2375 = vmul.f32 %v2333, 1.442695
      %v2376 = vpow.pop %v2375
      %v2377 = vmul.f32 %v2334, 1.442695
      %v2378 = vpow.pop %v2377
      %v2379 = vmul.f32 %v2335, 1.442695
      %v2380 = vpow.pop %v2379
      %v2381 = vmul.f32 %v2336, 1.442695
      %v2382 = vpow.pop %v2381
      %v2383 = vmul.f32 %v2337, 1.442695
      %v2384 = vpow.pop %v2383
      %v2385 = vmul.f32 %v2338, 1.442695
      %v2386 = vpow.pop %v2385
      %v2387 = vmul.f32 %v2339, 1.442695
      %v2388 = vpow.pop %v2387
      %v2389 = vmul.f32 %v2340, 1.442695
      %v2390 = vpow.pop %v2389
      %v2391 = vmul.f32 %v2341, 1.442695
      %v2392 = vpow.pop %v2391
      %v2393 = vmul.f32 %v2342, 1.442695
      %v2394 = vpow.pop %v2393
      %v2395 = vmul.f32 %v2343, 1.442695
      %v2396 = vpow.pop %v2395
      %v2397 = vmul.f32 %v2344, 1.442695
      %v2398 = vpow.pop %v2397
      %v2399 = vmul.f32 %v2345, 1.442695
      %v2400 = vpow.pop %v2399
      %v2401 = vmul.f32 %v2346, 1.442695
      %v2402 = vpow.pop %v2401
      %v2403 = vmul.f32 %v2347, 1.442695
      %v2404 = vpow.pop %v2403
      %v2405 = vmul.f32 %v2348, 1.442695
      %v2406 = vpow.pop %v2405
      %v2407 = vmul.f32 %v2349, 1.442695
      %v2408 = vpow.pop %v2407
      %v2409 = vmul.f32 %v2350, 1.442695
      %v2410 = vpow.pop %v2409
      %v2411 = vmul.f32 %v2351, 1.442695
      %v2412 = vpow.pop %v2411
      %v2413 = vmul.f32 %v2352, 1.442695
      %v2414 = vpow.pop %v2413
      %v2415 = vmul.f32 %v2353, 1.442695
      %v2416 = vpow.pop %v2415
      %v2417 = vmul.f32 %v2354, 1.442695
      %v2418 = vpow.pop %v2417
      %v2419 = vadd.f32 %v2356, 1.0
      %v2420 = vadd.f32 %v2358, 1.0
      %v2421 = vadd.f32 %v2360, 1.0
      %v2422 = vadd.f32 %v2362, 1.0
      %v2423 = vadd.f32 %v2364, 1.0
      %v2424 = vadd.f32 %v2366, 1.0
      %v2425 = vadd.f32 %v2368, 1.0
      %v2426 = vadd.f32 %v2370, 1.0
      %v2427 = vadd.f32 %v2372, 1.0
      %v2428 = vadd.f32 %v2374, 1.0
      %v2429 = vadd.f32 %v2376, 1.0
      %v2430 = vadd.f32 %v2378, 1.0
      %v2431 = vadd.f32 %v2380, 1.0
      %v2432 = vadd.f32 %v2382, 1.0
      %v2433 = vadd.f32 %v2384, 1.0
      %v2434 = vadd.f32 %v2386, 1.0
      %v2435 = vadd.f32 %v2388, 1.0
      %v2436 = vadd.f32 %v2390, 1.0
      %v2437 = vadd.f32 %v2392, 1.0
      %v2438 = vadd.f32 %v2394, 1.0
      %v2439 = vadd.f32 %v2396, 1.0
      %v2440 = vadd.f32 %v2398, 1.0
      %v2441 = vadd.f32 %v2400, 1.0
      %v2442 = vadd.f32 %v2402, 1.0
      %v2443 = vadd.f32 %v2404, 1.0
      %v2444 = vadd.f32 %v2406, 1.0
      %v2445 = vadd.f32 %v2408, 1.0
      %v2446 = vadd.f32 %v2410, 1.0
      %v2447 = vadd.f32 %v2412, 1.0
      %v2448 = vadd.f32 %v2414, 1.0
      %v2449 = vadd.f32 %v2416, 1.0
      %v2450 = vadd.f32 %v2418, 1.0
      %v2451 = vrcp.pop %v2419
      %v2452 = vmul.f32 1.0, %v2451
      %v2453 = vrcp.pop %v2420
      %v2454 = vmul.f32 1.0, %v2453
      %v2455 = vrcp.pop %v2421
      %v2456 = vmul.f32 1.0, %v2455
      %v2457 = vrcp.pop %v2422
      %v2458 = vmul.f32 1.0, %v2457
      %v2459 = vrcp.pop %v2423
      %v2460 = vmul.f32 1.0, %v2459
      %v2461 = vrcp.pop %v2424
      %v2462 = vmul.f32 1.0, %v2461
      %v2463 = vrcp.pop %v2425
      %v2464 = vmul.f32 1.0, %v2463
      %v2465 = vrcp.pop %v2426
      %v2466 = vmul.f32 1.0, %v2465
      %v2467 = vrcp.pop %v2427
      %v2468 = vmul.f32 1.0, %v2467
      %v2469 = vrcp.pop %v2428
      %v2470 = vmul.f32 1.0, %v2469
      %v2471 = vrcp.pop %v2429
      %v2472 = vmul.f32 1.0, %v2471
      %v2473 = vrcp.pop %v2430
      %v2474 = vmul.f32 1.0, %v2473
      %v2475 = vrcp.pop %v2431
      %v2476 = vmul.f32 1.0, %v2475
      %v2477 = vrcp.pop %v2432
      %v2478 = vmul.f32 1.0, %v2477
      %v2479 = vrcp.pop %v2433
      %v2480 = vmul.f32 1.0, %v2479
      %v2481 = vrcp.pop %v2434
      %v2482 = vmul.f32 1.0, %v2481
      %v2483 = vrcp.pop %v2435
      %v2484 = vmul.f32 1.0, %v2483
      %v2485 = vrcp.pop %v2436
      %v2486 = vmul.f32 1.0, %v2485
      %v2487 = vrcp.pop %v2437
      %v2488 = vmul.f32 1.0, %v2487
      %v2489 = vrcp.pop %v2438
      %v2490 = vmul.f32 1.0, %v2489
      %v2491 = vrcp.pop %v2439
      %v2492 = vmul.f32 1.0, %v2491
      %v2493 = vrcp.pop %v2440
      %v2494 = vmul.f32 1.0, %v2493
      %v2495 = vrcp.pop %v2441
      %v2496 = vmul.f32 1.0, %v2495
      %v2497 = vrcp.pop %v2442
      %v2498 = vmul.f32 1.0, %v2497
      %v2499 = vrcp.pop %v2443
      %v2500 = vmul.f32 1.0, %v2499
      %v2501 = vrcp.pop %v2444
      %v2502 = vmul.f32 1.0, %v2501
      %v2503 = vrcp.pop %v2445
      %v2504 = vmul.f32 1.0, %v2503
      %v2505 = vrcp.pop %v2446
      %v2506 = vmul.f32 1.0, %v2505
      %v2507 = vrcp.pop %v2447
      %v2508 = vmul.f32 1.0, %v2507
      %v2509 = vrcp.pop %v2448
      %v2510 = vmul.f32 1.0, %v2509
      %v2511 = vrcp.pop %v2449
      %v2512 = vmul.f32 1.0, %v2511
      %v2513 = vrcp.pop %v2450
      %v2514 = vmul.f32 1.0, %v2513
      %v2515 = vmul.f32 %v2291, %v2452
      %v2516 = vmul.f32 %v2292, %v2454
      %v2517 = vmul.f32 %v2293, %v2456
      %v2518 = vmul.f32 %v2294, %v2458
      %v2519 = vmul.f32 %v2295, %v2460
      %v2520 = vmul.f32 %v2296, %v2462
      %v2521 = vmul.f32 %v2297, %v2464
      %v2522 = vmul.f32 %v2298, %v2466
      %v2523 = vmul.f32 %v2299, %v2468
      %v2524 = vmul.f32 %v2300, %v2470
      %v2525 = vmul.f32 %v2301, %v2472
      %v2526 = vmul.f32 %v2302, %v2474
      %v2527 = vmul.f32 %v2303, %v2476
      %v2528 = vmul.f32 %v2304, %v2478
      %v2529 = vmul.f32 %v2305, %v2480
      %v2530 = vmul.f32 %v2306, %v2482
      %v2531 = vmul.f32 %v2307, %v2484
      %v2532 = vmul.f32 %v2308, %v2486
      %v2533 = vmul.f32 %v2309, %v2488
      %v2534 = vmul.f32 %v2310, %v2490
      %v2535 = vmul.f32 %v2311, %v2492
      %v2536 = vmul.f32 %v2312, %v2494
      %v2537 = vmul.f32 %v2313, %v2496
      %v2538 = vmul.f32 %v2314, %v2498
      %v2539 = vmul.f32 %v2315, %v2500
      %v2540 = vmul.f32 %v2316, %v2502
      %v2541 = vmul.f32 %v2317, %v2504
      %v2542 = vmul.f32 %v2318, %v2506
      %v2543 = vmul.f32 %v2319, %v2508
      %v2544 = vmul.f32 %v2320, %v2510
      %v2545 = vmul.f32 %v2321, %v2512
      %v2546 = vmul.f32 %v2322, %v2514
      %v2547 = vadd.f32 %v279, %v2515
      %v2548 = vadd.f32 %v280, %v2516
      %v2549 = vadd.f32 %v281, %v2517
      %v2550 = vadd.f32 %v282, %v2518
      %v2551 = vadd.f32 %v283, %v2519
      %v2552 = vadd.f32 %v284, %v2520
      %v2553 = vadd.f32 %v285, %v2521
      %v2554 = vadd.f32 %v286, %v2522
      %v2555 = vadd.f32 %v287, %v2523
      %v2556 = vadd.f32 %v288, %v2524
      %v2557 = vadd.f32 %v289, %v2525
      %v2558 = vadd.f32 %v290, %v2526
      %v2559 = vadd.f32 %v291, %v2527
      %v2560 = vadd.f32 %v292, %v2528
      %v2561 = vadd.f32 %v293, %v2529
      %v2562 = vadd.f32 %v294, %v2530
      %v2563 = vadd.f32 %v295, %v2531
      %v2564 = vadd.f32 %v296, %v2532
      %v2565 = vadd.f32 %v297, %v2533
      %v2566 = vadd.f32 %v298, %v2534
      %v2567 = vadd.f32 %v299, %v2535
      %v2568 = vadd.f32 %v300, %v2536
      %v2569 = vadd.f32 %v301, %v2537
      %v2570 = vadd.f32 %v302, %v2538
      %v2571 = vadd.f32 %v303, %v2539
      %v2572 = vadd.f32 %v304, %v2540
      %v2573 = vadd.f32 %v305, %v2541
      %v2574 = vadd.f32 %v306, %v2542
      %v2575 = vadd.f32 %v307, %v2543
      %v2576 = vadd.f32 %v308, %v2544
      %v2577 = vadd.f32 %v309, %v2545
      %v2578 = vadd.f32 %v310, %v2546
      %2579 = vst.msk [vmem:[%s278] sm:$0xff] %vm312, %v2547
      %2580 = vst.msk [vmem:[%s278 + $0x8] sm:$0xff] %vm312, %v2548
      %2581 = vst.msk [vmem:[%s278 + $0x10] sm:$0xff] %vm312, %v2549
      %2582 = vst.msk [vmem:[%s278 + $0x18] sm:$0xff] %vm312, %v2550
      %2583 = vst.msk [vmem:[%s278 + $0x20] sm:$0xff] %vm312, %v2551
      %2584 = vst.msk [vmem:[%s278 + $0x28] sm:$0xff] %vm312, %v2552
      %2585 = vst.msk [vmem:[%s278 + $0x30] sm:$0xff] %vm312, %v2553
      %2586 = vst.msk [vmem:[%s278 + $0x38] sm:$0xff] %vm312, %v2554
      %2587 = vst.msk [vmem:[%s278 + $0x40] sm:$0xff] %vm312, %v2555
      %2588 = vst.msk [vmem:[%s278 + $0x48] sm:$0xff] %vm312, %v2556
      %2589 = vst.msk [vmem:[%s278 + $0x50] sm:$0xff] %vm312, %v2557
      %2590 = vst.msk [vmem:[%s278 + $0x58] sm:$0xff] %vm312, %v2558
      %2591 = vst.msk [vmem:[%s278 + $0x60] sm:$0xff] %vm312, %v2559
      %2592 = vst.msk [vmem:[%s278 + $0x68] sm:$0xff] %vm312, %v2560
      %2593 = vst.msk [vmem:[%s278 + $0x70] sm:$0xff] %vm312, %v2561
      %2594 = vst.msk [vmem:[%s278 + $0x78] sm:$0xff] %vm312, %v2562
      %2595 = vst.msk [vmem:[%s278 + $0x80] sm:$0xff] %vm312, %v2563
      %2596 = vst.msk [vmem:[%s278 + $0x88] sm:$0xff] %vm312, %v2564
      %2597 = vst.msk [vmem:[%s278 + $0x90] sm:$0xff] %vm312, %v2565
      %2598 = vst.msk [vmem:[%s278 + $0x98] sm:$0xff] %vm312, %v2566
      %2599 = vst.msk [vmem:[%s278 + $0xa0] sm:$0xff] %vm312, %v2567
      %2600 = vst.msk [vmem:[%s278 + $0xa8] sm:$0xff] %vm312, %v2568
      %2601 = vst.msk [vmem:[%s278 + $0xb0] sm:$0xff] %vm312, %v2569
      %2602 = vst.msk [vmem:[%s278 + $0xb8] sm:$0xff] %vm312, %v2570
      %2603 = vst.msk [vmem:[%s278 + $0xc0] sm:$0xff] %vm312, %v2571
      %2604 = vst.msk [vmem:[%s278 + $0xc8] sm:$0xff] %vm312, %v2572
      %2605 = vst.msk [vmem:[%s278 + $0xd0] sm:$0xff] %vm312, %v2573
      %2606 = vst.msk [vmem:[%s278 + $0xd8] sm:$0xff] %vm312, %v2574
      %2607 = vst.msk [vmem:[%s278 + $0xe0] sm:$0xff] %vm312, %v2575
      %2608 = vst.msk [vmem:[%s278 + $0xe8] sm:$0xff] %vm312, %v2576
      %2609 = vst.msk [vmem:[%s278 + $0xf0] sm:$0xff] %vm312, %v2577
      %2610 = vst.msk [vmem:[%s278 + $0xf8] sm:$0xff] %vm312, %v2578
      %p2611 = scmp.lt.s32.totalorder %s18, 1
      %s2612 = scalar_select %p2611, %s18, 1
      %s2613 = smul.addr %s2612, 32
      %s2614 = smul.addr %s2613, 8
      %s2615 = scalar_lea.vmem %s7, %s2614
      // Predicated region
      $region49: #{c2f_forward.8} parent=47 // pred_check
        %p2616 = pneg %p188
      $region50: #{c2f_forward.8} parent=47 // pred_check_branch
        %2618 = sbr.rel (%p2616) target = $region52
      $region51: #{c2f_forward.8} parent=47 // pred_region
        _
      $region52: #{c2f_forward.8} parent=47 // pred_fallthru
        _
    $region48: #{c2f_forward.8} parent=5 // pred_fallthru
      _
    %p2619 = scmp.le.s32.totalorder 2, %s13
    // Predicated region
    $region53: #{c2f_forward.8} parent=5 // pred_check
      %p2620 = pneg %p2619
    $region54: #{c2f_forward.8} parent=5 // pred_check_branch
      %2622 = sbr.rel (%p2620) target = $region56
    $region55: #{c2f_forward.8} parent=5 // pred_region
      %s2623 = ssub.s32 %s13, 2
      // Predicated region
      $region57: #{c2f_forward.8} parent=55 // pred_check
        %p2624 = pneg %p194
      $region58: #{c2f_forward.8} parent=55 // pred_check_branch
        %2626 = sbr.rel (%p2624) target = $region60
      $region59: #{c2f_forward.8} parent=55 // pred_region
        %p2627 = scmp.lt.s32.totalorder %s19, 1
        %s2628 = scalar_select %p2627, %s19, 1
        %s2629 = smul.addr %s2628, 32
        %s2630 = smul.addr %s2629, 8
        %s2631 = scalar_lea.vmem %s7, %s2630
      $region60: #{c2f_forward.8} parent=55 // pred_fallthru
        _
    $region56: #{c2f_forward.8} parent=5 // pred_fallthru
      _
  $region6: #{c2f_forward.8} parent=0 // loop_footer
    %s17 = sadd.s32 1, %s13
  $region7: #{c2f_forward.8} parent=0 // loop_footer_branch
    %12 = sbr.rel target = $region3
  $region8: #{c2f_forward.8} parent=0 // loop_exit
    _

// kernel: c2f_forward.7
$region0: #{c2f_forward.7}
  #allocation0 [shape = 'u32[]', space=smem, size = 0x4, offset = 0x4, fixed_abs, tag = 'smem constant byte address 0x4 - core index']
  #allocation1 [shape = 'u32[144,128]{1,0:T(1,128)}', space=vmem, size = 0x12000, scoped, tag = 'internal scratch']
  %s0 = inlined_call_operand.vmem [shape: f32[2,256,3], index: 0, kind: input, shape index: {}]
  %s1 = inlined_call_operand.vmem [shape: f32[3,3], index: 1, kind: input, shape index: {}]
  %s2 = inlined_call_operand.vmem [shape: f32[1,3], index: 2, kind: input, shape index: {}]
  %s3 = inlined_call_operand.vmem [shape: f32[1,3], index: 3, kind: input, shape index: {}]
  %s4 = inlined_call_operand.vmem [shape: f32[3,9,3], index: 4, kind: input, shape index: {}]
  %s5 = inlined_call_operand.vmem [shape: f32[1,3], index: 5, kind: input, shape index: {}]
  %s6 = inlined_call_operand.vmem [shape: f32[1,3], index: 6, kind: input, shape index: {}]
  %s7 = inlined_call_operand.vmem [shape: f32[2,256,3], index: 7, kind: output, shape index: {}]
  %s8 = sld [smem:[#allocation0]]
  $region61: #{c2f_forward.7} parent=0
    _
  %s10 = ssub.s32 1, %s8
  %s11 = scalar_select 0, %s10, %s8
  loop: start=0, step=1, limit=4
  $region2: #{c2f_forward.7} parent=0 // loop_pre_header
    _
  $region3: #{c2f_forward.7} parent=0 // loop_header
    %s13 = sphi 0, %s17
    %p14 = scmp.ge.s32.totalorder %s13, 4
    %s23 = sphi 0, %s25
    %s26 = sphi 0, %s23
    %s27 = sphi 0, %s26
    %s43 = sphi 0, %s27
    %s47 = sphi 0, %s47
    %s49 = sphi 0, %s47
    %s50 = sphi 0, %s49
    %s64 = sphi 0, %s50
    %s68 = sphi 0, %s68
    %s70 = sphi 0, %s68
    %s71 = sphi 0, %s70
    %s85 = sphi 0, %s71
    %s89 = sphi 0, %s89
    %s91 = sphi 0, %s89
    %s92 = sphi 0, %s91
    %s106 = sphi 0, %s92
    %s110 = sphi 0, %s110
    %s112 = sphi 0, %s110
    %s113 = sphi 0, %s112
    %s127 = sphi 0, %s113
    %s131 = sphi 0, %s131
    %s133 = sphi 0, %s131
    %s134 = sphi 0, %s133
    %s148 = sphi 0, %s134
    %s152 = sphi 0, %s152
    %s154 = sphi 0, %s152
    %s155 = sphi 0, %s154
    %s169 = sphi 0, %s155
    %s175 = sphi 0, %s177
    %s178 = sphi 0, %s175
    %s179 = sphi 0, %s178
    %s195 = sphi 0, %s179
  $region4: #{c2f_forward.7} parent=0 // loop_header_branch
    %16 = sbr.rel (%p14) target = $region8
  $region5: #{c2f_forward.7} parent=0 // loop_body
    %s18 = ssub.s32 %s13, 1
    %s19 = ssub.s32 %s13, 2
    %s20 = sadd.s32 %s13, 1
    %s21 = ssub.s32 %s13, %s20
    %p22 = scmp.eq.s32.totalorder %s21, 0
    %s24 = sadd.s32 %s23, 1
    %s25 = scalar_select %p22, %s23, %s24
    %p28 = pneg %p22
    %p29 = scmp.eq.s32.totalorder %s13, 1
    %p30 = por %p28, %p29
    %p31 = scmp.ne.s32.totalorder %s23, %s26
    %p32 = scmp.eq.s32.totalorder %s13, 0
    %p33 = por %p31, %p32
    %p34 = scmp.ne.s32.totalorder %s23, %s26
    %p35 = scmp.eq.s32.totalorder %s18, 1
    %p36 = por %p34, %p35
    %p37 = scmp.ne.s32.totalorder %s26, %s27
    %p38 = scmp.eq.s32.totalorder %s18, 0
    %p39 = por %p37, %p38
    %p40 = scmp.ne.s32.totalorder %s26, %s27
    %p41 = scmp.eq.s32.totalorder %s19, 1
    %p42 = por %p40, %p41
    %p44 = scmp.ne.s32.totalorder %s27, %s43
    %p45 = scmp.eq.s32.totalorder %s19, 0
    %p46 = por %p44, %p45
    %s48 = sadd.s32 %s47, 1
    %p51 = scmp.eq.s32.totalorder %s13, 1
    %p52 = scmp.ne.s32.totalorder %s47, %s49
    %p53 = scmp.eq.s32.totalorder %s13, 0
    %p54 = por %p52, %p53
    %p55 = scmp.ne.s32.totalorder %s47, %s49
    %p56 = scmp.eq.s32.totalorder %s18, 1
    %p57 = por %p55, %p56
    %p58 = scmp.ne.s32.totalorder %s49, %s50
    %p59 = scmp.eq.s32.totalorder %s18, 0
    %p60 = por %p58, %p59
    %p61 = scmp.ne.s32.totalorder %s49, %s50
    %p62 = scmp.eq.s32.totalorder %s19, 1
    %p63 = por %p61, %p62
    %p65 = scmp.ne.s32.totalorder %s50, %s64
    %p66 = scmp.eq.s32.totalorder %s19, 0
    %p67 = por %p65, %p66
    %s69 = sadd.s32 %s68, 1
    %p72 = scmp.eq.s32.totalorder %s13, 1
    %p73 = scmp.ne.s32.totalorder %s68, %s70
    %p74 = scmp.eq.s32.totalorder %s13, 0
    %p75 = por %p73, %p74
    %p76 = scmp.ne.s32.totalorder %s68, %s70
    %p77 = scmp.eq.s32.totalorder %s18, 1
    %p78 = por %p76, %p77
    %p79 = scmp.ne.s32.totalorder %s70, %s71
    %p80 = scmp.eq.s32.totalorder %s18, 0
    %p81 = por %p79, %p80
    %p82 = scmp.ne.s32.totalorder %s70, %s71
    %p83 = scmp.eq.s32.totalorder %s19, 1
    %p84 = por %p82, %p83
    %p86 = scmp.ne.s32.totalorder %s71, %s85
    %p87 = scmp.eq.s32.totalorder %s19, 0
    %p88 = por %p86, %p87
    %s90 = sadd.s32 %s89, 1
    %p93 = scmp.eq.s32.totalorder %s13, 1
    %p94 = scmp.ne.s32.totalorder %s89, %s91
    %p95 = scmp.eq.s32.totalorder %s13, 0
    %p96 = por %p94, %p95
    %p97 = scmp.ne.s32.totalorder %s89, %s91
    %p98 = scmp.eq.s32.totalorder %s18, 1
    %p99 = por %p97, %p98
    %p100 = scmp.ne.s32.totalorder %s91, %s92
    %p101 = scmp.eq.s32.totalorder %s18, 0
    %p102 = por %p100, %p101
    %p103 = scmp.ne.s32.totalorder %s91, %s92
    %p104 = scmp.eq.s32.totalorder %s19, 1
    %p105 = por %p103, %p104
    %p107 = scmp.ne.s32.totalorder %s92, %s106
    %p108 = scmp.eq.s32.totalorder %s19, 0
    %p109 = por %p107, %p108
    %s111 = sadd.s32 %s110, 1
    %p114 = scmp.eq.s32.totalorder %s13, 1
    %p115 = scmp.ne.s32.totalorder %s110, %s112
    %p116 = scmp.eq.s32.totalorder %s13, 0
    %p117 = por %p115, %p116
    %p118 = scmp.ne.s32.totalorder %s110, %s112
    %p119 = scmp.eq.s32.totalorder %s18, 1
    %p120 = por %p118, %p119
    %p121 = scmp.ne.s32.totalorder %s112, %s113
    %p122 = scmp.eq.s32.totalorder %s18, 0
    %p123 = por %p121, %p122
    %p124 = scmp.ne.s32.totalorder %s112, %s113
    %p125 = scmp.eq.s32.totalorder %s19, 1
    %p126 = por %p124, %p125
    %p128 = scmp.ne.s32.totalorder %s113, %s127
    %p129 = scmp.eq.s32.totalorder %s19, 0
    %p130 = por %p128, %p129
    %s132 = sadd.s32 %s131, 1
    %p135 = scmp.eq.s32.totalorder %s13, 1
    %p136 = scmp.ne.s32.totalorder %s131, %s133
    %p137 = scmp.eq.s32.totalorder %s13, 0
    %p138 = por %p136, %p137
    %p139 = scmp.ne.s32.totalorder %s131, %s133
    %p140 = scmp.eq.s32.totalorder %s18, 1
    %p141 = por %p139, %p140
    %p142 = scmp.ne.s32.totalorder %s133, %s134
    %p143 = scmp.eq.s32.totalorder %s18, 0
    %p144 = por %p142, %p143
    %p145 = scmp.ne.s32.totalorder %s133, %s134
    %p146 = scmp.eq.s32.totalorder %s19, 1
    %p147 = por %p145, %p146
    %p149 = scmp.ne.s32.totalorder %s134, %s148
    %p150 = scmp.eq.s32.totalorder %s19, 0
    %p151 = por %p149, %p150
    %s153 = sadd.s32 %s152, 1
    %p156 = scmp.eq.s32.totalorder %s13, 1
    %p157 = scmp.ne.s32.totalorder %s152, %s154
    %p158 = scmp.eq.s32.totalorder %s13, 0
    %p159 = por %p157, %p158
    %p160 = scmp.ne.s32.totalorder %s152, %s154
    %p161 = scmp.eq.s32.totalorder %s18, 1
    %p162 = por %p160, %p161
    %p163 = scmp.ne.s32.totalorder %s154, %s155
    %p164 = scmp.eq.s32.totalorder %s18, 0
    %p165 = por %p163, %p164
    %p166 = scmp.ne.s32.totalorder %s154, %s155
    %p167 = scmp.eq.s32.totalorder %s19, 1
    %p168 = por %p166, %p167
    %p170 = scmp.ne.s32.totalorder %s155, %s169
    %p171 = scmp.eq.s32.totalorder %s19, 0
    %p172 = por %p170, %p171
    %s173 = ssub.s32 %s13, %s20
    %p174 = scmp.eq.s32.totalorder %s173, 0
    %s176 = sadd.s32 %s175, 1
    %s177 = scalar_select %p174, %s175, %s176
    %p180 = pneg %p174
    %p181 = scmp.eq.s32.totalorder %s13, 1
    %p182 = por %p180, %p181
    %p183 = scmp.ne.s32.totalorder %s175, %s178
    %p184 = scmp.eq.s32.totalorder %s13, 0
    %p185 = por %p183, %p184
    %p186 = scmp.ne.s32.totalorder %s175, %s178
    %p187 = scmp.eq.s32.totalorder %s18, 1
    %p188 = por %p186, %p187
    %p189 = scmp.ne.s32.totalorder %s178, %s179
    %p190 = scmp.eq.s32.totalorder %s18, 0
    %p191 = por %p189, %p190
    %p192 = scmp.ne.s32.totalorder %s178, %s179
    %p193 = scmp.eq.s32.totalorder %s19, 1
    %p194 = por %p192, %p193
    %p196 = scmp.ne.s32.totalorder %s179, %s195
    %p197 = scmp.eq.s32.totalorder %s19, 0
    %p198 = por %p196, %p197
    %p199 = scmp.le.s32.totalorder 1, %s13
    %p200 = scmp.lt.s32.totalorder %s13, 3
    %p201 = pnand %p199, %p200
    %p202 = pneg %p201
    // Predicated region
    $region9: #{c2f_forward.7} parent=5 // pred_check
      _
    $region10: #{c2f_forward.7} parent=5 // pred_check_branch
      %204 = sbr.rel (%p201) target = $region12
    $region11: #{c2f_forward.7} parent=5 // pred_region
      %s205 = ssub.s32 %s13, 1
      // Predicated region
      $region13: #{c2f_forward.7} parent=11 // pred_check
        %p206 = pneg %p60
      $region14: #{c2f_forward.7} parent=11 // pred_check_branch
        %208 = sbr.rel (%p206) target = $region16
      $region15: #{c2f_forward.7} parent=11 // pred_region
        _
      $region16: #{c2f_forward.7} parent=11 // pred_fallthru
        _
      // Predicated region
      $region17: #{c2f_forward.7} parent=11 // pred_check
        %p209 = pneg %p81
      $region18: #{c2f_forward.7} parent=11 // pred_check_branch
        %211 = sbr.rel (%p209) target = $region20
      $region19: #{c2f_forward.7} parent=11 // pred_region
        _
      $region20: #{c2f_forward.7} parent=11 // pred_fallthru
        _
      // Predicated region
      $region21: #{c2f_forward.7} parent=11 // pred_check
        %p212 = pneg %p102
      $region22: #{c2f_forward.7} parent=11 // pred_check_branch
        %214 = sbr.rel (%p212) target = $region24
      $region23: #{c2f_forward.7} parent=11 // pred_region
        _
      $region24: #{c2f_forward.7} parent=11 // pred_fallthru
        _
      // Predicated region
      $region25: #{c2f_forward.7} parent=11 // pred_check
        %p215 = pneg %p123
      $region26: #{c2f_forward.7} parent=11 // pred_check_branch
        %217 = sbr.rel (%p215) target = $region28
      $region27: #{c2f_forward.7} parent=11 // pred_region
        _
      $region28: #{c2f_forward.7} parent=11 // pred_fallthru
        _
      // Predicated region
      $region29: #{c2f_forward.7} parent=11 // pred_check
        %p218 = pneg %p144
      $region30: #{c2f_forward.7} parent=11 // pred_check_branch
        %220 = sbr.rel (%p218) target = $region32
      $region31: #{c2f_forward.7} parent=11 // pred_region
        _
      $region32: #{c2f_forward.7} parent=11 // pred_fallthru
        _
      // Predicated region
      $region33: #{c2f_forward.7} parent=11 // pred_check
        %p221 = pneg %p165
      $region34: #{c2f_forward.7} parent=11 // pred_check_branch
        %223 = sbr.rel (%p221) target = $region36
      $region35: #{c2f_forward.7} parent=11 // pred_region
        _
      $region36: #{c2f_forward.7} parent=11 // pred_fallthru
        _
    $region12: #{c2f_forward.7} parent=5 // pred_fallthru
      _
    %p224 = scmp.lt.s32.totalorder %s13, 2
    // Predicated region
    $region37: #{c2f_forward.7} parent=5 // pred_check
      %p225 = pneg %p224
    $region38: #{c2f_forward.7} parent=5 // pred_check_branch
      %227 = sbr.rel (%p225) target = $region40
    $region39: #{c2f_forward.7} parent=5 // pred_region
      // Predicated region
      $region41: #{c2f_forward.7} parent=39 // pred_check
        %p228 = pneg %p33
      $region42: #{c2f_forward.7} parent=39 // pred_check_branch
        %230 = sbr.rel (%p228) target = $region44
      $region43: #{c2f_forward.7} parent=39 // pred_region
        %p231 = scmp.lt.s32.totalorder %s13, 1
        %s232 = scalar_select %p231, %s13, 1
        %s233 = smul.addr %s232, 32
        %s234 = smul.addr %s233, 8
        %s235 = scalar_lea.vmem %s0, %s234
      $region44: #{c2f_forward.7} parent=39 // pred_fallthru
        _
    $region40: #{c2f_forward.7} parent=5 // pred_fallthru
      _
    %p236 = scmp.le.s32.totalorder 1, %s13
    %p237 = scmp.lt.s32.totalorder %s13, 3
    %p238 = pnand %p236, %p237
    %p239 = pneg %p238
    // Predicated region
    $region45: #{c2f_forward.7} parent=5 // pred_check
      _
    $region46: #{c2f_forward.7} parent=5 // pred_check_branch
      %241 = sbr.rel (%p238) target = $region48
    $region47: #{c2f_forward.7} parent=5 // pred_region
      %s242 = ssub.s32 %s13, 1
      %p243 = scmp.lt.s32.totalorder %s18, 1
      %s244 = scalar_select %p243, %s18, 1
      %s245 = smul.addr %s244, 32
      %s246 = smul.addr %s245, 8
      %s247 = scalar_lea.vmem %s0, %s246
      %p248 = pneg %p39
      %p249 = pneg %p36
      %p250 = pneg %p60
      %p251 = pneg %p57
      %p252 = pneg %p81
      %p253 = pneg %p78
      %p254 = pneg %p102
      %p255 = pneg %p99
      %p256 = pneg %p123
      %p257 = pneg %p120
      %p258 = pneg %p144
      %p259 = pneg %p141
      %p260 = pneg %p165
      %p261 = pneg %p162
      %p262 = pneg %p191
      %p263 = pneg %p188
      %p264 = scmp.lt.s32.totalorder %s18, 1
      %s265 = scalar_select %p264, %s18, 1
      %s266 = smul.addr %s265, 32
      %s267 = smul.addr %s266, 8
      %s268 = scalar_lea.vmem %s7, %s267
      %p269 = scmp.lt.s32.totalorder %s18, 1
      %s270 = scalar_select %p269, %s18, 1
      %s271 = smul.addr %s270, 32
      %s272 = smul.addr %s271, 8
      %s273 = scalar_lea.vmem %s0, %s272
      %p274 = scmp.lt.s32.totalorder %s18, 1
      %s275 = scalar_select %p274, %s18, 1
      %s276 = smul.addr %s275, 32
      %s277 = smul.addr %s276, 8
      %s278 = scalar_lea.vmem %s7, %s277
      %v279 = vld [vmem:[%s273] sm:$0xff]
      %v280 = vld [vmem:[%s273 + $0x8] sm:$0xff]
      %v281 = vld [vmem:[%s273 + $0x10] sm:$0xff]
      %v282 = vld [vmem:[%s273 + $0x18] sm:$0xff]
      %v283 = vld [vmem:[%s273 + $0x20] sm:$0xff]
      %v284 = vld [vmem:[%s273 + $0x28] sm:$0xff]
      %v285 = vld [vmem:[%s273 + $0x30] sm:$0xff]
      %v286 = vld [vmem:[%s273 + $0x38] sm:$0xff]
      %v287 = vld [vmem:[%s273 + $0x40] sm:$0xff]
      %v288 = vld [vmem:[%s273 + $0x48] sm:$0xff]
      %v289 = vld [vmem:[%s273 + $0x50] sm:$0xff]
      %v290 = vld [vmem:[%s273 + $0x58] sm:$0xff]
      %v291 = vld [vmem:[%s273 + $0x60] sm:$0xff]
      %v292 = vld [vmem:[%s273 + $0x68] sm:$0xff]
      %v293 = vld [vmem:[%s273 + $0x70] sm:$0xff]
      %v294 = vld [vmem:[%s273 + $0x78] sm:$0xff]
      %v295 = vld [vmem:[%s273 + $0x80] sm:$0xff]
      %v296 = vld [vmem:[%s273 + $0x88] sm:$0xff]
      %v297 = vld [vmem:[%s273 + $0x90] sm:$0xff]
      %v298 = vld [vmem:[%s273 + $0x98] sm:$0xff]
      %v299 = vld [vmem:[%s273 + $0xa0] sm:$0xff]
      %v300 = vld [vmem:[%s273 + $0xa8] sm:$0xff]
      %v301 = vld [vmem:[%s273 + $0xb0] sm:$0xff]
      %v302 = vld [vmem:[%s273 + $0xb8] sm:$0xff]
      %v303 = vld [vmem:[%s273 + $0xc0] sm:$0xff]
      %v304 = vld [vmem:[%s273 + $0xc8] sm:$0xff]
      %v305 = vld [vmem:[%s273 + $0xd0] sm:$0xff]
      %v306 = vld [vmem:[%s273 + $0xd8] sm:$0xff]
      %v307 = vld [vmem:[%s273 + $0xe0] sm:$0xff]
      %v308 = vld [vmem:[%s273 + $0xe8] sm:$0xff]
      %v309 = vld [vmem:[%s273 + $0xf0] sm:$0xff]
      %v310 = vld [vmem:[%s273 + $0xf8] sm:$0xff]
      %v311 = vld [vmem:[%s1] sm:$0x7]
      %vm312 = vcmask 23552
      %v314 = vsel %vm312, %v279, 0
      %v317 = vsel %vm312, %v280, 0
      %v320 = vsel %vm312, %v281, 0
      %v323 = vsel %vm312, %v282, 0
      %v326 = vsel %vm312, %v283, 0
      %v329 = vsel %vm312, %v284, 0
      %v332 = vsel %vm312, %v285, 0
      %v335 = vsel %vm312, %v286, 0
      %v338 = vsel %vm312, %v287, 0
      %v341 = vsel %vm312, %v288, 0
      %v344 = vsel %vm312, %v289, 0
      %v347 = vsel %vm312, %v290, 0
      %v350 = vsel %vm312, %v291, 0
      %v353 = vsel %vm312, %v292, 0
      %v356 = vsel %vm312, %v293, 0
      %v359 = vsel %vm312, %v294, 0
      %v362 = vsel %vm312, %v295, 0
      %v365 = vsel %vm312, %v296, 0
      %v368 = vsel %vm312, %v297, 0
      %v371 = vsel %vm312, %v298, 0
      %v374 = vsel %vm312, %v299, 0
      %v377 = vsel %vm312, %v300, 0
      %v380 = vsel %vm312, %v301, 0
      %v383 = vsel %vm312, %v302, 0
      %v386 = vsel %vm312, %v303, 0
      %v389 = vsel %vm312, %v304, 0
      %v392 = vsel %vm312, %v305, 0
      %v395 = vsel %vm312, %v306, 0
      %v398 = vsel %vm312, %v307, 0
      %v401 = vsel %vm312, %v308, 0
      %v404 = vsel %vm312, %v309, 0
      %v407 = vsel %vm312, %v310, 0
      %vm409 = vcmask 1042432
      %v411 = vsel %vm409, %v311, 0
      %413 = vmatprep.subr.mxu0 0.0
      %414 = vmatpush1.msra.mxu0 0.0
      %415 = vmatprep.subr.mxu0 0.0
      %416 = vmatpush1.msra.mxu0 0.0
      %417 = vmatprep.subr.mxu0 0.0
      %418 = vmatpush1.msra.mxu0 0.0
      %419 = vmatprep.subr.mxu0 0.0
      %420 = vmatpush1.msra.mxu0 0.0
      %421 = vmatprep.subr.mxu0 0.0
      %422 = vmatpush1.msra.mxu0 0.0
      %423 = vmatprep.subr.mxu0 0.0
      %424 = vmatpush1.msra.mxu0 0.0
      %425 = vmatprep.subr.mxu0 0.0
      %426 = vmatpush1.msra.mxu0 0.0
      %427 = vmatprep.subr.mxu0 0.0
      %428 = vmatpush1.msra.mxu0 0.0
      %429 = vmatprep.subr.mxu0 0.0
      %430 = vmatpush1.msra.mxu0 0.0
      %431 = vmatprep.subr.mxu0 0.0
      %432 = vmatpush1.msra.mxu0 0.0
      %433 = vmatprep.subr.mxu0 0.0
      %434 = vmatpush1.msra.mxu0 0.0
      %435 = vmatprep.subr.mxu0 0.0
      %436 = vmatpush1.msra.mxu0 0.0
      %437 = vmatprep.subr.mxu0 0.0
      %438 = vmatpush1.msra.mxu0 0.0
      %439 = vmatprep.subr.mxu0 0.0
      %440 = vmatpush1.msra.mxu0 0.0
      %441 = vmatprep.subr.mxu0 0.0
      %442 = vmatpush1.msra.mxu0 0.0
      %443 = vmatprep.subr.mxu0 0.0
      %444 = vmatpush1.msra.mxu0 %v411
      %445 = vmatprep.subr.mxu0 0.0
      %446 = vmatpush2.msra.mxu0 0.0
      %447 = vmatprep.subr.mxu0 0.0
      %448 = vmatpush2.msra.mxu0 0.0
      %449 = vmatprep.subr.mxu0 0.0
      %450 = vmatpush2.msra.mxu0 0.0
      %451 = vmatprep.subr.mxu0 0.0
      %452 = vmatpush2.msra.mxu0 0.0
      %453 = vmatprep.subr.mxu0 0.0
      %454 = vmatpush2.msra.mxu0 0.0
      %455 = vmatprep.subr.mxu0 0.0
      %456 = vmatpush2.msra.mxu0 0.0
      %457 = vmatprep.subr.mxu0 0.0
      %458 = vmatpush2.msra.mxu0 0.0
      %459 = vmatprep.subr.mxu0 0.0
      %460 = vmatpush2.msra.mxu0 0.0
      %461 = vmatprep.subr.mxu0 0.0
      %462 = vmatpush2.msra.mxu0 0.0
      %463 = vmatprep.subr.mxu0 0.0
      %464 = vmatpush2.msra.mxu0 0.0
      %465 = vmatprep.subr.mxu0 0.0
      %466 = vmatpush2.msra.mxu0 0.0
      %467 = vmatprep.subr.mxu0 0.0
      %468 = vmatpush2.msra.mxu0 0.0
      %469 = vmatprep.subr.mxu0 0.0
      %470 = vmatpush2.msra.mxu0 0.0
      %471 = vmatprep.subr.mxu0 0.0
      %472 = vmatpush2.msra.mxu0 0.0
      %473 = vmatprep.subr.mxu0 0.0
      %474 = vmatpush2.msra.mxu0 0.0
      %475 = vmatprep.subr.mxu0 0.0
      %476 = vmatpush2.msra.mxu0 0.0
      %477 = vmatprep.mubr.f32.mxu0 0.0
      %478 = vmatmul.mubr.f32.gmra.mxu0 %v314
      %v479 = vpop.f32.mrf.mxu0
      %v480 = vadd.f32 0.0, %v479
      %v481 = vpop.f32.mrf.mxu0
      %482 = vmatprep.mubr.f32.mxu0 0.0
      %483 = vmatmul.mubr.f32.gmra.mxu0 %v317
      %v484 = vpop.f32.mrf.mxu0
      %v485 = vadd.f32 0.0, %v484
      %v486 = vpop.f32.mrf.mxu0
      %487 = vmatprep.mubr.f32.mxu0 0.0
      %488 = vmatmul.mubr.f32.gmra.mxu0 %v320
      %v489 = vpop.f32.mrf.mxu0
      %v490 = vadd.f32 0.0, %v489
      %v491 = vpop.f32.mrf.mxu0
      %492 = vmatprep.mubr.f32.mxu0 0.0
      %493 = vmatmul.mubr.f32.gmra.mxu0 %v323
      %v494 = vpop.f32.mrf.mxu0
      %v495 = vadd.f32 0.0, %v494
      %v496 = vpop.f32.mrf.mxu0
      %497 = vmatprep.mubr.f32.mxu0 0.0
      %498 = vmatmul.mubr.f32.gmra.mxu0 %v326
      %v499 = vpop.f32.mrf.mxu0
      %v500 = vadd.f32 0.0, %v499
      %v501 = vpop.f32.mrf.mxu0
      %502 = vmatprep.mubr.f32.mxu0 0.0
      %503 = vmatmul.mubr.f32.gmra.mxu0 %v329
      %v504 = vpop.f32.mrf.mxu0
      %v505 = vadd.f32 0.0, %v504
      %v506 = vpop.f32.mrf.mxu0
      %507 = vmatprep.mubr.f32.mxu0 0.0
      %508 = vmatmul.mubr.f32.gmra.mxu0 %v332
      %v509 = vpop.f32.mrf.mxu0
      %v510 = vadd.f32 0.0, %v509
      %v511 = vpop.f32.mrf.mxu0
      %512 = vmatprep.mubr.f32.mxu0 0.0
      %513 = vmatmul.mubr.f32.gmra.mxu0 %v335
      %v514 = vpop.f32.mrf.mxu0
      %v515 = vadd.f32 0.0, %v514
      %v516 = vpop.f32.mrf.mxu0
      %517 = vmatprep.mubr.f32.mxu0 0.0
      %518 = vmatmul.mubr.f32.gmra.mxu0 %v338
      %v519 = vpop.f32.mrf.mxu0
      %v520 = vadd.f32 0.0, %v519
      %v521 = vpop.f32.mrf.mxu0
      %522 = vmatprep.mubr.f32.mxu0 0.0
      %523 = vmatmul.mubr.f32.gmra.mxu0 %v341
      %v524 = vpop.f32.mrf.mxu0
      %v525 = vadd.f32 0.0, %v524
      %v526 = vpop.f32.mrf.mxu0
      %527 = vmatprep.mubr.f32.mxu0 0.0
      %528 = vmatmul.mubr.f32.gmra.mxu0 %v344
      %v529 = vpop.f32.mrf.mxu0
      %v530 = vadd.f32 0.0, %v529
      %v531 = vpop.f32.mrf.mxu0
      %532 = vmatprep.mubr.f32.mxu0 0.0
      %533 = vmatmul.mubr.f32.gmra.mxu0 %v347
      %v534 = vpop.f32.mrf.mxu0
      %v535 = vadd.f32 0.0, %v534
      %v536 = vpop.f32.mrf.mxu0
      %537 = vmatprep.mubr.f32.mxu0 0.0
      %538 = vmatmul.mubr.f32.gmra.mxu0 %v350
      %v539 = vpop.f32.mrf.mxu0
      %v540 = vadd.f32 0.0, %v539
      %v541 = vpop.f32.mrf.mxu0
      %542 = vmatprep.mubr.f32.mxu0 0.0
      %543 = vmatmul.mubr.f32.gmra.mxu0 %v353
      %v544 = vpop.f32.mrf.mxu0
      %v545 = vadd.f32 0.0, %v544
      %v546 = vpop.f32.mrf.mxu0
      %547 = vmatprep.mubr.f32.mxu0 0.0
      %548 = vmatmul.mubr.f32.gmra.mxu0 %v356
      %v549 = vpop.f32.mrf.mxu0
      %v550 = vadd.f32 0.0, %v549
      %v551 = vpop.f32.mrf.mxu0
      %552 = vmatprep.mubr.f32.mxu0 0.0
      %553 = vmatmul.mubr.f32.gmra.mxu0 %v359
      %v554 = vpop.f32.mrf.mxu0
      %v555 = vadd.f32 0.0, %v554
      %v556 = vpop.f32.mrf.mxu0
      %557 = vmatprep.mubr.f32.mxu0 0.0
      %558 = vmatmul.mubr.f32.gmra.mxu0 %v362
      %v559 = vpop.f32.mrf.mxu0
      %v560 = vadd.f32 0.0, %v559
      %v561 = vpop.f32.mrf.mxu0
      %562 = vmatprep.mubr.f32.mxu0 0.0
      %563 = vmatmul.mubr.f32.gmra.mxu0 %v365
      %v564 = vpop.f32.mrf.mxu0
      %v565 = vadd.f32 0.0, %v564
      %v566 = vpop.f32.mrf.mxu0
      %567 = vmatprep.mubr.f32.mxu0 0.0
      %568 = vmatmul.mubr.f32.gmra.mxu0 %v368
      %v569 = vpop.f32.mrf.mxu0
      %v570 = vadd.f32 0.0, %v569
      %v571 = vpop.f32.mrf.mxu0
      %572 = vmatprep.mubr.f32.mxu0 0.0
      %573 = vmatmul.mubr.f32.gmra.mxu0 %v371
      %v574 = vpop.f32.mrf.mxu0
      %v575 = vadd.f32 0.0, %v574
      %v576 = vpop.f32.mrf.mxu0
      %577 = vmatprep.mubr.f32.mxu0 0.0
      %578 = vmatmul.mubr.f32.gmra.mxu0 %v374
      %v579 = vpop.f32.mrf.mxu0
      %v580 = vadd.f32 0.0, %v579
      %v581 = vpop.f32.mrf.mxu0
      %582 = vmatprep.mubr.f32.mxu0 0.0
      %583 = vmatmul.mubr.f32.gmra.mxu0 %v377
      %v584 = vpop.f32.mrf.mxu0
      %v585 = vadd.f32 0.0, %v584
      %v586 = vpop.f32.mrf.mxu0
      %587 = vmatprep.mubr.f32.mxu0 0.0
      %588 = vmatmul.mubr.f32.gmra.mxu0 %v380
      %v589 = vpop.f32.mrf.mxu0
      %v590 = vadd.f32 0.0, %v589
      %v591 = vpop.f32.mrf.mxu0
      %592 = vmatprep.mubr.f32.mxu0 0.0
      %593 = vmatmul.mubr.f32.gmra.mxu0 %v383
      %v594 = vpop.f32.mrf.mxu0
      %v595 = vadd.f32 0.0, %v594
      %v596 = vpop.f32.mrf.mxu0
      %597 = vmatprep.mubr.f32.mxu0 0.0
      %598 = vmatmul.mubr.f32.gmra.mxu0 %v386
      %v599 = vpop.f32.mrf.mxu0
      %v600 = vadd.f32 0.0, %v599
      %v601 = vpop.f32.mrf.mxu0
      %602 = vmatprep.mubr.f32.mxu0 0.0
      %603 = vmatmul.mubr.f32.gmra.mxu0 %v389
      %v604 = vpop.f32.mrf.mxu0
      %v605 = vadd.f32 0.0, %v604
      %v606 = vpop.f32.mrf.mxu0
      %607 = vmatprep.mubr.f32.mxu0 0.0
      %608 = vmatmul.mubr.f32.gmra.mxu0 %v392
      %v609 = vpop.f32.mrf.mxu0
      %v610 = vadd.f32 0.0, %v609
      %v611 = vpop.f32.mrf.mxu0
      %612 = vmatprep.mubr.f32.mxu0 0.0
      %613 = vmatmul.mubr.f32.gmra.mxu0 %v395
      %v614 = vpop.f32.mrf.mxu0
      %v615 = vadd.f32 0.0, %v614
      %v616 = vpop.f32.mrf.mxu0
      %617 = vmatprep.mubr.f32.mxu0 0.0
      %618 = vmatmul.mubr.f32.gmra.mxu0 %v398
      %v619 = vpop.f32.mrf.mxu0
      %v620 = vadd.f32 0.0, %v619
      %v621 = vpop.f32.mrf.mxu0
      %622 = vmatprep.mubr.f32.mxu0 0.0
      %623 = vmatmul.mubr.f32.gmra.mxu0 %v401
      %v624 = vpop.f32.mrf.mxu0
      %v625 = vadd.f32 0.0, %v624
      %v626 = vpop.f32.mrf.mxu0
      %627 = vmatprep.mubr.f32.mxu0 0.0
      %628 = vmatmul.mubr.f32.gmra.mxu0 %v404
      %v629 = vpop.f32.mrf.mxu0
      %v630 = vadd.f32 0.0, %v629
      %v631 = vpop.f32.mrf.mxu0
      %632 = vmatprep.mubr.f32.mxu0 0.0
      %633 = vmatmul.mubr.f32.gmra.mxu0 %v407
      %v634 = vpop.f32.mrf.mxu0
      %v635 = vadd.f32 0.0, %v634
      %v636 = vpop.f32.mrf.mxu0
      %637 = vdwg.mxu0
      %v638 = vld [vmem:[%s2] sm:$0x1]
      %v640 = vlaneseq
      %v641 = vshrl.u32 %v640, 7
      %v642 = vsub.s32 0, %v641
      %v643 = vrot.slane %v638, %v642
      %v645 = vmul.f32 %v480, %v643
      %v646 = vmul.f32 %v485, %v643
      %v647 = vmul.f32 %v490, %v643
      %v648 = vmul.f32 %v495, %v643
      %v649 = vmul.f32 %v500, %v643
      %v650 = vmul.f32 %v505, %v643
      %v651 = vmul.f32 %v510, %v643
      %v652 = vmul.f32 %v515, %v643
      %v653 = vmul.f32 %v520, %v643
      %v654 = vmul.f32 %v525, %v643
      %v655 = vmul.f32 %v530, %v643
      %v656 = vmul.f32 %v535, %v643
      %v657 = vmul.f32 %v540, %v643
      %v658 = vmul.f32 %v545, %v643
      %v659 = vmul.f32 %v550, %v643
      %v660 = vmul.f32 %v555, %v643
      %v661 = vmul.f32 %v560, %v643
      %v662 = vmul.f32 %v565, %v643
      %v663 = vmul.f32 %v570, %v643
      %v664 = vmul.f32 %v575, %v643
      %v665 = vmul.f32 %v580, %v643
      %v666 = vmul.f32 %v585, %v643
      %v667 = vmul.f32 %v590, %v643
      %v668 = vmul.f32 %v595, %v643
      %v669 = vmul.f32 %v600, %v643
      %v670 = vmul.f32 %v605, %v643
      %v671 = vmul.f32 %v610, %v643
      %v672 = vmul.f32 %v615, %v643
      %v673 = vmul.f32 %v620, %v643
      %v674 = vmul.f32 %v625, %v643
      %v675 = vmul.f32 %v630, %v643
      %v676 = vmul.f32 %v635, %v643
      %v677 = vld [vmem:[%s3] sm:$0x1]
      %v679 = vlaneseq
      %v680 = vshrl.u32 %v679, 7
      %v681 = vsub.s32 0, %v680
      %v682 = vrot.slane %v677, %v681
      %v684 = vadd.f32 %v645, %v682
      %v685 = vadd.f32 %v646, %v682
      %v686 = vadd.f32 %v647, %v682
      %v687 = vadd.f32 %v648, %v682
      %v688 = vadd.f32 %v649, %v682
      %v689 = vadd.f32 %v650, %v682
      %v690 = vadd.f32 %v651, %v682
      %v691 = vadd.f32 %v652, %v682
      %v692 = vadd.f32 %v653, %v682
      %v693 = vadd.f32 %v654, %v682
      %v694 = vadd.f32 %v655, %v682
      %v695 = vadd.f32 %v656, %v682
      %v696 = vadd.f32 %v657, %v682
      %v697 = vadd.f32 %v658, %v682
      %v698 = vadd.f32 %v659, %v682
      %v699 = vadd.f32 %v660, %v682
      %v700 = vadd.f32 %v661, %v682
      %v701 = vadd.f32 %v662, %v682
      %v702 = vadd.f32 %v663, %v682
      %v703 = vadd.f32 %v664, %v682
      %v704 = vadd.f32 %v665, %v682
      %v705 = vadd.f32 %v666, %v682
      %v706 = vadd.f32 %v667, %v682
      %v707 = vadd.f32 %v668, %v682
      %v708 = vadd.f32 %v669, %v682
      %v709 = vadd.f32 %v670, %v682
      %v710 = vadd.f32 %v671, %v682
      %v711 = vadd.f32 %v672, %v682
      %v712 = vadd.f32 %v673, %v682
      %v713 = vadd.f32 %v674, %v682
      %v714 = vadd.f32 %v675, %v682
      %v715 = vadd.f32 %v676, %v682
      %v716 = vxor.u32 %v684, 2147483648
      %v717 = vxor.u32 %v685, 2147483648
      %v718 = vxor.u32 %v686, 2147483648
      %v719 = vxor.u32 %v687, 2147483648
      %v720 = vxor.u32 %v688, 2147483648
      %v721 = vxor.u32 %v689, 2147483648
      %v722 = vxor.u32 %v690, 2147483648
      %v723 = vxor.u32 %v691, 2147483648
      %v724 = vxor.u32 %v692, 2147483648
      %v725 = vxor.u32 %v693, 2147483648
      %v726 = vxor.u32 %v694, 2147483648
      %v727 = vxor.u32 %v695, 2147483648
      %v728 = vxor.u32 %v696, 2147483648
      %v729 = vxor.u32 %v697, 2147483648
      %v730 = vxor.u32 %v698, 2147483648
      %v731 = vxor.u32 %v699, 2147483648
      %v732 = vxor.u32 %v700, 2147483648
      %v733 = vxor.u32 %v701, 2147483648
      %v734 = vxor.u32 %v702, 2147483648
      %v735 = vxor.u32 %v703, 2147483648
      %v736 = vxor.u32 %v704, 2147483648
      %v737 = vxor.u32 %v705, 2147483648
      %v738 = vxor.u32 %v706, 2147483648
      %v739 = vxor.u32 %v707, 2147483648
      %v740 = vxor.u32 %v708, 2147483648
      %v741 = vxor.u32 %v709, 2147483648
      %v742 = vxor.u32 %v710, 2147483648
      %v743 = vxor.u32 %v711, 2147483648
      %v744 = vxor.u32 %v712, 2147483648
      %v745 = vxor.u32 %v713, 2147483648
      %v746 = vxor.u32 %v714, 2147483648
      %v747 = vxor.u32 %v715, 2147483648
      %v748 = vmul.f32 %v716, 1.442695
      %v749 = vpow.pop %v748
      %v750 = vmul.f32 %v717, 1.442695
      %v751 = vpow.pop %v750
      %v752 = vmul.f32 %v718, 1.442695
      %v753 = vpow.pop %v752
      %v754 = vmul.f32 %v719, 1.442695
      %v755 = vpow.pop %v754
      %v756 = vmul.f32 %v720, 1.442695
      %v757 = vpow.pop %v756
      %v758 = vmul.f32 %v721, 1.442695
      %v759 = vpow.pop %v758
      %v760 = vmul.f32 %v722, 1.442695
      %v761 = vpow.pop %v760
      %v762 = vmul.f32 %v723, 1.442695
      %v763 = vpow.pop %v762
      %v764 = vmul.f32 %v724, 1.442695
      %v765 = vpow.pop %v764
      %v766 = vmul.f32 %v725, 1.442695
      %v767 = vpow.pop %v766
      %v768 = vmul.f32 %v726, 1.442695
      %v769 = vpow.pop %v768
      %v770 = vmul.f32 %v727, 1.442695
      %v771 = vpow.pop %v770
      %v772 = vmul.f32 %v728, 1.442695
      %v773 = vpow.pop %v772
      %v774 = vmul.f32 %v729, 1.442695
      %v775 = vpow.pop %v774
      %v776 = vmul.f32 %v730, 1.442695
      %v777 = vpow.pop %v776
      %v778 = vmul.f32 %v731, 1.442695
      %v779 = vpow.pop %v778
      %v780 = vmul.f32 %v732, 1.442695
      %v781 = vpow.pop %v780
      %v782 = vmul.f32 %v733, 1.442695
      %v783 = vpow.pop %v782
      %v784 = vmul.f32 %v734, 1.442695
      %v785 = vpow.pop %v784
      %v786 = vmul.f32 %v735, 1.442695
      %v787 = vpow.pop %v786
      %v788 = vmul.f32 %v736, 1.442695
      %v789 = vpow.pop %v788
      %v790 = vmul.f32 %v737, 1.442695
      %v791 = vpow.pop %v790
      %v792 = vmul.f32 %v738, 1.442695
      %v793 = vpow.pop %v792
      %v794 = vmul.f32 %v739, 1.442695
      %v795 = vpow.pop %v794
      %v796 = vmul.f32 %v740, 1.442695
      %v797 = vpow.pop %v796
      %v798 = vmul.f32 %v741, 1.442695
      %v799 = vpow.pop %v798
      %v800 = vmul.f32 %v742, 1.442695
      %v801 = vpow.pop %v800
      %v802 = vmul.f32 %v743, 1.442695
      %v803 = vpow.pop %v802
      %v804 = vmul.f32 %v744, 1.442695
      %v805 = vpow.pop %v804
      %v806 = vmul.f32 %v745, 1.442695
      %v807 = vpow.pop %v806
      %v808 = vmul.f32 %v746, 1.442695
      %v809 = vpow.pop %v808
      %v810 = vmul.f32 %v747, 1.442695
      %v811 = vpow.pop %v810
      %v812 = vadd.f32 %v749, 1.0
      %v813 = vadd.f32 %v751, 1.0
      %v814 = vadd.f32 %v753, 1.0
      %v815 = vadd.f32 %v755, 1.0
      %v816 = vadd.f32 %v757, 1.0
      %v817 = vadd.f32 %v759, 1.0
      %v818 = vadd.f32 %v761, 1.0
      %v819 = vadd.f32 %v763, 1.0
      %v820 = vadd.f32 %v765, 1.0
      %v821 = vadd.f32 %v767, 1.0
      %v822 = vadd.f32 %v769, 1.0
      %v823 = vadd.f32 %v771, 1.0
      %v824 = vadd.f32 %v773, 1.0
      %v825 = vadd.f32 %v775, 1.0
      %v826 = vadd.f32 %v777, 1.0
      %v827 = vadd.f32 %v779, 1.0
      %v828 = vadd.f32 %v781, 1.0
      %v829 = vadd.f32 %v783, 1.0
      %v830 = vadd.f32 %v785, 1.0
      %v831 = vadd.f32 %v787, 1.0
      %v832 = vadd.f32 %v789, 1.0
      %v833 = vadd.f32 %v791, 1.0
      %v834 = vadd.f32 %v793, 1.0
      %v835 = vadd.f32 %v795, 1.0
      %v836 = vadd.f32 %v797, 1.0
      %v837 = vadd.f32 %v799, 1.0
      %v838 = vadd.f32 %v801, 1.0
      %v839 = vadd.f32 %v803, 1.0
      %v840 = vadd.f32 %v805, 1.0
      %v841 = vadd.f32 %v807, 1.0
      %v842 = vadd.f32 %v809, 1.0
      %v843 = vadd.f32 %v811, 1.0
      %v844 = vrcp.pop %v812
      %v845 = vmul.f32 1.0, %v844
      %v846 = vrcp.pop %v813
      %v847 = vmul.f32 1.0, %v846
      %v848 = vrcp.pop %v814
      %v849 = vmul.f32 1.0, %v848
      %v850 = vrcp.pop %v815
      %v851 = vmul.f32 1.0, %v850
      %v852 = vrcp.pop %v816
      %v853 = vmul.f32 1.0, %v852
      %v854 = vrcp.pop %v817
      %v855 = vmul.f32 1.0, %v854
      %v856 = vrcp.pop %v818
      %v857 = vmul.f32 1.0, %v856
      %v858 = vrcp.pop %v819
      %v859 = vmul.f32 1.0, %v858
      %v860 = vrcp.pop %v820
      %v861 = vmul.f32 1.0, %v860
      %v862 = vrcp.pop %v821
      %v863 = vmul.f32 1.0, %v862
      %v864 = vrcp.pop %v822
      %v865 = vmul.f32 1.0, %v864
      %v866 = vrcp.pop %v823
      %v867 = vmul.f32 1.0, %v866
      %v868 = vrcp.pop %v824
      %v869 = vmul.f32 1.0, %v868
      %v870 = vrcp.pop %v825
      %v871 = vmul.f32 1.0, %v870
      %v872 = vrcp.pop %v826
      %v873 = vmul.f32 1.0, %v872
      %v874 = vrcp.pop %v827
      %v875 = vmul.f32 1.0, %v874
      %v876 = vrcp.pop %v828
      %v877 = vmul.f32 1.0, %v876
      %v878 = vrcp.pop %v829
      %v879 = vmul.f32 1.0, %v878
      %v880 = vrcp.pop %v830
      %v881 = vmul.f32 1.0, %v880
      %v882 = vrcp.pop %v831
      %v883 = vmul.f32 1.0, %v882
      %v884 = vrcp.pop %v832
      %v885 = vmul.f32 1.0, %v884
      %v886 = vrcp.pop %v833
      %v887 = vmul.f32 1.0, %v886
      %v888 = vrcp.pop %v834
      %v889 = vmul.f32 1.0, %v888
      %v890 = vrcp.pop %v835
      %v891 = vmul.f32 1.0, %v890
      %v892 = vrcp.pop %v836
      %v893 = vmul.f32 1.0, %v892
      %v894 = vrcp.pop %v837
      %v895 = vmul.f32 1.0, %v894
      %v896 = vrcp.pop %v838
      %v897 = vmul.f32 1.0, %v896
      %v898 = vrcp.pop %v839
      %v899 = vmul.f32 1.0, %v898
      %v900 = vrcp.pop %v840
      %v901 = vmul.f32 1.0, %v900
      %v902 = vrcp.pop %v841
      %v903 = vmul.f32 1.0, %v902
      %v904 = vrcp.pop %v842
      %v905 = vmul.f32 1.0, %v904
      %v906 = vrcp.pop %v843
      %v907 = vmul.f32 1.0, %v906
      %v908 = vmul.f32 %v684, %v845
      %v909 = vmul.f32 %v685, %v847
      %v910 = vmul.f32 %v686, %v849
      %v911 = vmul.f32 %v687, %v851
      %v912 = vmul.f32 %v688, %v853
      %v913 = vmul.f32 %v689, %v855
      %v914 = vmul.f32 %v690, %v857
      %v915 = vmul.f32 %v691, %v859
      %v916 = vmul.f32 %v692, %v861
      %v917 = vmul.f32 %v693, %v863
      %v918 = vmul.f32 %v694, %v865
      %v919 = vmul.f32 %v695, %v867
      %v920 = vmul.f32 %v696, %v869
      %v921 = vmul.f32 %v697, %v871
      %v922 = vmul.f32 %v698, %v873
      %v923 = vmul.f32 %v699, %v875
      %v924 = vmul.f32 %v700, %v877
      %v925 = vmul.f32 %v701, %v879
      %v926 = vmul.f32 %v702, %v881
      %v927 = vmul.f32 %v703, %v883
      %v928 = vmul.f32 %v704, %v885
      %v929 = vmul.f32 %v705, %v887
      %v930 = vmul.f32 %v706, %v889
      %v931 = vmul.f32 %v707, %v891
      %v932 = vmul.f32 %v708, %v893
      %v933 = vmul.f32 %v709, %v895
      %v934 = vmul.f32 %v710, %v897
      %v935 = vmul.f32 %v711, %v899
      %v936 = vmul.f32 %v712, %v901
      %v937 = vmul.f32 %v713, %v903
      %v938 = vmul.f32 %v714, %v905
      %v939 = vmul.f32 %v715, %v907
      %vm972 = vcmask 1040384
      %v973 = vrot.slane %v908, 7
      %v974 = vrot.slane %v909, 7
      %v975 = vsel %vm972, %v973, %v974
      %v976 = vrot.slane %v910, 7
      %v977 = vrot.slane %v911, 7
      %v978 = vsel %vm972, %v976, %v977
      %v979 = vrot.slane %v912, 7
      %v980 = vrot.slane %v913, 7
      %v981 = vsel %vm972, %v979, %v980
      %v982 = vrot.slane %v914, 7
      %v983 = vrot.slane %v915, 7
      %v984 = vsel %vm972, %v982, %v983
      %v985 = vrot.slane %v916, 7
      %v986 = vrot.slane %v917, 7
      %v987 = vsel %vm972, %v985, %v986
      %v988 = vrot.slane %v918, 7
      %v989 = vrot.slane %v919, 7
      %v990 = vsel %vm972, %v988, %v989
      %v991 = vrot.slane %v920, 7
      %v992 = vrot.slane %v921, 7
      %v993 = vsel %vm972, %v991, %v992
      %v994 = vrot.slane %v922, 7
      %v995 = vrot.slane %v923, 7
      %v996 = vsel %vm972, %v994, %v995
      %v997 = vrot.slane %v924, 7
      %v998 = vrot.slane %v925, 7
      %v999 = vsel %vm972, %v997, %v998
      %v1000 = vrot.slane %v926, 7
      %v1001 = vrot.slane %v927, 7
      %v1002 = vsel %vm972, %v1000, %v1001
      %v1003 = vrot.slane %v928, 7
      %v1004 = vrot.slane %v929, 7
      %v1005 = vsel %vm972, %v1003, %v1004
      %v1006 = vrot.slane %v930, 7
      %v1007 = vrot.slane %v931, 7
      %v1008 = vsel %vm972, %v1006, %v1007
      %v1009 = vrot.slane %v932, 7
      %v1010 = vrot.slane %v933, 7
      %v1011 = vsel %vm972, %v1009, %v1010
      %v1012 = vrot.slane %v934, 7
      %v1013 = vrot.slane %v935, 7
      %v1014 = vsel %vm972, %v1012, %v1013
      %v1015 = vrot.slane %v936, 7
      %v1016 = vrot.slane %v937, 7
      %v1017 = vsel %vm972, %v1015, %v1016
      %v1018 = vrot.slane %v938, 7
      %v1019 = vrot.slane %v939, 7
      %v1020 = vsel %vm972, %v1018, %v1019
      %v1053 = vsel %vm972, 0.0, %v973
      %v1054 = vsel %vm972, 0.0, %v976
      %v1055 = vsel %vm972, 0.0, %v979
      %v1056 = vsel %vm972, 0.0, %v982
      %v1057 = vsel %vm972, 0.0, %v985
      %v1058 = vsel %vm972, 0.0, %v988
      %v1059 = vsel %vm972, 0.0, %v991
      %v1060 = vsel %vm972, 0.0, %v994
      %v1061 = vsel %vm972, 0.0, %v997
      %v1062 = vsel %vm972, 0.0, %v1000
      %v1063 = vsel %vm972, 0.0, %v1003
      %v1064 = vsel %vm972, 0.0, %v1006
      %v1065 = vsel %vm972, 0.0, %v1009
      %v1066 = vsel %vm972, 0.0, %v1012
      %v1067 = vsel %vm972, 0.0, %v1015
      %v1068 = vsel %vm972, 0.0, %v1018
      %vm1069 = vcmask 1046528
      %v1070 = vrot.slane %v908, 1
      %v1071 = vrot.slane %v909, 1
      %v1072 = vsel %vm1069, %v1070, %v1071
      %v1073 = vrot.slane %v910, 1
      %v1074 = vrot.slane %v911, 1
      %v1075 = vsel %vm1069, %v1073, %v1074
      %v1076 = vrot.slane %v912, 1
      %v1077 = vrot.slane %v913, 1
      %v1078 = vsel %vm1069, %v1076, %v1077
      %v1079 = vrot.slane %v914, 1
      %v1080 = vrot.slane %v915, 1
      %v1081 = vsel %vm1069, %v1079, %v1080
      %v1082 = vrot.slane %v916, 1
      %v1083 = vrot.slane %v917, 1
      %v1084 = vsel %vm1069, %v1082, %v1083
      %v1085 = vrot.slane %v918, 1
      %v1086 = vrot.slane %v919, 1
      %v1087 = vsel %vm1069, %v1085, %v1086
      %v1088 = vrot.slane %v920, 1
      %v1089 = vrot.slane %v921, 1
      %v1090 = vsel %vm1069, %v1088, %v1089
      %v1091 = vrot.slane %v922, 1
      %v1092 = vrot.slane %v923, 1
      %v1093 = vsel %vm1069, %v1091, %v1092
      %v1094 = vrot.slane %v924, 1
      %v1095 = vrot.slane %v925, 1
      %v1096 = vsel %vm1069, %v1094, %v1095
      %v1097 = vrot.slane %v926, 1
      %v1098 = vrot.slane %v927, 1
      %v1099 = vsel %vm1069, %v1097, %v1098
      %v1100 = vrot.slane %v928, 1
      %v1101 = vrot.slane %v929, 1
      %v1102 = vsel %vm1069, %v1100, %v1101
      %v1103 = vrot.slane %v930, 1
      %v1104 = vrot.slane %v931, 1
      %v1105 = vsel %vm1069, %v1103, %v1104
      %v1106 = vrot.slane %v932, 1
      %v1107 = vrot.slane %v933, 1
      %v1108 = vsel %vm1069, %v1106, %v1107
      %v1109 = vrot.slane %v934, 1
      %v1110 = vrot.slane %v935, 1
      %v1111 = vsel %vm1069, %v1109, %v1110
      %v1112 = vrot.slane %v936, 1
      %v1113 = vrot.slane %v937, 1
      %v1114 = vsel %vm1069, %v1112, %v1113
      %v1115 = vrot.slane %v938, 1
      %v1116 = vrot.slane %v939, 1
      %v1117 = vsel %vm1069, %v1115, %v1116
      %v1134 = vsel %vm1069, %v1071, 0.0
      %v1135 = vsel %vm1069, %v1074, 0.0
      %v1136 = vsel %vm1069, %v1077, 0.0
      %v1137 = vsel %vm1069, %v1080, 0.0
      %v1138 = vsel %vm1069, %v1083, 0.0
      %v1139 = vsel %vm1069, %v1086, 0.0
      %v1140 = vsel %vm1069, %v1089, 0.0
      %v1141 = vsel %vm1069, %v1092, 0.0
      %v1142 = vsel %vm1069, %v1095, 0.0
      %v1143 = vsel %vm1069, %v1098, 0.0
      %v1144 = vsel %vm1069, %v1101, 0.0
      %v1145 = vsel %vm1069, %v1104, 0.0
      %v1146 = vsel %vm1069, %v1107, 0.0
      %v1147 = vsel %vm1069, %v1110, 0.0
      %v1148 = vsel %vm1069, %v1113, 0.0
      %v1149 = vsel %vm1069, %v1116, 0.0
      %1150 = vrot.lane.b32.xlu0 %v908, 3
      %v1151 = vpop.permute.xlu0 %1150
      %1152 = vrot.lane.b32.xlu0 %v909, 3
      %v1153 = vpop.permute.xlu0 %1152
      %1154 = vrot.lane.b32.xlu0 %v910, 3
      %v1155 = vpop.permute.xlu0 %1154
      %1156 = vrot.lane.b32.xlu0 %v911, 3
      %v1157 = vpop.permute.xlu0 %1156
      %1158 = vrot.lane.b32.xlu0 %v912, 3
      %v1159 = vpop.permute.xlu0 %1158
      %1160 = vrot.lane.b32.xlu0 %v913, 3
      %v1161 = vpop.permute.xlu0 %1160
      %1162 = vrot.lane.b32.xlu0 %v914, 3
      %v1163 = vpop.permute.xlu0 %1162
      %1164 = vrot.lane.b32.xlu0 %v915, 3
      %v1165 = vpop.permute.xlu0 %1164
      %1166 = vrot.lane.b32.xlu0 %v916, 3
      %v1167 = vpop.permute.xlu0 %1166
      %1168 = vrot.lane.b32.xlu0 %v917, 3
      %v1169 = vpop.permute.xlu0 %1168
      %1170 = vrot.lane.b32.xlu0 %v918, 3
      %v1171 = vpop.permute.xlu0 %1170
      %1172 = vrot.lane.b32.xlu0 %v919, 3
      %v1173 = vpop.permute.xlu0 %1172
      %1174 = vrot.lane.b32.xlu0 %v920, 3
      %v1175 = vpop.permute.xlu0 %1174
      %1176 = vrot.lane.b32.xlu0 %v921, 3
      %v1177 = vpop.permute.xlu0 %1176
      %1178 = vrot.lane.b32.xlu0 %v922, 3
      %v1179 = vpop.permute.xlu0 %1178
      %1180 = vrot.lane.b32.xlu0 %v923, 3
      %v1181 = vpop.permute.xlu0 %1180
      %1182 = vrot.lane.b32.xlu0 %v924, 3
      %v1183 = vpop.permute.xlu0 %1182
      %1184 = vrot.lane.b32.xlu0 %v925, 3
      %v1185 = vpop.permute.xlu0 %1184
      %1186 = vrot.lane.b32.xlu0 %v926, 3
      %v1187 = vpop.permute.xlu0 %1186
      %1188 = vrot.lane.b32.xlu0 %v927, 3
      %v1189 = vpop.permute.xlu0 %1188
      %1190 = vrot.lane.b32.xlu0 %v928, 3
      %v1191 = vpop.permute.xlu0 %1190
      %1192 = vrot.lane.b32.xlu0 %v929, 3
      %v1193 = vpop.permute.xlu0 %1192
      %1194 = vrot.lane.b32.xlu0 %v930, 3
      %v1195 = vpop.permute.xlu0 %1194
      %1196 = vrot.lane.b32.xlu0 %v931, 3
      %v1197 = vpop.permute.xlu0 %1196
      %1198 = vrot.lane.b32.xlu0 %v932, 3
      %v1199 = vpop.permute.xlu0 %1198
      %1200 = vrot.lane.b32.xlu0 %v933, 3
      %v1201 = vpop.permute.xlu0 %1200
      %1202 = vrot.lane.b32.xlu0 %v934, 3
      %v1203 = vpop.permute.xlu0 %1202
      %1204 = vrot.lane.b32.xlu0 %v935, 3
      %v1205 = vpop.permute.xlu0 %1204
      %1206 = vrot.lane.b32.xlu0 %v936, 3
      %v1207 = vpop.permute.xlu0 %1206
      %1208 = vrot.lane.b32.xlu0 %v937, 3
      %v1209 = vpop.permute.xlu0 %1208
      %1210 = vrot.lane.b32.xlu0 %v938, 3
      %v1211 = vpop.permute.xlu0 %1210
      %1212 = vrot.lane.b32.xlu0 %v939, 3
      %v1213 = vpop.permute.xlu0 %1212
      %1262 = vrot.lane.b32.xlu0 %v1072, 6
      %v1263 = vpop.permute.xlu0 %1262
      %1264 = vrot.lane.b32.xlu0 %v1134, 6
      %v1265 = vpop.permute.xlu0 %1264
      %1266 = vrot.lane.b32.xlu0 %v1075, 6
      %v1267 = vpop.permute.xlu0 %1266
      %1268 = vrot.lane.b32.xlu0 %v1135, 6
      %v1269 = vpop.permute.xlu0 %1268
      %1270 = vrot.lane.b32.xlu0 %v1078, 6
      %v1271 = vpop.permute.xlu0 %1270
      %1272 = vrot.lane.b32.xlu0 %v1136, 6
      %v1273 = vpop.permute.xlu0 %1272
      %1274 = vrot.lane.b32.xlu0 %v1081, 6
      %v1275 = vpop.permute.xlu0 %1274
      %1276 = vrot.lane.b32.xlu0 %v1137, 6
      %v1277 = vpop.permute.xlu0 %1276
      %1278 = vrot.lane.b32.xlu0 %v1084, 6
      %v1279 = vpop.permute.xlu0 %1278
      %1280 = vrot.lane.b32.xlu0 %v1138, 6
      %v1281 = vpop.permute.xlu0 %1280
      %1282 = vrot.lane.b32.xlu0 %v1087, 6
      %v1283 = vpop.permute.xlu0 %1282
      %1284 = vrot.lane.b32.xlu0 %v1139, 6
      %v1285 = vpop.permute.xlu0 %1284
      %1286 = vrot.lane.b32.xlu0 %v1090, 6
      %v1287 = vpop.permute.xlu0 %1286
      %1288 = vrot.lane.b32.xlu0 %v1140, 6
      %v1289 = vpop.permute.xlu0 %1288
      %1290 = vrot.lane.b32.xlu0 %v1093, 6
      %v1291 = vpop.permute.xlu0 %1290
      %1292 = vrot.lane.b32.xlu0 %v1141, 6
      %v1293 = vpop.permute.xlu0 %1292
      %1294 = vrot.lane.b32.xlu0 %v1096, 6
      %v1295 = vpop.permute.xlu0 %1294
      %1296 = vrot.lane.b32.xlu0 %v1142, 6
      %v1297 = vpop.permute.xlu0 %1296
      %1298 = vrot.lane.b32.xlu0 %v1099, 6
      %v1299 = vpop.permute.xlu0 %1298
      %1300 = vrot.lane.b32.xlu0 %v1143, 6
      %v1301 = vpop.permute.xlu0 %1300
      %1302 = vrot.lane.b32.xlu0 %v1102, 6
      %v1303 = vpop.permute.xlu0 %1302
      %1304 = vrot.lane.b32.xlu0 %v1144, 6
      %v1305 = vpop.permute.xlu0 %1304
      %1306 = vrot.lane.b32.xlu0 %v1105, 6
      %v1307 = vpop.permute.xlu0 %1306
      %1308 = vrot.lane.b32.xlu0 %v1145, 6
      %v1309 = vpop.permute.xlu0 %1308
      %1310 = vrot.lane.b32.xlu0 %v1108, 6
      %v1311 = vpop.permute.xlu0 %1310
      %1312 = vrot.lane.b32.xlu0 %v1146, 6
      %v1313 = vpop.permute.xlu0 %1312
      %1314 = vrot.lane.b32.xlu0 %v1111, 6
      %v1315 = vpop.permute.xlu0 %1314
      %1316 = vrot.lane.b32.xlu0 %v1147, 6
      %v1317 = vpop.permute.xlu0 %1316
      %1318 = vrot.lane.b32.xlu0 %v1114, 6
      %v1319 = vpop.permute.xlu0 %1318
      %1320 = vrot.lane.b32.xlu0 %v1148, 6
      %v1321 = vpop.permute.xlu0 %1320
      %1322 = vrot.lane.b32.xlu0 %v1117, 6
      %v1323 = vpop.permute.xlu0 %1322
      %1324 = vrot.lane.b32.xlu0 %v1149, 6
      %v1325 = vpop.permute.xlu0 %1324
      %v1358 = vsel %vm312, %v1053, %v1151
      %v1359 = vsel %vm312, %v975, %v1153
      %v1360 = vsel %vm312, %v1054, %v1155
      %v1361 = vsel %vm312, %v978, %v1157
      %v1362 = vsel %vm312, %v1055, %v1159
      %v1363 = vsel %vm312, %v981, %v1161
      %v1364 = vsel %vm312, %v1056, %v1163
      %v1365 = vsel %vm312, %v984, %v1165
      %v1366 = vsel %vm312, %v1057, %v1167
      %v1367 = vsel %vm312, %v987, %v1169
      %v1368 = vsel %vm312, %v1058, %v1171
      %v1369 = vsel %vm312, %v990, %v1173
      %v1370 = vsel %vm312, %v1059, %v1175
      %v1371 = vsel %vm312, %v993, %v1177
      %v1372 = vsel %vm312, %v1060, %v1179
      %v1373 = vsel %vm312, %v996, %v1181
      %v1374 = vsel %vm312, %v1061, %v1183
      %v1375 = vsel %vm312, %v999, %v1185
      %v1376 = vsel %vm312, %v1062, %v1187
      %v1377 = vsel %vm312, %v1002, %v1189
      %v1378 = vsel %vm312, %v1063, %v1191
      %v1379 = vsel %vm312, %v1005, %v1193
      %v1380 = vsel %vm312, %v1064, %v1195
      %v1381 = vsel %vm312, %v1008, %v1197
      %v1382 = vsel %vm312, %v1065, %v1199
      %v1383 = vsel %vm312, %v1011, %v1201
      %v1384 = vsel %vm312, %v1066, %v1203
      %v1385 = vsel %vm312, %v1014, %v1205
      %v1386 = vsel %vm312, %v1067, %v1207
      %v1387 = vsel %vm312, %v1017, %v1209
      %v1388 = vsel %vm312, %v1068, %v1211
      %v1389 = vsel %vm312, %v1020, %v1213
      %vm1390 = vcmask 48128
      %v1391 = vsel %vm1390, %v1358, %v1263
      %v1392 = vsel %vm1390, %v1359, %v1265
      %v1393 = vsel %vm1390, %v1360, %v1267
      %v1394 = vsel %vm1390, %v1361, %v1269
      %v1395 = vsel %vm1390, %v1362, %v1271
      %v1396 = vsel %vm1390, %v1363, %v1273
      %v1397 = vsel %vm1390, %v1364, %v1275
      %v1398 = vsel %vm1390, %v1365, %v1277
      %v1399 = vsel %vm1390, %v1366, %v1279
      %v1400 = vsel %vm1390, %v1367, %v1281
      %v1401 = vsel %vm1390, %v1368, %v1283
      %v1402 = vsel %vm1390, %v1369, %v1285
      %v1403 = vsel %vm1390, %v1370, %v1287
      %v1404 = vsel %vm1390, %v1371, %v1289
      %v1405 = vsel %vm1390, %v1372, %v1291
      %v1406 = vsel %vm1390, %v1373, %v1293
      %v1407 = vsel %vm1390, %v1374, %v1295
      %v1408 = vsel %vm1390, %v1375, %v1297
      %v1409 = vsel %vm1390, %v1376, %v1299
      %v1410 = vsel %vm1390, %v1377, %v1301
      %v1411 = vsel %vm1390, %v1378, %v1303
      %v1412 = vsel %vm1390, %v1379, %v1305
      %v1413 = vsel %vm1390, %v1380, %v1307
      %v1414 = vsel %vm1390, %v1381, %v1309
      %v1415 = vsel %vm1390, %v1382, %v1311
      %v1416 = vsel %vm1390, %v1383, %v1313
      %v1417 = vsel %vm1390, %v1384, %v1315
      %v1418 = vsel %vm1390, %v1385, %v1317
      %v1419 = vsel %vm1390, %v1386, %v1319
      %v1420 = vsel %vm1390, %v1387, %v1321
      %v1421 = vsel %vm1390, %v1388, %v1323
      %v1422 = vsel %vm1390, %v1389, %v1325
      %s1423 = scalar_lea.vmem %s4, 16
      %v1424 = vld [vmem:[%s1423] sm:$0xff]
      %v1425 = vld [vmem:[%s1423 + $0x8] sm:$0x1]
      %v1426 = vld [vmem:[%s4] sm:$0xff]
      %v1427 = vld [vmem:[%s4 + $0x8] sm:$0x1]
      %vm1428 = vcmask 72704
      %v1430 = vsel %vm1428, 0.0, 0
      %v1433 = vsel %vm1428, %v1391, 0
      %v1436 = vsel %vm1428, %v1392, 0
      %v1439 = vsel %vm1428, %v1393, 0
      %v1442 = vsel %vm1428, %v1394, 0
      %v1445 = vsel %vm1428, %v1395, 0
      %v1448 = vsel %vm1428, %v1396, 0
      %v1451 = vsel %vm1428, %v1397, 0
      %v1454 = vsel %vm1428, %v1398, 0
      %v1457 = vsel %vm1428, %v1399, 0
      %v1460 = vsel %vm1428, %v1400, 0
      %v1463 = vsel %vm1428, %v1401, 0
      %v1466 = vsel %vm1428, %v1402, 0
      %v1469 = vsel %vm1428, %v1403, 0
      %v1472 = vsel %vm1428, %v1404, 0
      %v1475 = vsel %vm1428, %v1405, 0
      %v1478 = vsel %vm1428, %v1406, 0
      %v1481 = vsel %vm1428, %v1407, 0
      %v1484 = vsel %vm1428, %v1408, 0
      %v1487 = vsel %vm1428, %v1409, 0
      %v1490 = vsel %vm1428, %v1410, 0
      %v1493 = vsel %vm1428, %v1411, 0
      %v1496 = vsel %vm1428, %v1412, 0
      %v1499 = vsel %vm1428, %v1413, 0
      %v1502 = vsel %vm1428, %v1414, 0
      %v1505 = vsel %vm1428, %v1415, 0
      %v1508 = vsel %vm1428, %v1416, 0
      %v1511 = vsel %vm1428, %v1417, 0
      %v1514 = vsel %vm1428, %v1418, 0
      %v1517 = vsel %vm1428, %v1419, 0
      %v1520 = vsel %vm1428, %v1420, 0
      %v1523 = vsel %vm972, %v1427, 0
      %1525 = vmatprep.subr.mxu0 0.0
      %1526 = vmatpush1.msra.mxu0 0.0
      %1527 = vmatprep.subr.mxu0 0.0
      %1528 = vmatpush1.msra.mxu0 0.0
      %1529 = vmatprep.subr.mxu0 0.0
      %1530 = vmatpush1.msra.mxu0 0.0
      %1531 = vmatprep.subr.mxu0 0.0
      %1532 = vmatpush1.msra.mxu0 0.0
      %1533 = vmatprep.subr.mxu0 0.0
      %1534 = vmatpush1.msra.mxu0 0.0
      %1535 = vmatprep.subr.mxu0 0.0
      %1536 = vmatpush1.msra.mxu0 0.0
      %1537 = vmatprep.subr.mxu0 0.0
      %1538 = vmatpush1.msra.mxu0 0.0
      %1539 = vmatprep.subr.mxu0 0.0
      %1540 = vmatpush1.msra.mxu0 0.0
      %1541 = vmatprep.subr.mxu0 0.0
      %1542 = vmatpush1.msra.mxu0 0.0
      %1543 = vmatprep.subr.mxu0 0.0
      %1544 = vmatpush1.msra.mxu0 0.0
      %1545 = vmatprep.subr.mxu0 0.0
      %1546 = vmatpush1.msra.mxu0 0.0
      %1547 = vmatprep.subr.mxu0 0.0
      %1548 = vmatpush1.msra.mxu0 0.0
      %1549 = vmatprep.subr.mxu0 0.0
      %1550 = vmatpush1.msra.mxu0 0.0
      %1551 = vmatprep.subr.mxu0 0.0
      %1552 = vmatpush1.msra.mxu0 0.0
      %1553 = vmatprep.subr.mxu0 0.0
      %1554 = vmatpush1.msra.mxu0 %v1523
      %1555 = vmatprep.subr.mxu0 0.0
      %1556 = vmatpush1.msra.mxu0 %v1426
      %1557 = vmatprep.subr.mxu0 0.0
      %1558 = vmatpush2.msra.mxu0 0.0
      %1559 = vmatprep.subr.mxu0 0.0
      %1560 = vmatpush2.msra.mxu0 0.0
      %1561 = vmatprep.subr.mxu0 0.0
      %1562 = vmatpush2.msra.mxu0 0.0
      %1563 = vmatprep.subr.mxu0 0.0
      %1564 = vmatpush2.msra.mxu0 0.0
      %1565 = vmatprep.subr.mxu0 0.0
      %1566 = vmatpush2.msra.mxu0 0.0
      %1567 = vmatprep.subr.mxu0 0.0
      %1568 = vmatpush2.msra.mxu0 0.0
      %1569 = vmatprep.subr.mxu0 0.0
      %1570 = vmatpush2.msra.mxu0 0.0
      %1571 = vmatprep.subr.mxu0 0.0
      %1572 = vmatpush2.msra.mxu0 0.0
      %1573 = vmatprep.subr.mxu0 0.0
      %1574 = vmatpush2.msra.mxu0 0.0
      %1575 = vmatprep.subr.mxu0 0.0
      %1576 = vmatpush2.msra.mxu0 0.0
      %1577 = vmatprep.subr.mxu0 0.0
      %1578 = vmatpush2.msra.mxu0 0.0
      %1579 = vmatprep.subr.mxu0 0.0
      %1580 = vmatpush2.msra.mxu0 0.0
      %1581 = vmatprep.subr.mxu0 0.0
      %1582 = vmatpush2.msra.mxu0 0.0
      %1583 = vmatprep.subr.mxu0 0.0
      %1584 = vmatpush2.msra.mxu0 0.0
      %1585 = vmatprep.subr.mxu0 0.0
      %1586 = vmatpush2.msra.mxu0 0.0
      %1587 = vmatprep.subr.mxu0 0.0
      %1588 = vmatpush2.msra.mxu0 0.0
      %1589 = vmatprep.mubr.f32.mxu0 0.0
      %1590 = vmatmul.mubr.f32.gmra.mxu0 %v1430
      %v1591 = vpop.f32.mrf.mxu0
      %v1592 = vadd.f32 0.0, %v1591
      %v1593 = vpop.f32.mrf.mxu0
      %1594 = vmatprep.mubr.f32.mxu0 0.0
      %1595 = vmatmul.mubr.f32.gmra.mxu0 %v1430
      %v1596 = vpop.f32.mrf.mxu0
      %v1597 = vadd.f32 0.0, %v1596
      %v1598 = vpop.f32.mrf.mxu0
      %1599 = vmatprep.mubr.f32.mxu0 0.0
      %1600 = vmatmul.mubr.f32.gmra.mxu0 %v1433
      %v1601 = vpop.f32.mrf.mxu0
      %v1602 = vadd.f32 0.0, %v1601
      %v1603 = vpop.f32.mrf.mxu0
      %1604 = vmatprep.mubr.f32.mxu0 0.0
      %1605 = vmatmul.mubr.f32.gmra.mxu0 %v1436
      %v1606 = vpop.f32.mrf.mxu0
      %v1607 = vadd.f32 0.0, %v1606
      %v1608 = vpop.f32.mrf.mxu0
      %1609 = vmatprep.mubr.f32.mxu0 0.0
      %1610 = vmatmul.mubr.f32.gmra.mxu0 %v1439
      %v1611 = vpop.f32.mrf.mxu0
      %v1612 = vadd.f32 0.0, %v1611
      %v1613 = vpop.f32.mrf.mxu0
      %1614 = vmatprep.mubr.f32.mxu0 0.0
      %1615 = vmatmul.mubr.f32.gmra.mxu0 %v1442
      %v1616 = vpop.f32.mrf.mxu0
      %v1617 = vadd.f32 0.0, %v1616
      %v1618 = vpop.f32.mrf.mxu0
      %1619 = vmatprep.mubr.f32.mxu0 0.0
      %1620 = vmatmul.mubr.f32.gmra.mxu0 %v1445
      %v1621 = vpop.f32.mrf.mxu0
      %v1622 = vadd.f32 0.0, %v1621
      %v1623 = vpop.f32.mrf.mxu0
      %1624 = vmatprep.mubr.f32.mxu0 0.0
      %1625 = vmatmul.mubr.f32.gmra.mxu0 %v1448
      %v1626 = vpop.f32.mrf.mxu0
      %v1627 = vadd.f32 0.0, %v1626
      %v1628 = vpop.f32.mrf.mxu0
      %1629 = vmatprep.mubr.f32.mxu0 0.0
      %1630 = vmatmul.mubr.f32.gmra.mxu0 %v1451
      %v1631 = vpop.f32.mrf.mxu0
      %v1632 = vadd.f32 0.0, %v1631
      %v1633 = vpop.f32.mrf.mxu0
      %1634 = vmatprep.mubr.f32.mxu0 0.0
      %1635 = vmatmul.mubr.f32.gmra.mxu0 %v1454
      %v1636 = vpop.f32.mrf.mxu0
      %v1637 = vadd.f32 0.0, %v1636
      %v1638 = vpop.f32.mrf.mxu0
      %1639 = vmatprep.mubr.f32.mxu0 0.0
      %1640 = vmatmul.mubr.f32.gmra.mxu0 %v1457
      %v1641 = vpop.f32.mrf.mxu0
      %v1642 = vadd.f32 0.0, %v1641
      %v1643 = vpop.f32.mrf.mxu0
      %1644 = vmatprep.mubr.f32.mxu0 0.0
      %1645 = vmatmul.mubr.f32.gmra.mxu0 %v1460
      %v1646 = vpop.f32.mrf.mxu0
      %v1647 = vadd.f32 0.0, %v1646
      %v1648 = vpop.f32.mrf.mxu0
      %1649 = vmatprep.mubr.f32.mxu0 0.0
      %1650 = vmatmul.mubr.f32.gmra.mxu0 %v1463
      %v1651 = vpop.f32.mrf.mxu0
      %v1652 = vadd.f32 0.0, %v1651
      %v1653 = vpop.f32.mrf.mxu0
      %1654 = vmatprep.mubr.f32.mxu0 0.0
      %1655 = vmatmul.mubr.f32.gmra.mxu0 %v1466
      %v1656 = vpop.f32.mrf.mxu0
      %v1657 = vadd.f32 0.0, %v1656
      %v1658 = vpop.f32.mrf.mxu0
      %1659 = vmatprep.mubr.f32.mxu0 0.0
      %1660 = vmatmul.mubr.f32.gmra.mxu0 %v1469
      %v1661 = vpop.f32.mrf.mxu0
      %v1662 = vadd.f32 0.0, %v1661
      %v1663 = vpop.f32.mrf.mxu0
      %1664 = vmatprep.mubr.f32.mxu0 0.0
      %1665 = vmatmul.mubr.f32.gmra.mxu0 %v1472
      %v1666 = vpop.f32.mrf.mxu0
      %v1667 = vadd.f32 0.0, %v1666
      %v1668 = vpop.f32.mrf.mxu0
      %1669 = vmatprep.mubr.f32.mxu0 0.0
      %1670 = vmatmul.mubr.f32.gmra.mxu0 %v1475
      %v1671 = vpop.f32.mrf.mxu0
      %v1672 = vadd.f32 0.0, %v1671
      %v1673 = vpop.f32.mrf.mxu0
      %1674 = vmatprep.mubr.f32.mxu0 0.0
      %1675 = vmatmul.mubr.f32.gmra.mxu0 %v1478
      %v1676 = vpop.f32.mrf.mxu0
      %v1677 = vadd.f32 0.0, %v1676
      %v1678 = vpop.f32.mrf.mxu0
      %1679 = vmatprep.mubr.f32.mxu0 0.0
      %1680 = vmatmul.mubr.f32.gmra.mxu0 %v1481
      %v1681 = vpop.f32.mrf.mxu0
      %v1682 = vadd.f32 0.0, %v1681
      %v1683 = vpop.f32.mrf.mxu0
      %1684 = vmatprep.mubr.f32.mxu0 0.0
      %1685 = vmatmul.mubr.f32.gmra.mxu0 %v1484
      %v1686 = vpop.f32.mrf.mxu0
      %v1687 = vadd.f32 0.0, %v1686
      %v1688 = vpop.f32.mrf.mxu0
      %1689 = vmatprep.mubr.f32.mxu0 0.0
      %1690 = vmatmul.mubr.f32.gmra.mxu0 %v1487
      %v1691 = vpop.f32.mrf.mxu0
      %v1692 = vadd.f32 0.0, %v1691
      %v1693 = vpop.f32.mrf.mxu0
      %1694 = vmatprep.mubr.f32.mxu0 0.0
      %1695 = vmatmul.mubr.f32.gmra.mxu0 %v1490
      %v1696 = vpop.f32.mrf.mxu0
      %v1697 = vadd.f32 0.0, %v1696
      %v1698 = vpop.f32.mrf.mxu0
      %1699 = vmatprep.mubr.f32.mxu0 0.0
      %1700 = vmatmul.mubr.f32.gmra.mxu0 %v1493
      %v1701 = vpop.f32.mrf.mxu0
      %v1702 = vadd.f32 0.0, %v1701
      %v1703 = vpop.f32.mrf.mxu0
      %1704 = vmatprep.mubr.f32.mxu0 0.0
      %1705 = vmatmul.mubr.f32.gmra.mxu0 %v1496
      %v1706 = vpop.f32.mrf.mxu0
      %v1707 = vadd.f32 0.0, %v1706
      %v1708 = vpop.f32.mrf.mxu0
      %1709 = vmatprep.mubr.f32.mxu0 0.0
      %1710 = vmatmul.mubr.f32.gmra.mxu0 %v1499
      %v1711 = vpop.f32.mrf.mxu0
      %v1712 = vadd.f32 0.0, %v1711
      %v1713 = vpop.f32.mrf.mxu0
      %1714 = vmatprep.mubr.f32.mxu0 0.0
      %1715 = vmatmul.mubr.f32.gmra.mxu0 %v1502
      %v1716 = vpop.f32.mrf.mxu0
      %v1717 = vadd.f32 0.0, %v1716
      %v1718 = vpop.f32.mrf.mxu0
      %1719 = vmatprep.mubr.f32.mxu0 0.0
      %1720 = vmatmul.mubr.f32.gmra.mxu0 %v1505
      %v1721 = vpop.f32.mrf.mxu0
      %v1722 = vadd.f32 0.0, %v1721
      %v1723 = vpop.f32.mrf.mxu0
      %1724 = vmatprep.mubr.f32.mxu0 0.0
      %1725 = vmatmul.mubr.f32.gmra.mxu0 %v1508
      %v1726 = vpop.f32.mrf.mxu0
      %v1727 = vadd.f32 0.0, %v1726
      %v1728 = vpop.f32.mrf.mxu0
      %1729 = vmatprep.mubr.f32.mxu0 0.0
      %1730 = vmatmul.mubr.f32.gmra.mxu0 %v1511
      %v1731 = vpop.f32.mrf.mxu0
      %v1732 = vadd.f32 0.0, %v1731
      %v1733 = vpop.f32.mrf.mxu0
      %1734 = vmatprep.mubr.f32.mxu0 0.0
      %1735 = vmatmul.mubr.f32.gmra.mxu0 %v1514
      %v1736 = vpop.f32.mrf.mxu0
      %v1737 = vadd.f32 0.0, %v1736
      %v1738 = vpop.f32.mrf.mxu0
      %1739 = vmatprep.mubr.f32.mxu0 0.0
      %1740 = vmatmul.mubr.f32.gmra.mxu0 %v1517
      %v1741 = vpop.f32.mrf.mxu0
      %v1742 = vadd.f32 0.0, %v1741
      %v1743 = vpop.f32.mrf.mxu0
      %1744 = vmatprep.mubr.f32.mxu0 0.0
      %1745 = vmatmul.mubr.f32.gmra.mxu0 %v1520
      %v1746 = vpop.f32.mrf.mxu0
      %v1747 = vadd.f32 0.0, %v1746
      %v1748 = vpop.f32.mrf.mxu0
      %1749 = vdwg.mxu0
      %v1751 = vsel %vm1428, %v1421, 0
      %v1754 = vsel %vm1428, %v1422, 0
      %v1757 = vsel %vm972, %v1425, 0
      %1759 = vmatprep.subr.mxu0 0.0
      %1760 = vmatpush1.msra.mxu0 0.0
      %1761 = vmatprep.subr.mxu0 0.0
      %1762 = vmatpush1.msra.mxu0 0.0
      %1763 = vmatprep.subr.mxu0 0.0
      %1764 = vmatpush1.msra.mxu0 0.0
      %1765 = vmatprep.subr.mxu0 0.0
      %1766 = vmatpush1.msra.mxu0 0.0
      %1767 = vmatprep.subr.mxu0 0.0
      %1768 = vmatpush1.msra.mxu0 0.0
      %1769 = vmatprep.subr.mxu0 0.0
      %1770 = vmatpush1.msra.mxu0 0.0
      %1771 = vmatprep.subr.mxu0 0.0
      %1772 = vmatpush1.msra.mxu0 0.0
      %1773 = vmatprep.subr.mxu0 0.0
      %1774 = vmatpush1.msra.mxu0 0.0
      %1775 = vmatprep.subr.mxu0 0.0
      %1776 = vmatpush1.msra.mxu0 0.0
      %1777 = vmatprep.subr.mxu0 0.0
      %1778 = vmatpush1.msra.mxu0 0.0
      %1779 = vmatprep.subr.mxu0 0.0
      %1780 = vmatpush1.msra.mxu0 0.0
      %1781 = vmatprep.subr.mxu0 0.0
      %1782 = vmatpush1.msra.mxu0 0.0
      %1783 = vmatprep.subr.mxu0 0.0
      %1784 = vmatpush1.msra.mxu0 0.0
      %1785 = vmatprep.subr.mxu0 0.0
      %1786 = vmatpush1.msra.mxu0 0.0
      %1787 = vmatprep.subr.mxu0 0.0
      %1788 = vmatpush1.msra.mxu0 %v1757
      %1789 = vmatprep.subr.mxu0 0.0
      %1790 = vmatpush1.msra.mxu0 %v1424
      %1791 = vmatprep.subr.mxu0 0.0
      %1792 = vmatpush2.msra.mxu0 0.0
      %1793 = vmatprep.subr.mxu0 0.0
      %1794 = vmatpush2.msra.mxu0 0.0
      %1795 = vmatprep.subr.mxu0 0.0
      %1796 = vmatpush2.msra.mxu0 0.0
      %1797 = vmatprep.subr.mxu0 0.0
      %1798 = vmatpush2.msra.mxu0 0.0
      %1799 = vmatprep.subr.mxu0 0.0
      %1800 = vmatpush2.msra.mxu0 0.0
      %1801 = vmatprep.subr.mxu0 0.0
      %1802 = vmatpush2.msra.mxu0 0.0
      %1803 = vmatprep.subr.mxu0 0.0
      %1804 = vmatpush2.msra.mxu0 0.0
      %1805 = vmatprep.subr.mxu0 0.0
      %1806 = vmatpush2.msra.mxu0 0.0
      %1807 = vmatprep.subr.mxu0 0.0
      %1808 = vmatpush2.msra.mxu0 0.0
      %1809 = vmatprep.subr.mxu0 0.0
      %1810 = vmatpush2.msra.mxu0 0.0
      %1811 = vmatprep.subr.mxu0 0.0
      %1812 = vmatpush2.msra.mxu0 0.0
      %1813 = vmatprep.subr.mxu0 0.0
      %1814 = vmatpush2.msra.mxu0 0.0
      %1815 = vmatprep.subr.mxu0 0.0
      %1816 = vmatpush2.msra.mxu0 0.0
      %1817 = vmatprep.subr.mxu0 0.0
      %1818 = vmatpush2.msra.mxu0 0.0
      %1819 = vmatprep.subr.mxu0 0.0
      %1820 = vmatpush2.msra.mxu0 0.0
      %1821 = vmatprep.subr.mxu0 0.0
      %1822 = vmatpush2.msra.mxu0 0.0
      %1823 = vmatprep.mubr.f32.mxu0 0.0
      %1824 = vmatmul.mubr.f32.gmra.mxu0 %v1433
      %v1825 = vpop.f32.mrf.mxu0
      %v1826 = vadd.f32 %v1592, %v1825
      %v1827 = vpop.f32.mrf.mxu0
      %1828 = vmatprep.mubr.f32.mxu0 0.0
      %1829 = vmatmul.mubr.f32.gmra.mxu0 %v1436
      %v1830 = vpop.f32.mrf.mxu0
      %v1831 = vadd.f32 %v1597, %v1830
      %v1832 = vpop.f32.mrf.mxu0
      %1833 = vmatprep.mubr.f32.mxu0 0.0
      %1834 = vmatmul.mubr.f32.gmra.mxu0 %v1439
      %v1835 = vpop.f32.mrf.mxu0
      %v1836 = vadd.f32 %v1602, %v1835
      %v1837 = vpop.f32.mrf.mxu0
      %1838 = vmatprep.mubr.f32.mxu0 0.0
      %1839 = vmatmul.mubr.f32.gmra.mxu0 %v1442
      %v1840 = vpop.f32.mrf.mxu0
      %v1841 = vadd.f32 %v1607, %v1840
      %v1842 = vpop.f32.mrf.mxu0
      %1843 = vmatprep.mubr.f32.mxu0 0.0
      %1844 = vmatmul.mubr.f32.gmra.mxu0 %v1445
      %v1845 = vpop.f32.mrf.mxu0
      %v1846 = vadd.f32 %v1612, %v1845
      %v1847 = vpop.f32.mrf.mxu0
      %1848 = vmatprep.mubr.f32.mxu0 0.0
      %1849 = vmatmul.mubr.f32.gmra.mxu0 %v1448
      %v1850 = vpop.f32.mrf.mxu0
      %v1851 = vadd.f32 %v1617, %v1850
      %v1852 = vpop.f32.mrf.mxu0
      %1853 = vmatprep.mubr.f32.mxu0 0.0
      %1854 = vmatmul.mubr.f32.gmra.mxu0 %v1451
      %v1855 = vpop.f32.mrf.mxu0
      %v1856 = vadd.f32 %v1622, %v1855
      %v1857 = vpop.f32.mrf.mxu0
      %1858 = vmatprep.mubr.f32.mxu0 0.0
      %1859 = vmatmul.mubr.f32.gmra.mxu0 %v1454
      %v1860 = vpop.f32.mrf.mxu0
      %v1861 = vadd.f32 %v1627, %v1860
      %v1862 = vpop.f32.mrf.mxu0
      %1863 = vmatprep.mubr.f32.mxu0 0.0
      %1864 = vmatmul.mubr.f32.gmra.mxu0 %v1457
      %v1865 = vpop.f32.mrf.mxu0
      %v1866 = vadd.f32 %v1632, %v1865
      %v1867 = vpop.f32.mrf.mxu0
      %1868 = vmatprep.mubr.f32.mxu0 0.0
      %1869 = vmatmul.mubr.f32.gmra.mxu0 %v1460
      %v1870 = vpop.f32.mrf.mxu0
      %v1871 = vadd.f32 %v1637, %v1870
      %v1872 = vpop.f32.mrf.mxu0
      %1873 = vmatprep.mubr.f32.mxu0 0.0
      %1874 = vmatmul.mubr.f32.gmra.mxu0 %v1463
      %v1875 = vpop.f32.mrf.mxu0
      %v1876 = vadd.f32 %v1642, %v1875
      %v1877 = vpop.f32.mrf.mxu0
      %1878 = vmatprep.mubr.f32.mxu0 0.0
      %1879 = vmatmul.mubr.f32.gmra.mxu0 %v1466
      %v1880 = vpop.f32.mrf.mxu0
      %v1881 = vadd.f32 %v1647, %v1880
      %v1882 = vpop.f32.mrf.mxu0
      %1883 = vmatprep.mubr.f32.mxu0 0.0
      %1884 = vmatmul.mubr.f32.gmra.mxu0 %v1469
      %v1885 = vpop.f32.mrf.mxu0
      %v1886 = vadd.f32 %v1652, %v1885
      %v1887 = vpop.f32.mrf.mxu0
      %1888 = vmatprep.mubr.f32.mxu0 0.0
      %1889 = vmatmul.mubr.f32.gmra.mxu0 %v1472
      %v1890 = vpop.f32.mrf.mxu0
      %v1891 = vadd.f32 %v1657, %v1890
      %v1892 = vpop.f32.mrf.mxu0
      %1893 = vmatprep.mubr.f32.mxu0 0.0
      %1894 = vmatmul.mubr.f32.gmra.mxu0 %v1475
      %v1895 = vpop.f32.mrf.mxu0
      %v1896 = vadd.f32 %v1662, %v1895
      %v1897 = vpop.f32.mrf.mxu0
      %1898 = vmatprep.mubr.f32.mxu0 0.0
      %1899 = vmatmul.mubr.f32.gmra.mxu0 %v1478
      %v1900 = vpop.f32.mrf.mxu0
      %v1901 = vadd.f32 %v1667, %v1900
      %v1902 = vpop.f32.mrf.mxu0
      %1903 = vmatprep.mubr.f32.mxu0 0.0
      %1904 = vmatmul.mubr.f32.gmra.mxu0 %v1481
      %v1905 = vpop.f32.mrf.mxu0
      %v1906 = vadd.f32 %v1672, %v1905
      %v1907 = vpop.f32.mrf.mxu0
      %1908 = vmatprep.mubr.f32.mxu0 0.0
      %1909 = vmatmul.mubr.f32.gmra.mxu0 %v1484
      %v1910 = vpop.f32.mrf.mxu0
      %v1911 = vadd.f32 %v1677, %v1910
      %v1912 = vpop.f32.mrf.mxu0
      %1913 = vmatprep.mubr.f32.mxu0 0.0
      %1914 = vmatmul.mubr.f32.gmra.mxu0 %v1487
      %v1915 = vpop.f32.mrf.mxu0
      %v1916 = vadd.f32 %v1682, %v1915
      %v1917 = vpop.f32.mrf.mxu0
      %1918 = vmatprep.mubr.f32.mxu0 0.0
      %1919 = vmatmul.mubr.f32.gmra.mxu0 %v1490
      %v1920 = vpop.f32.mrf.mxu0
      %v1921 = vadd.f32 %v1687, %v1920
      %v1922 = vpop.f32.mrf.mxu0
      %1923 = vmatprep.mubr.f32.mxu0 0.0
      %1924 = vmatmul.mubr.f32.gmra.mxu0 %v1493
      %v1925 = vpop.f32.mrf.mxu0
      %v1926 = vadd.f32 %v1692, %v1925
      %v1927 = vpop.f32.mrf.mxu0
      %1928 = vmatprep.mubr.f32.mxu0 0.0
      %1929 = vmatmul.mubr.f32.gmra.mxu0 %v1496
      %v1930 = vpop.f32.mrf.mxu0
      %v1931 = vadd.f32 %v1697, %v1930
      %v1932 = vpop.f32.mrf.mxu0
      %1933 = vmatprep.mubr.f32.mxu0 0.0
      %1934 = vmatmul.mubr.f32.gmra.mxu0 %v1499
      %v1935 = vpop.f32.mrf.mxu0
      %v1936 = vadd.f32 %v1702, %v1935
      %v1937 = vpop.f32.mrf.mxu0
      %1938 = vmatprep.mubr.f32.mxu0 0.0
      %1939 = vmatmul.mubr.f32.gmra.mxu0 %v1502
      %v1940 = vpop.f32.mrf.mxu0
      %v1941 = vadd.f32 %v1707, %v1940
      %v1942 = vpop.f32.mrf.mxu0
      %1943 = vmatprep.mubr.f32.mxu0 0.0
      %1944 = vmatmul.mubr.f32.gmra.mxu0 %v1505
      %v1945 = vpop.f32.mrf.mxu0
      %v1946 = vadd.f32 %v1712, %v1945
      %v1947 = vpop.f32.mrf.mxu0
      %1948 = vmatprep.mubr.f32.mxu0 0.0
      %1949 = vmatmul.mubr.f32.gmra.mxu0 %v1508
      %v1950 = vpop.f32.mrf.mxu0
      %v1951 = vadd.f32 %v1717, %v1950
      %v1952 = vpop.f32.mrf.mxu0
      %1953 = vmatprep.mubr.f32.mxu0 0.0
      %1954 = vmatmul.mubr.f32.gmra.mxu0 %v1511
      %v1955 = vpop.f32.mrf.mxu0
      %v1956 = vadd.f32 %v1722, %v1955
      %v1957 = vpop.f32.mrf.mxu0
      %1958 = vmatprep.mubr.f32.mxu0 0.0
      %1959 = vmatmul.mubr.f32.gmra.mxu0 %v1514
      %v1960 = vpop.f32.mrf.mxu0
      %v1961 = vadd.f32 %v1727, %v1960
      %v1962 = vpop.f32.mrf.mxu0
      %1963 = vmatprep.mubr.f32.mxu0 0.0
      %1964 = vmatmul.mubr.f32.gmra.mxu0 %v1517
      %v1965 = vpop.f32.mrf.mxu0
      %v1966 = vadd.f32 %v1732, %v1965
      %v1967 = vpop.f32.mrf.mxu0
      %1968 = vmatprep.mubr.f32.mxu0 0.0
      %1969 = vmatmul.mubr.f32.gmra.mxu0 %v1520
      %v1970 = vpop.f32.mrf.mxu0
      %v1971 = vadd.f32 %v1737, %v1970
      %v1972 = vpop.f32.mrf.mxu0
      %1973 = vmatprep.mubr.f32.mxu0 0.0
      %1974 = vmatmul.mubr.f32.gmra.mxu0 %v1751
      %v1975 = vpop.f32.mrf.mxu0
      %v1976 = vadd.f32 %v1742, %v1975
      %v1977 = vpop.f32.mrf.mxu0
      %1978 = vmatprep.mubr.f32.mxu0 0.0
      %1979 = vmatmul.mubr.f32.gmra.mxu0 %v1754
      %v1980 = vpop.f32.mrf.mxu0
      %v1981 = vadd.f32 %v1747, %v1980
      %v1982 = vpop.f32.mrf.mxu0
      %1983 = vdwg.mxu0
      %s1984 = scalar_lea.vmem %s4, 32
      %v1985 = vld [vmem:[%s1984] sm:$0xff]
      %v1986 = vld [vmem:[%s1984 + $0x8] sm:$0x1]
      %v1988 = vsel %vm972, %v1986, 0
      %1990 = vmatprep.subr.mxu0 0.0
      %1991 = vmatpush1.msra.mxu0 0.0
      %1992 = vmatprep.subr.mxu0 0.0
      %1993 = vmatpush1.msra.mxu0 0.0
      %1994 = vmatprep.subr.mxu0 0.0
      %1995 = vmatpush1.msra.mxu0 0.0
      %1996 = vmatprep.subr.mxu0 0.0
      %1997 = vmatpush1.msra.mxu0 0.0
      %1998 = vmatprep.subr.mxu0 0.0
      %1999 = vmatpush1.msra.mxu0 0.0
      %2000 = vmatprep.subr.mxu0 0.0
      %2001 = vmatpush1.msra.mxu0 0.0
      %2002 = vmatprep.subr.mxu0 0.0
      %2003 = vmatpush1.msra.mxu0 0.0
      %2004 = vmatprep.subr.mxu0 0.0
      %2005 = vmatpush1.msra.mxu0 0.0
      %2006 = vmatprep.subr.mxu0 0.0
      %2007 = vmatpush1.msra.mxu0 0.0
      %2008 = vmatprep.subr.mxu0 0.0
      %2009 = vmatpush1.msra.mxu0 0.0
      %2010 = vmatprep.subr.mxu0 0.0
      %2011 = vmatpush1.msra.mxu0 0.0
      %2012 = vmatprep.subr.mxu0 0.0
      %2013 = vmatpush1.msra.mxu0 0.0
      %2014 = vmatprep.subr.mxu0 0.0
      %2015 = vmatpush1.msra.mxu0 0.0
      %2016 = vmatprep.subr.mxu0 0.0
      %2017 = vmatpush1.msra.mxu0 0.0
      %2018 = vmatprep.subr.mxu0 0.0
      %2019 = vmatpush1.msra.mxu0 %v1988
      %2020 = vmatprep.subr.mxu0 0.0
      %2021 = vmatpush1.msra.mxu0 %v1985
      %2022 = vmatprep.subr.mxu0 0.0
      %2023 = vmatpush2.msra.mxu0 0.0
      %2024 = vmatprep.subr.mxu0 0.0
      %2025 = vmatpush2.msra.mxu0 0.0
      %2026 = vmatprep.subr.mxu0 0.0
      %2027 = vmatpush2.msra.mxu0 0.0
      %2028 = vmatprep.subr.mxu0 0.0
      %2029 = vmatpush2.msra.mxu0 0.0
      %2030 = vmatprep.subr.mxu0 0.0
      %2031 = vmatpush2.msra.mxu0 0.0
      %2032 = vmatprep.subr.mxu0 0.0
      %2033 = vmatpush2.msra.mxu0 0.0
      %2034 = vmatprep.subr.mxu0 0.0
      %2035 = vmatpush2.msra.mxu0 0.0
      %2036 = vmatprep.subr.mxu0 0.0
      %2037 = vmatpush2.msra.mxu0 0.0
      %2038 = vmatprep.subr.mxu0 0.0
      %2039 = vmatpush2.msra.mxu0 0.0
      %2040 = vmatprep.subr.mxu0 0.0
      %2041 = vmatpush2.msra.mxu0 0.0
      %2042 = vmatprep.subr.mxu0 0.0
      %2043 = vmatpush2.msra.mxu0 0.0
      %2044 = vmatprep.subr.mxu0 0.0
      %2045 = vmatpush2.msra.mxu0 0.0
      %2046 = vmatprep.subr.mxu0 0.0
      %2047 = vmatpush2.msra.mxu0 0.0
      %2048 = vmatprep.subr.mxu0 0.0
      %2049 = vmatpush2.msra.mxu0 0.0
      %2050 = vmatprep.subr.mxu0 0.0
      %2051 = vmatpush2.msra.mxu0 0.0
      %2052 = vmatprep.subr.mxu0 0.0
      %2053 = vmatpush2.msra.mxu0 0.0
      %2054 = vmatprep.mubr.f32.mxu0 0.0
      %2055 = vmatmul.mubr.f32.gmra.mxu0 %v1439
      %v2056 = vpop.f32.mrf.mxu0
      %v2057 = vadd.f32 0.0, %v2056
      %v2058 = vpop.f32.mrf.mxu0
      %2059 = vmatprep.mubr.f32.mxu0 0.0
      %2060 = vmatmul.mubr.f32.gmra.mxu0 %v1442
      %v2061 = vpop.f32.mrf.mxu0
      %v2062 = vadd.f32 0.0, %v2061
      %v2063 = vpop.f32.mrf.mxu0
      %2064 = vmatprep.mubr.f32.mxu0 0.0
      %2065 = vmatmul.mubr.f32.gmra.mxu0 %v1445
      %v2066 = vpop.f32.mrf.mxu0
      %v2067 = vadd.f32 0.0, %v2066
      %v2068 = vpop.f32.mrf.mxu0
      %2069 = vmatprep.mubr.f32.mxu0 0.0
      %2070 = vmatmul.mubr.f32.gmra.mxu0 %v1448
      %v2071 = vpop.f32.mrf.mxu0
      %v2072 = vadd.f32 0.0, %v2071
      %v2073 = vpop.f32.mrf.mxu0
      %2074 = vmatprep.mubr.f32.mxu0 0.0
      %2075 = vmatmul.mubr.f32.gmra.mxu0 %v1451
      %v2076 = vpop.f32.mrf.mxu0
      %v2077 = vadd.f32 0.0, %v2076
      %v2078 = vpop.f32.mrf.mxu0
      %2079 = vmatprep.mubr.f32.mxu0 0.0
      %2080 = vmatmul.mubr.f32.gmra.mxu0 %v1454
      %v2081 = vpop.f32.mrf.mxu0
      %v2082 = vadd.f32 0.0, %v2081
      %v2083 = vpop.f32.mrf.mxu0
      %2084 = vmatprep.mubr.f32.mxu0 0.0
      %2085 = vmatmul.mubr.f32.gmra.mxu0 %v1457
      %v2086 = vpop.f32.mrf.mxu0
      %v2087 = vadd.f32 0.0, %v2086
      %v2088 = vpop.f32.mrf.mxu0
      %2089 = vmatprep.mubr.f32.mxu0 0.0
      %2090 = vmatmul.mubr.f32.gmra.mxu0 %v1460
      %v2091 = vpop.f32.mrf.mxu0
      %v2092 = vadd.f32 0.0, %v2091
      %v2093 = vpop.f32.mrf.mxu0
      %2094 = vmatprep.mubr.f32.mxu0 0.0
      %2095 = vmatmul.mubr.f32.gmra.mxu0 %v1463
      %v2096 = vpop.f32.mrf.mxu0
      %v2097 = vadd.f32 0.0, %v2096
      %v2098 = vpop.f32.mrf.mxu0
      %2099 = vmatprep.mubr.f32.mxu0 0.0
      %2100 = vmatmul.mubr.f32.gmra.mxu0 %v1466
      %v2101 = vpop.f32.mrf.mxu0
      %v2102 = vadd.f32 0.0, %v2101
      %v2103 = vpop.f32.mrf.mxu0
      %2104 = vmatprep.mubr.f32.mxu0 0.0
      %2105 = vmatmul.mubr.f32.gmra.mxu0 %v1469
      %v2106 = vpop.f32.mrf.mxu0
      %v2107 = vadd.f32 0.0, %v2106
      %v2108 = vpop.f32.mrf.mxu0
      %2109 = vmatprep.mubr.f32.mxu0 0.0
      %2110 = vmatmul.mubr.f32.gmra.mxu0 %v1472
      %v2111 = vpop.f32.mrf.mxu0
      %v2112 = vadd.f32 0.0, %v2111
      %v2113 = vpop.f32.mrf.mxu0
      %2114 = vmatprep.mubr.f32.mxu0 0.0
      %2115 = vmatmul.mubr.f32.gmra.mxu0 %v1475
      %v2116 = vpop.f32.mrf.mxu0
      %v2117 = vadd.f32 0.0, %v2116
      %v2118 = vpop.f32.mrf.mxu0
      %2119 = vmatprep.mubr.f32.mxu0 0.0
      %2120 = vmatmul.mubr.f32.gmra.mxu0 %v1478
      %v2121 = vpop.f32.mrf.mxu0
      %v2122 = vadd.f32 0.0, %v2121
      %v2123 = vpop.f32.mrf.mxu0
      %2124 = vmatprep.mubr.f32.mxu0 0.0
      %2125 = vmatmul.mubr.f32.gmra.mxu0 %v1481
      %v2126 = vpop.f32.mrf.mxu0
      %v2127 = vadd.f32 0.0, %v2126
      %v2128 = vpop.f32.mrf.mxu0
      %2129 = vmatprep.mubr.f32.mxu0 0.0
      %2130 = vmatmul.mubr.f32.gmra.mxu0 %v1484
      %v2131 = vpop.f32.mrf.mxu0
      %v2132 = vadd.f32 0.0, %v2131
      %v2133 = vpop.f32.mrf.mxu0
      %2134 = vmatprep.mubr.f32.mxu0 0.0
      %2135 = vmatmul.mubr.f32.gmra.mxu0 %v1487
      %v2136 = vpop.f32.mrf.mxu0
      %v2137 = vadd.f32 0.0, %v2136
      %v2138 = vpop.f32.mrf.mxu0
      %2139 = vmatprep.mubr.f32.mxu0 0.0
      %2140 = vmatmul.mubr.f32.gmra.mxu0 %v1490
      %v2141 = vpop.f32.mrf.mxu0
      %v2142 = vadd.f32 0.0, %v2141
      %v2143 = vpop.f32.mrf.mxu0
      %2144 = vmatprep.mubr.f32.mxu0 0.0
      %2145 = vmatmul.mubr.f32.gmra.mxu0 %v1493
      %v2146 = vpop.f32.mrf.mxu0
      %v2147 = vadd.f32 0.0, %v2146
      %v2148 = vpop.f32.mrf.mxu0
      %2149 = vmatprep.mubr.f32.mxu0 0.0
      %2150 = vmatmul.mubr.f32.gmra.mxu0 %v1496
      %v2151 = vpop.f32.mrf.mxu0
      %v2152 = vadd.f32 0.0, %v2151
      %v2153 = vpop.f32.mrf.mxu0
      %2154 = vmatprep.mubr.f32.mxu0 0.0
      %2155 = vmatmul.mubr.f32.gmra.mxu0 %v1499
      %v2156 = vpop.f32.mrf.mxu0
      %v2157 = vadd.f32 0.0, %v2156
      %v2158 = vpop.f32.mrf.mxu0
      %2159 = vmatprep.mubr.f32.mxu0 0.0
      %2160 = vmatmul.mubr.f32.gmra.mxu0 %v1502
      %v2161 = vpop.f32.mrf.mxu0
      %v2162 = vadd.f32 0.0, %v2161
      %v2163 = vpop.f32.mrf.mxu0
      %2164 = vmatprep.mubr.f32.mxu0 0.0
      %2165 = vmatmul.mubr.f32.gmra.mxu0 %v1505
      %v2166 = vpop.f32.mrf.mxu0
      %v2167 = vadd.f32 0.0, %v2166
      %v2168 = vpop.f32.mrf.mxu0
      %2169 = vmatprep.mubr.f32.mxu0 0.0
      %2170 = vmatmul.mubr.f32.gmra.mxu0 %v1508
      %v2171 = vpop.f32.mrf.mxu0
      %v2172 = vadd.f32 0.0, %v2171
      %v2173 = vpop.f32.mrf.mxu0
      %2174 = vmatprep.mubr.f32.mxu0 0.0
      %2175 = vmatmul.mubr.f32.gmra.mxu0 %v1511
      %v2176 = vpop.f32.mrf.mxu0
      %v2177 = vadd.f32 0.0, %v2176
      %v2178 = vpop.f32.mrf.mxu0
      %2179 = vmatprep.mubr.f32.mxu0 0.0
      %2180 = vmatmul.mubr.f32.gmra.mxu0 %v1514
      %v2181 = vpop.f32.mrf.mxu0
      %v2182 = vadd.f32 0.0, %v2181
      %v2183 = vpop.f32.mrf.mxu0
      %2184 = vmatprep.mubr.f32.mxu0 0.0
      %2185 = vmatmul.mubr.f32.gmra.mxu0 %v1517
      %v2186 = vpop.f32.mrf.mxu0
      %v2187 = vadd.f32 0.0, %v2186
      %v2188 = vpop.f32.mrf.mxu0
      %2189 = vmatprep.mubr.f32.mxu0 0.0
      %2190 = vmatmul.mubr.f32.gmra.mxu0 %v1520
      %v2191 = vpop.f32.mrf.mxu0
      %v2192 = vadd.f32 0.0, %v2191
      %v2193 = vpop.f32.mrf.mxu0
      %2194 = vmatprep.mubr.f32.mxu0 0.0
      %2195 = vmatmul.mubr.f32.gmra.mxu0 %v1751
      %v2196 = vpop.f32.mrf.mxu0
      %v2197 = vadd.f32 0.0, %v2196
      %v2198 = vpop.f32.mrf.mxu0
      %2199 = vmatprep.mubr.f32.mxu0 0.0
      %2200 = vmatmul.mubr.f32.gmra.mxu0 %v1754
      %v2201 = vpop.f32.mrf.mxu0
      %v2202 = vadd.f32 0.0, %v2201
      %v2203 = vpop.f32.mrf.mxu0
      %2204 = vmatprep.mubr.f32.mxu0 0.0
      %2205 = vmatmul.mubr.f32.gmra.mxu0 %v1430
      %v2206 = vpop.f32.mrf.mxu0
      %v2207 = vadd.f32 0.0, %v2206
      %v2208 = vpop.f32.mrf.mxu0
      %2209 = vmatprep.mubr.f32.mxu0 0.0
      %2210 = vmatmul.mubr.f32.gmra.mxu0 %v1430
      %v2211 = vpop.f32.mrf.mxu0
      %v2212 = vadd.f32 0.0, %v2211
      %v2213 = vpop.f32.mrf.mxu0
      %2214 = vdwg.mxu0
      %v2215 = vadd.f32 %v1826, %v2057
      %v2216 = vadd.f32 %v1831, %v2062
      %v2217 = vadd.f32 %v1836, %v2067
      %v2218 = vadd.f32 %v1841, %v2072
      %v2219 = vadd.f32 %v1846, %v2077
      %v2220 = vadd.f32 %v1851, %v2082
      %v2221 = vadd.f32 %v1856, %v2087
      %v2222 = vadd.f32 %v1861, %v2092
      %v2223 = vadd.f32 %v1866, %v2097
      %v2224 = vadd.f32 %v1871, %v2102
      %v2225 = vadd.f32 %v1876, %v2107
      %v2226 = vadd.f32 %v1881, %v2112
      %v2227 = vadd.f32 %v1886, %v2117
      %v2228 = vadd.f32 %v1891, %v2122
      %v2229 = vadd.f32 %v1896, %v2127
      %v2230 = vadd.f32 %v1901, %v2132
      %v2231 = vadd.f32 %v1906, %v2137
      %v2232 = vadd.f32 %v1911, %v2142
      %v2233 = vadd.f32 %v1916, %v2147
      %v2234 = vadd.f32 %v1921, %v2152
      %v2235 = vadd.f32 %v1926, %v2157
      %v2236 = vadd.f32 %v1931, %v2162
      %v2237 = vadd.f32 %v1936, %v2167
      %v2238 = vadd.f32 %v1941, %v2172
      %v2239 = vadd.f32 %v1946, %v2177
      %v2240 = vadd.f32 %v1951, %v2182
      %v2241 = vadd.f32 %v1956, %v2187
      %v2242 = vadd.f32 %v1961, %v2192
      %v2243 = vadd.f32 %v1966, %v2197
      %v2244 = vadd.f32 %v1971, %v2202
      %v2245 = vadd.f32 %v1976, %v2207
      %v2246 = vadd.f32 %v1981, %v2212
      %v2247 = vld [vmem:[%s5] sm:$0x1]
      %v2249 = vlaneseq
      %v2250 = vshrl.u32 %v2249, 7
      %v2251 = vsub.s32 0, %v2250
      %v2252 = vrot.slane %v2247, %v2251
      %v2254 = vmul.f32 %v2215, %v2252
      %v2255 = vmul.f32 %v2216, %v2252
      %v2256 = vmul.f32 %v2217, %v2252
      %v2257 = vmul.f32 %v2218, %v2252
      %v2258 = vmul.f32 %v2219, %v2252
      %v2259 = vmul.f32 %v2220, %v2252
      %v2260 = vmul.f32 %v2221, %v2252
      %v2261 = vmul.f32 %v2222, %v2252
      %v2262 = vmul.f32 %v2223, %v2252
      %v2263 = vmul.f32 %v2224, %v2252
      %v2264 = vmul.f32 %v2225, %v2252
      %v2265 = vmul.f32 %v2226, %v2252
      %v2266 = vmul.f32 %v2227, %v2252
      %v2267 = vmul.f32 %v2228, %v2252
      %v2268 = vmul.f32 %v2229, %v2252
      %v2269 = vmul.f32 %v2230, %v2252
      %v2270 = vmul.f32 %v2231, %v2252
      %v2271 = vmul.f32 %v2232, %v2252
      %v2272 = vmul.f32 %v2233, %v2252
      %v2273 = vmul.f32 %v2234, %v2252
      %v2274 = vmul.f32 %v2235, %v2252
      %v2275 = vmul.f32 %v2236, %v2252
      %v2276 = vmul.f32 %v2237, %v2252
      %v2277 = vmul.f32 %v2238, %v2252
      %v2278 = vmul.f32 %v2239, %v2252
      %v2279 = vmul.f32 %v2240, %v2252
      %v2280 = vmul.f32 %v2241, %v2252
      %v2281 = vmul.f32 %v2242, %v2252
      %v2282 = vmul.f32 %v2243, %v2252
      %v2283 = vmul.f32 %v2244, %v2252
      %v2284 = vmul.f32 %v2245, %v2252
      %v2285 = vmul.f32 %v2246, %v2252
      %v2286 = vld [vmem:[%s6] sm:$0x1]
      %v2288 = vlaneseq
      %v2289 = vshrl.u32 %v2288, 7
      %v2290 = vsub.s32 0, %v2289
      %v2291 = vrot.slane %v2286, %v2290
      %v2293 = vadd.f32 %v2254, %v2291
      %v2294 = vadd.f32 %v2255, %v2291
      %v2295 = vadd.f32 %v2256, %v2291
      %v2296 = vadd.f32 %v2257, %v2291
      %v2297 = vadd.f32 %v2258, %v2291
      %v2298 = vadd.f32 %v2259, %v2291
      %v2299 = vadd.f32 %v2260, %v2291
      %v2300 = vadd.f32 %v2261, %v2291
      %v2301 = vadd.f32 %v2262, %v2291
      %v2302 = vadd.f32 %v2263, %v2291
      %v2303 = vadd.f32 %v2264, %v2291
      %v2304 = vadd.f32 %v2265, %v2291
      %v2305 = vadd.f32 %v2266, %v2291
      %v2306 = vadd.f32 %v2267, %v2291
      %v2307 = vadd.f32 %v2268, %v2291
      %v2308 = vadd.f32 %v2269, %v2291
      %v2309 = vadd.f32 %v2270, %v2291
      %v2310 = vadd.f32 %v2271, %v2291
      %v2311 = vadd.f32 %v2272, %v2291
      %v2312 = vadd.f32 %v2273, %v2291
      %v2313 = vadd.f32 %v2274, %v2291
      %v2314 = vadd.f32 %v2275, %v2291
      %v2315 = vadd.f32 %v2276, %v2291
      %v2316 = vadd.f32 %v2277, %v2291
      %v2317 = vadd.f32 %v2278, %v2291
      %v2318 = vadd.f32 %v2279, %v2291
      %v2319 = vadd.f32 %v2280, %v2291
      %v2320 = vadd.f32 %v2281, %v2291
      %v2321 = vadd.f32 %v2282, %v2291
      %v2322 = vadd.f32 %v2283, %v2291
      %v2323 = vadd.f32 %v2284, %v2291
      %v2324 = vadd.f32 %v2285, %v2291
      %v2325 = vxor.u32 %v2293, 2147483648
      %v2326 = vxor.u32 %v2294, 2147483648
      %v2327 = vxor.u32 %v2295, 2147483648
      %v2328 = vxor.u32 %v2296, 2147483648
      %v2329 = vxor.u32 %v2297, 2147483648
      %v2330 = vxor.u32 %v2298, 2147483648
      %v2331 = vxor.u32 %v2299, 2147483648
      %v2332 = vxor.u32 %v2300, 2147483648
      %v2333 = vxor.u32 %v2301, 2147483648
      %v2334 = vxor.u32 %v2302, 2147483648
      %v2335 = vxor.u32 %v2303, 2147483648
      %v2336 = vxor.u32 %v2304, 2147483648
      %v2337 = vxor.u32 %v2305, 2147483648
      %v2338 = vxor.u32 %v2306, 2147483648
      %v2339 = vxor.u32 %v2307, 2147483648
      %v2340 = vxor.u32 %v2308, 2147483648
      %v2341 = vxor.u32 %v2309, 2147483648
      %v2342 = vxor.u32 %v2310, 2147483648
      %v2343 = vxor.u32 %v2311, 2147483648
      %v2344 = vxor.u32 %v2312, 2147483648
      %v2345 = vxor.u32 %v2313, 2147483648
      %v2346 = vxor.u32 %v2314, 2147483648
      %v2347 = vxor.u32 %v2315, 2147483648
      %v2348 = vxor.u32 %v2316, 2147483648
      %v2349 = vxor.u32 %v2317, 2147483648
      %v2350 = vxor.u32 %v2318, 2147483648
      %v2351 = vxor.u32 %v2319, 2147483648
      %v2352 = vxor.u32 %v2320, 2147483648
      %v2353 = vxor.u32 %v2321, 2147483648
      %v2354 = vxor.u32 %v2322, 2147483648
      %v2355 = vxor.u32 %v2323, 2147483648
      %v2356 = vxor.u32 %v2324, 2147483648
      %v2357 = vmul.f32 %v2325, 1.442695
      %v2358 = vpow.pop %v2357
      %v2359 = vmul.f32 %v2326, 1.442695
      %v2360 = vpow.pop %v2359
      %v2361 = vmul.f32 %v2327, 1.442695
      %v2362 = vpow.pop %v2361
      %v2363 = vmul.f32 %v2328, 1.442695
      %v2364 = vpow.pop %v2363
      %v2365 = vmul.f32 %v2329, 1.442695
      %v2366 = vpow.pop %v2365
      %v2367 = vmul.f32 %v2330, 1.442695
      %v2368 = vpow.pop %v2367
      %v2369 = vmul.f32 %v2331, 1.442695
      %v2370 = vpow.pop %v2369
      %v2371 = vmul.f32 %v2332, 1.442695
      %v2372 = vpow.pop %v2371
      %v2373 = vmul.f32 %v2333, 1.442695
      %v2374 = vpow.pop %v2373
      %v2375 = vmul.f32 %v2334, 1.442695
      %v2376 = vpow.pop %v2375
      %v2377 = vmul.f32 %v2335, 1.442695
      %v2378 = vpow.pop %v2377
      %v2379 = vmul.f32 %v2336, 1.442695
      %v2380 = vpow.pop %v2379
      %v2381 = vmul.f32 %v2337, 1.442695
      %v2382 = vpow.pop %v2381
      %v2383 = vmul.f32 %v2338, 1.442695
      %v2384 = vpow.pop %v2383
      %v2385 = vmul.f32 %v2339, 1.442695
      %v2386 = vpow.pop %v2385
      %v2387 = vmul.f32 %v2340, 1.442695
      %v2388 = vpow.pop %v2387
      %v2389 = vmul.f32 %v2341, 1.442695
      %v2390 = vpow.pop %v2389
      %v2391 = vmul.f32 %v2342, 1.442695
      %v2392 = vpow.pop %v2391
      %v2393 = vmul.f32 %v2343, 1.442695
      %v2394 = vpow.pop %v2393
      %v2395 = vmul.f32 %v2344, 1.442695
      %v2396 = vpow.pop %v2395
      %v2397 = vmul.f32 %v2345, 1.442695
      %v2398 = vpow.pop %v2397
      %v2399 = vmul.f32 %v2346, 1.442695
      %v2400 = vpow.pop %v2399
      %v2401 = vmul.f32 %v2347, 1.442695
      %v2402 = vpow.pop %v2401
      %v2403 = vmul.f32 %v2348, 1.442695
      %v2404 = vpow.pop %v2403
      %v2405 = vmul.f32 %v2349, 1.442695
      %v2406 = vpow.pop %v2405
      %v2407 = vmul.f32 %v2350, 1.442695
      %v2408 = vpow.pop %v2407
      %v2409 = vmul.f32 %v2351, 1.442695
      %v2410 = vpow.pop %v2409
      %v2411 = vmul.f32 %v2352, 1.442695
      %v2412 = vpow.pop %v2411
      %v2413 = vmul.f32 %v2353, 1.442695
      %v2414 = vpow.pop %v2413
      %v2415 = vmul.f32 %v2354, 1.442695
      %v2416 = vpow.pop %v2415
      %v2417 = vmul.f32 %v2355, 1.442695
      %v2418 = vpow.pop %v2417
      %v2419 = vmul.f32 %v2356, 1.442695
      %v2420 = vpow.pop %v2419
      %v2421 = vadd.f32 %v2358, 1.0
      %v2422 = vadd.f32 %v2360, 1.0
      %v2423 = vadd.f32 %v2362, 1.0
      %v2424 = vadd.f32 %v2364, 1.0
      %v2425 = vadd.f32 %v2366, 1.0
      %v2426 = vadd.f32 %v2368, 1.0
      %v2427 = vadd.f32 %v2370, 1.0
      %v2428 = vadd.f32 %v2372, 1.0
      %v2429 = vadd.f32 %v2374, 1.0
      %v2430 = vadd.f32 %v2376, 1.0
      %v2431 = vadd.f32 %v2378, 1.0
      %v2432 = vadd.f32 %v2380, 1.0
      %v2433 = vadd.f32 %v2382, 1.0
      %v2434 = vadd.f32 %v2384, 1.0
      %v2435 = vadd.f32 %v2386, 1.0
      %v2436 = vadd.f32 %v2388, 1.0
      %v2437 = vadd.f32 %v2390, 1.0
      %v2438 = vadd.f32 %v2392, 1.0
      %v2439 = vadd.f32 %v2394, 1.0
      %v2440 = vadd.f32 %v2396, 1.0
      %v2441 = vadd.f32 %v2398, 1.0
      %v2442 = vadd.f32 %v2400, 1.0
      %v2443 = vadd.f32 %v2402, 1.0
      %v2444 = vadd.f32 %v2404, 1.0
      %v2445 = vadd.f32 %v2406, 1.0
      %v2446 = vadd.f32 %v2408, 1.0
      %v2447 = vadd.f32 %v2410, 1.0
      %v2448 = vadd.f32 %v2412, 1.0
      %v2449 = vadd.f32 %v2414, 1.0
      %v2450 = vadd.f32 %v2416, 1.0
      %v2451 = vadd.f32 %v2418, 1.0
      %v2452 = vadd.f32 %v2420, 1.0
      %v2453 = vrcp.pop %v2421
      %v2454 = vmul.f32 1.0, %v2453
      %v2455 = vrcp.pop %v2422
      %v2456 = vmul.f32 1.0, %v2455
      %v2457 = vrcp.pop %v2423
      %v2458 = vmul.f32 1.0, %v2457
      %v2459 = vrcp.pop %v2424
      %v2460 = vmul.f32 1.0, %v2459
      %v2461 = vrcp.pop %v2425
      %v2462 = vmul.f32 1.0, %v2461
      %v2463 = vrcp.pop %v2426
      %v2464 = vmul.f32 1.0, %v2463
      %v2465 = vrcp.pop %v2427
      %v2466 = vmul.f32 1.0, %v2465
      %v2467 = vrcp.pop %v2428
      %v2468 = vmul.f32 1.0, %v2467
      %v2469 = vrcp.pop %v2429
      %v2470 = vmul.f32 1.0, %v2469
      %v2471 = vrcp.pop %v2430
      %v2472 = vmul.f32 1.0, %v2471
      %v2473 = vrcp.pop %v2431
      %v2474 = vmul.f32 1.0, %v2473
      %v2475 = vrcp.pop %v2432
      %v2476 = vmul.f32 1.0, %v2475
      %v2477 = vrcp.pop %v2433
      %v2478 = vmul.f32 1.0, %v2477
      %v2479 = vrcp.pop %v2434
      %v2480 = vmul.f32 1.0, %v2479
      %v2481 = vrcp.pop %v2435
      %v2482 = vmul.f32 1.0, %v2481
      %v2483 = vrcp.pop %v2436
      %v2484 = vmul.f32 1.0, %v2483
      %v2485 = vrcp.pop %v2437
      %v2486 = vmul.f32 1.0, %v2485
      %v2487 = vrcp.pop %v2438
      %v2488 = vmul.f32 1.0, %v2487
      %v2489 = vrcp.pop %v2439
      %v2490 = vmul.f32 1.0, %v2489
      %v2491 = vrcp.pop %v2440
      %v2492 = vmul.f32 1.0, %v2491
      %v2493 = vrcp.pop %v2441
      %v2494 = vmul.f32 1.0, %v2493
      %v2495 = vrcp.pop %v2442
      %v2496 = vmul.f32 1.0, %v2495
      %v2497 = vrcp.pop %v2443
      %v2498 = vmul.f32 1.0, %v2497
      %v2499 = vrcp.pop %v2444
      %v2500 = vmul.f32 1.0, %v2499
      %v2501 = vrcp.pop %v2445
      %v2502 = vmul.f32 1.0, %v2501
      %v2503 = vrcp.pop %v2446
      %v2504 = vmul.f32 1.0, %v2503
      %v2505 = vrcp.pop %v2447
      %v2506 = vmul.f32 1.0, %v2505
      %v2507 = vrcp.pop %v2448
      %v2508 = vmul.f32 1.0, %v2507
      %v2509 = vrcp.pop %v2449
      %v2510 = vmul.f32 1.0, %v2509
      %v2511 = vrcp.pop %v2450
      %v2512 = vmul.f32 1.0, %v2511
      %v2513 = vrcp.pop %v2451
      %v2514 = vmul.f32 1.0, %v2513
      %v2515 = vrcp.pop %v2452
      %v2516 = vmul.f32 1.0, %v2515
      %v2517 = vmul.f32 %v2293, %v2454
      %v2518 = vmul.f32 %v2294, %v2456
      %v2519 = vmul.f32 %v2295, %v2458
      %v2520 = vmul.f32 %v2296, %v2460
      %v2521 = vmul.f32 %v2297, %v2462
      %v2522 = vmul.f32 %v2298, %v2464
      %v2523 = vmul.f32 %v2299, %v2466
      %v2524 = vmul.f32 %v2300, %v2468
      %v2525 = vmul.f32 %v2301, %v2470
      %v2526 = vmul.f32 %v2302, %v2472
      %v2527 = vmul.f32 %v2303, %v2474
      %v2528 = vmul.f32 %v2304, %v2476
      %v2529 = vmul.f32 %v2305, %v2478
      %v2530 = vmul.f32 %v2306, %v2480
      %v2531 = vmul.f32 %v2307, %v2482
      %v2532 = vmul.f32 %v2308, %v2484
      %v2533 = vmul.f32 %v2309, %v2486
      %v2534 = vmul.f32 %v2310, %v2488
      %v2535 = vmul.f32 %v2311, %v2490
      %v2536 = vmul.f32 %v2312, %v2492
      %v2537 = vmul.f32 %v2313, %v2494
      %v2538 = vmul.f32 %v2314, %v2496
      %v2539 = vmul.f32 %v2315, %v2498
      %v2540 = vmul.f32 %v2316, %v2500
      %v2541 = vmul.f32 %v2317, %v2502
      %v2542 = vmul.f32 %v2318, %v2504
      %v2543 = vmul.f32 %v2319, %v2506
      %v2544 = vmul.f32 %v2320, %v2508
      %v2545 = vmul.f32 %v2321, %v2510
      %v2546 = vmul.f32 %v2322, %v2512
      %v2547 = vmul.f32 %v2323, %v2514
      %v2548 = vmul.f32 %v2324, %v2516
      %v2549 = vadd.f32 %v279, %v2517
      %v2550 = vadd.f32 %v280, %v2518
      %v2551 = vadd.f32 %v281, %v2519
      %v2552 = vadd.f32 %v282, %v2520
      %v2553 = vadd.f32 %v283, %v2521
      %v2554 = vadd.f32 %v284, %v2522
      %v2555 = vadd.f32 %v285, %v2523
      %v2556 = vadd.f32 %v286, %v2524
      %v2557 = vadd.f32 %v287, %v2525
      %v2558 = vadd.f32 %v288, %v2526
      %v2559 = vadd.f32 %v289, %v2527
      %v2560 = vadd.f32 %v290, %v2528
      %v2561 = vadd.f32 %v291, %v2529
      %v2562 = vadd.f32 %v292, %v2530
      %v2563 = vadd.f32 %v293, %v2531
      %v2564 = vadd.f32 %v294, %v2532
      %v2565 = vadd.f32 %v295, %v2533
      %v2566 = vadd.f32 %v296, %v2534
      %v2567 = vadd.f32 %v297, %v2535
      %v2568 = vadd.f32 %v298, %v2536
      %v2569 = vadd.f32 %v299, %v2537
      %v2570 = vadd.f32 %v300, %v2538
      %v2571 = vadd.f32 %v301, %v2539
      %v2572 = vadd.f32 %v302, %v2540
      %v2573 = vadd.f32 %v303, %v2541
      %v2574 = vadd.f32 %v304, %v2542
      %v2575 = vadd.f32 %v305, %v2543
      %v2576 = vadd.f32 %v306, %v2544
      %v2577 = vadd.f32 %v307, %v2545
      %v2578 = vadd.f32 %v308, %v2546
      %v2579 = vadd.f32 %v309, %v2547
      %v2580 = vadd.f32 %v310, %v2548
      %2581 = vst.msk [vmem:[%s278] sm:$0xff] %vm312, %v2549
      %2582 = vst.msk [vmem:[%s278 + $0x8] sm:$0xff] %vm312, %v2550
      %2583 = vst.msk [vmem:[%s278 + $0x10] sm:$0xff] %vm312, %v2551
      %2584 = vst.msk [vmem:[%s278 + $0x18] sm:$0xff] %vm312, %v2552
      %2585 = vst.msk [vmem:[%s278 + $0x20] sm:$0xff] %vm312, %v2553
      %2586 = vst.msk [vmem:[%s278 + $0x28] sm:$0xff] %vm312, %v2554
      %2587 = vst.msk [vmem:[%s278 + $0x30] sm:$0xff] %vm312, %v2555
      %2588 = vst.msk [vmem:[%s278 + $0x38] sm:$0xff] %vm312, %v2556
      %2589 = vst.msk [vmem:[%s278 + $0x40] sm:$0xff] %vm312, %v2557
      %2590 = vst.msk [vmem:[%s278 + $0x48] sm:$0xff] %vm312, %v2558
      %2591 = vst.msk [vmem:[%s278 + $0x50] sm:$0xff] %vm312, %v2559
      %2592 = vst.msk [vmem:[%s278 + $0x58] sm:$0xff] %vm312, %v2560
      %2593 = vst.msk [vmem:[%s278 + $0x60] sm:$0xff] %vm312, %v2561
      %2594 = vst.msk [vmem:[%s278 + $0x68] sm:$0xff] %vm312, %v2562
      %2595 = vst.msk [vmem:[%s278 + $0x70] sm:$0xff] %vm312, %v2563
      %2596 = vst.msk [vmem:[%s278 + $0x78] sm:$0xff] %vm312, %v2564
      %2597 = vst.msk [vmem:[%s278 + $0x80] sm:$0xff] %vm312, %v2565
      %2598 = vst.msk [vmem:[%s278 + $0x88] sm:$0xff] %vm312, %v2566
      %2599 = vst.msk [vmem:[%s278 + $0x90] sm:$0xff] %vm312, %v2567
      %2600 = vst.msk [vmem:[%s278 + $0x98] sm:$0xff] %vm312, %v2568
      %2601 = vst.msk [vmem:[%s278 + $0xa0] sm:$0xff] %vm312, %v2569
      %2602 = vst.msk [vmem:[%s278 + $0xa8] sm:$0xff] %vm312, %v2570
      %2603 = vst.msk [vmem:[%s278 + $0xb0] sm:$0xff] %vm312, %v2571
      %2604 = vst.msk [vmem:[%s278 + $0xb8] sm:$0xff] %vm312, %v2572
      %2605 = vst.msk [vmem:[%s278 + $0xc0] sm:$0xff] %vm312, %v2573
      %2606 = vst.msk [vmem:[%s278 + $0xc8] sm:$0xff] %vm312, %v2574
      %2607 = vst.msk [vmem:[%s278 + $0xd0] sm:$0xff] %vm312, %v2575
      %2608 = vst.msk [vmem:[%s278 + $0xd8] sm:$0xff] %vm312, %v2576
      %2609 = vst.msk [vmem:[%s278 + $0xe0] sm:$0xff] %vm312, %v2577
      %2610 = vst.msk [vmem:[%s278 + $0xe8] sm:$0xff] %vm312, %v2578
      %2611 = vst.msk [vmem:[%s278 + $0xf0] sm:$0xff] %vm312, %v2579
      %2612 = vst.msk [vmem:[%s278 + $0xf8] sm:$0xff] %vm312, %v2580
      %p2613 = scmp.lt.s32.totalorder %s18, 1
      %s2614 = scalar_select %p2613, %s18, 1
      %s2615 = smul.addr %s2614, 32
      %s2616 = smul.addr %s2615, 8
      %s2617 = scalar_lea.vmem %s7, %s2616
      // Predicated region
      $region49: #{c2f_forward.7} parent=47 // pred_check
        %p2618 = pneg %p188
      $region50: #{c2f_forward.7} parent=47 // pred_check_branch
        %2620 = sbr.rel (%p2618) target = $region52
      $region51: #{c2f_forward.7} parent=47 // pred_region
        _
      $region52: #{c2f_forward.7} parent=47 // pred_fallthru
        _
    $region48: #{c2f_forward.7} parent=5 // pred_fallthru
      _
    %p2621 = scmp.le.s32.totalorder 2, %s13
    // Predicated region
    $region53: #{c2f_forward.7} parent=5 // pred_check
      %p2622 = pneg %p2621
    $region54: #{c2f_forward.7} parent=5 // pred_check_branch
      %2624 = sbr.rel (%p2622) target = $region56
    $region55: #{c2f_forward.7} parent=5 // pred_region
      %s2625 = ssub.s32 %s13, 2
      // Predicated region
      $region57: #{c2f_forward.7} parent=55 // pred_check
        %p2626 = pneg %p194
      $region58: #{c2f_forward.7} parent=55 // pred_check_branch
        %2628 = sbr.rel (%p2626) target = $region60
      $region59: #{c2f_forward.7} parent=55 // pred_region
        %p2629 = scmp.lt.s32.totalorder %s19, 1
        %s2630 = scalar_select %p2629, %s19, 1
        %s2631 = smul.addr %s2630, 32
        %s2632 = smul.addr %s2631, 8
        %s2633 = scalar_lea.vmem %s7, %s2632
      $region60: #{c2f_forward.7} parent=55 // pred_fallthru
        _
    $region56: #{c2f_forward.7} parent=5 // pred_fallthru
      _
  $region6: #{c2f_forward.7} parent=0 // loop_footer
    %s17 = sadd.s32 1, %s13
  $region7: #{c2f_forward.7} parent=0 // loop_footer_branch
    %12 = sbr.rel target = $region3
  $region8: #{c2f_forward.7} parent=0 // loop_exit
    _

// kernel: c2f_forward.9
$region0: #{c2f_forward.9}
  #allocation0 [shape = 'u32[]', space=smem, size = 0x4, offset = 0x4, fixed_abs, tag = 'smem constant byte address 0x4 - core index']
  #allocation1 [shape = 'u32[144,128]{1,0:T(1,128)}', space=vmem, size = 0x12000, scoped, tag = 'internal scratch']
  %s0 = inlined_call_operand.vmem [shape: f32[512,3], index: 0, kind: input, shape index: {}]
  %s1 = inlined_call_operand.vmem [shape: f32[512,3], index: 1, kind: input, shape index: {}]
  %s2 = inlined_call_operand.vmem [shape: f32[512,3], index: 2, kind: input, shape index: {}]
  %s3 = inlined_call_operand.vmem [shape: f32[512,2], index: 3, kind: input, shape index: {}]
  %s4 = inlined_call_operand.vmem [shape: f32[3,8], index: 4, kind: input, shape index: {}]
  %s5 = inlined_call_operand.vmem [shape: f32[3,8], index: 5, kind: input, shape index: {}]
  %s6 = inlined_call_operand.vmem [shape: f32[3,8], index: 6, kind: input, shape index: {}]
  %s7 = inlined_call_operand.vmem [shape: f32[2,8], index: 7, kind: input, shape index: {}]
  %s8 = inlined_call_operand.vmem [shape: f32[1,8], index: 8, kind: input, shape index: {}]
  %s9 = inlined_call_operand.vmem [shape: f32[1,8], index: 9, kind: input, shape index: {}]
  %s10 = inlined_call_operand.vmem [shape: f32[512,8], index: 10, kind: output, shape index: {}]
  %s11 = sld [smem:[#allocation0]]
  $region50: #{c2f_forward.9} parent=0
    _
  %s13 = ssub.s32 1, %s11
  %s14 = scalar_select 0, %s13, %s11
  // Predicated region
  $region2: #{c2f_forward.9} parent=0 // pred_check
    _
  $region3: #{c2f_forward.9} parent=0 // pred_check_branch
    %16 = sbr.rel (0) target = $region5
  $region4: #{c2f_forward.9} parent=0 // pred_region
    _
  $region5: #{c2f_forward.9} parent=0 // pred_fallthru
    _
  // Predicated region
  $region6: #{c2f_forward.9} parent=0 // pred_check
    _
  $region7: #{c2f_forward.9} parent=0 // pred_check_branch
    %18 = sbr.rel (0) target = $region9
  $region8: #{c2f_forward.9} parent=0 // pred_region
    _
  $region9: #{c2f_forward.9} parent=0 // pred_fallthru
    _
  // Predicated region
  $region10: #{c2f_forward.9} parent=0 // pred_check
    _
  $region11: #{c2f_forward.9} parent=0 // pred_check_branch
    %20 = sbr.rel (0) target = $region13
  $region12: #{c2f_forward.9} parent=0 // pred_region
    _
  $region13: #{c2f_forward.9} parent=0 // pred_fallthru
    _
  // Predicated region
  $region14: #{c2f_forward.9} parent=0 // pred_check
    _
  $region15: #{c2f_forward.9} parent=0 // pred_check_branch
    %22 = sbr.rel (0) target = $region17
  $region16: #{c2f_forward.9} parent=0 // pred_region
    _
  $region17: #{c2f_forward.9} parent=0 // pred_fallthru
    _
  // Predicated region
  $region18: #{c2f_forward.9} parent=0 // pred_check
    _
  $region19: #{c2f_forward.9} parent=0 // pred_check_branch
    %24 = sbr.rel (0) target = $region21
  $region20: #{c2f_forward.9} parent=0 // pred_region
    _
  $region21: #{c2f_forward.9} parent=0 // pred_fallthru
    _
  // Predicated region
  $region22: #{c2f_forward.9} parent=0 // pred_check
    _
  $region23: #{c2f_forward.9} parent=0 // pred_check_branch
    %26 = sbr.rel (0) target = $region25
  $region24: #{c2f_forward.9} parent=0 // pred_region
    _
  $region25: #{c2f_forward.9} parent=0 // pred_fallthru
    _
  // Predicated region
  $region26: #{c2f_forward.9} parent=0 // pred_check
    _
  $region27: #{c2f_forward.9} parent=0 // pred_check_branch
    %28 = sbr.rel (0) target = $region29
  $region28: #{c2f_forward.9} parent=0 // pred_region
    _
  $region29: #{c2f_forward.9} parent=0 // pred_fallthru
    _
  // Predicated region
  $region30: #{c2f_forward.9} parent=0 // pred_check
    _
  $region31: #{c2f_forward.9} parent=0 // pred_check_branch
    %30 = sbr.rel (0) target = $region33
  $region32: #{c2f_forward.9} parent=0 // pred_region
    _
  $region33: #{c2f_forward.9} parent=0 // pred_fallthru
    _
  // Predicated region
  $region34: #{c2f_forward.9} parent=0 // pred_check
    _
  $region35: #{c2f_forward.9} parent=0 // pred_check_branch
    %32 = sbr.rel (0) target = $region37
  $region36: #{c2f_forward.9} parent=0 // pred_region
    _
  $region37: #{c2f_forward.9} parent=0 // pred_fallthru
    _
  // Predicated region
  $region38: #{c2f_forward.9} parent=0 // pred_check
    _
  $region39: #{c2f_forward.9} parent=0 // pred_check_branch
    %34 = sbr.rel (0) target = $region41
  $region40: #{c2f_forward.9} parent=0 // pred_region
    _
  $region41: #{c2f_forward.9} parent=0 // pred_fallthru
    _
  %v35 = vld [vmem:[%s0] sm:$0xff]
  %v36 = vld [vmem:[%s0 + $0x8] sm:$0xff]
  %v37 = vld [vmem:[%s0 + $0x10] sm:$0xff]
  %v38 = vld [vmem:[%s0 + $0x18] sm:$0xff]
  %v39 = vld [vmem:[%s0 + $0x20] sm:$0xff]
  %v40 = vld [vmem:[%s0 + $0x28] sm:$0xff]
  %v41 = vld [vmem:[%s0 + $0x30] sm:$0xff]
  %v42 = vld [vmem:[%s0 + $0x38] sm:$0xff]
  %v43 = vld [vmem:[%s0 + $0x40] sm:$0xff]
  %v44 = vld [vmem:[%s0 + $0x48] sm:$0xff]
  %v45 = vld [vmem:[%s0 + $0x50] sm:$0xff]
  %v46 = vld [vmem:[%s0 + $0x58] sm:$0xff]
  %v47 = vld [vmem:[%s0 + $0x60] sm:$0xff]
  %v48 = vld [vmem:[%s0 + $0x68] sm:$0xff]
  %v49 = vld [vmem:[%s0 + $0x70] sm:$0xff]
  %v50 = vld [vmem:[%s0 + $0x78] sm:$0xff]
  %v51 = vld [vmem:[%s0 + $0x80] sm:$0xff]
  %v52 = vld [vmem:[%s0 + $0x88] sm:$0xff]
  %v53 = vld [vmem:[%s0 + $0x90] sm:$0xff]
  %v54 = vld [vmem:[%s0 + $0x98] sm:$0xff]
  %v55 = vld [vmem:[%s0 + $0xa0] sm:$0xff]
  %v56 = vld [vmem:[%s0 + $0xa8] sm:$0xff]
  %v57 = vld [vmem:[%s0 + $0xb0] sm:$0xff]
  %v58 = vld [vmem:[%s0 + $0xb8] sm:$0xff]
  %v59 = vld [vmem:[%s0 + $0xc0] sm:$0xff]
  %v60 = vld [vmem:[%s0 + $0xc8] sm:$0xff]
  %v61 = vld [vmem:[%s0 + $0xd0] sm:$0xff]
  %v62 = vld [vmem:[%s0 + $0xd8] sm:$0xff]
  %v63 = vld [vmem:[%s0 + $0xe0] sm:$0xff]
  %v64 = vld [vmem:[%s0 + $0xe8] sm:$0xff]
  %v65 = vld [vmem:[%s0 + $0xf0] sm:$0xff]
  %v66 = vld [vmem:[%s0 + $0xf8] sm:$0xff]
  %v67 = vld [vmem:[%s0 + $0x100] sm:$0xff]
  %v68 = vld [vmem:[%s0 + $0x108] sm:$0xff]
  %v69 = vld [vmem:[%s0 + $0x110] sm:$0xff]
  %v70 = vld [vmem:[%s0 + $0x118] sm:$0xff]
  %v71 = vld [vmem:[%s0 + $0x120] sm:$0xff]
  %v72 = vld [vmem:[%s0 + $0x128] sm:$0xff]
  %v73 = vld [vmem:[%s0 + $0x130] sm:$0xff]
  %v74 = vld [vmem:[%s0 + $0x138] sm:$0xff]
  %v75 = vld [vmem:[%s0 + $0x140] sm:$0xff]
  %v76 = vld [vmem:[%s0 + $0x148] sm:$0xff]
  %v77 = vld [vmem:[%s0 + $0x150] sm:$0xff]
  %v78 = vld [vmem:[%s0 + $0x158] sm:$0xff]
  %v79 = vld [vmem:[%s0 + $0x160] sm:$0xff]
  %v80 = vld [vmem:[%s0 + $0x168] sm:$0xff]
  %v81 = vld [vmem:[%s0 + $0x170] sm:$0xff]
  %v82 = vld [vmem:[%s0 + $0x178] sm:$0xff]
  %v83 = vld [vmem:[%s0 + $0x180] sm:$0xff]
  %v84 = vld [vmem:[%s0 + $0x188] sm:$0xff]
  %v85 = vld [vmem:[%s0 + $0x190] sm:$0xff]
  %v86 = vld [vmem:[%s0 + $0x198] sm:$0xff]
  %v87 = vld [vmem:[%s0 + $0x1a0] sm:$0xff]
  %v88 = vld [vmem:[%s0 + $0x1a8] sm:$0xff]
  %v89 = vld [vmem:[%s0 + $0x1b0] sm:$0xff]
  %v90 = vld [vmem:[%s0 + $0x1b8] sm:$0xff]
  %v91 = vld [vmem:[%s0 + $0x1c0] sm:$0xff]
  %v92 = vld [vmem:[%s0 + $0x1c8] sm:$0xff]
  %v93 = vld [vmem:[%s0 + $0x1d0] sm:$0xff]
  %v94 = vld [vmem:[%s0 + $0x1d8] sm:$0xff]
  %v95 = vld [vmem:[%s0 + $0x1e0] sm:$0xff]
  %v96 = vld [vmem:[%s0 + $0x1e8] sm:$0xff]
  %v97 = vld [vmem:[%s0 + $0x1f0] sm:$0xff]
  %v98 = vld [vmem:[%s0 + $0x1f8] sm:$0xff]
  %v99 = vld [vmem:[%s4] sm:$0x7]
  %v100 = vld [vmem:[%s1] sm:$0xff]
  %v101 = vld [vmem:[%s1 + $0x8] sm:$0xff]
  %v102 = vld [vmem:[%s1 + $0x10] sm:$0xff]
  %v103 = vld [vmem:[%s1 + $0x18] sm:$0xff]
  %v104 = vld [vmem:[%s1 + $0x20] sm:$0xff]
  %v105 = vld [vmem:[%s1 + $0x28] sm:$0xff]
  %v106 = vld [vmem:[%s1 + $0x30] sm:$0xff]
  %v107 = vld [vmem:[%s1 + $0x38] sm:$0xff]
  %v108 = vld [vmem:[%s1 + $0x40] sm:$0xff]
  %v109 = vld [vmem:[%s1 + $0x48] sm:$0xff]
  %v110 = vld [vmem:[%s1 + $0x50] sm:$0xff]
  %v111 = vld [vmem:[%s1 + $0x58] sm:$0xff]
  %v112 = vld [vmem:[%s1 + $0x60] sm:$0xff]
  %v113 = vld [vmem:[%s1 + $0x68] sm:$0xff]
  %v114 = vld [vmem:[%s1 + $0x70] sm:$0xff]
  %v115 = vld [vmem:[%s1 + $0x78] sm:$0xff]
  %v116 = vld [vmem:[%s1 + $0x80] sm:$0xff]
  %v117 = vld [vmem:[%s1 + $0x88] sm:$0xff]
  %v118 = vld [vmem:[%s1 + $0x90] sm:$0xff]
  %v119 = vld [vmem:[%s1 + $0x98] sm:$0xff]
  %v120 = vld [vmem:[%s1 + $0xa0] sm:$0xff]
  %v121 = vld [vmem:[%s1 + $0xa8] sm:$0xff]
  %v122 = vld [vmem:[%s1 + $0xb0] sm:$0xff]
  %v123 = vld [vmem:[%s1 + $0xb8] sm:$0xff]
  %v124 = vld [vmem:[%s1 + $0xc0] sm:$0xff]
  %v125 = vld [vmem:[%s1 + $0xc8] sm:$0xff]
  %v126 = vld [vmem:[%s1 + $0xd0] sm:$0xff]
  %v127 = vld [vmem:[%s1 + $0xd8] sm:$0xff]
  %v128 = vld [vmem:[%s1 + $0xe0] sm:$0xff]
  %v129 = vld [vmem:[%s1 + $0xe8] sm:$0xff]
  %v130 = vld [vmem:[%s1 + $0xf0] sm:$0xff]
  %v131 = vld [vmem:[%s1 + $0xf8] sm:$0xff]
  %v132 = vld [vmem:[%s1 + $0x100] sm:$0xff]
  %v133 = vld [vmem:[%s1 + $0x108] sm:$0xff]
  %v134 = vld [vmem:[%s1 + $0x110] sm:$0xff]
  %v135 = vld [vmem:[%s1 + $0x118] sm:$0xff]
  %v136 = vld [vmem:[%s1 + $0x120] sm:$0xff]
  %v137 = vld [vmem:[%s1 + $0x128] sm:$0xff]
  %v138 = vld [vmem:[%s1 + $0x130] sm:$0xff]
  %v139 = vld [vmem:[%s1 + $0x138] sm:$0xff]
  %v140 = vld [vmem:[%s1 + $0x140] sm:$0xff]
  %v141 = vld [vmem:[%s1 + $0x148] sm:$0xff]
  %v142 = vld [vmem:[%s1 + $0x150] sm:$0xff]
  %v143 = vld [vmem:[%s1 + $0x158] sm:$0xff]
  %v144 = vld [vmem:[%s1 + $0x160] sm:$0xff]
  %v145 = vld [vmem:[%s1 + $0x168] sm:$0xff]
  %v146 = vld [vmem:[%s1 + $0x170] sm:$0xff]
  %v147 = vld [vmem:[%s1 + $0x178] sm:$0xff]
  %v148 = vld [vmem:[%s1 + $0x180] sm:$0xff]
  %v149 = vld [vmem:[%s1 + $0x188] sm:$0xff]
  %v150 = vld [vmem:[%s1 + $0x190] sm:$0xff]
  %v151 = vld [vmem:[%s1 + $0x198] sm:$0xff]
  %v152 = vld [vmem:[%s1 + $0x1a0] sm:$0xff]
  %v153 = vld [vmem:[%s1 + $0x1a8] sm:$0xff]
  %v154 = vld [vmem:[%s1 + $0x1b0] sm:$0xff]
  %v155 = vld [vmem:[%s1 + $0x1b8] sm:$0xff]
  %v156 = vld [vmem:[%s1 + $0x1c0] sm:$0xff]
  %v157 = vld [vmem:[%s1 + $0x1c8] sm:$0xff]
  %v158 = vld [vmem:[%s1 + $0x1d0] sm:$0xff]
  %v159 = vld [vmem:[%s1 + $0x1d8] sm:$0xff]
  %v160 = vld [vmem:[%s1 + $0x1e0] sm:$0xff]
  %v161 = vld [vmem:[%s1 + $0x1e8] sm:$0xff]
  %v162 = vld [vmem:[%s1 + $0x1f0] sm:$0xff]
  %v163 = vld [vmem:[%s1 + $0x1f8] sm:$0xff]
  %v164 = vld [vmem:[%s5] sm:$0x7]
  %vm165 = vcmask 23552
  %v167 = vsel %vm165, %v100, 0
  %v170 = vsel %vm165, %v101, 0
  %v173 = vsel %vm165, %v102, 0
  %v176 = vsel %vm165, %v103, 0
  %v179 = vsel %vm165, %v104, 0
  %v182 = vsel %vm165, %v105, 0
  %v185 = vsel %vm165, %v106, 0
  %v188 = vsel %vm165, %v107, 0
  %v191 = vsel %vm165, %v108, 0
  %v194 = vsel %vm165, %v109, 0
  %v197 = vsel %vm165, %v110, 0
  %v200 = vsel %vm165, %v111, 0
  %v203 = vsel %vm165, %v112, 0
  %v206 = vsel %vm165, %v113, 0
  %v209 = vsel %vm165, %v114, 0
  %v212 = vsel %vm165, %v115, 0
  %v215 = vsel %vm165, %v116, 0
  %v218 = vsel %vm165, %v117, 0
  %v221 = vsel %vm165, %v118, 0
  %v224 = vsel %vm165, %v119, 0
  %v227 = vsel %vm165, %v120, 0
  %v230 = vsel %vm165, %v121, 0
  %v233 = vsel %vm165, %v122, 0
  %v236 = vsel %vm165, %v123, 0
  %v239 = vsel %vm165, %v124, 0
  %v242 = vsel %vm165, %v125, 0
  %v245 = vsel %vm165, %v126, 0
  %v248 = vsel %vm165, %v127, 0
  %v251 = vsel %vm165, %v128, 0
  %v254 = vsel %vm165, %v129, 0
  %v257 = vsel %vm165, %v130, 0
  %v260 = vsel %vm165, %v131, 0
  %v263 = vsel %vm165, %v132, 0
  %v266 = vsel %vm165, %v133, 0
  %v269 = vsel %vm165, %v134, 0
  %v272 = vsel %vm165, %v135, 0
  %v275 = vsel %vm165, %v136, 0
  %v278 = vsel %vm165, %v137, 0
  %v281 = vsel %vm165, %v138, 0
  %v284 = vsel %vm165, %v139, 0
  %v287 = vsel %vm165, %v140, 0
  %v290 = vsel %vm165, %v141, 0
  %v293 = vsel %vm165, %v142, 0
  %v296 = vsel %vm165, %v143, 0
  %v299 = vsel %vm165, %v144, 0
  %v302 = vsel %vm165, %v145, 0
  %v305 = vsel %vm165, %v146, 0
  %v308 = vsel %vm165, %v147, 0
  %v311 = vsel %vm165, %v148, 0
  %v314 = vsel %vm165, %v149, 0
  %v317 = vsel %vm165, %v150, 0
  %v320 = vsel %vm165, %v151, 0
  %v323 = vsel %vm165, %v152, 0
  %v326 = vsel %vm165, %v153, 0
  %v329 = vsel %vm165, %v154, 0
  %v332 = vsel %vm165, %v155, 0
  %v335 = vsel %vm165, %v156, 0
  %v338 = vsel %vm165, %v157, 0
  %v341 = vsel %vm165, %v158, 0
  %v344 = vsel %vm165, %v159, 0
  %v347 = vsel %vm165, %v160, 0
  %v350 = vsel %vm165, %v161, 0
  %v353 = vsel %vm165, %v162, 0
  %v356 = vsel %vm165, %v163, 0
  %vm358 = vcmask 1042432
  %v360 = vsel %vm358, %v164, 0
  %362 = vmatprep.subr.mxu0 0.0
  %363 = vmatpush1.msra.mxu0 0.0
  %364 = vmatprep.subr.mxu0 0.0
  %365 = vmatpush1.msra.mxu0 0.0
  %366 = vmatprep.subr.mxu0 0.0
  %367 = vmatpush1.msra.mxu0 0.0
  %368 = vmatprep.subr.mxu0 0.0
  %369 = vmatpush1.msra.mxu0 0.0
  %370 = vmatprep.subr.mxu0 0.0
  %371 = vmatpush1.msra.mxu0 0.0
  %372 = vmatprep.subr.mxu0 0.0
  %373 = vmatpush1.msra.mxu0 0.0
  %374 = vmatprep.subr.mxu0 0.0
  %375 = vmatpush1.msra.mxu0 0.0
  %376 = vmatprep.subr.mxu0 0.0
  %377 = vmatpush1.msra.mxu0 0.0
  %378 = vmatprep.subr.mxu0 0.0
  %379 = vmatpush1.msra.mxu0 0.0
  %380 = vmatprep.subr.mxu0 0.0
  %381 = vmatpush1.msra.mxu0 0.0
  %382 = vmatprep.subr.mxu0 0.0
  %383 = vmatpush1.msra.mxu0 0.0
  %384 = vmatprep.subr.mxu0 0.0
  %385 = vmatpush1.msra.mxu0 0.0
  %386 = vmatprep.subr.mxu0 0.0
  %387 = vmatpush1.msra.mxu0 0.0
  %388 = vmatprep.subr.mxu0 0.0
  %389 = vmatpush1.msra.mxu0 0.0
  %390 = vmatprep.subr.mxu0 0.0
  %391 = vmatpush1.msra.mxu0 0.0
  %392 = vmatprep.subr.mxu0 0.0
  %393 = vmatpush1.msra.mxu0 %v360
  %394 = vmatprep.subr.mxu0 0.0
  %395 = vmatpush2.msra.mxu0 0.0
  %396 = vmatprep.subr.mxu0 0.0
  %397 = vmatpush2.msra.mxu0 0.0
  %398 = vmatprep.subr.mxu0 0.0
  %399 = vmatpush2.msra.mxu0 0.0
  %400 = vmatprep.subr.mxu0 0.0
  %401 = vmatpush2.msra.mxu0 0.0
  %402 = vmatprep.subr.mxu0 0.0
  %403 = vmatpush2.msra.mxu0 0.0
  %404 = vmatprep.subr.mxu0 0.0
  %405 = vmatpush2.msra.mxu0 0.0
  %406 = vmatprep.subr.mxu0 0.0
  %407 = vmatpush2.msra.mxu0 0.0
  %408 = vmatprep.subr.mxu0 0.0
  %409 = vmatpush2.msra.mxu0 0.0
  %410 = vmatprep.subr.mxu0 0.0
  %411 = vmatpush2.msra.mxu0 0.0
  %412 = vmatprep.subr.mxu0 0.0
  %413 = vmatpush2.msra.mxu0 0.0
  %414 = vmatprep.subr.mxu0 0.0
  %415 = vmatpush2.msra.mxu0 0.0
  %416 = vmatprep.subr.mxu0 0.0
  %417 = vmatpush2.msra.mxu0 0.0
  %418 = vmatprep.subr.mxu0 0.0
  %419 = vmatpush2.msra.mxu0 0.0
  %420 = vmatprep.subr.mxu0 0.0
  %421 = vmatpush2.msra.mxu0 0.0
  %422 = vmatprep.subr.mxu0 0.0
  %423 = vmatpush2.msra.mxu0 0.0
  %424 = vmatprep.subr.mxu0 0.0
  %425 = vmatpush2.msra.mxu0 0.0
  %426 = vmatprep.mubr.f32.mxu0 0.0
  %427 = vmatmul.mubr.f32.gmra.mxu0 %v167
  %v428 = vpop.f32.mrf.mxu0
  %v429 = vadd.f32 0.0, %v428
  %v430 = vpop.f32.mrf.mxu0
  %431 = vmatprep.mubr.f32.mxu0 0.0
  %432 = vmatmul.mubr.f32.gmra.mxu0 %v170
  %v433 = vpop.f32.mrf.mxu0
  %v434 = vadd.f32 0.0, %v433
  %v435 = vpop.f32.mrf.mxu0
  %436 = vmatprep.mubr.f32.mxu0 0.0
  %437 = vmatmul.mubr.f32.gmra.mxu0 %v173
  %v438 = vpop.f32.mrf.mxu0
  %v439 = vadd.f32 0.0, %v438
  %v440 = vpop.f32.mrf.mxu0
  %441 = vmatprep.mubr.f32.mxu0 0.0
  %442 = vmatmul.mubr.f32.gmra.mxu0 %v176
  %v443 = vpop.f32.mrf.mxu0
  %v444 = vadd.f32 0.0, %v443
  %v445 = vpop.f32.mrf.mxu0
  %446 = vmatprep.mubr.f32.mxu0 0.0
  %447 = vmatmul.mubr.f32.gmra.mxu0 %v179
  %v448 = vpop.f32.mrf.mxu0
  %v449 = vadd.f32 0.0, %v448
  %v450 = vpop.f32.mrf.mxu0
  %451 = vmatprep.mubr.f32.mxu0 0.0
  %452 = vmatmul.mubr.f32.gmra.mxu0 %v182
  %v453 = vpop.f32.mrf.mxu0
  %v454 = vadd.f32 0.0, %v453
  %v455 = vpop.f32.mrf.mxu0
  %456 = vmatprep.mubr.f32.mxu0 0.0
  %457 = vmatmul.mubr.f32.gmra.mxu0 %v185
  %v458 = vpop.f32.mrf.mxu0
  %v459 = vadd.f32 0.0, %v458
  %v460 = vpop.f32.mrf.mxu0
  %461 = vmatprep.mubr.f32.mxu0 0.0
  %462 = vmatmul.mubr.f32.gmra.mxu0 %v188
  %v463 = vpop.f32.mrf.mxu0
  %v464 = vadd.f32 0.0, %v463
  %v465 = vpop.f32.mrf.mxu0
  %466 = vmatprep.mubr.f32.mxu0 0.0
  %467 = vmatmul.mubr.f32.gmra.mxu0 %v191
  %v468 = vpop.f32.mrf.mxu0
  %v469 = vadd.f32 0.0, %v468
  %v470 = vpop.f32.mrf.mxu0
  %471 = vmatprep.mubr.f32.mxu0 0.0
  %472 = vmatmul.mubr.f32.gmra.mxu0 %v194
  %v473 = vpop.f32.mrf.mxu0
  %v474 = vadd.f32 0.0, %v473
  %v475 = vpop.f32.mrf.mxu0
  %476 = vmatprep.mubr.f32.mxu0 0.0
  %477 = vmatmul.mubr.f32.gmra.mxu0 %v197
  %v478 = vpop.f32.mrf.mxu0
  %v479 = vadd.f32 0.0, %v478
  %v480 = vpop.f32.mrf.mxu0
  %481 = vmatprep.mubr.f32.mxu0 0.0
  %482 = vmatmul.mubr.f32.gmra.mxu0 %v200
  %v483 = vpop.f32.mrf.mxu0
  %v484 = vadd.f32 0.0, %v483
  %v485 = vpop.f32.mrf.mxu0
  %486 = vmatprep.mubr.f32.mxu0 0.0
  %487 = vmatmul.mubr.f32.gmra.mxu0 %v203
  %v488 = vpop.f32.mrf.mxu0
  %v489 = vadd.f32 0.0, %v488
  %v490 = vpop.f32.mrf.mxu0
  %491 = vmatprep.mubr.f32.mxu0 0.0
  %492 = vmatmul.mubr.f32.gmra.mxu0 %v206
  %v493 = vpop.f32.mrf.mxu0
  %v494 = vadd.f32 0.0, %v493
  %v495 = vpop.f32.mrf.mxu0
  %496 = vmatprep.mubr.f32.mxu0 0.0
  %497 = vmatmul.mubr.f32.gmra.mxu0 %v209
  %v498 = vpop.f32.mrf.mxu0
  %v499 = vadd.f32 0.0, %v498
  %v500 = vpop.f32.mrf.mxu0
  %501 = vmatprep.mubr.f32.mxu0 0.0
  %502 = vmatmul.mubr.f32.gmra.mxu0 %v212
  %v503 = vpop.f32.mrf.mxu0
  %v504 = vadd.f32 0.0, %v503
  %v505 = vpop.f32.mrf.mxu0
  %506 = vmatprep.mubr.f32.mxu0 0.0
  %507 = vmatmul.mubr.f32.gmra.mxu0 %v215
  %v508 = vpop.f32.mrf.mxu0
  %v509 = vadd.f32 0.0, %v508
  %v510 = vpop.f32.mrf.mxu0
  %511 = vmatprep.mubr.f32.mxu0 0.0
  %512 = vmatmul.mubr.f32.gmra.mxu0 %v218
  %v513 = vpop.f32.mrf.mxu0
  %v514 = vadd.f32 0.0, %v513
  %v515 = vpop.f32.mrf.mxu0
  %516 = vmatprep.mubr.f32.mxu0 0.0
  %517 = vmatmul.mubr.f32.gmra.mxu0 %v221
  %v518 = vpop.f32.mrf.mxu0
  %v519 = vadd.f32 0.0, %v518
  %v520 = vpop.f32.mrf.mxu0
  %521 = vmatprep.mubr.f32.mxu0 0.0
  %522 = vmatmul.mubr.f32.gmra.mxu0 %v224
  %v523 = vpop.f32.mrf.mxu0
  %v524 = vadd.f32 0.0, %v523
  %v525 = vpop.f32.mrf.mxu0
  %526 = vmatprep.mubr.f32.mxu0 0.0
  %527 = vmatmul.mubr.f32.gmra.mxu0 %v227
  %v528 = vpop.f32.mrf.mxu0
  %v529 = vadd.f32 0.0, %v528
  %v530 = vpop.f32.mrf.mxu0
  %531 = vmatprep.mubr.f32.mxu0 0.0
  %532 = vmatmul.mubr.f32.gmra.mxu0 %v230
  %v533 = vpop.f32.mrf.mxu0
  %v534 = vadd.f32 0.0, %v533
  %v535 = vpop.f32.mrf.mxu0
  %536 = vmatprep.mubr.f32.mxu0 0.0
  %537 = vmatmul.mubr.f32.gmra.mxu0 %v233
  %v538 = vpop.f32.mrf.mxu0
  %v539 = vadd.f32 0.0, %v538
  %v540 = vpop.f32.mrf.mxu0
  %541 = vmatprep.mubr.f32.mxu0 0.0
  %542 = vmatmul.mubr.f32.gmra.mxu0 %v236
  %v543 = vpop.f32.mrf.mxu0
  %v544 = vadd.f32 0.0, %v543
  %v545 = vpop.f32.mrf.mxu0
  %546 = vmatprep.mubr.f32.mxu0 0.0
  %547 = vmatmul.mubr.f32.gmra.mxu0 %v239
  %v548 = vpop.f32.mrf.mxu0
  %v549 = vadd.f32 0.0, %v548
  %v550 = vpop.f32.mrf.mxu0
  %551 = vmatprep.mubr.f32.mxu0 0.0
  %552 = vmatmul.mubr.f32.gmra.mxu0 %v242
  %v553 = vpop.f32.mrf.mxu0
  %v554 = vadd.f32 0.0, %v553
  %v555 = vpop.f32.mrf.mxu0
  %556 = vmatprep.mubr.f32.mxu0 0.0
  %557 = vmatmul.mubr.f32.gmra.mxu0 %v245
  %v558 = vpop.f32.mrf.mxu0
  %v559 = vadd.f32 0.0, %v558
  %v560 = vpop.f32.mrf.mxu0
  %561 = vmatprep.mubr.f32.mxu0 0.0
  %562 = vmatmul.mubr.f32.gmra.mxu0 %v248
  %v563 = vpop.f32.mrf.mxu0
  %v564 = vadd.f32 0.0, %v563
  %v565 = vpop.f32.mrf.mxu0
  %566 = vmatprep.mubr.f32.mxu0 0.0
  %567 = vmatmul.mubr.f32.gmra.mxu0 %v251
  %v568 = vpop.f32.mrf.mxu0
  %v569 = vadd.f32 0.0, %v568
  %v570 = vpop.f32.mrf.mxu0
  %571 = vmatprep.mubr.f32.mxu0 0.0
  %572 = vmatmul.mubr.f32.gmra.mxu0 %v254
  %v573 = vpop.f32.mrf.mxu0
  %v574 = vadd.f32 0.0, %v573
  %v575 = vpop.f32.mrf.mxu0
  %576 = vmatprep.mubr.f32.mxu0 0.0
  %577 = vmatmul.mubr.f32.gmra.mxu0 %v257
  %v578 = vpop.f32.mrf.mxu0
  %v579 = vadd.f32 0.0, %v578
  %v580 = vpop.f32.mrf.mxu0
  %581 = vmatprep.mubr.f32.mxu0 0.0
  %582 = vmatmul.mubr.f32.gmra.mxu0 %v260
  %v583 = vpop.f32.mrf.mxu0
  %v584 = vadd.f32 0.0, %v583
  %v585 = vpop.f32.mrf.mxu0
  %586 = vmatprep.mubr.f32.mxu0 0.0
  %587 = vmatmul.mubr.f32.gmra.mxu0 %v263
  %v588 = vpop.f32.mrf.mxu0
  %v589 = vadd.f32 0.0, %v588
  %v590 = vpop.f32.mrf.mxu0
  %591 = vmatprep.mubr.f32.mxu0 0.0
  %592 = vmatmul.mubr.f32.gmra.mxu0 %v266
  %v593 = vpop.f32.mrf.mxu0
  %v594 = vadd.f32 0.0, %v593
  %v595 = vpop.f32.mrf.mxu0
  %596 = vmatprep.mubr.f32.mxu0 0.0
  %597 = vmatmul.mubr.f32.gmra.mxu0 %v269
  %v598 = vpop.f32.mrf.mxu0
  %v599 = vadd.f32 0.0, %v598
  %v600 = vpop.f32.mrf.mxu0
  %601 = vmatprep.mubr.f32.mxu0 0.0
  %602 = vmatmul.mubr.f32.gmra.mxu0 %v272
  %v603 = vpop.f32.mrf.mxu0
  %v604 = vadd.f32 0.0, %v603
  %v605 = vpop.f32.mrf.mxu0
  %606 = vmatprep.mubr.f32.mxu0 0.0
  %607 = vmatmul.mubr.f32.gmra.mxu0 %v275
  %v608 = vpop.f32.mrf.mxu0
  %v609 = vadd.f32 0.0, %v608
  %v610 = vpop.f32.mrf.mxu0
  %611 = vmatprep.mubr.f32.mxu0 0.0
  %612 = vmatmul.mubr.f32.gmra.mxu0 %v278
  %v613 = vpop.f32.mrf.mxu0
  %v614 = vadd.f32 0.0, %v613
  %v615 = vpop.f32.mrf.mxu0
  %616 = vmatprep.mubr.f32.mxu0 0.0
  %617 = vmatmul.mubr.f32.gmra.mxu0 %v281
  %v618 = vpop.f32.mrf.mxu0
  %v619 = vadd.f32 0.0, %v618
  %v620 = vpop.f32.mrf.mxu0
  %621 = vmatprep.mubr.f32.mxu0 0.0
  %622 = vmatmul.mubr.f32.gmra.mxu0 %v284
  %v623 = vpop.f32.mrf.mxu0
  %v624 = vadd.f32 0.0, %v623
  %v625 = vpop.f32.mrf.mxu0
  %626 = vmatprep.mubr.f32.mxu0 0.0
  %627 = vmatmul.mubr.f32.gmra.mxu0 %v287
  %v628 = vpop.f32.mrf.mxu0
  %v629 = vadd.f32 0.0, %v628
  %v630 = vpop.f32.mrf.mxu0
  %631 = vmatprep.mubr.f32.mxu0 0.0
  %632 = vmatmul.mubr.f32.gmra.mxu0 %v290
  %v633 = vpop.f32.mrf.mxu0
  %v634 = vadd.f32 0.0, %v633
  %v635 = vpop.f32.mrf.mxu0
  %636 = vmatprep.mubr.f32.mxu0 0.0
  %637 = vmatmul.mubr.f32.gmra.mxu0 %v293
  %v638 = vpop.f32.mrf.mxu0
  %v639 = vadd.f32 0.0, %v638
  %v640 = vpop.f32.mrf.mxu0
  %641 = vmatprep.mubr.f32.mxu0 0.0
  %642 = vmatmul.mubr.f32.gmra.mxu0 %v296
  %v643 = vpop.f32.mrf.mxu0
  %v644 = vadd.f32 0.0, %v643
  %v645 = vpop.f32.mrf.mxu0
  %646 = vmatprep.mubr.f32.mxu0 0.0
  %647 = vmatmul.mubr.f32.gmra.mxu0 %v299
  %v648 = vpop.f32.mrf.mxu0
  %v649 = vadd.f32 0.0, %v648
  %v650 = vpop.f32.mrf.mxu0
  %651 = vmatprep.mubr.f32.mxu0 0.0
  %652 = vmatmul.mubr.f32.gmra.mxu0 %v302
  %v653 = vpop.f32.mrf.mxu0
  %v654 = vadd.f32 0.0, %v653
  %v655 = vpop.f32.mrf.mxu0
  %656 = vmatprep.mubr.f32.mxu0 0.0
  %657 = vmatmul.mubr.f32.gmra.mxu0 %v305
  %v658 = vpop.f32.mrf.mxu0
  %v659 = vadd.f32 0.0, %v658
  %v660 = vpop.f32.mrf.mxu0
  %661 = vmatprep.mubr.f32.mxu0 0.0
  %662 = vmatmul.mubr.f32.gmra.mxu0 %v308
  %v663 = vpop.f32.mrf.mxu0
  %v664 = vadd.f32 0.0, %v663
  %v665 = vpop.f32.mrf.mxu0
  %666 = vmatprep.mubr.f32.mxu0 0.0
  %667 = vmatmul.mubr.f32.gmra.mxu0 %v311
  %v668 = vpop.f32.mrf.mxu0
  %v669 = vadd.f32 0.0, %v668
  %v670 = vpop.f32.mrf.mxu0
  %671 = vmatprep.mubr.f32.mxu0 0.0
  %672 = vmatmul.mubr.f32.gmra.mxu0 %v314
  %v673 = vpop.f32.mrf.mxu0
  %v674 = vadd.f32 0.0, %v673
  %v675 = vpop.f32.mrf.mxu0
  %676 = vmatprep.mubr.f32.mxu0 0.0
  %677 = vmatmul.mubr.f32.gmra.mxu0 %v317
  %v678 = vpop.f32.mrf.mxu0
  %v679 = vadd.f32 0.0, %v678
  %v680 = vpop.f32.mrf.mxu0
  %681 = vmatprep.mubr.f32.mxu0 0.0
  %682 = vmatmul.mubr.f32.gmra.mxu0 %v320
  %v683 = vpop.f32.mrf.mxu0
  %v684 = vadd.f32 0.0, %v683
  %v685 = vpop.f32.mrf.mxu0
  %686 = vmatprep.mubr.f32.mxu0 0.0
  %687 = vmatmul.mubr.f32.gmra.mxu0 %v323
  %v688 = vpop.f32.mrf.mxu0
  %v689 = vadd.f32 0.0, %v688
  %v690 = vpop.f32.mrf.mxu0
  %691 = vmatprep.mubr.f32.mxu0 0.0
  %692 = vmatmul.mubr.f32.gmra.mxu0 %v326
  %v693 = vpop.f32.mrf.mxu0
  %v694 = vadd.f32 0.0, %v693
  %v695 = vpop.f32.mrf.mxu0
  %696 = vmatprep.mubr.f32.mxu0 0.0
  %697 = vmatmul.mubr.f32.gmra.mxu0 %v329
  %v698 = vpop.f32.mrf.mxu0
  %v699 = vadd.f32 0.0, %v698
  %v700 = vpop.f32.mrf.mxu0
  %701 = vmatprep.mubr.f32.mxu0 0.0
  %702 = vmatmul.mubr.f32.gmra.mxu0 %v332
  %v703 = vpop.f32.mrf.mxu0
  %v704 = vadd.f32 0.0, %v703
  %v705 = vpop.f32.mrf.mxu0
  %706 = vmatprep.mubr.f32.mxu0 0.0
  %707 = vmatmul.mubr.f32.gmra.mxu0 %v335
  %v708 = vpop.f32.mrf.mxu0
  %v709 = vadd.f32 0.0, %v708
  %v710 = vpop.f32.mrf.mxu0
  %711 = vmatprep.mubr.f32.mxu0 0.0
  %712 = vmatmul.mubr.f32.gmra.mxu0 %v338
  %v713 = vpop.f32.mrf.mxu0
  %v714 = vadd.f32 0.0, %v713
  %v715 = vpop.f32.mrf.mxu0
  %716 = vmatprep.mubr.f32.mxu0 0.0
  %717 = vmatmul.mubr.f32.gmra.mxu0 %v341
  %v718 = vpop.f32.mrf.mxu0
  %v719 = vadd.f32 0.0, %v718
  %v720 = vpop.f32.mrf.mxu0
  %721 = vmatprep.mubr.f32.mxu0 0.0
  %722 = vmatmul.mubr.f32.gmra.mxu0 %v344
  %v723 = vpop.f32.mrf.mxu0
  %v724 = vadd.f32 0.0, %v723
  %v725 = vpop.f32.mrf.mxu0
  %726 = vmatprep.mubr.f32.mxu0 0.0
  %727 = vmatmul.mubr.f32.gmra.mxu0 %v347
  %v728 = vpop.f32.mrf.mxu0
  %v729 = vadd.f32 0.0, %v728
  %v730 = vpop.f32.mrf.mxu0
  %731 = vmatprep.mubr.f32.mxu0 0.0
  %732 = vmatmul.mubr.f32.gmra.mxu0 %v350
  %v733 = vpop.f32.mrf.mxu0
  %v734 = vadd.f32 0.0, %v733
  %v735 = vpop.f32.mrf.mxu0
  %736 = vmatprep.mubr.f32.mxu0 0.0
  %737 = vmatmul.mubr.f32.gmra.mxu0 %v353
  %v738 = vpop.f32.mrf.mxu0
  %v739 = vadd.f32 0.0, %v738
  %v740 = vpop.f32.mrf.mxu0
  %741 = vmatprep.mubr.f32.mxu0 0.0
  %742 = vmatmul.mubr.f32.gmra.mxu0 %v356
  %v743 = vpop.f32.mrf.mxu0
  %v744 = vadd.f32 0.0, %v743
  %v745 = vpop.f32.mrf.mxu0
  %746 = vdwg.mxu0
  %v748 = vsel %vm165, %v35, 0
  %v751 = vsel %vm165, %v36, 0
  %v754 = vsel %vm165, %v37, 0
  %v757 = vsel %vm165, %v38, 0
  %v760 = vsel %vm165, %v39, 0
  %v763 = vsel %vm165, %v40, 0
  %v766 = vsel %vm165, %v41, 0
  %v769 = vsel %vm165, %v42, 0
  %v772 = vsel %vm165, %v43, 0
  %v775 = vsel %vm165, %v44, 0
  %v778 = vsel %vm165, %v45, 0
  %v781 = vsel %vm165, %v46, 0
  %v784 = vsel %vm165, %v47, 0
  %v787 = vsel %vm165, %v48, 0
  %v790 = vsel %vm165, %v49, 0
  %v793 = vsel %vm165, %v50, 0
  %v796 = vsel %vm165, %v51, 0
  %v799 = vsel %vm165, %v52, 0
  %v802 = vsel %vm165, %v53, 0
  %v805 = vsel %vm165, %v54, 0
  %v808 = vsel %vm165, %v55, 0
  %v811 = vsel %vm165, %v56, 0
  %v814 = vsel %vm165, %v57, 0
  %v817 = vsel %vm165, %v58, 0
  %v820 = vsel %vm165, %v59, 0
  %v823 = vsel %vm165, %v60, 0
  %v826 = vsel %vm165, %v61, 0
  %v829 = vsel %vm165, %v62, 0
  %v832 = vsel %vm165, %v63, 0
  %v835 = vsel %vm165, %v64, 0
  %v838 = vsel %vm165, %v65, 0
  %v841 = vsel %vm165, %v66, 0
  %v844 = vsel %vm165, %v67, 0
  %v847 = vsel %vm165, %v68, 0
  %v850 = vsel %vm165, %v69, 0
  %v853 = vsel %vm165, %v70, 0
  %v856 = vsel %vm165, %v71, 0
  %v859 = vsel %vm165, %v72, 0
  %v862 = vsel %vm165, %v73, 0
  %v865 = vsel %vm165, %v74, 0
  %v868 = vsel %vm165, %v75, 0
  %v871 = vsel %vm165, %v76, 0
  %v874 = vsel %vm165, %v77, 0
  %v877 = vsel %vm165, %v78, 0
  %v880 = vsel %vm165, %v79, 0
  %v883 = vsel %vm165, %v80, 0
  %v886 = vsel %vm165, %v81, 0
  %v889 = vsel %vm165, %v82, 0
  %v892 = vsel %vm165, %v83, 0
  %v895 = vsel %vm165, %v84, 0
  %v898 = vsel %vm165, %v85, 0
  %v901 = vsel %vm165, %v86, 0
  %v904 = vsel %vm165, %v87, 0
  %v907 = vsel %vm165, %v88, 0
  %v910 = vsel %vm165, %v89, 0
  %v913 = vsel %vm165, %v90, 0
  %v916 = vsel %vm165, %v91, 0
  %v919 = vsel %vm165, %v92, 0
  %v922 = vsel %vm165, %v93, 0
  %v925 = vsel %vm165, %v94, 0
  %v928 = vsel %vm165, %v95, 0
  %v931 = vsel %vm165, %v96, 0
  %v934 = vsel %vm165, %v97, 0
  %v937 = vsel %vm165, %v98, 0
  %v940 = vsel %vm358, %v99, 0
  %942 = vmatprep.subr.mxu0 0.0
  %943 = vmatpush1.msra.mxu0 0.0
  %944 = vmatprep.subr.mxu0 0.0
  %945 = vmatpush1.msra.mxu0 0.0
  %946 = vmatprep.subr.mxu0 0.0
  %947 = vmatpush1.msra.mxu0 0.0
  %948 = vmatprep.subr.mxu0 0.0
  %949 = vmatpush1.msra.mxu0 0.0
  %950 = vmatprep.subr.mxu0 0.0
  %951 = vmatpush1.msra.mxu0 0.0
  %952 = vmatprep.subr.mxu0 0.0
  %953 = vmatpush1.msra.mxu0 0.0
  %954 = vmatprep.subr.mxu0 0.0
  %955 = vmatpush1.msra.mxu0 0.0
  %956 = vmatprep.subr.mxu0 0.0
  %957 = vmatpush1.msra.mxu0 0.0
  %958 = vmatprep.subr.mxu0 0.0
  %959 = vmatpush1.msra.mxu0 0.0
  %960 = vmatprep.subr.mxu0 0.0
  %961 = vmatpush1.msra.mxu0 0.0
  %962 = vmatprep.subr.mxu0 0.0
  %963 = vmatpush1.msra.mxu0 0.0
  %964 = vmatprep.subr.mxu0 0.0
  %965 = vmatpush1.msra.mxu0 0.0
  %966 = vmatprep.subr.mxu0 0.0
  %967 = vmatpush1.msra.mxu0 0.0
  %968 = vmatprep.subr.mxu0 0.0
  %969 = vmatpush1.msra.mxu0 0.0
  %970 = vmatprep.subr.mxu0 0.0
  %971 = vmatpush1.msra.mxu0 0.0
  %972 = vmatprep.subr.mxu0 0.0
  %973 = vmatpush1.msra.mxu0 %v940
  %974 = vmatprep.subr.mxu0 0.0
  %975 = vmatpush2.msra.mxu0 0.0
  %976 = vmatprep.subr.mxu0 0.0
  %977 = vmatpush2.msra.mxu0 0.0
  %978 = vmatprep.subr.mxu0 0.0
  %979 = vmatpush2.msra.mxu0 0.0
  %980 = vmatprep.subr.mxu0 0.0
  %981 = vmatpush2.msra.mxu0 0.0
  %982 = vmatprep.subr.mxu0 0.0
  %983 = vmatpush2.msra.mxu0 0.0
  %984 = vmatprep.subr.mxu0 0.0
  %985 = vmatpush2.msra.mxu0 0.0
  %986 = vmatprep.subr.mxu0 0.0
  %987 = vmatpush2.msra.mxu0 0.0
  %988 = vmatprep.subr.mxu0 0.0
  %989 = vmatpush2.msra.mxu0 0.0
  %990 = vmatprep.subr.mxu0 0.0
  %991 = vmatpush2.msra.mxu0 0.0
  %992 = vmatprep.subr.mxu0 0.0
  %993 = vmatpush2.msra.mxu0 0.0
  %994 = vmatprep.subr.mxu0 0.0
  %995 = vmatpush2.msra.mxu0 0.0
  %996 = vmatprep.subr.mxu0 0.0
  %997 = vmatpush2.msra.mxu0 0.0
  %998 = vmatprep.subr.mxu0 0.0
  %999 = vmatpush2.msra.mxu0 0.0
  %1000 = vmatprep.subr.mxu0 0.0
  %1001 = vmatpush2.msra.mxu0 0.0
  %1002 = vmatprep.subr.mxu0 0.0
  %1003 = vmatpush2.msra.mxu0 0.0
  %1004 = vmatprep.subr.mxu0 0.0
  %1005 = vmatpush2.msra.mxu0 0.0
  %1006 = vmatprep.mubr.f32.mxu0 0.0
  %1007 = vmatmul.mubr.f32.gmra.mxu0 %v748
  %v1008 = vpop.f32.mrf.mxu0
  %v1009 = vadd.f32 %v429, %v1008
  %v1010 = vpop.f32.mrf.mxu0
  %1011 = vmatprep.mubr.f32.mxu0 0.0
  %1012 = vmatmul.mubr.f32.gmra.mxu0 %v751
  %v1013 = vpop.f32.mrf.mxu0
  %v1014 = vadd.f32 %v434, %v1013
  %v1015 = vpop.f32.mrf.mxu0
  %1016 = vmatprep.mubr.f32.mxu0 0.0
  %1017 = vmatmul.mubr.f32.gmra.mxu0 %v754
  %v1018 = vpop.f32.mrf.mxu0
  %v1019 = vadd.f32 %v439, %v1018
  %v1020 = vpop.f32.mrf.mxu0
  %1021 = vmatprep.mubr.f32.mxu0 0.0
  %1022 = vmatmul.mubr.f32.gmra.mxu0 %v757
  %v1023 = vpop.f32.mrf.mxu0
  %v1024 = vadd.f32 %v444, %v1023
  %v1025 = vpop.f32.mrf.mxu0
  %1026 = vmatprep.mubr.f32.mxu0 0.0
  %1027 = vmatmul.mubr.f32.gmra.mxu0 %v760
  %v1028 = vpop.f32.mrf.mxu0
  %v1029 = vadd.f32 %v449, %v1028
  %v1030 = vpop.f32.mrf.mxu0
  %1031 = vmatprep.mubr.f32.mxu0 0.0
  %1032 = vmatmul.mubr.f32.gmra.mxu0 %v763
  %v1033 = vpop.f32.mrf.mxu0
  %v1034 = vadd.f32 %v454, %v1033
  %v1035 = vpop.f32.mrf.mxu0
  %1036 = vmatprep.mubr.f32.mxu0 0.0
  %1037 = vmatmul.mubr.f32.gmra.mxu0 %v766
  %v1038 = vpop.f32.mrf.mxu0
  %v1039 = vadd.f32 %v459, %v1038
  %v1040 = vpop.f32.mrf.mxu0
  %1041 = vmatprep.mubr.f32.mxu0 0.0
  %1042 = vmatmul.mubr.f32.gmra.mxu0 %v769
  %v1043 = vpop.f32.mrf.mxu0
  %v1044 = vadd.f32 %v464, %v1043
  %v1045 = vpop.f32.mrf.mxu0
  %1046 = vmatprep.mubr.f32.mxu0 0.0
  %1047 = vmatmul.mubr.f32.gmra.mxu0 %v772
  %v1048 = vpop.f32.mrf.mxu0
  %v1049 = vadd.f32 %v469, %v1048
  %v1050 = vpop.f32.mrf.mxu0
  %1051 = vmatprep.mubr.f32.mxu0 0.0
  %1052 = vmatmul.mubr.f32.gmra.mxu0 %v775
  %v1053 = vpop.f32.mrf.mxu0
  %v1054 = vadd.f32 %v474, %v1053
  %v1055 = vpop.f32.mrf.mxu0
  %1056 = vmatprep.mubr.f32.mxu0 0.0
  %1057 = vmatmul.mubr.f32.gmra.mxu0 %v778
  %v1058 = vpop.f32.mrf.mxu0
  %v1059 = vadd.f32 %v479, %v1058
  %v1060 = vpop.f32.mrf.mxu0
  %1061 = vmatprep.mubr.f32.mxu0 0.0
  %1062 = vmatmul.mubr.f32.gmra.mxu0 %v781
  %v1063 = vpop.f32.mrf.mxu0
  %v1064 = vadd.f32 %v484, %v1063
  %v1065 = vpop.f32.mrf.mxu0
  %1066 = vmatprep.mubr.f32.mxu0 0.0
  %1067 = vmatmul.mubr.f32.gmra.mxu0 %v784
  %v1068 = vpop.f32.mrf.mxu0
  %v1069 = vadd.f32 %v489, %v1068
  %v1070 = vpop.f32.mrf.mxu0
  %1071 = vmatprep.mubr.f32.mxu0 0.0
  %1072 = vmatmul.mubr.f32.gmra.mxu0 %v787
  %v1073 = vpop.f32.mrf.mxu0
  %v1074 = vadd.f32 %v494, %v1073
  %v1075 = vpop.f32.mrf.mxu0
  %1076 = vmatprep.mubr.f32.mxu0 0.0
  %1077 = vmatmul.mubr.f32.gmra.mxu0 %v790
  %v1078 = vpop.f32.mrf.mxu0
  %v1079 = vadd.f32 %v499, %v1078
  %v1080 = vpop.f32.mrf.mxu0
  %1081 = vmatprep.mubr.f32.mxu0 0.0
  %1082 = vmatmul.mubr.f32.gmra.mxu0 %v793
  %v1083 = vpop.f32.mrf.mxu0
  %v1084 = vadd.f32 %v504, %v1083
  %v1085 = vpop.f32.mrf.mxu0
  %1086 = vmatprep.mubr.f32.mxu0 0.0
  %1087 = vmatmul.mubr.f32.gmra.mxu0 %v796
  %v1088 = vpop.f32.mrf.mxu0
  %v1089 = vadd.f32 %v509, %v1088
  %v1090 = vpop.f32.mrf.mxu0
  %1091 = vmatprep.mubr.f32.mxu0 0.0
  %1092 = vmatmul.mubr.f32.gmra.mxu0 %v799
  %v1093 = vpop.f32.mrf.mxu0
  %v1094 = vadd.f32 %v514, %v1093
  %v1095 = vpop.f32.mrf.mxu0
  %1096 = vmatprep.mubr.f32.mxu0 0.0
  %1097 = vmatmul.mubr.f32.gmra.mxu0 %v802
  %v1098 = vpop.f32.mrf.mxu0
  %v1099 = vadd.f32 %v519, %v1098
  %v1100 = vpop.f32.mrf.mxu0
  %1101 = vmatprep.mubr.f32.mxu0 0.0
  %1102 = vmatmul.mubr.f32.gmra.mxu0 %v805
  %v1103 = vpop.f32.mrf.mxu0
  %v1104 = vadd.f32 %v524, %v1103
  %v1105 = vpop.f32.mrf.mxu0
  %1106 = vmatprep.mubr.f32.mxu0 0.0
  %1107 = vmatmul.mubr.f32.gmra.mxu0 %v808
  %v1108 = vpop.f32.mrf.mxu0
  %v1109 = vadd.f32 %v529, %v1108
  %v1110 = vpop.f32.mrf.mxu0
  %1111 = vmatprep.mubr.f32.mxu0 0.0
  %1112 = vmatmul.mubr.f32.gmra.mxu0 %v811
  %v1113 = vpop.f32.mrf.mxu0
  %v1114 = vadd.f32 %v534, %v1113
  %v1115 = vpop.f32.mrf.mxu0
  %1116 = vmatprep.mubr.f32.mxu0 0.0
  %1117 = vmatmul.mubr.f32.gmra.mxu0 %v814
  %v1118 = vpop.f32.mrf.mxu0
  %v1119 = vadd.f32 %v539, %v1118
  %v1120 = vpop.f32.mrf.mxu0
  %1121 = vmatprep.mubr.f32.mxu0 0.0
  %1122 = vmatmul.mubr.f32.gmra.mxu0 %v817
  %v1123 = vpop.f32.mrf.mxu0
  %v1124 = vadd.f32 %v544, %v1123
  %v1125 = vpop.f32.mrf.mxu0
  %1126 = vmatprep.mubr.f32.mxu0 0.0
  %1127 = vmatmul.mubr.f32.gmra.mxu0 %v820
  %v1128 = vpop.f32.mrf.mxu0
  %v1129 = vadd.f32 %v549, %v1128
  %v1130 = vpop.f32.mrf.mxu0
  %1131 = vmatprep.mubr.f32.mxu0 0.0
  %1132 = vmatmul.mubr.f32.gmra.mxu0 %v823
  %v1133 = vpop.f32.mrf.mxu0
  %v1134 = vadd.f32 %v554, %v1133
  %v1135 = vpop.f32.mrf.mxu0
  %1136 = vmatprep.mubr.f32.mxu0 0.0
  %1137 = vmatmul.mubr.f32.gmra.mxu0 %v826
  %v1138 = vpop.f32.mrf.mxu0
  %v1139 = vadd.f32 %v559, %v1138
  %v1140 = vpop.f32.mrf.mxu0
  %1141 = vmatprep.mubr.f32.mxu0 0.0
  %1142 = vmatmul.mubr.f32.gmra.mxu0 %v829
  %v1143 = vpop.f32.mrf.mxu0
  %v1144 = vadd.f32 %v564, %v1143
  %v1145 = vpop.f32.mrf.mxu0
  %1146 = vmatprep.mubr.f32.mxu0 0.0
  %1147 = vmatmul.mubr.f32.gmra.mxu0 %v832
  %v1148 = vpop.f32.mrf.mxu0
  %v1149 = vadd.f32 %v569, %v1148
  %v1150 = vpop.f32.mrf.mxu0
  %1151 = vmatprep.mubr.f32.mxu0 0.0
  %1152 = vmatmul.mubr.f32.gmra.mxu0 %v835
  %v1153 = vpop.f32.mrf.mxu0
  %v1154 = vadd.f32 %v574, %v1153
  %v1155 = vpop.f32.mrf.mxu0
  %1156 = vmatprep.mubr.f32.mxu0 0.0
  %1157 = vmatmul.mubr.f32.gmra.mxu0 %v838
  %v1158 = vpop.f32.mrf.mxu0
  %v1159 = vadd.f32 %v579, %v1158
  %v1160 = vpop.f32.mrf.mxu0
  %1161 = vmatprep.mubr.f32.mxu0 0.0
  %1162 = vmatmul.mubr.f32.gmra.mxu0 %v841
  %v1163 = vpop.f32.mrf.mxu0
  %v1164 = vadd.f32 %v584, %v1163
  %v1165 = vpop.f32.mrf.mxu0
  %1166 = vmatprep.mubr.f32.mxu0 0.0
  %1167 = vmatmul.mubr.f32.gmra.mxu0 %v844
  %v1168 = vpop.f32.mrf.mxu0
  %v1169 = vadd.f32 %v589, %v1168
  %v1170 = vpop.f32.mrf.mxu0
  %1171 = vmatprep.mubr.f32.mxu0 0.0
  %1172 = vmatmul.mubr.f32.gmra.mxu0 %v847
  %v1173 = vpop.f32.mrf.mxu0
  %v1174 = vadd.f32 %v594, %v1173
  %v1175 = vpop.f32.mrf.mxu0
  %1176 = vmatprep.mubr.f32.mxu0 0.0
  %1177 = vmatmul.mubr.f32.gmra.mxu0 %v850
  %v1178 = vpop.f32.mrf.mxu0
  %v1179 = vadd.f32 %v599, %v1178
  %v1180 = vpop.f32.mrf.mxu0
  %1181 = vmatprep.mubr.f32.mxu0 0.0
  %1182 = vmatmul.mubr.f32.gmra.mxu0 %v853
  %v1183 = vpop.f32.mrf.mxu0
  %v1184 = vadd.f32 %v604, %v1183
  %v1185 = vpop.f32.mrf.mxu0
  %1186 = vmatprep.mubr.f32.mxu0 0.0
  %1187 = vmatmul.mubr.f32.gmra.mxu0 %v856
  %v1188 = vpop.f32.mrf.mxu0
  %v1189 = vadd.f32 %v609, %v1188
  %v1190 = vpop.f32.mrf.mxu0
  %1191 = vmatprep.mubr.f32.mxu0 0.0
  %1192 = vmatmul.mubr.f32.gmra.mxu0 %v859
  %v1193 = vpop.f32.mrf.mxu0
  %v1194 = vadd.f32 %v614, %v1193
  %v1195 = vpop.f32.mrf.mxu0
  %1196 = vmatprep.mubr.f32.mxu0 0.0
  %1197 = vmatmul.mubr.f32.gmra.mxu0 %v862
  %v1198 = vpop.f32.mrf.mxu0
  %v1199 = vadd.f32 %v619, %v1198
  %v1200 = vpop.f32.mrf.mxu0
  %1201 = vmatprep.mubr.f32.mxu0 0.0
  %1202 = vmatmul.mubr.f32.gmra.mxu0 %v865
  %v1203 = vpop.f32.mrf.mxu0
  %v1204 = vadd.f32 %v624, %v1203
  %v1205 = vpop.f32.mrf.mxu0
  %1206 = vmatprep.mubr.f32.mxu0 0.0
  %1207 = vmatmul.mubr.f32.gmra.mxu0 %v868
  %v1208 = vpop.f32.mrf.mxu0
  %v1209 = vadd.f32 %v629, %v1208
  %v1210 = vpop.f32.mrf.mxu0
  %1211 = vmatprep.mubr.f32.mxu0 0.0
  %1212 = vmatmul.mubr.f32.gmra.mxu0 %v871
  %v1213 = vpop.f32.mrf.mxu0
  %v1214 = vadd.f32 %v634, %v1213
  %v1215 = vpop.f32.mrf.mxu0
  %1216 = vmatprep.mubr.f32.mxu0 0.0
  %1217 = vmatmul.mubr.f32.gmra.mxu0 %v874
  %v1218 = vpop.f32.mrf.mxu0
  %v1219 = vadd.f32 %v639, %v1218
  %v1220 = vpop.f32.mrf.mxu0
  %1221 = vmatprep.mubr.f32.mxu0 0.0
  %1222 = vmatmul.mubr.f32.gmra.mxu0 %v877
  %v1223 = vpop.f32.mrf.mxu0
  %v1224 = vadd.f32 %v644, %v1223
  %v1225 = vpop.f32.mrf.mxu0
  %1226 = vmatprep.mubr.f32.mxu0 0.0
  %1227 = vmatmul.mubr.f32.gmra.mxu0 %v880
  %v1228 = vpop.f32.mrf.mxu0
  %v1229 = vadd.f32 %v649, %v1228
  %v1230 = vpop.f32.mrf.mxu0
  %1231 = vmatprep.mubr.f32.mxu0 0.0
  %1232 = vmatmul.mubr.f32.gmra.mxu0 %v883
  %v1233 = vpop.f32.mrf.mxu0
  %v1234 = vadd.f32 %v654, %v1233
  %v1235 = vpop.f32.mrf.mxu0
  %1236 = vmatprep.mubr.f32.mxu0 0.0
  %1237 = vmatmul.mubr.f32.gmra.mxu0 %v886
  %v1238 = vpop.f32.mrf.mxu0
  %v1239 = vadd.f32 %v659, %v1238
  %v1240 = vpop.f32.mrf.mxu0
  %1241 = vmatprep.mubr.f32.mxu0 0.0
  %1242 = vmatmul.mubr.f32.gmra.mxu0 %v889
  %v1243 = vpop.f32.mrf.mxu0
  %v1244 = vadd.f32 %v664, %v1243
  %v1245 = vpop.f32.mrf.mxu0
  %1246 = vmatprep.mubr.f32.mxu0 0.0
  %1247 = vmatmul.mubr.f32.gmra.mxu0 %v892
  %v1248 = vpop.f32.mrf.mxu0
  %v1249 = vadd.f32 %v669, %v1248
  %v1250 = vpop.f32.mrf.mxu0
  %1251 = vmatprep.mubr.f32.mxu0 0.0
  %1252 = vmatmul.mubr.f32.gmra.mxu0 %v895
  %v1253 = vpop.f32.mrf.mxu0
  %v1254 = vadd.f32 %v674, %v1253
  %v1255 = vpop.f32.mrf.mxu0
  %1256 = vmatprep.mubr.f32.mxu0 0.0
  %1257 = vmatmul.mubr.f32.gmra.mxu0 %v898
  %v1258 = vpop.f32.mrf.mxu0
  %v1259 = vadd.f32 %v679, %v1258
  %v1260 = vpop.f32.mrf.mxu0
  %1261 = vmatprep.mubr.f32.mxu0 0.0
  %1262 = vmatmul.mubr.f32.gmra.mxu0 %v901
  %v1263 = vpop.f32.mrf.mxu0
  %v1264 = vadd.f32 %v684, %v1263
  %v1265 = vpop.f32.mrf.mxu0
  %1266 = vmatprep.mubr.f32.mxu0 0.0
  %1267 = vmatmul.mubr.f32.gmra.mxu0 %v904
  %v1268 = vpop.f32.mrf.mxu0
  %v1269 = vadd.f32 %v689, %v1268
  %v1270 = vpop.f32.mrf.mxu0
  %1271 = vmatprep.mubr.f32.mxu0 0.0
  %1272 = vmatmul.mubr.f32.gmra.mxu0 %v907
  %v1273 = vpop.f32.mrf.mxu0
  %v1274 = vadd.f32 %v694, %v1273
  %v1275 = vpop.f32.mrf.mxu0
  %1276 = vmatprep.mubr.f32.mxu0 0.0
  %1277 = vmatmul.mubr.f32.gmra.mxu0 %v910
  %v1278 = vpop.f32.mrf.mxu0
  %v1279 = vadd.f32 %v699, %v1278
  %v1280 = vpop.f32.mrf.mxu0
  %1281 = vmatprep.mubr.f32.mxu0 0.0
  %1282 = vmatmul.mubr.f32.gmra.mxu0 %v913
  %v1283 = vpop.f32.mrf.mxu0
  %v1284 = vadd.f32 %v704, %v1283
  %v1285 = vpop.f32.mrf.mxu0
  %1286 = vmatprep.mubr.f32.mxu0 0.0
  %1287 = vmatmul.mubr.f32.gmra.mxu0 %v916
  %v1288 = vpop.f32.mrf.mxu0
  %v1289 = vadd.f32 %v709, %v1288
  %v1290 = vpop.f32.mrf.mxu0
  %1291 = vmatprep.mubr.f32.mxu0 0.0
  %1292 = vmatmul.mubr.f32.gmra.mxu0 %v919
  %v1293 = vpop.f32.mrf.mxu0
  %v1294 = vadd.f32 %v714, %v1293
  %v1295 = vpop.f32.mrf.mxu0
  %1296 = vmatprep.mubr.f32.mxu0 0.0
  %1297 = vmatmul.mubr.f32.gmra.mxu0 %v922
  %v1298 = vpop.f32.mrf.mxu0
  %v1299 = vadd.f32 %v719, %v1298
  %v1300 = vpop.f32.mrf.mxu0
  %1301 = vmatprep.mubr.f32.mxu0 0.0
  %1302 = vmatmul.mubr.f32.gmra.mxu0 %v925
  %v1303 = vpop.f32.mrf.mxu0
  %v1304 = vadd.f32 %v724, %v1303
  %v1305 = vpop.f32.mrf.mxu0
  %1306 = vmatprep.mubr.f32.mxu0 0.0
  %1307 = vmatmul.mubr.f32.gmra.mxu0 %v928
  %v1308 = vpop.f32.mrf.mxu0
  %v1309 = vadd.f32 %v729, %v1308
  %v1310 = vpop.f32.mrf.mxu0
  %1311 = vmatprep.mubr.f32.mxu0 0.0
  %1312 = vmatmul.mubr.f32.gmra.mxu0 %v931
  %v1313 = vpop.f32.mrf.mxu0
  %v1314 = vadd.f32 %v734, %v1313
  %v1315 = vpop.f32.mrf.mxu0
  %1316 = vmatprep.mubr.f32.mxu0 0.0
  %1317 = vmatmul.mubr.f32.gmra.mxu0 %v934
  %v1318 = vpop.f32.mrf.mxu0
  %v1319 = vadd.f32 %v739, %v1318
  %v1320 = vpop.f32.mrf.mxu0
  %1321 = vmatprep.mubr.f32.mxu0 0.0
  %1322 = vmatmul.mubr.f32.gmra.mxu0 %v937
  %v1323 = vpop.f32.mrf.mxu0
  %v1324 = vadd.f32 %v744, %v1323
  %v1325 = vpop.f32.mrf.mxu0
  %1326 = vdwg.mxu0
  %v1327 = vld [vmem:[%s2] sm:$0xff]
  %v1328 = vld [vmem:[%s2 + $0x8] sm:$0xff]
  %v1329 = vld [vmem:[%s2 + $0x10] sm:$0xff]
  %v1330 = vld [vmem:[%s2 + $0x18] sm:$0xff]
  %v1331 = vld [vmem:[%s2 + $0x20] sm:$0xff]
  %v1332 = vld [vmem:[%s2 + $0x28] sm:$0xff]
  %v1333 = vld [vmem:[%s2 + $0x30] sm:$0xff]
  %v1334 = vld [vmem:[%s2 + $0x38] sm:$0xff]
  %v1335 = vld [vmem:[%s2 + $0x40] sm:$0xff]
  %v1336 = vld [vmem:[%s2 + $0x48] sm:$0xff]
  %v1337 = vld [vmem:[%s2 + $0x50] sm:$0xff]
  %v1338 = vld [vmem:[%s2 + $0x58] sm:$0xff]
  %v1339 = vld [vmem:[%s2 + $0x60] sm:$0xff]
  %v1340 = vld [vmem:[%s2 + $0x68] sm:$0xff]
  %v1341 = vld [vmem:[%s2 + $0x70] sm:$0xff]
  %v1342 = vld [vmem:[%s2 + $0x78] sm:$0xff]
  %v1343 = vld [vmem:[%s2 + $0x80] sm:$0xff]
  %v1344 = vld [vmem:[%s2 + $0x88] sm:$0xff]
  %v1345 = vld [vmem:[%s2 + $0x90] sm:$0xff]
  %v1346 = vld [vmem:[%s2 + $0x98] sm:$0xff]
  %v1347 = vld [vmem:[%s2 + $0xa0] sm:$0xff]
  %v1348 = vld [vmem:[%s2 + $0xa8] sm:$0xff]
  %v1349 = vld [vmem:[%s2 + $0xb0] sm:$0xff]
  %v1350 = vld [vmem:[%s2 + $0xb8] sm:$0xff]
  %v1351 = vld [vmem:[%s2 + $0xc0] sm:$0xff]
  %v1352 = vld [vmem:[%s2 + $0xc8] sm:$0xff]
  %v1353 = vld [vmem:[%s2 + $0xd0] sm:$0xff]
  %v1354 = vld [vmem:[%s2 + $0xd8] sm:$0xff]
  %v1355 = vld [vmem:[%s2 + $0xe0] sm:$0xff]
  %v1356 = vld [vmem:[%s2 + $0xe8] sm:$0xff]
  %v1357 = vld [vmem:[%s2 + $0xf0] sm:$0xff]
  %v1358 = vld [vmem:[%s2 + $0xf8] sm:$0xff]
  %v1359 = vld [vmem:[%s2 + $0x100] sm:$0xff]
  %v1360 = vld [vmem:[%s2 + $0x108] sm:$0xff]
  %v1361 = vld [vmem:[%s2 + $0x110] sm:$0xff]
  %v1362 = vld [vmem:[%s2 + $0x118] sm:$0xff]
  %v1363 = vld [vmem:[%s2 + $0x120] sm:$0xff]
  %v1364 = vld [vmem:[%s2 + $0x128] sm:$0xff]
  %v1365 = vld [vmem:[%s2 + $0x130] sm:$0xff]
  %v1366 = vld [vmem:[%s2 + $0x138] sm:$0xff]
  %v1367 = vld [vmem:[%s2 + $0x140] sm:$0xff]
  %v1368 = vld [vmem:[%s2 + $0x148] sm:$0xff]
  %v1369 = vld [vmem:[%s2 + $0x150] sm:$0xff]
  %v1370 = vld [vmem:[%s2 + $0x158] sm:$0xff]
  %v1371 = vld [vmem:[%s2 + $0x160] sm:$0xff]
  %v1372 = vld [vmem:[%s2 + $0x168] sm:$0xff]
  %v1373 = vld [vmem:[%s2 + $0x170] sm:$0xff]
  %v1374 = vld [vmem:[%s2 + $0x178] sm:$0xff]
  %v1375 = vld [vmem:[%s2 + $0x180] sm:$0xff]
  %v1376 = vld [vmem:[%s2 + $0x188] sm:$0xff]
  %v1377 = vld [vmem:[%s2 + $0x190] sm:$0xff]
  %v1378 = vld [vmem:[%s2 + $0x198] sm:$0xff]
  %v1379 = vld [vmem:[%s2 + $0x1a0] sm:$0xff]
  %v1380 = vld [vmem:[%s2 + $0x1a8] sm:$0xff]
  %v1381 = vld [vmem:[%s2 + $0x1b0] sm:$0xff]
  %v1382 = vld [vmem:[%s2 + $0x1b8] sm:$0xff]
  %v1383 = vld [vmem:[%s2 + $0x1c0] sm:$0xff]
  %v1384 = vld [vmem:[%s2 + $0x1c8] sm:$0xff]
  %v1385 = vld [vmem:[%s2 + $0x1d0] sm:$0xff]
  %v1386 = vld [vmem:[%s2 + $0x1d8] sm:$0xff]
  %v1387 = vld [vmem:[%s2 + $0x1e0] sm:$0xff]
  %v1388 = vld [vmem:[%s2 + $0x1e8] sm:$0xff]
  %v1389 = vld [vmem:[%s2 + $0x1f0] sm:$0xff]
  %v1390 = vld [vmem:[%s2 + $0x1f8] sm:$0xff]
  %v1391 = vld [vmem:[%s6] sm:$0x7]
  %v1393 = vsel %vm165, %v1327, 0
  %v1396 = vsel %vm165, %v1328, 0
  %v1399 = vsel %vm165, %v1329, 0
  %v1402 = vsel %vm165, %v1330, 0
  %v1405 = vsel %vm165, %v1331, 0
  %v1408 = vsel %vm165, %v1332, 0
  %v1411 = vsel %vm165, %v1333, 0
  %v1414 = vsel %vm165, %v1334, 0
  %v1417 = vsel %vm165, %v1335, 0
  %v1420 = vsel %vm165, %v1336, 0
  %v1423 = vsel %vm165, %v1337, 0
  %v1426 = vsel %vm165, %v1338, 0
  %v1429 = vsel %vm165, %v1339, 0
  %v1432 = vsel %vm165, %v1340, 0
  %v1435 = vsel %vm165, %v1341, 0
  %v1438 = vsel %vm165, %v1342, 0
  %v1441 = vsel %vm165, %v1343, 0
  %v1444 = vsel %vm165, %v1344, 0
  %v1447 = vsel %vm165, %v1345, 0
  %v1450 = vsel %vm165, %v1346, 0
  %v1453 = vsel %vm165, %v1347, 0
  %v1456 = vsel %vm165, %v1348, 0
  %v1459 = vsel %vm165, %v1349, 0
  %v1462 = vsel %vm165, %v1350, 0
  %v1465 = vsel %vm165, %v1351, 0
  %v1468 = vsel %vm165, %v1352, 0
  %v1471 = vsel %vm165, %v1353, 0
  %v1474 = vsel %vm165, %v1354, 0
  %v1477 = vsel %vm165, %v1355, 0
  %v1480 = vsel %vm165, %v1356, 0
  %v1483 = vsel %vm165, %v1357, 0
  %v1486 = vsel %vm165, %v1358, 0
  %v1489 = vsel %vm165, %v1359, 0
  %v1492 = vsel %vm165, %v1360, 0
  %v1495 = vsel %vm165, %v1361, 0
  %v1498 = vsel %vm165, %v1362, 0
  %v1501 = vsel %vm165, %v1363, 0
  %v1504 = vsel %vm165, %v1364, 0
  %v1507 = vsel %vm165, %v1365, 0
  %v1510 = vsel %vm165, %v1366, 0
  %v1513 = vsel %vm165, %v1367, 0
  %v1516 = vsel %vm165, %v1368, 0
  %v1519 = vsel %vm165, %v1369, 0
  %v1522 = vsel %vm165, %v1370, 0
  %v1525 = vsel %vm165, %v1371, 0
  %v1528 = vsel %vm165, %v1372, 0
  %v1531 = vsel %vm165, %v1373, 0
  %v1534 = vsel %vm165, %v1374, 0
  %v1537 = vsel %vm165, %v1375, 0
  %v1540 = vsel %vm165, %v1376, 0
  %v1543 = vsel %vm165, %v1377, 0
  %v1546 = vsel %vm165, %v1378, 0
  %v1549 = vsel %vm165, %v1379, 0
  %v1552 = vsel %vm165, %v1380, 0
  %v1555 = vsel %vm165, %v1381, 0
  %v1558 = vsel %vm165, %v1382, 0
  %v1561 = vsel %vm165, %v1383, 0
  %v1564 = vsel %vm165, %v1384, 0
  %v1567 = vsel %vm165, %v1385, 0
  %v1570 = vsel %vm165, %v1386, 0
  %v1573 = vsel %vm165, %v1387, 0
  %v1576 = vsel %vm165, %v1388, 0
  %v1579 = vsel %vm165, %v1389, 0
  %v1582 = vsel %vm165, %v1390, 0
  %v1585 = vsel %vm358, %v1391, 0
  %1587 = vmatprep.subr.mxu0 0.0
  %1588 = vmatpush1.msra.mxu0 0.0
  %1589 = vmatprep.subr.mxu0 0.0
  %1590 = vmatpush1.msra.mxu0 0.0
  %1591 = vmatprep.subr.mxu0 0.0
  %1592 = vmatpush1.msra.mxu0 0.0
  %1593 = vmatprep.subr.mxu0 0.0
  %1594 = vmatpush1.msra.mxu0 0.0
  %1595 = vmatprep.subr.mxu0 0.0
  %1596 = vmatpush1.msra.mxu0 0.0
  %1597 = vmatprep.subr.mxu0 0.0
  %1598 = vmatpush1.msra.mxu0 0.0
  %1599 = vmatprep.subr.mxu0 0.0
  %1600 = vmatpush1.msra.mxu0 0.0
  %1601 = vmatprep.subr.mxu0 0.0
  %1602 = vmatpush1.msra.mxu0 0.0
  %1603 = vmatprep.subr.mxu0 0.0
  %1604 = vmatpush1.msra.mxu0 0.0
  %1605 = vmatprep.subr.mxu0 0.0
  %1606 = vmatpush1.msra.mxu0 0.0
  %1607 = vmatprep.subr.mxu0 0.0
  %1608 = vmatpush1.msra.mxu0 0.0
  %1609 = vmatprep.subr.mxu0 0.0
  %1610 = vmatpush1.msra.mxu0 0.0
  %1611 = vmatprep.subr.mxu0 0.0
  %1612 = vmatpush1.msra.mxu0 0.0
  %1613 = vmatprep.subr.mxu0 0.0
  %1614 = vmatpush1.msra.mxu0 0.0
  %1615 = vmatprep.subr.mxu0 0.0
  %1616 = vmatpush1.msra.mxu0 0.0
  %1617 = vmatprep.subr.mxu0 0.0
  %1618 = vmatpush1.msra.mxu0 %v1585
  %1619 = vmatprep.subr.mxu0 0.0
  %1620 = vmatpush2.msra.mxu0 0.0
  %1621 = vmatprep.subr.mxu0 0.0
  %1622 = vmatpush2.msra.mxu0 0.0
  %1623 = vmatprep.subr.mxu0 0.0
  %1624 = vmatpush2.msra.mxu0 0.0
  %1625 = vmatprep.subr.mxu0 0.0
  %1626 = vmatpush2.msra.mxu0 0.0
  %1627 = vmatprep.subr.mxu0 0.0
  %1628 = vmatpush2.msra.mxu0 0.0
  %1629 = vmatprep.subr.mxu0 0.0
  %1630 = vmatpush2.msra.mxu0 0.0
  %1631 = vmatprep.subr.mxu0 0.0
  %1632 = vmatpush2.msra.mxu0 0.0
  %1633 = vmatprep.subr.mxu0 0.0
  %1634 = vmatpush2.msra.mxu0 0.0
  %1635 = vmatprep.subr.mxu0 0.0
  %1636 = vmatpush2.msra.mxu0 0.0
  %1637 = vmatprep.subr.mxu0 0.0
  %1638 = vmatpush2.msra.mxu0 0.0
  %1639 = vmatprep.subr.mxu0 0.0
  %1640 = vmatpush2.msra.mxu0 0.0
  %1641 = vmatprep.subr.mxu0 0.0
  %1642 = vmatpush2.msra.mxu0 0.0
  %1643 = vmatprep.subr.mxu0 0.0
  %1644 = vmatpush2.msra.mxu0 0.0
  %1645 = vmatprep.subr.mxu0 0.0
  %1646 = vmatpush2.msra.mxu0 0.0
  %1647 = vmatprep.subr.mxu0 0.0
  %1648 = vmatpush2.msra.mxu0 0.0
  %1649 = vmatprep.subr.mxu0 0.0
  %1650 = vmatpush2.msra.mxu0 0.0
  %1651 = vmatprep.mubr.f32.mxu0 0.0
  %1652 = vmatmul.mubr.f32.gmra.mxu0 %v1393
  %v1653 = vpop.f32.mrf.mxu0
  %v1654 = vadd.f32 0.0, %v1653
  %v1655 = vpop.f32.mrf.mxu0
  %1656 = vmatprep.mubr.f32.mxu0 0.0
  %1657 = vmatmul.mubr.f32.gmra.mxu0 %v1396
  %v1658 = vpop.f32.mrf.mxu0
  %v1659 = vadd.f32 0.0, %v1658
  %v1660 = vpop.f32.mrf.mxu0
  %1661 = vmatprep.mubr.f32.mxu0 0.0
  %1662 = vmatmul.mubr.f32.gmra.mxu0 %v1399
  %v1663 = vpop.f32.mrf.mxu0
  %v1664 = vadd.f32 0.0, %v1663
  %v1665 = vpop.f32.mrf.mxu0
  %1666 = vmatprep.mubr.f32.mxu0 0.0
  %1667 = vmatmul.mubr.f32.gmra.mxu0 %v1402
  %v1668 = vpop.f32.mrf.mxu0
  %v1669 = vadd.f32 0.0, %v1668
  %v1670 = vpop.f32.mrf.mxu0
  %1671 = vmatprep.mubr.f32.mxu0 0.0
  %1672 = vmatmul.mubr.f32.gmra.mxu0 %v1405
  %v1673 = vpop.f32.mrf.mxu0
  %v1674 = vadd.f32 0.0, %v1673
  %v1675 = vpop.f32.mrf.mxu0
  %1676 = vmatprep.mubr.f32.mxu0 0.0
  %1677 = vmatmul.mubr.f32.gmra.mxu0 %v1408
  %v1678 = vpop.f32.mrf.mxu0
  %v1679 = vadd.f32 0.0, %v1678
  %v1680 = vpop.f32.mrf.mxu0
  %1681 = vmatprep.mubr.f32.mxu0 0.0
  %1682 = vmatmul.mubr.f32.gmra.mxu0 %v1411
  %v1683 = vpop.f32.mrf.mxu0
  %v1684 = vadd.f32 0.0, %v1683
  %v1685 = vpop.f32.mrf.mxu0
  %1686 = vmatprep.mubr.f32.mxu0 0.0
  %1687 = vmatmul.mubr.f32.gmra.mxu0 %v1414
  %v1688 = vpop.f32.mrf.mxu0
  %v1689 = vadd.f32 0.0, %v1688
  %v1690 = vpop.f32.mrf.mxu0
  %1691 = vmatprep.mubr.f32.mxu0 0.0
  %1692 = vmatmul.mubr.f32.gmra.mxu0 %v1417
  %v1693 = vpop.f32.mrf.mxu0
  %v1694 = vadd.f32 0.0, %v1693
  %v1695 = vpop.f32.mrf.mxu0
  %1696 = vmatprep.mubr.f32.mxu0 0.0
  %1697 = vmatmul.mubr.f32.gmra.mxu0 %v1420
  %v1698 = vpop.f32.mrf.mxu0
  %v1699 = vadd.f32 0.0, %v1698
  %v1700 = vpop.f32.mrf.mxu0
  %1701 = vmatprep.mubr.f32.mxu0 0.0
  %1702 = vmatmul.mubr.f32.gmra.mxu0 %v1423
  %v1703 = vpop.f32.mrf.mxu0
  %v1704 = vadd.f32 0.0, %v1703
  %v1705 = vpop.f32.mrf.mxu0
  %1706 = vmatprep.mubr.f32.mxu0 0.0
  %1707 = vmatmul.mubr.f32.gmra.mxu0 %v1426
  %v1708 = vpop.f32.mrf.mxu0
  %v1709 = vadd.f32 0.0, %v1708
  %v1710 = vpop.f32.mrf.mxu0
  %1711 = vmatprep.mubr.f32.mxu0 0.0
  %1712 = vmatmul.mubr.f32.gmra.mxu0 %v1429
  %v1713 = vpop.f32.mrf.mxu0
  %v1714 = vadd.f32 0.0, %v1713
  %v1715 = vpop.f32.mrf.mxu0
  %1716 = vmatprep.mubr.f32.mxu0 0.0
  %1717 = vmatmul.mubr.f32.gmra.mxu0 %v1432
  %v1718 = vpop.f32.mrf.mxu0
  %v1719 = vadd.f32 0.0, %v1718
  %v1720 = vpop.f32.mrf.mxu0
  %1721 = vmatprep.mubr.f32.mxu0 0.0
  %1722 = vmatmul.mubr.f32.gmra.mxu0 %v1435
  %v1723 = vpop.f32.mrf.mxu0
  %v1724 = vadd.f32 0.0, %v1723
  %v1725 = vpop.f32.mrf.mxu0
  %1726 = vmatprep.mubr.f32.mxu0 0.0
  %1727 = vmatmul.mubr.f32.gmra.mxu0 %v1438
  %v1728 = vpop.f32.mrf.mxu0
  %v1729 = vadd.f32 0.0, %v1728
  %v1730 = vpop.f32.mrf.mxu0
  %1731 = vmatprep.mubr.f32.mxu0 0.0
  %1732 = vmatmul.mubr.f32.gmra.mxu0 %v1441
  %v1733 = vpop.f32.mrf.mxu0
  %v1734 = vadd.f32 0.0, %v1733
  %v1735 = vpop.f32.mrf.mxu0
  %1736 = vmatprep.mubr.f32.mxu0 0.0
  %1737 = vmatmul.mubr.f32.gmra.mxu0 %v1444
  %v1738 = vpop.f32.mrf.mxu0
  %v1739 = vadd.f32 0.0, %v1738
  %v1740 = vpop.f32.mrf.mxu0
  %1741 = vmatprep.mubr.f32.mxu0 0.0
  %1742 = vmatmul.mubr.f32.gmra.mxu0 %v1447
  %v1743 = vpop.f32.mrf.mxu0
  %v1744 = vadd.f32 0.0, %v1743
  %v1745 = vpop.f32.mrf.mxu0
  %1746 = vmatprep.mubr.f32.mxu0 0.0
  %1747 = vmatmul.mubr.f32.gmra.mxu0 %v1450
  %v1748 = vpop.f32.mrf.mxu0
  %v1749 = vadd.f32 0.0, %v1748
  %v1750 = vpop.f32.mrf.mxu0
  %1751 = vmatprep.mubr.f32.mxu0 0.0
  %1752 = vmatmul.mubr.f32.gmra.mxu0 %v1453
  %v1753 = vpop.f32.mrf.mxu0
  %v1754 = vadd.f32 0.0, %v1753
  %v1755 = vpop.f32.mrf.mxu0
  %1756 = vmatprep.mubr.f32.mxu0 0.0
  %1757 = vmatmul.mubr.f32.gmra.mxu0 %v1456
  %v1758 = vpop.f32.mrf.mxu0
  %v1759 = vadd.f32 0.0, %v1758
  %v1760 = vpop.f32.mrf.mxu0
  %1761 = vmatprep.mubr.f32.mxu0 0.0
  %1762 = vmatmul.mubr.f32.gmra.mxu0 %v1459
  %v1763 = vpop.f32.mrf.mxu0
  %v1764 = vadd.f32 0.0, %v1763
  %v1765 = vpop.f32.mrf.mxu0
  %1766 = vmatprep.mubr.f32.mxu0 0.0
  %1767 = vmatmul.mubr.f32.gmra.mxu0 %v1462
  %v1768 = vpop.f32.mrf.mxu0
  %v1769 = vadd.f32 0.0, %v1768
  %v1770 = vpop.f32.mrf.mxu0
  %1771 = vmatprep.mubr.f32.mxu0 0.0
  %1772 = vmatmul.mubr.f32.gmra.mxu0 %v1465
  %v1773 = vpop.f32.mrf.mxu0
  %v1774 = vadd.f32 0.0, %v1773
  %v1775 = vpop.f32.mrf.mxu0
  %1776 = vmatprep.mubr.f32.mxu0 0.0
  %1777 = vmatmul.mubr.f32.gmra.mxu0 %v1468
  %v1778 = vpop.f32.mrf.mxu0
  %v1779 = vadd.f32 0.0, %v1778
  %v1780 = vpop.f32.mrf.mxu0
  %1781 = vmatprep.mubr.f32.mxu0 0.0
  %1782 = vmatmul.mubr.f32.gmra.mxu0 %v1471
  %v1783 = vpop.f32.mrf.mxu0
  %v1784 = vadd.f32 0.0, %v1783
  %v1785 = vpop.f32.mrf.mxu0
  %1786 = vmatprep.mubr.f32.mxu0 0.0
  %1787 = vmatmul.mubr.f32.gmra.mxu0 %v1474
  %v1788 = vpop.f32.mrf.mxu0
  %v1789 = vadd.f32 0.0, %v1788
  %v1790 = vpop.f32.mrf.mxu0
  %1791 = vmatprep.mubr.f32.mxu0 0.0
  %1792 = vmatmul.mubr.f32.gmra.mxu0 %v1477
  %v1793 = vpop.f32.mrf.mxu0
  %v1794 = vadd.f32 0.0, %v1793
  %v1795 = vpop.f32.mrf.mxu0
  %1796 = vmatprep.mubr.f32.mxu0 0.0
  %1797 = vmatmul.mubr.f32.gmra.mxu0 %v1480
  %v1798 = vpop.f32.mrf.mxu0
  %v1799 = vadd.f32 0.0, %v1798
  %v1800 = vpop.f32.mrf.mxu0
  %1801 = vmatprep.mubr.f32.mxu0 0.0
  %1802 = vmatmul.mubr.f32.gmra.mxu0 %v1483
  %v1803 = vpop.f32.mrf.mxu0
  %v1804 = vadd.f32 0.0, %v1803
  %v1805 = vpop.f32.mrf.mxu0
  %1806 = vmatprep.mubr.f32.mxu0 0.0
  %1807 = vmatmul.mubr.f32.gmra.mxu0 %v1486
  %v1808 = vpop.f32.mrf.mxu0
  %v1809 = vadd.f32 0.0, %v1808
  %v1810 = vpop.f32.mrf.mxu0
  %1811 = vmatprep.mubr.f32.mxu0 0.0
  %1812 = vmatmul.mubr.f32.gmra.mxu0 %v1489
  %v1813 = vpop.f32.mrf.mxu0
  %v1814 = vadd.f32 0.0, %v1813
  %v1815 = vpop.f32.mrf.mxu0
  %1816 = vmatprep.mubr.f32.mxu0 0.0
  %1817 = vmatmul.mubr.f32.gmra.mxu0 %v1492
  %v1818 = vpop.f32.mrf.mxu0
  %v1819 = vadd.f32 0.0, %v1818
  %v1820 = vpop.f32.mrf.mxu0
  %1821 = vmatprep.mubr.f32.mxu0 0.0
  %1822 = vmatmul.mubr.f32.gmra.mxu0 %v1495
  %v1823 = vpop.f32.mrf.mxu0
  %v1824 = vadd.f32 0.0, %v1823
  %v1825 = vpop.f32.mrf.mxu0
  %1826 = vmatprep.mubr.f32.mxu0 0.0
  %1827 = vmatmul.mubr.f32.gmra.mxu0 %v1498
  %v1828 = vpop.f32.mrf.mxu0
  %v1829 = vadd.f32 0.0, %v1828
  %v1830 = vpop.f32.mrf.mxu0
  %1831 = vmatprep.mubr.f32.mxu0 0.0
  %1832 = vmatmul.mubr.f32.gmra.mxu0 %v1501
  %v1833 = vpop.f32.mrf.mxu0
  %v1834 = vadd.f32 0.0, %v1833
  %v1835 = vpop.f32.mrf.mxu0
  %1836 = vmatprep.mubr.f32.mxu0 0.0
  %1837 = vmatmul.mubr.f32.gmra.mxu0 %v1504
  %v1838 = vpop.f32.mrf.mxu0
  %v1839 = vadd.f32 0.0, %v1838
  %v1840 = vpop.f32.mrf.mxu0
  %1841 = vmatprep.mubr.f32.mxu0 0.0
  %1842 = vmatmul.mubr.f32.gmra.mxu0 %v1507
  %v1843 = vpop.f32.mrf.mxu0
  %v1844 = vadd.f32 0.0, %v1843
  %v1845 = vpop.f32.mrf.mxu0
  %1846 = vmatprep.mubr.f32.mxu0 0.0
  %1847 = vmatmul.mubr.f32.gmra.mxu0 %v1510
  %v1848 = vpop.f32.mrf.mxu0
  %v1849 = vadd.f32 0.0, %v1848
  %v1850 = vpop.f32.mrf.mxu0
  %1851 = vmatprep.mubr.f32.mxu0 0.0
  %1852 = vmatmul.mubr.f32.gmra.mxu0 %v1513
  %v1853 = vpop.f32.mrf.mxu0
  %v1854 = vadd.f32 0.0, %v1853
  %v1855 = vpop.f32.mrf.mxu0
  %1856 = vmatprep.mubr.f32.mxu0 0.0
  %1857 = vmatmul.mubr.f32.gmra.mxu0 %v1516
  %v1858 = vpop.f32.mrf.mxu0
  %v1859 = vadd.f32 0.0, %v1858
  %v1860 = vpop.f32.mrf.mxu0
  %1861 = vmatprep.mubr.f32.mxu0 0.0
  %1862 = vmatmul.mubr.f32.gmra.mxu0 %v1519
  %v1863 = vpop.f32.mrf.mxu0
  %v1864 = vadd.f32 0.0, %v1863
  %v1865 = vpop.f32.mrf.mxu0
  %1866 = vmatprep.mubr.f32.mxu0 0.0
  %1867 = vmatmul.mubr.f32.gmra.mxu0 %v1522
  %v1868 = vpop.f32.mrf.mxu0
  %v1869 = vadd.f32 0.0, %v1868
  %v1870 = vpop.f32.mrf.mxu0
  %1871 = vmatprep.mubr.f32.mxu0 0.0
  %1872 = vmatmul.mubr.f32.gmra.mxu0 %v1525
  %v1873 = vpop.f32.mrf.mxu0
  %v1874 = vadd.f32 0.0, %v1873
  %v1875 = vpop.f32.mrf.mxu0
  %1876 = vmatprep.mubr.f32.mxu0 0.0
  %1877 = vmatmul.mubr.f32.gmra.mxu0 %v1528
  %v1878 = vpop.f32.mrf.mxu0
  %v1879 = vadd.f32 0.0, %v1878
  %v1880 = vpop.f32.mrf.mxu0
  %1881 = vmatprep.mubr.f32.mxu0 0.0
  %1882 = vmatmul.mubr.f32.gmra.mxu0 %v1531
  %v1883 = vpop.f32.mrf.mxu0
  %v1884 = vadd.f32 0.0, %v1883
  %v1885 = vpop.f32.mrf.mxu0
  %1886 = vmatprep.mubr.f32.mxu0 0.0
  %1887 = vmatmul.mubr.f32.gmra.mxu0 %v1534
  %v1888 = vpop.f32.mrf.mxu0
  %v1889 = vadd.f32 0.0, %v1888
  %v1890 = vpop.f32.mrf.mxu0
  %1891 = vmatprep.mubr.f32.mxu0 0.0
  %1892 = vmatmul.mubr.f32.gmra.mxu0 %v1537
  %v1893 = vpop.f32.mrf.mxu0
  %v1894 = vadd.f32 0.0, %v1893
  %v1895 = vpop.f32.mrf.mxu0
  %1896 = vmatprep.mubr.f32.mxu0 0.0
  %1897 = vmatmul.mubr.f32.gmra.mxu0 %v1540
  %v1898 = vpop.f32.mrf.mxu0
  %v1899 = vadd.f32 0.0, %v1898
  %v1900 = vpop.f32.mrf.mxu0
  %1901 = vmatprep.mubr.f32.mxu0 0.0
  %1902 = vmatmul.mubr.f32.gmra.mxu0 %v1543
  %v1903 = vpop.f32.mrf.mxu0
  %v1904 = vadd.f32 0.0, %v1903
  %v1905 = vpop.f32.mrf.mxu0
  %1906 = vmatprep.mubr.f32.mxu0 0.0
  %1907 = vmatmul.mubr.f32.gmra.mxu0 %v1546
  %v1908 = vpop.f32.mrf.mxu0
  %v1909 = vadd.f32 0.0, %v1908
  %v1910 = vpop.f32.mrf.mxu0
  %1911 = vmatprep.mubr.f32.mxu0 0.0
  %1912 = vmatmul.mubr.f32.gmra.mxu0 %v1549
  %v1913 = vpop.f32.mrf.mxu0
  %v1914 = vadd.f32 0.0, %v1913
  %v1915 = vpop.f32.mrf.mxu0
  %1916 = vmatprep.mubr.f32.mxu0 0.0
  %1917 = vmatmul.mubr.f32.gmra.mxu0 %v1552
  %v1918 = vpop.f32.mrf.mxu0
  %v1919 = vadd.f32 0.0, %v1918
  %v1920 = vpop.f32.mrf.mxu0
  %1921 = vmatprep.mubr.f32.mxu0 0.0
  %1922 = vmatmul.mubr.f32.gmra.mxu0 %v1555
  %v1923 = vpop.f32.mrf.mxu0
  %v1924 = vadd.f32 0.0, %v1923
  %v1925 = vpop.f32.mrf.mxu0
  %1926 = vmatprep.mubr.f32.mxu0 0.0
  %1927 = vmatmul.mubr.f32.gmra.mxu0 %v1558
  %v1928 = vpop.f32.mrf.mxu0
  %v1929 = vadd.f32 0.0, %v1928
  %v1930 = vpop.f32.mrf.mxu0
  %1931 = vmatprep.mubr.f32.mxu0 0.0
  %1932 = vmatmul.mubr.f32.gmra.mxu0 %v1561
  %v1933 = vpop.f32.mrf.mxu0
  %v1934 = vadd.f32 0.0, %v1933
  %v1935 = vpop.f32.mrf.mxu0
  %1936 = vmatprep.mubr.f32.mxu0 0.0
  %1937 = vmatmul.mubr.f32.gmra.mxu0 %v1564
  %v1938 = vpop.f32.mrf.mxu0
  %v1939 = vadd.f32 0.0, %v1938
  %v1940 = vpop.f32.mrf.mxu0
  %1941 = vmatprep.mubr.f32.mxu0 0.0
  %1942 = vmatmul.mubr.f32.gmra.mxu0 %v1567
  %v1943 = vpop.f32.mrf.mxu0
  %v1944 = vadd.f32 0.0, %v1943
  %v1945 = vpop.f32.mrf.mxu0
  %1946 = vmatprep.mubr.f32.mxu0 0.0
  %1947 = vmatmul.mubr.f32.gmra.mxu0 %v1570
  %v1948 = vpop.f32.mrf.mxu0
  %v1949 = vadd.f32 0.0, %v1948
  %v1950 = vpop.f32.mrf.mxu0
  %1951 = vmatprep.mubr.f32.mxu0 0.0
  %1952 = vmatmul.mubr.f32.gmra.mxu0 %v1573
  %v1953 = vpop.f32.mrf.mxu0
  %v1954 = vadd.f32 0.0, %v1953
  %v1955 = vpop.f32.mrf.mxu0
  %1956 = vmatprep.mubr.f32.mxu0 0.0
  %1957 = vmatmul.mubr.f32.gmra.mxu0 %v1576
  %v1958 = vpop.f32.mrf.mxu0
  %v1959 = vadd.f32 0.0, %v1958
  %v1960 = vpop.f32.mrf.mxu0
  %1961 = vmatprep.mubr.f32.mxu0 0.0
  %1962 = vmatmul.mubr.f32.gmra.mxu0 %v1579
  %v1963 = vpop.f32.mrf.mxu0
  %v1964 = vadd.f32 0.0, %v1963
  %v1965 = vpop.f32.mrf.mxu0
  %1966 = vmatprep.mubr.f32.mxu0 0.0
  %1967 = vmatmul.mubr.f32.gmra.mxu0 %v1582
  %v1968 = vpop.f32.mrf.mxu0
  %v1969 = vadd.f32 0.0, %v1968
  %v1970 = vpop.f32.mrf.mxu0
  %1971 = vdwg.mxu0
  %v1972 = vadd.f32 %v1009, %v1654
  %v1973 = vadd.f32 %v1014, %v1659
  %v1974 = vadd.f32 %v1019, %v1664
  %v1975 = vadd.f32 %v1024, %v1669
  %v1976 = vadd.f32 %v1029, %v1674
  %v1977 = vadd.f32 %v1034, %v1679
  %v1978 = vadd.f32 %v1039, %v1684
  %v1979 = vadd.f32 %v1044, %v1689
  %v1980 = vadd.f32 %v1049, %v1694
  %v1981 = vadd.f32 %v1054, %v1699
  %v1982 = vadd.f32 %v1059, %v1704
  %v1983 = vadd.f32 %v1064, %v1709
  %v1984 = vadd.f32 %v1069, %v1714
  %v1985 = vadd.f32 %v1074, %v1719
  %v1986 = vadd.f32 %v1079, %v1724
  %v1987 = vadd.f32 %v1084, %v1729
  %v1988 = vadd.f32 %v1089, %v1734
  %v1989 = vadd.f32 %v1094, %v1739
  %v1990 = vadd.f32 %v1099, %v1744
  %v1991 = vadd.f32 %v1104, %v1749
  %v1992 = vadd.f32 %v1109, %v1754
  %v1993 = vadd.f32 %v1114, %v1759
  %v1994 = vadd.f32 %v1119, %v1764
  %v1995 = vadd.f32 %v1124, %v1769
  %v1996 = vadd.f32 %v1129, %v1774
  %v1997 = vadd.f32 %v1134, %v1779
  %v1998 = vadd.f32 %v1139, %v1784
  %v1999 = vadd.f32 %v1144, %v1789
  %v2000 = vadd.f32 %v1149, %v1794
  %v2001 = vadd.f32 %v1154, %v1799
  %v2002 = vadd.f32 %v1159, %v1804
  %v2003 = vadd.f32 %v1164, %v1809
  %v2004 = vadd.f32 %v1169, %v1814
  %v2005 = vadd.f32 %v1174, %v1819
  %v2006 = vadd.f32 %v1179, %v1824
  %v2007 = vadd.f32 %v1184, %v1829
  %v2008 = vadd.f32 %v1189, %v1834
  %v2009 = vadd.f32 %v1194, %v1839
  %v2010 = vadd.f32 %v1199, %v1844
  %v2011 = vadd.f32 %v1204, %v1849
  %v2012 = vadd.f32 %v1209, %v1854
  %v2013 = vadd.f32 %v1214, %v1859
  %v2014 = vadd.f32 %v1219, %v1864
  %v2015 = vadd.f32 %v1224, %v1869
  %v2016 = vadd.f32 %v1229, %v1874
  %v2017 = vadd.f32 %v1234, %v1879
  %v2018 = vadd.f32 %v1239, %v1884
  %v2019 = vadd.f32 %v1244, %v1889
  %v2020 = vadd.f32 %v1249, %v1894
  %v2021 = vadd.f32 %v1254, %v1899
  %v2022 = vadd.f32 %v1259, %v1904
  %v2023 = vadd.f32 %v1264, %v1909
  %v2024 = vadd.f32 %v1269, %v1914
  %v2025 = vadd.f32 %v1274, %v1919
  %v2026 = vadd.f32 %v1279, %v1924
  %v2027 = vadd.f32 %v1284, %v1929
  %v2028 = vadd.f32 %v1289, %v1934
  %v2029 = vadd.f32 %v1294, %v1939
  %v2030 = vadd.f32 %v1299, %v1944
  %v2031 = vadd.f32 %v1304, %v1949
  %v2032 = vadd.f32 %v1309, %v1954
  %v2033 = vadd.f32 %v1314, %v1959
  %v2034 = vadd.f32 %v1319, %v1964
  %v2035 = vadd.f32 %v1324, %v1969
  %v2036 = vld [vmem:[%s3] sm:$0xff]
  %v2037 = vld [vmem:[%s3 + $0x8] sm:$0xff]
  %v2038 = vld [vmem:[%s3 + $0x10] sm:$0xff]
  %v2039 = vld [vmem:[%s3 + $0x18] sm:$0xff]
  %v2040 = vld [vmem:[%s3 + $0x20] sm:$0xff]
  %v2041 = vld [vmem:[%s3 + $0x28] sm:$0xff]
  %v2042 = vld [vmem:[%s3 + $0x30] sm:$0xff]
  %v2043 = vld [vmem:[%s3 + $0x38] sm:$0xff]
  %v2044 = vld [vmem:[%s3 + $0x40] sm:$0xff]
  %v2045 = vld [vmem:[%s3 + $0x48] sm:$0xff]
  %v2046 = vld [vmem:[%s3 + $0x50] sm:$0xff]
  %v2047 = vld [vmem:[%s3 + $0x58] sm:$0xff]
  %v2048 = vld [vmem:[%s3 + $0x60] sm:$0xff]
  %v2049 = vld [vmem:[%s3 + $0x68] sm:$0xff]
  %v2050 = vld [vmem:[%s3 + $0x70] sm:$0xff]
  %v2051 = vld [vmem:[%s3 + $0x78] sm:$0xff]
  %v2052 = vld [vmem:[%s3 + $0x80] sm:$0xff]
  %v2053 = vld [vmem:[%s3 + $0x88] sm:$0xff]
  %v2054 = vld [vmem:[%s3 + $0x90] sm:$0xff]
  %v2055 = vld [vmem:[%s3 + $0x98] sm:$0xff]
  %v2056 = vld [vmem:[%s3 + $0xa0] sm:$0xff]
  %v2057 = vld [vmem:[%s3 + $0xa8] sm:$0xff]
  %v2058 = vld [vmem:[%s3 + $0xb0] sm:$0xff]
  %v2059 = vld [vmem:[%s3 + $0xb8] sm:$0xff]
  %v2060 = vld [vmem:[%s3 + $0xc0] sm:$0xff]
  %v2061 = vld [vmem:[%s3 + $0xc8] sm:$0xff]
  %v2062 = vld [vmem:[%s3 + $0xd0] sm:$0xff]
  %v2063 = vld [vmem:[%s3 + $0xd8] sm:$0xff]
  %v2064 = vld [vmem:[%s3 + $0xe0] sm:$0xff]
  %v2065 = vld [vmem:[%s3 + $0xe8] sm:$0xff]
  %v2066 = vld [vmem:[%s3 + $0xf0] sm:$0xff]
  %v2067 = vld [vmem:[%s3 + $0xf8] sm:$0xff]
  %v2068 = vld [vmem:[%s3 + $0x100] sm:$0xff]
  %v2069 = vld [vmem:[%s3 + $0x108] sm:$0xff]
  %v2070 = vld [vmem:[%s3 + $0x110] sm:$0xff]
  %v2071 = vld [vmem:[%s3 + $0x118] sm:$0xff]
  %v2072 = vld [vmem:[%s3 + $0x120] sm:$0xff]
  %v2073 = vld [vmem:[%s3 + $0x128] sm:$0xff]
  %v2074 = vld [vmem:[%s3 + $0x130] sm:$0xff]
  %v2075 = vld [vmem:[%s3 + $0x138] sm:$0xff]
  %v2076 = vld [vmem:[%s3 + $0x140] sm:$0xff]
  %v2077 = vld [vmem:[%s3 + $0x148] sm:$0xff]
  %v2078 = vld [vmem:[%s3 + $0x150] sm:$0xff]
  %v2079 = vld [vmem:[%s3 + $0x158] sm:$0xff]
  %v2080 = vld [vmem:[%s3 + $0x160] sm:$0xff]
  %v2081 = vld [vmem:[%s3 + $0x168] sm:$0xff]
  %v2082 = vld [vmem:[%s3 + $0x170] sm:$0xff]
  %v2083 = vld [vmem:[%s3 + $0x178] sm:$0xff]
  %v2084 = vld [vmem:[%s3 + $0x180] sm:$0xff]
  %v2085 = vld [vmem:[%s3 + $0x188] sm:$0xff]
  %v2086 = vld [vmem:[%s3 + $0x190] sm:$0xff]
  %v2087 = vld [vmem:[%s3 + $0x198] sm:$0xff]
  %v2088 = vld [vmem:[%s3 + $0x1a0] sm:$0xff]
  %v2089 = vld [vmem:[%s3 + $0x1a8] sm:$0xff]
  %v2090 = vld [vmem:[%s3 + $0x1b0] sm:$0xff]
  %v2091 = vld [vmem:[%s3 + $0x1b8] sm:$0xff]
  %v2092 = vld [vmem:[%s3 + $0x1c0] sm:$0xff]
  %v2093 = vld [vmem:[%s3 + $0x1c8] sm:$0xff]
  %v2094 = vld [vmem:[%s3 + $0x1d0] sm:$0xff]
  %v2095 = vld [vmem:[%s3 + $0x1d8] sm:$0xff]
  %v2096 = vld [vmem:[%s3 + $0x1e0] sm:$0xff]
  %v2097 = vld [vmem:[%s3 + $0x1e8] sm:$0xff]
  %v2098 = vld [vmem:[%s3 + $0x1f0] sm:$0xff]
  %v2099 = vld [vmem:[%s3 + $0x1f8] sm:$0xff]
  %v2100 = vld [vmem:[%s7] sm:$0x3]
  %vm2101 = vcmask 15360
  %v2103 = vsel %vm2101, %v2036, 0
  %v2106 = vsel %vm2101, %v2037, 0
  %v2109 = vsel %vm2101, %v2038, 0
  %v2112 = vsel %vm2101, %v2039, 0
  %v2115 = vsel %vm2101, %v2040, 0
  %v2118 = vsel %vm2101, %v2041, 0
  %v2121 = vsel %vm2101, %v2042, 0
  %v2124 = vsel %vm2101, %v2043, 0
  %v2127 = vsel %vm2101, %v2044, 0
  %v2130 = vsel %vm2101, %v2045, 0
  %v2133 = vsel %vm2101, %v2046, 0
  %v2136 = vsel %vm2101, %v2047, 0
  %v2139 = vsel %vm2101, %v2048, 0
  %v2142 = vsel %vm2101, %v2049, 0
  %v2145 = vsel %vm2101, %v2050, 0
  %v2148 = vsel %vm2101, %v2051, 0
  %v2151 = vsel %vm2101, %v2052, 0
  %v2154 = vsel %vm2101, %v2053, 0
  %v2157 = vsel %vm2101, %v2054, 0
  %v2160 = vsel %vm2101, %v2055, 0
  %v2163 = vsel %vm2101, %v2056, 0
  %v2166 = vsel %vm2101, %v2057, 0
  %v2169 = vsel %vm2101, %v2058, 0
  %v2172 = vsel %vm2101, %v2059, 0
  %v2175 = vsel %vm2101, %v2060, 0
  %v2178 = vsel %vm2101, %v2061, 0
  %v2181 = vsel %vm2101, %v2062, 0
  %v2184 = vsel %vm2101, %v2063, 0
  %v2187 = vsel %vm2101, %v2064, 0
  %v2190 = vsel %vm2101, %v2065, 0
  %v2193 = vsel %vm2101, %v2066, 0
  %v2196 = vsel %vm2101, %v2067, 0
  %v2199 = vsel %vm2101, %v2068, 0
  %v2202 = vsel %vm2101, %v2069, 0
  %v2205 = vsel %vm2101, %v2070, 0
  %v2208 = vsel %vm2101, %v2071, 0
  %v2211 = vsel %vm2101, %v2072, 0
  %v2214 = vsel %vm2101, %v2073, 0
  %v2217 = vsel %vm2101, %v2074, 0
  %v2220 = vsel %vm2101, %v2075, 0
  %v2223 = vsel %vm2101, %v2076, 0
  %v2226 = vsel %vm2101, %v2077, 0
  %v2229 = vsel %vm2101, %v2078, 0
  %v2232 = vsel %vm2101, %v2079, 0
  %v2235 = vsel %vm2101, %v2080, 0
  %v2238 = vsel %vm2101, %v2081, 0
  %v2241 = vsel %vm2101, %v2082, 0
  %v2244 = vsel %vm2101, %v2083, 0
  %v2247 = vsel %vm2101, %v2084, 0
  %v2250 = vsel %vm2101, %v2085, 0
  %v2253 = vsel %vm2101, %v2086, 0
  %v2256 = vsel %vm2101, %v2087, 0
  %v2259 = vsel %vm2101, %v2088, 0
  %v2262 = vsel %vm2101, %v2089, 0
  %v2265 = vsel %vm2101, %v2090, 0
  %v2268 = vsel %vm2101, %v2091, 0
  %v2271 = vsel %vm2101, %v2092, 0
  %v2274 = vsel %vm2101, %v2093, 0
  %v2277 = vsel %vm2101, %v2094, 0
  %v2280 = vsel %vm2101, %v2095, 0
  %v2283 = vsel %vm2101, %v2096, 0
  %v2286 = vsel %vm2101, %v2097, 0
  %v2289 = vsel %vm2101, %v2098, 0
  %v2292 = vsel %vm2101, %v2099, 0
  %vm2294 = vcmask 1041408
  %v2296 = vsel %vm2294, %v2100, 0
  %2298 = vmatprep.subr.mxu0 0.0
  %2299 = vmatpush1.msra.mxu0 0.0
  %2300 = vmatprep.subr.mxu0 0.0
  %2301 = vmatpush1.msra.mxu0 0.0
  %2302 = vmatprep.subr.mxu0 0.0
  %2303 = vmatpush1.msra.mxu0 0.0
  %2304 = vmatprep.subr.mxu0 0.0
  %2305 = vmatpush1.msra.mxu0 0.0
  %2306 = vmatprep.subr.mxu0 0.0
  %2307 = vmatpush1.msra.mxu0 0.0
  %2308 = vmatprep.subr.mxu0 0.0
  %2309 = vmatpush1.msra.mxu0 0.0
  %2310 = vmatprep.subr.mxu0 0.0
  %2311 = vmatpush1.msra.mxu0 0.0
  %2312 = vmatprep.subr.mxu0 0.0
  %2313 = vmatpush1.msra.mxu0 0.0
  %2314 = vmatprep.subr.mxu0 0.0
  %2315 = vmatpush1.msra.mxu0 0.0
  %2316 = vmatprep.subr.mxu0 0.0
  %2317 = vmatpush1.msra.mxu0 0.0
  %2318 = vmatprep.subr.mxu0 0.0
  %2319 = vmatpush1.msra.mxu0 0.0
  %2320 = vmatprep.subr.mxu0 0.0
  %2321 = vmatpush1.msra.mxu0 0.0
  %2322 = vmatprep.subr.mxu0 0.0
  %2323 = vmatpush1.msra.mxu0 0.0
  %2324 = vmatprep.subr.mxu0 0.0
  %2325 = vmatpush1.msra.mxu0 0.0
  %2326 = vmatprep.subr.mxu0 0.0
  %2327 = vmatpush1.msra.mxu0 0.0
  %2328 = vmatprep.subr.mxu0 0.0
  %2329 = vmatpush1.msra.mxu0 %v2296
  %2330 = vmatprep.subr.mxu0 0.0
  %2331 = vmatpush2.msra.mxu0 0.0
  %2332 = vmatprep.subr.mxu0 0.0
  %2333 = vmatpush2.msra.mxu0 0.0
  %2334 = vmatprep.subr.mxu0 0.0
  %2335 = vmatpush2.msra.mxu0 0.0
  %2336 = vmatprep.subr.mxu0 0.0
  %2337 = vmatpush2.msra.mxu0 0.0
  %2338 = vmatprep.subr.mxu0 0.0
  %2339 = vmatpush2.msra.mxu0 0.0
  %2340 = vmatprep.subr.mxu0 0.0
  %2341 = vmatpush2.msra.mxu0 0.0
  %2342 = vmatprep.subr.mxu0 0.0
  %2343 = vmatpush2.msra.mxu0 0.0
  %2344 = vmatprep.subr.mxu0 0.0
  %2345 = vmatpush2.msra.mxu0 0.0
  %2346 = vmatprep.subr.mxu0 0.0
  %2347 = vmatpush2.msra.mxu0 0.0
  %2348 = vmatprep.subr.mxu0 0.0
  %2349 = vmatpush2.msra.mxu0 0.0
  %2350 = vmatprep.subr.mxu0 0.0
  %2351 = vmatpush2.msra.mxu0 0.0
  %2352 = vmatprep.subr.mxu0 0.0
  %2353 = vmatpush2.msra.mxu0 0.0
  %2354 = vmatprep.subr.mxu0 0.0
  %2355 = vmatpush2.msra.mxu0 0.0
  %2356 = vmatprep.subr.mxu0 0.0
  %2357 = vmatpush2.msra.mxu0 0.0
  %2358 = vmatprep.subr.mxu0 0.0
  %2359 = vmatpush2.msra.mxu0 0.0
  %2360 = vmatprep.subr.mxu0 0.0
  %2361 = vmatpush2.msra.mxu0 0.0
  %2362 = vmatprep.mubr.f32.mxu0 0.0
  %2363 = vmatmul.mubr.f32.gmra.mxu0 %v2103
  %v2364 = vpop.f32.mrf.mxu0
  %v2365 = vadd.f32 0.0, %v2364
  %v2366 = vpop.f32.mrf.mxu0
  %2367 = vmatprep.mubr.f32.mxu0 0.0
  %2368 = vmatmul.mubr.f32.gmra.mxu0 %v2106
  %v2369 = vpop.f32.mrf.mxu0
  %v2370 = vadd.f32 0.0, %v2369
  %v2371 = vpop.f32.mrf.mxu0
  %2372 = vmatprep.mubr.f32.mxu0 0.0
  %2373 = vmatmul.mubr.f32.gmra.mxu0 %v2109
  %v2374 = vpop.f32.mrf.mxu0
  %v2375 = vadd.f32 0.0, %v2374
  %v2376 = vpop.f32.mrf.mxu0
  %2377 = vmatprep.mubr.f32.mxu0 0.0
  %2378 = vmatmul.mubr.f32.gmra.mxu0 %v2112
  %v2379 = vpop.f32.mrf.mxu0
  %v2380 = vadd.f32 0.0, %v2379
  %v2381 = vpop.f32.mrf.mxu0
  %2382 = vmatprep.mubr.f32.mxu0 0.0
  %2383 = vmatmul.mubr.f32.gmra.mxu0 %v2115
  %v2384 = vpop.f32.mrf.mxu0
  %v2385 = vadd.f32 0.0, %v2384
  %v2386 = vpop.f32.mrf.mxu0
  %2387 = vmatprep.mubr.f32.mxu0 0.0
  %2388 = vmatmul.mubr.f32.gmra.mxu0 %v2118
  %v2389 = vpop.f32.mrf.mxu0
  %v2390 = vadd.f32 0.0, %v2389
  %v2391 = vpop.f32.mrf.mxu0
  %2392 = vmatprep.mubr.f32.mxu0 0.0
  %2393 = vmatmul.mubr.f32.gmra.mxu0 %v2121
  %v2394 = vpop.f32.mrf.mxu0
  %v2395 = vadd.f32 0.0, %v2394
  %v2396 = vpop.f32.mrf.mxu0
  %2397 = vmatprep.mubr.f32.mxu0 0.0
  %2398 = vmatmul.mubr.f32.gmra.mxu0 %v2124
  %v2399 = vpop.f32.mrf.mxu0
  %v2400 = vadd.f32 0.0, %v2399
  %v2401 = vpop.f32.mrf.mxu0
  %2402 = vmatprep.mubr.f32.mxu0 0.0
  %2403 = vmatmul.mubr.f32.gmra.mxu0 %v2127
  %v2404 = vpop.f32.mrf.mxu0
  %v2405 = vadd.f32 0.0, %v2404
  %v2406 = vpop.f32.mrf.mxu0
  %2407 = vmatprep.mubr.f32.mxu0 0.0
  %2408 = vmatmul.mubr.f32.gmra.mxu0 %v2130
  %v2409 = vpop.f32.mrf.mxu0
  %v2410 = vadd.f32 0.0, %v2409
  %v2411 = vpop.f32.mrf.mxu0
  %2412 = vmatprep.mubr.f32.mxu0 0.0
  %2413 = vmatmul.mubr.f32.gmra.mxu0 %v2133
  %v2414 = vpop.f32.mrf.mxu0
  %v2415 = vadd.f32 0.0, %v2414
  %v2416 = vpop.f32.mrf.mxu0
  %2417 = vmatprep.mubr.f32.mxu0 0.0
  %2418 = vmatmul.mubr.f32.gmra.mxu0 %v2136
  %v2419 = vpop.f32.mrf.mxu0
  %v2420 = vadd.f32 0.0, %v2419
  %v2421 = vpop.f32.mrf.mxu0
  %2422 = vmatprep.mubr.f32.mxu0 0.0
  %2423 = vmatmul.mubr.f32.gmra.mxu0 %v2139
  %v2424 = vpop.f32.mrf.mxu0
  %v2425 = vadd.f32 0.0, %v2424
  %v2426 = vpop.f32.mrf.mxu0
  %2427 = vmatprep.mubr.f32.mxu0 0.0
  %2428 = vmatmul.mubr.f32.gmra.mxu0 %v2142
  %v2429 = vpop.f32.mrf.mxu0
  %v2430 = vadd.f32 0.0, %v2429
  %v2431 = vpop.f32.mrf.mxu0
  %2432 = vmatprep.mubr.f32.mxu0 0.0
  %2433 = vmatmul.mubr.f32.gmra.mxu0 %v2145
  %v2434 = vpop.f32.mrf.mxu0
  %v2435 = vadd.f32 0.0, %v2434
  %v2436 = vpop.f32.mrf.mxu0
  %2437 = vmatprep.mubr.f32.mxu0 0.0
  %2438 = vmatmul.mubr.f32.gmra.mxu0 %v2148
  %v2439 = vpop.f32.mrf.mxu0
  %v2440 = vadd.f32 0.0, %v2439
  %v2441 = vpop.f32.mrf.mxu0
  %2442 = vmatprep.mubr.f32.mxu0 0.0
  %2443 = vmatmul.mubr.f32.gmra.mxu0 %v2151
  %v2444 = vpop.f32.mrf.mxu0
  %v2445 = vadd.f32 0.0, %v2444
  %v2446 = vpop.f32.mrf.mxu0
  %2447 = vmatprep.mubr.f32.mxu0 0.0
  %2448 = vmatmul.mubr.f32.gmra.mxu0 %v2154
  %v2449 = vpop.f32.mrf.mxu0
  %v2450 = vadd.f32 0.0, %v2449
  %v2451 = vpop.f32.mrf.mxu0
  %2452 = vmatprep.mubr.f32.mxu0 0.0
  %2453 = vmatmul.mubr.f32.gmra.mxu0 %v2157
  %v2454 = vpop.f32.mrf.mxu0
  %v2455 = vadd.f32 0.0, %v2454
  %v2456 = vpop.f32.mrf.mxu0
  %2457 = vmatprep.mubr.f32.mxu0 0.0
  %2458 = vmatmul.mubr.f32.gmra.mxu0 %v2160
  %v2459 = vpop.f32.mrf.mxu0
  %v2460 = vadd.f32 0.0, %v2459
  %v2461 = vpop.f32.mrf.mxu0
  %2462 = vmatprep.mubr.f32.mxu0 0.0
  %2463 = vmatmul.mubr.f32.gmra.mxu0 %v2163
  %v2464 = vpop.f32.mrf.mxu0
  %v2465 = vadd.f32 0.0, %v2464
  %v2466 = vpop.f32.mrf.mxu0
  %2467 = vmatprep.mubr.f32.mxu0 0.0
  %2468 = vmatmul.mubr.f32.gmra.mxu0 %v2166
  %v2469 = vpop.f32.mrf.mxu0
  %v2470 = vadd.f32 0.0, %v2469
  %v2471 = vpop.f32.mrf.mxu0
  %2472 = vmatprep.mubr.f32.mxu0 0.0
  %2473 = vmatmul.mubr.f32.gmra.mxu0 %v2169
  %v2474 = vpop.f32.mrf.mxu0
  %v2475 = vadd.f32 0.0, %v2474
  %v2476 = vpop.f32.mrf.mxu0
  %2477 = vmatprep.mubr.f32.mxu0 0.0
  %2478 = vmatmul.mubr.f32.gmra.mxu0 %v2172
  %v2479 = vpop.f32.mrf.mxu0
  %v2480 = vadd.f32 0.0, %v2479
  %v2481 = vpop.f32.mrf.mxu0
  %2482 = vmatprep.mubr.f32.mxu0 0.0
  %2483 = vmatmul.mubr.f32.gmra.mxu0 %v2175
  %v2484 = vpop.f32.mrf.mxu0
  %v2485 = vadd.f32 0.0, %v2484
  %v2486 = vpop.f32.mrf.mxu0
  %2487 = vmatprep.mubr.f32.mxu0 0.0
  %2488 = vmatmul.mubr.f32.gmra.mxu0 %v2178
  %v2489 = vpop.f32.mrf.mxu0
  %v2490 = vadd.f32 0.0, %v2489
  %v2491 = vpop.f32.mrf.mxu0
  %2492 = vmatprep.mubr.f32.mxu0 0.0
  %2493 = vmatmul.mubr.f32.gmra.mxu0 %v2181
  %v2494 = vpop.f32.mrf.mxu0
  %v2495 = vadd.f32 0.0, %v2494
  %v2496 = vpop.f32.mrf.mxu0
  %2497 = vmatprep.mubr.f32.mxu0 0.0
  %2498 = vmatmul.mubr.f32.gmra.mxu0 %v2184
  %v2499 = vpop.f32.mrf.mxu0
  %v2500 = vadd.f32 0.0, %v2499
  %v2501 = vpop.f32.mrf.mxu0
  %2502 = vmatprep.mubr.f32.mxu0 0.0
  %2503 = vmatmul.mubr.f32.gmra.mxu0 %v2187
  %v2504 = vpop.f32.mrf.mxu0
  %v2505 = vadd.f32 0.0, %v2504
  %v2506 = vpop.f32.mrf.mxu0
  %2507 = vmatprep.mubr.f32.mxu0 0.0
  %2508 = vmatmul.mubr.f32.gmra.mxu0 %v2190
  %v2509 = vpop.f32.mrf.mxu0
  %v2510 = vadd.f32 0.0, %v2509
  %v2511 = vpop.f32.mrf.mxu0
  %2512 = vmatprep.mubr.f32.mxu0 0.0
  %2513 = vmatmul.mubr.f32.gmra.mxu0 %v2193
  %v2514 = vpop.f32.mrf.mxu0
  %v2515 = vadd.f32 0.0, %v2514
  %v2516 = vpop.f32.mrf.mxu0
  %2517 = vmatprep.mubr.f32.mxu0 0.0
  %2518 = vmatmul.mubr.f32.gmra.mxu0 %v2196
  %v2519 = vpop.f32.mrf.mxu0
  %v2520 = vadd.f32 0.0, %v2519
  %v2521 = vpop.f32.mrf.mxu0
  %2522 = vmatprep.mubr.f32.mxu0 0.0
  %2523 = vmatmul.mubr.f32.gmra.mxu0 %v2199
  %v2524 = vpop.f32.mrf.mxu0
  %v2525 = vadd.f32 0.0, %v2524
  %v2526 = vpop.f32.mrf.mxu0
  %2527 = vmatprep.mubr.f32.mxu0 0.0
  %2528 = vmatmul.mubr.f32.gmra.mxu0 %v2202
  %v2529 = vpop.f32.mrf.mxu0
  %v2530 = vadd.f32 0.0, %v2529
  %v2531 = vpop.f32.mrf.mxu0
  %2532 = vmatprep.mubr.f32.mxu0 0.0
  %2533 = vmatmul.mubr.f32.gmra.mxu0 %v2205
  %v2534 = vpop.f32.mrf.mxu0
  %v2535 = vadd.f32 0.0, %v2534
  %v2536 = vpop.f32.mrf.mxu0
  %2537 = vmatprep.mubr.f32.mxu0 0.0
  %2538 = vmatmul.mubr.f32.gmra.mxu0 %v2208
  %v2539 = vpop.f32.mrf.mxu0
  %v2540 = vadd.f32 0.0, %v2539
  %v2541 = vpop.f32.mrf.mxu0
  %2542 = vmatprep.mubr.f32.mxu0 0.0
  %2543 = vmatmul.mubr.f32.gmra.mxu0 %v2211
  %v2544 = vpop.f32.mrf.mxu0
  %v2545 = vadd.f32 0.0, %v2544
  %v2546 = vpop.f32.mrf.mxu0
  %2547 = vmatprep.mubr.f32.mxu0 0.0
  %2548 = vmatmul.mubr.f32.gmra.mxu0 %v2214
  %v2549 = vpop.f32.mrf.mxu0
  %v2550 = vadd.f32 0.0, %v2549
  %v2551 = vpop.f32.mrf.mxu0
  %2552 = vmatprep.mubr.f32.mxu0 0.0
  %2553 = vmatmul.mubr.f32.gmra.mxu0 %v2217
  %v2554 = vpop.f32.mrf.mxu0
  %v2555 = vadd.f32 0.0, %v2554
  %v2556 = vpop.f32.mrf.mxu0
  %2557 = vmatprep.mubr.f32.mxu0 0.0
  %2558 = vmatmul.mubr.f32.gmra.mxu0 %v2220
  %v2559 = vpop.f32.mrf.mxu0
  %v2560 = vadd.f32 0.0, %v2559
  %v2561 = vpop.f32.mrf.mxu0
  %2562 = vmatprep.mubr.f32.mxu0 0.0
  %2563 = vmatmul.mubr.f32.gmra.mxu0 %v2223
  %v2564 = vpop.f32.mrf.mxu0
  %v2565 = vadd.f32 0.0, %v2564
  %v2566 = vpop.f32.mrf.mxu0
  %2567 = vmatprep.mubr.f32.mxu0 0.0
  %2568 = vmatmul.mubr.f32.gmra.mxu0 %v2226
  %v2569 = vpop.f32.mrf.mxu0
  %v2570 = vadd.f32 0.0, %v2569
  %v2571 = vpop.f32.mrf.mxu0
  %2572 = vmatprep.mubr.f32.mxu0 0.0
  %2573 = vmatmul.mubr.f32.gmra.mxu0 %v2229
  %v2574 = vpop.f32.mrf.mxu0
  %v2575 = vadd.f32 0.0, %v2574
  %v2576 = vpop.f32.mrf.mxu0
  %2577 = vmatprep.mubr.f32.mxu0 0.0
  %2578 = vmatmul.mubr.f32.gmra.mxu0 %v2232
  %v2579 = vpop.f32.mrf.mxu0
  %v2580 = vadd.f32 0.0, %v2579
  %v2581 = vpop.f32.mrf.mxu0
  %2582 = vmatprep.mubr.f32.mxu0 0.0
  %2583 = vmatmul.mubr.f32.gmra.mxu0 %v2235
  %v2584 = vpop.f32.mrf.mxu0
  %v2585 = vadd.f32 0.0, %v2584
  %v2586 = vpop.f32.mrf.mxu0
  %2587 = vmatprep.mubr.f32.mxu0 0.0
  %2588 = vmatmul.mubr.f32.gmra.mxu0 %v2238
  %v2589 = vpop.f32.mrf.mxu0
  %v2590 = vadd.f32 0.0, %v2589
  %v2591 = vpop.f32.mrf.mxu0
  %2592 = vmatprep.mubr.f32.mxu0 0.0
  %2593 = vmatmul.mubr.f32.gmra.mxu0 %v2241
  %v2594 = vpop.f32.mrf.mxu0
  %v2595 = vadd.f32 0.0, %v2594
  %v2596 = vpop.f32.mrf.mxu0
  %2597 = vmatprep.mubr.f32.mxu0 0.0
  %2598 = vmatmul.mubr.f32.gmra.mxu0 %v2244
  %v2599 = vpop.f32.mrf.mxu0
  %v2600 = vadd.f32 0.0, %v2599
  %v2601 = vpop.f32.mrf.mxu0
  %2602 = vmatprep.mubr.f32.mxu0 0.0
  %2603 = vmatmul.mubr.f32.gmra.mxu0 %v2247
  %v2604 = vpop.f32.mrf.mxu0
  %v2605 = vadd.f32 0.0, %v2604
  %v2606 = vpop.f32.mrf.mxu0
  %2607 = vmatprep.mubr.f32.mxu0 0.0
  %2608 = vmatmul.mubr.f32.gmra.mxu0 %v2250
  %v2609 = vpop.f32.mrf.mxu0
  %v2610 = vadd.f32 0.0, %v2609
  %v2611 = vpop.f32.mrf.mxu0
  %2612 = vmatprep.mubr.f32.mxu0 0.0
  %2613 = vmatmul.mubr.f32.gmra.mxu0 %v2253
  %v2614 = vpop.f32.mrf.mxu0
  %v2615 = vadd.f32 0.0, %v2614
  %v2616 = vpop.f32.mrf.mxu0
  %2617 = vmatprep.mubr.f32.mxu0 0.0
  %2618 = vmatmul.mubr.f32.gmra.mxu0 %v2256
  %v2619 = vpop.f32.mrf.mxu0
  %v2620 = vadd.f32 0.0, %v2619
  %v2621 = vpop.f32.mrf.mxu0
  %2622 = vmatprep.mubr.f32.mxu0 0.0
  %2623 = vmatmul.mubr.f32.gmra.mxu0 %v2259
  %v2624 = vpop.f32.mrf.mxu0
  %v2625 = vadd.f32 0.0, %v2624
  %v2626 = vpop.f32.mrf.mxu0
  %2627 = vmatprep.mubr.f32.mxu0 0.0
  %2628 = vmatmul.mubr.f32.gmra.mxu0 %v2262
  %v2629 = vpop.f32.mrf.mxu0
  %v2630 = vadd.f32 0.0, %v2629
  %v2631 = vpop.f32.mrf.mxu0
  %2632 = vmatprep.mubr.f32.mxu0 0.0
  %2633 = vmatmul.mubr.f32.gmra.mxu0 %v2265
  %v2634 = vpop.f32.mrf.mxu0
  %v2635 = vadd.f32 0.0, %v2634
  %v2636 = vpop.f32.mrf.mxu0
  %2637 = vmatprep.mubr.f32.mxu0 0.0
  %2638 = vmatmul.mubr.f32.gmra.mxu0 %v2268
  %v2639 = vpop.f32.mrf.mxu0
  %v2640 = vadd.f32 0.0, %v2639
  %v2641 = vpop.f32.mrf.mxu0
  %2642 = vmatprep.mubr.f32.mxu0 0.0
  %2643 = vmatmul.mubr.f32.gmra.mxu0 %v2271
  %v2644 = vpop.f32.mrf.mxu0
  %v2645 = vadd.f32 0.0, %v2644
  %v2646 = vpop.f32.mrf.mxu0
  %2647 = vmatprep.mubr.f32.mxu0 0.0
  %2648 = vmatmul.mubr.f32.gmra.mxu0 %v2274
  %v2649 = vpop.f32.mrf.mxu0
  %v2650 = vadd.f32 0.0, %v2649
  %v2651 = vpop.f32.mrf.mxu0
  %2652 = vmatprep.mubr.f32.mxu0 0.0
  %2653 = vmatmul.mubr.f32.gmra.mxu0 %v2277
  %v2654 = vpop.f32.mrf.mxu0
  %v2655 = vadd.f32 0.0, %v2654
  %v2656 = vpop.f32.mrf.mxu0
  %2657 = vmatprep.mubr.f32.mxu0 0.0
  %2658 = vmatmul.mubr.f32.gmra.mxu0 %v2280
  %v2659 = vpop.f32.mrf.mxu0
  %v2660 = vadd.f32 0.0, %v2659
  %v2661 = vpop.f32.mrf.mxu0
  %2662 = vmatprep.mubr.f32.mxu0 0.0
  %2663 = vmatmul.mubr.f32.gmra.mxu0 %v2283
  %v2664 = vpop.f32.mrf.mxu0
  %v2665 = vadd.f32 0.0, %v2664
  %v2666 = vpop.f32.mrf.mxu0
  %2667 = vmatprep.mubr.f32.mxu0 0.0
  %2668 = vmatmul.mubr.f32.gmra.mxu0 %v2286
  %v2669 = vpop.f32.mrf.mxu0
  %v2670 = vadd.f32 0.0, %v2669
  %v2671 = vpop.f32.mrf.mxu0
  %2672 = vmatprep.mubr.f32.mxu0 0.0
  %2673 = vmatmul.mubr.f32.gmra.mxu0 %v2289
  %v2674 = vpop.f32.mrf.mxu0
  %v2675 = vadd.f32 0.0, %v2674
  %v2676 = vpop.f32.mrf.mxu0
  %2677 = vmatprep.mubr.f32.mxu0 0.0
  %2678 = vmatmul.mubr.f32.gmra.mxu0 %v2292
  %v2679 = vpop.f32.mrf.mxu0
  %v2680 = vadd.f32 0.0, %v2679
  %v2681 = vpop.f32.mrf.mxu0
  %2682 = vdwg.mxu0
  %v2683 = vadd.f32 %v1972, %v2365
  %v2684 = vadd.f32 %v1973, %v2370
  %v2685 = vadd.f32 %v1974, %v2375
  %v2686 = vadd.f32 %v1975, %v2380
  %v2687 = vadd.f32 %v1976, %v2385
  %v2688 = vadd.f32 %v1977, %v2390
  %v2689 = vadd.f32 %v1978, %v2395
  %v2690 = vadd.f32 %v1979, %v2400
  %v2691 = vadd.f32 %v1980, %v2405
  %v2692 = vadd.f32 %v1981, %v2410
  %v2693 = vadd.f32 %v1982, %v2415
  %v2694 = vadd.f32 %v1983, %v2420
  %v2695 = vadd.f32 %v1984, %v2425
  %v2696 = vadd.f32 %v1985, %v2430
  %v2697 = vadd.f32 %v1986, %v2435
  %v2698 = vadd.f32 %v1987, %v2440
  %v2699 = vadd.f32 %v1988, %v2445
  %v2700 = vadd.f32 %v1989, %v2450
  %v2701 = vadd.f32 %v1990, %v2455
  %v2702 = vadd.f32 %v1991, %v2460
  %v2703 = vadd.f32 %v1992, %v2465
  %v2704 = vadd.f32 %v1993, %v2470
  %v2705 = vadd.f32 %v1994, %v2475
  %v2706 = vadd.f32 %v1995, %v2480
  %v2707 = vadd.f32 %v1996, %v2485
  %v2708 = vadd.f32 %v1997, %v2490
  %v2709 = vadd.f32 %v1998, %v2495
  %v2710 = vadd.f32 %v1999, %v2500
  %v2711 = vadd.f32 %v2000, %v2505
  %v2712 = vadd.f32 %v2001, %v2510
  %v2713 = vadd.f32 %v2002, %v2515
  %v2714 = vadd.f32 %v2003, %v2520
  %v2715 = vadd.f32 %v2004, %v2525
  %v2716 = vadd.f32 %v2005, %v2530
  %v2717 = vadd.f32 %v2006, %v2535
  %v2718 = vadd.f32 %v2007, %v2540
  %v2719 = vadd.f32 %v2008, %v2545
  %v2720 = vadd.f32 %v2009, %v2550
  %v2721 = vadd.f32 %v2010, %v2555
  %v2722 = vadd.f32 %v2011, %v2560
  %v2723 = vadd.f32 %v2012, %v2565
  %v2724 = vadd.f32 %v2013, %v2570
  %v2725 = vadd.f32 %v2014, %v2575
  %v2726 = vadd.f32 %v2015, %v2580
  %v2727 = vadd.f32 %v2016, %v2585
  %v2728 = vadd.f32 %v2017, %v2590
  %v2729 = vadd.f32 %v2018, %v2595
  %v2730 = vadd.f32 %v2019, %v2600
  %v2731 = vadd.f32 %v2020, %v2605
  %v2732 = vadd.f32 %v2021, %v2610
  %v2733 = vadd.f32 %v2022, %v2615
  %v2734 = vadd.f32 %v2023, %v2620
  %v2735 = vadd.f32 %v2024, %v2625
  %v2736 = vadd.f32 %v2025, %v2630
  %v2737 = vadd.f32 %v2026, %v2635
  %v2738 = vadd.f32 %v2027, %v2640
  %v2739 = vadd.f32 %v2028, %v2645
  %v2740 = vadd.f32 %v2029, %v2650
  %v2741 = vadd.f32 %v2030, %v2655
  %v2742 = vadd.f32 %v2031, %v2660
  %v2743 = vadd.f32 %v2032, %v2665
  %v2744 = vadd.f32 %v2033, %v2670
  %v2745 = vadd.f32 %v2034, %v2675
  %v2746 = vadd.f32 %v2035, %v2680
  %v2747 = vld [vmem:[%s8] sm:$0x1]
  %v2749 = vlaneseq
  %v2750 = vshrl.u32 %v2749, 7
  %v2751 = vsub.s32 0, %v2750
  %v2752 = vrot.slane %v2747, %v2751
  %v2754 = vmul.f32 %v2683, %v2752
  %v2755 = vmul.f32 %v2684, %v2752
  %v2756 = vmul.f32 %v2685, %v2752
  %v2757 = vmul.f32 %v2686, %v2752
  %v2758 = vmul.f32 %v2687, %v2752
  %v2759 = vmul.f32 %v2688, %v2752
  %v2760 = vmul.f32 %v2689, %v2752
  %v2761 = vmul.f32 %v2690, %v2752
  %v2762 = vmul.f32 %v2691, %v2752
  %v2763 = vmul.f32 %v2692, %v2752
  %v2764 = vmul.f32 %v2693, %v2752
  %v2765 = vmul.f32 %v2694, %v2752
  %v2766 = vmul.f32 %v2695, %v2752
  %v2767 = vmul.f32 %v2696, %v2752
  %v2768 = vmul.f32 %v2697, %v2752
  %v2769 = vmul.f32 %v2698, %v2752
  %v2770 = vmul.f32 %v2699, %v2752
  %v2771 = vmul.f32 %v2700, %v2752
  %v2772 = vmul.f32 %v2701, %v2752
  %v2773 = vmul.f32 %v2702, %v2752
  %v2774 = vmul.f32 %v2703, %v2752
  %v2775 = vmul.f32 %v2704, %v2752
  %v2776 = vmul.f32 %v2705, %v2752
  %v2777 = vmul.f32 %v2706, %v2752
  %v2778 = vmul.f32 %v2707, %v2752
  %v2779 = vmul.f32 %v2708, %v2752
  %v2780 = vmul.f32 %v2709, %v2752
  %v2781 = vmul.f32 %v2710, %v2752
  %v2782 = vmul.f32 %v2711, %v2752
  %v2783 = vmul.f32 %v2712, %v2752
  %v2784 = vmul.f32 %v2713, %v2752
  %v2785 = vmul.f32 %v2714, %v2752
  %v2786 = vmul.f32 %v2715, %v2752
  %v2787 = vmul.f32 %v2716, %v2752
  %v2788 = vmul.f32 %v2717, %v2752
  %v2789 = vmul.f32 %v2718, %v2752
  %v2790 = vmul.f32 %v2719, %v2752
  %v2791 = vmul.f32 %v2720, %v2752
  %v2792 = vmul.f32 %v2721, %v2752
  %v2793 = vmul.f32 %v2722, %v2752
  %v2794 = vmul.f32 %v2723, %v2752
  %v2795 = vmul.f32 %v2724, %v2752
  %v2796 = vmul.f32 %v2725, %v2752
  %v2797 = vmul.f32 %v2726, %v2752
  %v2798 = vmul.f32 %v2727, %v2752
  %v2799 = vmul.f32 %v2728, %v2752
  %v2800 = vmul.f32 %v2729, %v2752
  %v2801 = vmul.f32 %v2730, %v2752
  %v2802 = vmul.f32 %v2731, %v2752
  %v2803 = vmul.f32 %v2732, %v2752
  %v2804 = vmul.f32 %v2733, %v2752
  %v2805 = vmul.f32 %v2734, %v2752
  %v2806 = vmul.f32 %v2735, %v2752
  %v2807 = vmul.f32 %v2736, %v2752
  %v2808 = vmul.f32 %v2737, %v2752
  %v2809 = vmul.f32 %v2738, %v2752
  %v2810 = vmul.f32 %v2739, %v2752
  %v2811 = vmul.f32 %v2740, %v2752
  %v2812 = vmul.f32 %v2741, %v2752
  %v2813 = vmul.f32 %v2742, %v2752
  %v2814 = vmul.f32 %v2743, %v2752
  %v2815 = vmul.f32 %v2744, %v2752
  %v2816 = vmul.f32 %v2745, %v2752
  %v2817 = vmul.f32 %v2746, %v2752
  %v2818 = vld [vmem:[%s9] sm:$0x1]
  %v2820 = vlaneseq
  %v2821 = vshrl.u32 %v2820, 7
  %v2822 = vsub.s32 0, %v2821
  %v2823 = vrot.slane %v2818, %v2822
  %v2825 = vadd.f32 %v2754, %v2823
  %v2826 = vadd.f32 %v2755, %v2823
  %v2827 = vadd.f32 %v2756, %v2823
  %v2828 = vadd.f32 %v2757, %v2823
  %v2829 = vadd.f32 %v2758, %v2823
  %v2830 = vadd.f32 %v2759, %v2823
  %v2831 = vadd.f32 %v2760, %v2823
  %v2832 = vadd.f32 %v2761, %v2823
  %v2833 = vadd.f32 %v2762, %v2823
  %v2834 = vadd.f32 %v2763, %v2823
  %v2835 = vadd.f32 %v2764, %v2823
  %v2836 = vadd.f32 %v2765, %v2823
  %v2837 = vadd.f32 %v2766, %v2823
  %v2838 = vadd.f32 %v2767, %v2823
  %v2839 = vadd.f32 %v2768, %v2823
  %v2840 = vadd.f32 %v2769, %v2823
  %v2841 = vadd.f32 %v2770, %v2823
  %v2842 = vadd.f32 %v2771, %v2823
  %v2843 = vadd.f32 %v2772, %v2823
  %v2844 = vadd.f32 %v2773, %v2823
  %v2845 = vadd.f32 %v2774, %v2823
  %v2846 = vadd.f32 %v2775, %v2823
  %v2847 = vadd.f32 %v2776, %v2823
  %v2848 = vadd.f32 %v2777, %v2823
  %v2849 = vadd.f32 %v2778, %v2823
  %v2850 = vadd.f32 %v2779, %v2823
  %v2851 = vadd.f32 %v2780, %v2823
  %v2852 = vadd.f32 %v2781, %v2823
  %v2853 = vadd.f32 %v2782, %v2823
  %v2854 = vadd.f32 %v2783, %v2823
  %v2855 = vadd.f32 %v2784, %v2823
  %v2856 = vadd.f32 %v2785, %v2823
  %v2857 = vadd.f32 %v2786, %v2823
  %v2858 = vadd.f32 %v2787, %v2823
  %v2859 = vadd.f32 %v2788, %v2823
  %v2860 = vadd.f32 %v2789, %v2823
  %v2861 = vadd.f32 %v2790, %v2823
  %v2862 = vadd.f32 %v2791, %v2823
  %v2863 = vadd.f32 %v2792, %v2823
  %v2864 = vadd.f32 %v2793, %v2823
  %v2865 = vadd.f32 %v2794, %v2823
  %v2866 = vadd.f32 %v2795, %v2823
  %v2867 = vadd.f32 %v2796, %v2823
  %v2868 = vadd.f32 %v2797, %v2823
  %v2869 = vadd.f32 %v2798, %v2823
  %v2870 = vadd.f32 %v2799, %v2823
  %v2871 = vadd.f32 %v2800, %v2823
  %v2872 = vadd.f32 %v2801, %v2823
  %v2873 = vadd.f32 %v2802, %v2823
  %v2874 = vadd.f32 %v2803, %v2823
  %v2875 = vadd.f32 %v2804, %v2823
  %v2876 = vadd.f32 %v2805, %v2823
  %v2877 = vadd.f32 %v2806, %v2823
  %v2878 = vadd.f32 %v2807, %v2823
  %v2879 = vadd.f32 %v2808, %v2823
  %v2880 = vadd.f32 %v2809, %v2823
  %v2881 = vadd.f32 %v2810, %v2823
  %v2882 = vadd.f32 %v2811, %v2823
  %v2883 = vadd.f32 %v2812, %v2823
  %v2884 = vadd.f32 %v2813, %v2823
  %v2885 = vadd.f32 %v2814, %v2823
  %v2886 = vadd.f32 %v2815, %v2823
  %v2887 = vadd.f32 %v2816, %v2823
  %v2888 = vadd.f32 %v2817, %v2823
  %v2889 = vxor.u32 %v2825, 2147483648
  %v2890 = vxor.u32 %v2826, 2147483648
  %v2891 = vxor.u32 %v2827, 2147483648
  %v2892 = vxor.u32 %v2828, 2147483648
  %v2893 = vxor.u32 %v2829, 2147483648
  %v2894 = vxor.u32 %v2830, 2147483648
  %v2895 = vxor.u32 %v2831, 2147483648
  %v2896 = vxor.u32 %v2832, 2147483648
  %v2897 = vxor.u32 %v2833, 2147483648
  %v2898 = vxor.u32 %v2834, 2147483648
  %v2899 = vxor.u32 %v2835, 2147483648
  %v2900 = vxor.u32 %v2836, 2147483648
  %v2901 = vxor.u32 %v2837, 2147483648
  %v2902 = vxor.u32 %v2838, 2147483648
  %v2903 = vxor.u32 %v2839, 2147483648
  %v2904 = vxor.u32 %v2840, 2147483648
  %v2905 = vxor.u32 %v2841, 2147483648
  %v2906 = vxor.u32 %v2842, 2147483648
  %v2907 = vxor.u32 %v2843, 2147483648
  %v2908 = vxor.u32 %v2844, 2147483648
  %v2909 = vxor.u32 %v2845, 2147483648
  %v2910 = vxor.u32 %v2846, 2147483648
  %v2911 = vxor.u32 %v2847, 2147483648
  %v2912 = vxor.u32 %v2848, 2147483648
  %v2913 = vxor.u32 %v2849, 2147483648
  %v2914 = vxor.u32 %v2850, 2147483648
  %v2915 = vxor.u32 %v2851, 2147483648
  %v2916 = vxor.u32 %v2852, 2147483648
  %v2917 = vxor.u32 %v2853, 2147483648
  %v2918 = vxor.u32 %v2854, 2147483648
  %v2919 = vxor.u32 %v2855, 2147483648
  %v2920 = vxor.u32 %v2856, 2147483648
  %v2921 = vxor.u32 %v2857, 2147483648
  %v2922 = vxor.u32 %v2858, 2147483648
  %v2923 = vxor.u32 %v2859, 2147483648
  %v2924 = vxor.u32 %v2860, 2147483648
  %v2925 = vxor.u32 %v2861, 2147483648
  %v2926 = vxor.u32 %v2862, 2147483648
  %v2927 = vxor.u32 %v2863, 2147483648
  %v2928 = vxor.u32 %v2864, 2147483648
  %v2929 = vxor.u32 %v2865, 2147483648
  %v2930 = vxor.u32 %v2866, 2147483648
  %v2931 = vxor.u32 %v2867, 2147483648
  %v2932 = vxor.u32 %v2868, 2147483648
  %v2933 = vxor.u32 %v2869, 2147483648
  %v2934 = vxor.u32 %v2870, 2147483648
  %v2935 = vxor.u32 %v2871, 2147483648
  %v2936 = vxor.u32 %v2872, 2147483648
  %v2937 = vxor.u32 %v2873, 2147483648
  %v2938 = vxor.u32 %v2874, 2147483648
  %v2939 = vxor.u32 %v2875, 2147483648
  %v2940 = vxor.u32 %v2876, 2147483648
  %v2941 = vxor.u32 %v2877, 2147483648
  %v2942 = vxor.u32 %v2878, 2147483648
  %v2943 = vxor.u32 %v2879, 2147483648
  %v2944 = vxor.u32 %v2880, 2147483648
  %v2945 = vxor.u32 %v2881, 2147483648
  %v2946 = vxor.u32 %v2882, 2147483648
  %v2947 = vxor.u32 %v2883, 2147483648
  %v2948 = vxor.u32 %v2884, 2147483648
  %v2949 = vxor.u32 %v2885, 2147483648
  %v2950 = vxor.u32 %v2886, 2147483648
  %v2951 = vxor.u32 %v2887, 2147483648
  %v2952 = vxor.u32 %v2888, 2147483648
  %v2953 = vmul.f32 %v2889, 1.442695
  %v2954 = vpow.pop %v2953
  %v2955 = vmul.f32 %v2890, 1.442695
  %v2956 = vpow.pop %v2955
  %v2957 = vmul.f32 %v2891, 1.442695
  %v2958 = vpow.pop %v2957
  %v2959 = vmul.f32 %v2892, 1.442695
  %v2960 = vpow.pop %v2959
  %v2961 = vmul.f32 %v2893, 1.442695
  %v2962 = vpow.pop %v2961
  %v2963 = vmul.f32 %v2894, 1.442695
  %v2964 = vpow.pop %v2963
  %v2965 = vmul.f32 %v2895, 1.442695
  %v2966 = vpow.pop %v2965
  %v2967 = vmul.f32 %v2896, 1.442695
  %v2968 = vpow.pop %v2967
  %v2969 = vmul.f32 %v2897, 1.442695
  %v2970 = vpow.pop %v2969
  %v2971 = vmul.f32 %v2898, 1.442695
  %v2972 = vpow.pop %v2971
  %v2973 = vmul.f32 %v2899, 1.442695
  %v2974 = vpow.pop %v2973
  %v2975 = vmul.f32 %v2900, 1.442695
  %v2976 = vpow.pop %v2975
  %v2977 = vmul.f32 %v2901, 1.442695
  %v2978 = vpow.pop %v2977
  %v2979 = vmul.f32 %v2902, 1.442695
  %v2980 = vpow.pop %v2979
  %v2981 = vmul.f32 %v2903, 1.442695
  %v2982 = vpow.pop %v2981
  %v2983 = vmul.f32 %v2904, 1.442695
  %v2984 = vpow.pop %v2983
  %v2985 = vmul.f32 %v2905, 1.442695
  %v2986 = vpow.pop %v2985
  %v2987 = vmul.f32 %v2906, 1.442695
  %v2988 = vpow.pop %v2987
  %v2989 = vmul.f32 %v2907, 1.442695
  %v2990 = vpow.pop %v2989
  %v2991 = vmul.f32 %v2908, 1.442695
  %v2992 = vpow.pop %v2991
  %v2993 = vmul.f32 %v2909, 1.442695
  %v2994 = vpow.pop %v2993
  %v2995 = vmul.f32 %v2910, 1.442695
  %v2996 = vpow.pop %v2995
  %v2997 = vmul.f32 %v2911, 1.442695
  %v2998 = vpow.pop %v2997
  %v2999 = vmul.f32 %v2912, 1.442695
  %v3000 = vpow.pop %v2999
  %v3001 = vmul.f32 %v2913, 1.442695
  %v3002 = vpow.pop %v3001
  %v3003 = vmul.f32 %v2914, 1.442695
  %v3004 = vpow.pop %v3003
  %v3005 = vmul.f32 %v2915, 1.442695
  %v3006 = vpow.pop %v3005
  %v3007 = vmul.f32 %v2916, 1.442695
  %v3008 = vpow.pop %v3007
  %v3009 = vmul.f32 %v2917, 1.442695
  %v3010 = vpow.pop %v3009
  %v3011 = vmul.f32 %v2918, 1.442695
  %v3012 = vpow.pop %v3011
  %v3013 = vmul.f32 %v2919, 1.442695
  %v3014 = vpow.pop %v3013
  %v3015 = vmul.f32 %v2920, 1.442695
  %v3016 = vpow.pop %v3015
  %v3017 = vmul.f32 %v2921, 1.442695
  %v3018 = vpow.pop %v3017
  %v3019 = vmul.f32 %v2922, 1.442695
  %v3020 = vpow.pop %v3019
  %v3021 = vmul.f32 %v2923, 1.442695
  %v3022 = vpow.pop %v3021
  %v3023 = vmul.f32 %v2924, 1.442695
  %v3024 = vpow.pop %v3023
  %v3025 = vmul.f32 %v2925, 1.442695
  %v3026 = vpow.pop %v3025
  %v3027 = vmul.f32 %v2926, 1.442695
  %v3028 = vpow.pop %v3027
  %v3029 = vmul.f32 %v2927, 1.442695
  %v3030 = vpow.pop %v3029
  %v3031 = vmul.f32 %v2928, 1.442695
  %v3032 = vpow.pop %v3031
  %v3033 = vmul.f32 %v2929, 1.442695
  %v3034 = vpow.pop %v3033
  %v3035 = vmul.f32 %v2930, 1.442695
  %v3036 = vpow.pop %v3035
  %v3037 = vmul.f32 %v2931, 1.442695
  %v3038 = vpow.pop %v3037
  %v3039 = vmul.f32 %v2932, 1.442695
  %v3040 = vpow.pop %v3039
  %v3041 = vmul.f32 %v2933, 1.442695
  %v3042 = vpow.pop %v3041
  %v3043 = vmul.f32 %v2934, 1.442695
  %v3044 = vpow.pop %v3043
  %v3045 = vmul.f32 %v2935, 1.442695
  %v3046 = vpow.pop %v3045
  %v3047 = vmul.f32 %v2936, 1.442695
  %v3048 = vpow.pop %v3047
  %v3049 = vmul.f32 %v2937, 1.442695
  %v3050 = vpow.pop %v3049
  %v3051 = vmul.f32 %v2938, 1.442695
  %v3052 = vpow.pop %v3051
  %v3053 = vmul.f32 %v2939, 1.442695
  %v3054 = vpow.pop %v3053
  %v3055 = vmul.f32 %v2940, 1.442695
  %v3056 = vpow.pop %v3055
  %v3057 = vmul.f32 %v2941, 1.442695
  %v3058 = vpow.pop %v3057
  %v3059 = vmul.f32 %v2942, 1.442695
  %v3060 = vpow.pop %v3059
  %v3061 = vmul.f32 %v2943, 1.442695
  %v3062 = vpow.pop %v3061
  %v3063 = vmul.f32 %v2944, 1.442695
  %v3064 = vpow.pop %v3063
  %v3065 = vmul.f32 %v2945, 1.442695
  %v3066 = vpow.pop %v3065
  %v3067 = vmul.f32 %v2946, 1.442695
  %v3068 = vpow.pop %v3067
  %v3069 = vmul.f32 %v2947, 1.442695
  %v3070 = vpow.pop %v3069
  %v3071 = vmul.f32 %v2948, 1.442695
  %v3072 = vpow.pop %v3071
  %v3073 = vmul.f32 %v2949, 1.442695
  %v3074 = vpow.pop %v3073
  %v3075 = vmul.f32 %v2950, 1.442695
  %v3076 = vpow.pop %v3075
  %v3077 = vmul.f32 %v2951, 1.442695
  %v3078 = vpow.pop %v3077
  %v3079 = vmul.f32 %v2952, 1.442695
  %v3080 = vpow.pop %v3079
  %v3081 = vadd.f32 %v2954, 1.0
  %v3082 = vadd.f32 %v2956, 1.0
  %v3083 = vadd.f32 %v2958, 1.0
  %v3084 = vadd.f32 %v2960, 1.0
  %v3085 = vadd.f32 %v2962, 1.0
  %v3086 = vadd.f32 %v2964, 1.0
  %v3087 = vadd.f32 %v2966, 1.0
  %v3088 = vadd.f32 %v2968, 1.0
  %v3089 = vadd.f32 %v2970, 1.0
  %v3090 = vadd.f32 %v2972, 1.0
  %v3091 = vadd.f32 %v2974, 1.0
  %v3092 = vadd.f32 %v2976, 1.0
  %v3093 = vadd.f32 %v2978, 1.0
  %v3094 = vadd.f32 %v2980, 1.0
  %v3095 = vadd.f32 %v2982, 1.0
  %v3096 = vadd.f32 %v2984, 1.0
  %v3097 = vadd.f32 %v2986, 1.0
  %v3098 = vadd.f32 %v2988, 1.0
  %v3099 = vadd.f32 %v2990, 1.0
  %v3100 = vadd.f32 %v2992, 1.0
  %v3101 = vadd.f32 %v2994, 1.0
  %v3102 = vadd.f32 %v2996, 1.0
  %v3103 = vadd.f32 %v2998, 1.0
  %v3104 = vadd.f32 %v3000, 1.0
  %v3105 = vadd.f32 %v3002, 1.0
  %v3106 = vadd.f32 %v3004, 1.0
  %v3107 = vadd.f32 %v3006, 1.0
  %v3108 = vadd.f32 %v3008, 1.0
  %v3109 = vadd.f32 %v3010, 1.0
  %v3110 = vadd.f32 %v3012, 1.0
  %v3111 = vadd.f32 %v3014, 1.0
  %v3112 = vadd.f32 %v3016, 1.0
  %v3113 = vadd.f32 %v3018, 1.0
  %v3114 = vadd.f32 %v3020, 1.0
  %v3115 = vadd.f32 %v3022, 1.0
  %v3116 = vadd.f32 %v3024, 1.0
  %v3117 = vadd.f32 %v3026, 1.0
  %v3118 = vadd.f32 %v3028, 1.0
  %v3119 = vadd.f32 %v3030, 1.0
  %v3120 = vadd.f32 %v3032, 1.0
  %v3121 = vadd.f32 %v3034, 1.0
  %v3122 = vadd.f32 %v3036, 1.0
  %v3123 = vadd.f32 %v3038, 1.0
  %v3124 = vadd.f32 %v3040, 1.0
  %v3125 = vadd.f32 %v3042, 1.0
  %v3126 = vadd.f32 %v3044, 1.0
  %v3127 = vadd.f32 %v3046, 1.0
  %v3128 = vadd.f32 %v3048, 1.0
  %v3129 = vadd.f32 %v3050, 1.0
  %v3130 = vadd.f32 %v3052, 1.0
  %v3131 = vadd.f32 %v3054, 1.0
  %v3132 = vadd.f32 %v3056, 1.0
  %v3133 = vadd.f32 %v3058, 1.0
  %v3134 = vadd.f32 %v3060, 1.0
  %v3135 = vadd.f32 %v3062, 1.0
  %v3136 = vadd.f32 %v3064, 1.0
  %v3137 = vadd.f32 %v3066, 1.0
  %v3138 = vadd.f32 %v3068, 1.0
  %v3139 = vadd.f32 %v3070, 1.0
  %v3140 = vadd.f32 %v3072, 1.0
  %v3141 = vadd.f32 %v3074, 1.0
  %v3142 = vadd.f32 %v3076, 1.0
  %v3143 = vadd.f32 %v3078, 1.0
  %v3144 = vadd.f32 %v3080, 1.0
  %v3145 = vrcp.pop %v3081
  %v3146 = vmul.f32 1.0, %v3145
  %v3147 = vrcp.pop %v3082
  %v3148 = vmul.f32 1.0, %v3147
  %v3149 = vrcp.pop %v3083
  %v3150 = vmul.f32 1.0, %v3149
  %v3151 = vrcp.pop %v3084
  %v3152 = vmul.f32 1.0, %v3151
  %v3153 = vrcp.pop %v3085
  %v3154 = vmul.f32 1.0, %v3153
  %v3155 = vrcp.pop %v3086
  %v3156 = vmul.f32 1.0, %v3155
  %v3157 = vrcp.pop %v3087
  %v3158 = vmul.f32 1.0, %v3157
  %v3159 = vrcp.pop %v3088
  %v3160 = vmul.f32 1.0, %v3159
  %v3161 = vrcp.pop %v3089
  %v3162 = vmul.f32 1.0, %v3161
  %v3163 = vrcp.pop %v3090
  %v3164 = vmul.f32 1.0, %v3163
  %v3165 = vrcp.pop %v3091
  %v3166 = vmul.f32 1.0, %v3165
  %v3167 = vrcp.pop %v3092
  %v3168 = vmul.f32 1.0, %v3167
  %v3169 = vrcp.pop %v3093
  %v3170 = vmul.f32 1.0, %v3169
  %v3171 = vrcp.pop %v3094
  %v3172 = vmul.f32 1.0, %v3171
  %v3173 = vrcp.pop %v3095
  %v3174 = vmul.f32 1.0, %v3173
  %v3175 = vrcp.pop %v3096
  %v3176 = vmul.f32 1.0, %v3175
  %v3177 = vrcp.pop %v3097
  %v3178 = vmul.f32 1.0, %v3177
  %v3179 = vrcp.pop %v3098
  %v3180 = vmul.f32 1.0, %v3179
  %v3181 = vrcp.pop %v3099
  %v3182 = vmul.f32 1.0, %v3181
  %v3183 = vrcp.pop %v3100
  %v3184 = vmul.f32 1.0, %v3183
  %v3185 = vrcp.pop %v3101
  %v3186 = vmul.f32 1.0, %v3185
  %v3187 = vrcp.pop %v3102
  %v3188 = vmul.f32 1.0, %v3187
  %v3189 = vrcp.pop %v3103
  %v3190 = vmul.f32 1.0, %v3189
  %v3191 = vrcp.pop %v3104
  %v3192 = vmul.f32 1.0, %v3191
  %v3193 = vrcp.pop %v3105
  %v3194 = vmul.f32 1.0, %v3193
  %v3195 = vrcp.pop %v3106
  %v3196 = vmul.f32 1.0, %v3195
  %v3197 = vrcp.pop %v3107
  %v3198 = vmul.f32 1.0, %v3197
  %v3199 = vrcp.pop %v3108
  %v3200 = vmul.f32 1.0, %v3199
  %v3201 = vrcp.pop %v3109
  %v3202 = vmul.f32 1.0, %v3201
  %v3203 = vrcp.pop %v3110
  %v3204 = vmul.f32 1.0, %v3203
  %v3205 = vrcp.pop %v3111
  %v3206 = vmul.f32 1.0, %v3205
  %v3207 = vrcp.pop %v3112
  %v3208 = vmul.f32 1.0, %v3207
  %v3209 = vrcp.pop %v3113
  %v3210 = vmul.f32 1.0, %v3209
  %v3211 = vrcp.pop %v3114
  %v3212 = vmul.f32 1.0, %v3211
  %v3213 = vrcp.pop %v3115
  %v3214 = vmul.f32 1.0, %v3213
  %v3215 = vrcp.pop %v3116
  %v3216 = vmul.f32 1.0, %v3215
  %v3217 = vrcp.pop %v3117
  %v3218 = vmul.f32 1.0, %v3217
  %v3219 = vrcp.pop %v3118
  %v3220 = vmul.f32 1.0, %v3219
  %v3221 = vrcp.pop %v3119
  %v3222 = vmul.f32 1.0, %v3221
  %v3223 = vrcp.pop %v3120
  %v3224 = vmul.f32 1.0, %v3223
  %v3225 = vrcp.pop %v3121
  %v3226 = vmul.f32 1.0, %v3225
  %v3227 = vrcp.pop %v3122
  %v3228 = vmul.f32 1.0, %v3227
  %v3229 = vrcp.pop %v3123
  %v3230 = vmul.f32 1.0, %v3229
  %v3231 = vrcp.pop %v3124
  %v3232 = vmul.f32 1.0, %v3231
  %v3233 = vrcp.pop %v3125
  %v3234 = vmul.f32 1.0, %v3233
  %v3235 = vrcp.pop %v3126
  %v3236 = vmul.f32 1.0, %v3235
  %v3237 = vrcp.pop %v3127
  %v3238 = vmul.f32 1.0, %v3237
  %v3239 = vrcp.pop %v3128
  %v3240 = vmul.f32 1.0, %v3239
  %v3241 = vrcp.pop %v3129
  %v3242 = vmul.f32 1.0, %v3241
  %v3243 = vrcp.pop %v3130
  %v3244 = vmul.f32 1.0, %v3243
  %v3245 = vrcp.pop %v3131
  %v3246 = vmul.f32 1.0, %v3245
  %v3247 = vrcp.pop %v3132
  %v3248 = vmul.f32 1.0, %v3247
  %v3249 = vrcp.pop %v3133
  %v3250 = vmul.f32 1.0, %v3249
  %v3251 = vrcp.pop %v3134
  %v3252 = vmul.f32 1.0, %v3251
  %v3253 = vrcp.pop %v3135
  %v3254 = vmul.f32 1.0, %v3253
  %v3255 = vrcp.pop %v3136
  %v3256 = vmul.f32 1.0, %v3255
  %v3257 = vrcp.pop %v3137
  %v3258 = vmul.f32 1.0, %v3257
  %v3259 = vrcp.pop %v3138
  %v3260 = vmul.f32 1.0, %v3259
  %v3261 = vrcp.pop %v3139
  %v3262 = vmul.f32 1.0, %v3261
  %v3263 = vrcp.pop %v3140
  %v3264 = vmul.f32 1.0, %v3263
  %v3265 = vrcp.pop %v3141
  %v3266 = vmul.f32 1.0, %v3265
  %v3267 = vrcp.pop %v3142
  %v3268 = vmul.f32 1.0, %v3267
  %v3269 = vrcp.pop %v3143
  %v3270 = vmul.f32 1.0, %v3269
  %v3271 = vrcp.pop %v3144
  %v3272 = vmul.f32 1.0, %v3271
  %v3273 = vmul.f32 %v2825, %v3146
  %v3274 = vmul.f32 %v2826, %v3148
  %v3275 = vmul.f32 %v2827, %v3150
  %v3276 = vmul.f32 %v2828, %v3152
  %v3277 = vmul.f32 %v2829, %v3154
  %v3278 = vmul.f32 %v2830, %v3156
  %v3279 = vmul.f32 %v2831, %v3158
  %v3280 = vmul.f32 %v2832, %v3160
  %v3281 = vmul.f32 %v2833, %v3162
  %v3282 = vmul.f32 %v2834, %v3164
  %v3283 = vmul.f32 %v2835, %v3166
  %v3284 = vmul.f32 %v2836, %v3168
  %v3285 = vmul.f32 %v2837, %v3170
  %v3286 = vmul.f32 %v2838, %v3172
  %v3287 = vmul.f32 %v2839, %v3174
  %v3288 = vmul.f32 %v2840, %v3176
  %v3289 = vmul.f32 %v2841, %v3178
  %v3290 = vmul.f32 %v2842, %v3180
  %v3291 = vmul.f32 %v2843, %v3182
  %v3292 = vmul.f32 %v2844, %v3184
  %v3293 = vmul.f32 %v2845, %v3186
  %v3294 = vmul.f32 %v2846, %v3188
  %v3295 = vmul.f32 %v2847, %v3190
  %v3296 = vmul.f32 %v2848, %v3192
  %v3297 = vmul.f32 %v2849, %v3194
  %v3298 = vmul.f32 %v2850, %v3196
  %v3299 = vmul.f32 %v2851, %v3198
  %v3300 = vmul.f32 %v2852, %v3200
  %v3301 = vmul.f32 %v2853, %v3202
  %v3302 = vmul.f32 %v2854, %v3204
  %v3303 = vmul.f32 %v2855, %v3206
  %v3304 = vmul.f32 %v2856, %v3208
  %v3305 = vmul.f32 %v2857, %v3210
  %v3306 = vmul.f32 %v2858, %v3212
  %v3307 = vmul.f32 %v2859, %v3214
  %v3308 = vmul.f32 %v2860, %v3216
  %v3309 = vmul.f32 %v2861, %v3218
  %v3310 = vmul.f32 %v2862, %v3220
  %v3311 = vmul.f32 %v2863, %v3222
  %v3312 = vmul.f32 %v2864, %v3224
  %v3313 = vmul.f32 %v2865, %v3226
  %v3314 = vmul.f32 %v2866, %v3228
  %v3315 = vmul.f32 %v2867, %v3230
  %v3316 = vmul.f32 %v2868, %v3232
  %v3317 = vmul.f32 %v2869, %v3234
  %v3318 = vmul.f32 %v2870, %v3236
  %v3319 = vmul.f32 %v2871, %v3238
  %v3320 = vmul.f32 %v2872, %v3240
  %v3321 = vmul.f32 %v2873, %v3242
  %v3322 = vmul.f32 %v2874, %v3244
  %v3323 = vmul.f32 %v2875, %v3246
  %v3324 = vmul.f32 %v2876, %v3248
  %v3325 = vmul.f32 %v2877, %v3250
  %v3326 = vmul.f32 %v2878, %v3252
  %v3327 = vmul.f32 %v2879, %v3254
  %v3328 = vmul.f32 %v2880, %v3256
  %v3329 = vmul.f32 %v2881, %v3258
  %v3330 = vmul.f32 %v2882, %v3260
  %v3331 = vmul.f32 %v2883, %v3262
  %v3332 = vmul.f32 %v2884, %v3264
  %v3333 = vmul.f32 %v2885, %v3266
  %v3334 = vmul.f32 %v2886, %v3268
  %v3335 = vmul.f32 %v2887, %v3270
  %v3336 = vmul.f32 %v2888, %v3272
  %vm3337 = vcmask 64512
  %3338 = vst.msk [vmem:[%s10] sm:$0xff] %vm3337, %v3273
  %3339 = vst.msk [vmem:[%s10 + $0x8] sm:$0xff] %vm3337, %v3274
  %3340 = vst.msk [vmem:[%s10 + $0x10] sm:$0xff] %vm3337, %v3275
  %3341 = vst.msk [vmem:[%s10 + $0x18] sm:$0xff] %vm3337, %v3276
  %3342 = vst.msk [vmem:[%s10 + $0x20] sm:$0xff] %vm3337, %v3277
  %3343 = vst.msk [vmem:[%s10 + $0x28] sm:$0xff] %vm3337, %v3278
  %3344 = vst.msk [vmem:[%s10 + $0x30] sm:$0xff] %vm3337, %v3279
  %3345 = vst.msk [vmem:[%s10 + $0x38] sm:$0xff] %vm3337, %v3280
  %3346 = vst.msk [vmem:[%s10 + $0x40] sm:$0xff] %vm3337, %v3281
  %3347 = vst.msk [vmem:[%s10 + $0x48] sm:$0xff] %vm3337, %v3282
  %3348 = vst.msk [vmem:[%s10 + $0x50] sm:$0xff] %vm3337, %v3283
  %3349 = vst.msk [vmem:[%s10 + $0x58] sm:$0xff] %vm3337, %v3284
  %3350 = vst.msk [vmem:[%s10 + $0x60] sm:$0xff] %vm3337, %v3285
  %3351 = vst.msk [vmem:[%s10 + $0x68] sm:$0xff] %vm3337, %v3286
  %3352 = vst.msk [vmem:[%s10 + $0x70] sm:$0xff] %vm3337, %v3287
  %3353 = vst.msk [vmem:[%s10 + $0x78] sm:$0xff] %vm3337, %v3288
  %3354 = vst.msk [vmem:[%s10 + $0x80] sm:$0xff] %vm3337, %v3289
  %3355 = vst.msk [vmem:[%s10 + $0x88] sm:$0xff] %vm3337, %v3290
  %3356 = vst.msk [vmem:[%s10 + $0x90] sm:$0xff] %vm3337, %v3291
  %3357 = vst.msk [vmem:[%s10 + $0x98] sm:$0xff] %vm3337, %v3292
  %3358 = vst.msk [vmem:[%s10 + $0xa0] sm:$0xff] %vm3337, %v3293
  %3359 = vst.msk [vmem:[%s10 + $0xa8] sm:$0xff] %vm3337, %v3294
  %3360 = vst.msk [vmem:[%s10 + $0xb0] sm:$0xff] %vm3337, %v3295
  %3361 = vst.msk [vmem:[%s10 + $0xb8] sm:$0xff] %vm3337, %v3296
  %3362 = vst.msk [vmem:[%s10 + $0xc0] sm:$0xff] %vm3337, %v3297
  %3363 = vst.msk [vmem:[%s10 + $0xc8] sm:$0xff] %vm3337, %v3298
  %3364 = vst.msk [vmem:[%s10 + $0xd0] sm:$0xff] %vm3337, %v3299
  %3365 = vst.msk [vmem:[%s10 + $0xd8] sm:$0xff] %vm3337, %v3300
  %3366 = vst.msk [vmem:[%s10 + $0xe0] sm:$0xff] %vm3337, %v3301
  %3367 = vst.msk [vmem:[%s10 + $0xe8] sm:$0xff] %vm3337, %v3302
  %3368 = vst.msk [vmem:[%s10 + $0xf0] sm:$0xff] %vm3337, %v3303
  %3369 = vst.msk [vmem:[%s10 + $0xf8] sm:$0xff] %vm3337, %v3304
  %3370 = vst.msk [vmem:[%s10 + $0x100] sm:$0xff] %vm3337, %v3305
  %3371 = vst.msk [vmem:[%s10 + $0x108] sm:$0xff] %vm3337, %v3306
  %3372 = vst.msk [vmem:[%s10 + $0x110] sm:$0xff] %vm3337, %v3307
  %3373 = vst.msk [vmem:[%s10 + $0x118] sm:$0xff] %vm3337, %v3308
  %3374 = vst.msk [vmem:[%s10 + $0x120] sm:$0xff] %vm3337, %v3309
  %3375 = vst.msk [vmem:[%s10 + $0x128] sm:$0xff] %vm3337, %v3310
  %3376 = vst.msk [vmem:[%s10 + $0x130] sm:$0xff] %vm3337, %v3311
  %3377 = vst.msk [vmem:[%s10 + $0x138] sm:$0xff] %vm3337, %v3312
  %3378 = vst.msk [vmem:[%s10 + $0x140] sm:$0xff] %vm3337, %v3313
  %3379 = vst.msk [vmem:[%s10 + $0x148] sm:$0xff] %vm3337, %v3314
  %3380 = vst.msk [vmem:[%s10 + $0x150] sm:$0xff] %vm3337, %v3315
  %3381 = vst.msk [vmem:[%s10 + $0x158] sm:$0xff] %vm3337, %v3316
  %3382 = vst.msk [vmem:[%s10 + $0x160] sm:$0xff] %vm3337, %v3317
  %3383 = vst.msk [vmem:[%s10 + $0x168] sm:$0xff] %vm3337, %v3318
  %3384 = vst.msk [vmem:[%s10 + $0x170] sm:$0xff] %vm3337, %v3319
  %3385 = vst.msk [vmem:[%s10 + $0x178] sm:$0xff] %vm3337, %v3320
  %3386 = vst.msk [vmem:[%s10 + $0x180] sm:$0xff] %vm3337, %v3321
  %3387 = vst.msk [vmem:[%s10 + $0x188] sm:$0xff] %vm3337, %v3322
  %3388 = vst.msk [vmem:[%s10 + $0x190] sm:$0xff] %vm3337, %v3323
  %3389 = vst.msk [vmem:[%s10 + $0x198] sm:$0xff] %vm3337, %v3324
  %3390 = vst.msk [vmem:[%s10 + $0x1a0] sm:$0xff] %vm3337, %v3325
  %3391 = vst.msk [vmem:[%s10 + $0x1a8] sm:$0xff] %vm3337, %v3326
  %3392 = vst.msk [vmem:[%s10 + $0x1b0] sm:$0xff] %vm3337, %v3327
  %3393 = vst.msk [vmem:[%s10 + $0x1b8] sm:$0xff] %vm3337, %v3328
  %3394 = vst.msk [vmem:[%s10 + $0x1c0] sm:$0xff] %vm3337, %v3329
  %3395 = vst.msk [vmem:[%s10 + $0x1c8] sm:$0xff] %vm3337, %v3330
  %3396 = vst.msk [vmem:[%s10 + $0x1d0] sm:$0xff] %vm3337, %v3331
  %3397 = vst.msk [vmem:[%s10 + $0x1d8] sm:$0xff] %vm3337, %v3332
  %3398 = vst.msk [vmem:[%s10 + $0x1e0] sm:$0xff] %vm3337, %v3333
  %3399 = vst.msk [vmem:[%s10 + $0x1e8] sm:$0xff] %vm3337, %v3334
  %3400 = vst.msk [vmem:[%s10 + $0x1f0] sm:$0xff] %vm3337, %v3335
  %3401 = vst.msk [vmem:[%s10 + $0x1f8] sm:$0xff] %vm3337, %v3336
  // Predicated region
  $region42: #{c2f_forward.9} parent=0 // pred_check
    _
  $region43: #{c2f_forward.9} parent=0 // pred_check_branch
    %3403 = sbr.rel (0) target = $region45
  $region44: #{c2f_forward.9} parent=0 // pred_region
    _
  $region45: #{c2f_forward.9} parent=0 // pred_fallthru
    _
  // Predicated region
  $region46: #{c2f_forward.9} parent=0 // pred_check
    _
  $region47: #{c2f_forward.9} parent=0 // pred_check_branch
    %3405 = sbr.rel (0) target = $region49
  $region48: #{c2f_forward.9} parent=0 // pred_region
    _
  $region49: #{c2f_forward.9} parent=0 // pred_fallthru
    _

</llo_original>
